<compile_context>
chip_gen: v5e
topology: v5e:2x2
jax: 0.10.0
libtpu: 0.0.40
codegen_flags: <defaults>
</compile_context>

<pallas_src>
import functools
import math

import jax
import jax.numpy as jnp
from jax import lax
from jax.experimental import pallas as pl
from jax.experimental.pallas import tpu as pltpu

EPS = 1e-5                       # nn.InstanceNorm3d default eps
_VMEM_LIMIT = 48 * 1024 * 1024   # fits v5e/v6e (128 MiB phys) and v7x (64 MiB phys)


def _cdiv(a, b):
    return -(-a // b)


def _round_up(a, m):
    return _cdiv(a, m) * m


# ---------------------------------------------------------------------------
# In-kernel helpers
# ---------------------------------------------------------------------------
def _conv_taps(slab, w_ref, b_ref, offsets, ts):
    """Shifted-tap conv:  sum_t  W_t(Cp,Cin) @ slab[:, ofs_t:ofs_t+ts]  -> bias -> ReLU."""
    acc = None
    for t, ofs in enumerate(offsets):
        xt = slab[:, ofs:ofs + ts]                                   # (Cin, TS) bf16
        d = jnp.dot(w_ref[t], xt, preferred_element_type=jnp.float32)
        acc = d if acc is None else acc + d
    return jnp.maximum(acc + b_ref[...], 0.0)                        # (Cp, TS) f32


def _conv_1x1(slab, w_ref, b_ref, center, ts):
    xt = slab[:, center:center + ts]                                 # (Cin, TS) bf16
    y = jnp.dot(w_ref[...], xt, preferred_element_type=jnp.float32)
    return jnp.maximum(y + b_ref[...], 0.0)                          # (Cp, TS) f32


def _build_slab(x_refs):
    if len(x_refs) == 1:
        return x_refs[0][...]
    return jnp.concatenate([r[...] for r in x_refs], axis=1)


# ---------------------------------------------------------------------------
# Pass 1: per-(batch, channel) sum / sum-of-squares of post-ReLU conv outputs
# ---------------------------------------------------------------------------
def _stats_kernel(*refs, n_copies, ts, offsets, center, has_res):
    xs = refs[:n_copies]
    mask_ref = refs[n_copies]
    wm_ref = refs[n_copies + 1]
    bm_ref = refs[n_copies + 2]
    i = n_copies + 3
    if has_res:
        wr_ref, br_ref = refs[i], refs[i + 1]
        i += 2
    stats_ref = refs[i]

    s = pl.program_id(1)
    slab = _build_slab(xs)                                           # (Cin, n_copies*TS)
    m = mask_ref[...]                                                # (1, TS) f32

    ym = _conv_taps(slab, wm_ref, bm_ref, offsets, ts)               # (Cp, TS)
    pieces = [jnp.sum(ym * m, axis=1, keepdims=True),
              jnp.sum(ym * ym * m, axis=1, keepdims=True)]
    if has_res:
        yr = _conv_1x1(slab, wr_ref, br_ref, center, ts)
        pieces += [jnp.sum(yr * m, axis=1, keepdims=True),
                   jnp.sum(yr * yr * m, axis=1, keepdims=True)]
    upd = jnp.concatenate(pieces, axis=1)                            # (Cp, 2|4)

    @pl.when(s == 0)
    def _init():
        stats_ref[...] = jnp.zeros_like(stats_ref)

    stats_ref[...] += upd


# ---------------------------------------------------------------------------
# Pass 2: recompute convs, apply folded InstanceNorm+SE scale/shift, add residual
# ---------------------------------------------------------------------------
def _apply_kernel(*refs, n_copies, ts, offsets, center, has_res, c_out):
    xs = refs[:n_copies]
    wm_ref = refs[n_copies]
    bm_ref = refs[n_copies + 1]
    i = n_copies + 2
    if has_res:
        wr_ref, br_ref = refs[i], refs[i + 1]
        i += 2
    amod_ref = refs[i]
    out_ref = refs[i + 1]

    slab = _build_slab(xs)
    ym = _conv_taps(slab, wm_ref, bm_ref, offsets, ts)               # (Cp, TS)
    a = amod_ref[...]                                                # (Cp, 2|4)
    out = a[:, 0:1] * ym + a[:, 1:2]
    if has_res:
        yr = _conv_1x1(slab, wr_ref, br_ref, center, ts)
        out = out + a[:, 2:3] * yr + a[:, 3:4]
        out = out[:c_out]
    else:
        # identity residual (Cin == Cout): add the centre tap of x back.
        out = out[:c_out] + slab[:, center:center + ts].astype(jnp.float32)
    out_ref[...] = out.astype(out_ref.dtype)


# ---------------------------------------------------------------------------
# BlockSpec builders
# ---------------------------------------------------------------------------
def _x_specs(c_in, ts, n_s, n_copies):
    """1 + n_extra copies of the flat input; copy j reads block min(s+j, nS-1)."""
    specs = []
    for j in range(n_copies):
        def imap(b, s, _j=j):
            return (b, 0, jnp.minimum(s + _j, n_s - 1))
        specs.append(pl.BlockSpec((pl.Squeezed(), c_in, ts), imap))
    return specs


def _full_spec(shape):
    n = len(shape)
    return pl.BlockSpec(shape, lambda b, s, _n=n: (0,) * _n)


# ---------------------------------------------------------------------------
# pallas_call wrappers
# ---------------------------------------------------------------------------
def _stats_pass(x_flat, mask, wm, bm, wr, br, *, grid, ts, n_s, n_copies,
                offsets, center, has_res, cp):
    B, c_in, _ = x_flat.shape
    nstat = 4 if has_res else 2
    in_specs = _x_specs(c_in, ts, n_s, n_copies) + [
        pl.BlockSpec((1, ts), lambda b, s: (0, s)),
        _full_spec(wm.shape),
        _full_spec(bm.shape),
    ]
    args = [x_flat] * n_copies + [mask, wm, bm]
    if has_res:
        in_specs += [_full_spec(wr.shape), _full_spec(br.shape)]
        args += [wr, br]

    n_taps = len(offsets) + (1 if has_res else 0)
    flops = 2.0 * B * n_s * ts * c_in * cp * n_taps
    bytes_acc = (B * n_s * n_copies * ts * c_in * x_flat.dtype.itemsize
                 + B * n_s * ts * 4 + B * cp * nstat * 4
                 + wm.size * 2 + bm.size * 4)

    kernel = functools.partial(_stats_kernel, n_copies=n_copies, ts=ts,
                               offsets=offsets, center=center, has_res=has_res)
    return pl.pallas_call(
        kernel,
        grid=grid,
        in_specs=in_specs,
        out_specs=pl.BlockSpec((pl.Squeezed(), cp, nstat), lambda b, s: (b, 0, 0)),
        out_shape=jax.ShapeDtypeStruct((B, cp, nstat), jnp.float32),
        compiler_params=pltpu.CompilerParams(
            dimension_semantics=("parallel", "arbitrary"),
            vmem_limit_bytes=_VMEM_LIMIT),
        cost_estimate=pl.CostEstimate(flops=int(flops), transcendentals=0,
                                      bytes_accessed=int(bytes_acc)),
    )(*args)


def _apply_pass(x_flat, wm, bm, wr, br, amod, *, grid, ts, n_s, n_copies,
                offsets, center, has_res, cp, c_out, s_tot):
    B, c_in, _ = x_flat.shape
    in_specs = _x_specs(c_in, ts, n_s, n_copies) + [
        _full_spec(wm.shape), _full_spec(bm.shape)]
    args = [x_flat] * n_copies + [wm, bm]
    if has_res:
        in_specs += [_full_spec(wr.shape), _full_spec(br.shape)]
        args += [wr, br]
    in_specs.append(pl.BlockSpec((pl.Squeezed(),) + amod.shape[1:],
                                 lambda b, s: (b, 0, 0)))
    args.append(amod)

    n_taps = len(offsets) + (1 if has_res else 0)
    flops = 2.0 * B * n_s * ts * c_in * cp * n_taps
    bytes_acc = (B * n_s * n_copies * ts * c_in * x_flat.dtype.itemsize
                 + B * s_tot * c_out * 4 + amod.size * 4
                 + wm.size * 2 + bm.size * 4)

    kernel = functools.partial(_apply_kernel, n_copies=n_copies, ts=ts,
                               offsets=offsets, center=center,
                               has_res=has_res, c_out=c_out)
    return pl.pallas_call(
        kernel,
        grid=grid,
        in_specs=in_specs,
        out_specs=pl.BlockSpec((pl.Squeezed(), c_out, ts), lambda b, s: (b, 0, s)),
        out_shape=jax.ShapeDtypeStruct((B, c_out, s_tot), jnp.float32),
        compiler_params=pltpu.CompilerParams(
            dimension_semantics=("parallel", "parallel"),
            vmem_limit_bytes=_VMEM_LIMIT),
        cost_estimate=pl.CostEstimate(flops=int(flops), transcendentals=0,
                                      bytes_accessed=int(bytes_acc)),
    )(*args)


# ---------------------------------------------------------------------------
# Tiny per-(batch, channel) finalisation: InstanceNorm stats + SE -> scale/shift
# ---------------------------------------------------------------------------
def _se_scale_shift(sum_c, ssq_c, count, p):
    mean = sum_c / count                                             # [B, Cout]
    var = jnp.maximum(ssq_c / count - mean * mean, 0.0)
    rstd = lax.rsqrt(var + EPS)
    hg = jax.nn.relu(mean @ p["g1w"].T + p["g1b"])
    gamma = jax.nn.sigmoid(hg @ p["g2w"].T + p["g2b"])
    ht = jax.nn.relu(mean @ p["t1w"].T + p["t1b"])
    beta = jnp.tanh(ht @ p["t2w"].T + p["t2b"])
    scale = gamma * rstd
    shift = beta - mean * scale
    return scale, shift


# ---------------------------------------------------------------------------
# Public forward: RESseNormConv3d
# ---------------------------------------------------------------------------
def res_se_norm_conv3d(x, params, kernel_size=3, padding=1, block_s=512):
    """x: [B, Cin, D, H, W] f32 -> [B, Cout, D, H, W] f32."""
    B, c_in, D, H, W = x.shape
    conv1 = params["conv1"]
    resp = params.get("res", None)
    has_res = resp is not None
    c_out = conv1["conv_w"].shape[0]
    k, p = kernel_size, padding
    if not has_res and c_in != c_out:
        raise ValueError("identity residual requires in_channels == out_channels")
    if D + 2 * p - k + 1 != D:
        raise ValueError("only size-preserving convs supported (k odd, p=(k-1)//2)")

    Dp, Hp, Wp = D + 2 * p, H + 2 * p, W + 2 * p
    hw = Hp * Wp
    sp = Dp * hw
    ts = _round_up(min(max(block_s, 128), max(sp, 128)), 128)
    n_s = _cdiv(sp, ts)
    s_tot = n_s * ts
    halo = (k - 1) * (hw + Wp + 1)                     # max shifted-tap offset
    n_copies = (1 + _cdiv(halo, ts)) if halo > 0 else 1
    center = p * (hw + Wp + 1)                         # offset of the original voxel
    cp = _round_up(c_out, 8)                           # sublane-aligned channel count
    offsets = tuple(kd * hw + kh * Wp + kw
                    for kd in range(k) for kh in range(k) for kw in range(k))

    # input: zero-pad spatially, flatten spatial, channels-as-sublanes, bf16
    xp = jnp.pad(x, ((0, 0), (0, 0), (p, p), (p, p), (p, p)))
    x_flat = xp.reshape(B, c_in, sp)
    x_flat = jnp.pad(x_flat, ((0, 0), (0, 0), (0, s_tot - sp))).astype(jnp.bfloat16)

    # validity mask over the flattened padded index space (pass-1 statistics only)
    idx = jnp.arange(s_tot, dtype=jnp.int32)
    d_ = idx // hw
    h_ = (idx % hw) // Wp
    w_ = idx % Wp
    mask = ((d_ < D) & (h_ < H) & (w_ < W)).astype(jnp.float32).reshape(1, s_tot)

    # weights: per-tap (Cp, Cin) matrices, channel-padded, bf16 for the MXU
    wm = jnp.transpose(conv1["conv_w"], (2, 3, 4, 0, 1)).reshape(k ** 3, c_out, c_in)
    wm = jnp.pad(wm, ((0, 0), (0, cp - c_out), (0, 0))).astype(jnp.bfloat16)
    bm = jnp.pad(conv1["conv_b"], (0, cp - c_out)).reshape(cp, 1).astype(jnp.float32)
    if has_res:
        wr = jnp.pad(resp["conv_w"].reshape(c_out, c_in),
                     ((0, cp - c_out), (0, 0))).astype(jnp.bfloat16)
        br = jnp.pad(resp["conv_b"], (0, cp - c_out)).reshape(cp, 1).astype(jnp.float32)
    else:
        wr = br = None

    common = dict(grid=(B, n_s), ts=ts, n_s=n_s, n_copies=n_copies,
                  offsets=offsets, center=center, has_res=has_res, cp=cp)

    # pass 1: accumulate sum / sum-of-squares of both branches
    stats = _stats_pass(x_flat, mask, wm, bm, wr, br, **common)      # [B, Cp, 2|4]

    # per-(batch, channel) InstanceNorm + SE folded into scale/shift (plain JAX glue)
    count = float(D * H * W)
    scale_m, shift_m = _se_scale_shift(stats[:, :c_out, 0], stats[:, :c_out, 1],
                                       count, conv1)
    cols = [scale_m, shift_m]
    if has_res:
        scale_r, shift_r = _se_scale_shift(stats[:, :c_out, 2], stats[:, :c_out, 3],
                                           count, resp)
        cols += [scale_r, shift_r]
    amod = jnp.stack(cols, axis=-1)                                  # [B, Cout, 2|4]
    amod = jnp.pad(amod, ((0, 0), (0, cp - c_out), (0, 0))).astype(jnp.float32)

    # pass 2: recompute convs, modulate, fuse residual, lane-dense (Cout, TS) stores
    out_flat = _apply_pass(x_flat, wm, bm, wr, br, amod, c_out=c_out,
                           s_tot=s_tot, **common)                    # [B, Cout, s_tot]

    # channels-first flat output reshapes straight back to NCDHW (slice, no transpose)
    out = out_flat[:, :, :sp].reshape(B, c_out, Dp, Hp, Wp)[:, :, :D, :H, :W]
    return out


# ---------------------------------------------------------------------------
# Deterministic parameter init (PyTorch conv-style uniform bounds)
# ---------------------------------------------------------------------------
def init_fssn_params(key, cin, cout, k, reduction=2):
    cr = max(cout // reduction, 1)
    ks = jax.random.split(key, 10)

    def u(k_, shape, fan_in):
        bound = 1.0 / math.sqrt(fan_in)
        return jax.random.uniform(k_, shape, jnp.float32, -bound, bound)

    return {
        "conv_w": u(ks[0], (cout, cin, k, k, k), cin * k ** 3),
        "conv_b": u(ks[1], (cout,), cin * k ** 3),
        "g1w": u(ks[2], (cr, cout), cout), "g1b": u(ks[3], (cr,), cout),
        "g2w": u(ks[4], (cout, cr), cr), "g2b": u(ks[5], (cout,), cr),
        "t1w": u(ks[6], (cr, cout), cout), "t1b": u(ks[7], (cr,), cout),
        "t2w": u(ks[8], (cout, cr), cr), "t2b": u(ks[9], (cout,), cr),
    }


# ---------------------------------------------------------------------------
# Pure-JAX reference (mirrors the PyTorch module).  quantize=True rounds the conv
# operands to bf16 so it matches the kernel's MXU dtype (tight tolerance check).
# ---------------------------------------------------------------------------
def _conv3d_ref(x, w, b, pad, quantize):
    if quantize:
        x = x.astype(jnp.bfloat16).astype(jnp.float32)
        w = w.astype(jnp.bfloat16).astype(jnp.float32)
    out = lax.conv_general_dilated(
        x, w, window_strides=(1, 1, 1), padding=[(pad, pad)] * 3,
        dimension_numbers=("NCDHW", "OIDHW", "NCDHW"))
    return out + b[None, :, None, None, None]


def _se_ref(y, w1, b1, w2, b2):
    B, C = y.shape[:2]
    m = jnp.mean(y.reshape(B, C, -1), axis=-1)
    h = jax.nn.relu(m @ w1.T + b1)
    return (h @ w2.T + b2)[:, :, None, None, None]


def _fssn_ref(x, p, pad, quantize):
    y = jax.nn.relu(_conv3d_ref(x, p["conv_w"], p["conv_b"], pad, quantize))
    gamma = jax.nn.sigmoid(_se_ref(y, p["g1w"], p["g1b"], p["g2w"], p["g2b"]))
    beta = jnp.tanh(_se_ref(y, p["t1w"], p["t1b"], p["t2w"], p["t2b"]))
    mean = jnp.mean(y, axis=(2, 3, 4), keepdims=True)
    var = jnp.mean((y - mean) ** 2, axis=(2, 3, 4), keepdims=True)
    return gamma * (y - mean) / jnp.sqrt(var + EPS) + beta


def _res_ref(x, params, padding=1, quantize=False):
    if params["res"] is not None:
        r = _fssn_ref(x, params["res"], 0, quantize)
    else:
        r = x.astype(jnp.bfloat16).astype(jnp.float32) if quantize else x
    return _fssn_ref(x, params["conv1"], padding, quantize) + r


# ---------------------------------------------------------------------------
if __name__ == "__main__":
    B, Cin, Cout, D, H, W = 2, 4, 8, 8, 8, 8
    key = jax.random.PRNGKey(0)
    kx, k1, k2, kx2 = jax.random.split(key, 4)

    fwd = jax.jit(functools.partial(res_se_norm_conv3d, kernel_size=3, padding=1))

    # case 1: in_channels != out_channels  ->  fused 1x1x1 res-conv branch
    x = jax.random.normal(kx, (B, Cin, D, H, W), jnp.float32)
    params = {"conv1": init_fssn_params(k1, Cin, Cout, 3),
              "res": init_fssn_params(k2, Cin, Cout, 1)}
    out = jax.block_until_ready(fwd(x, params))
    assert out.shape == (B, Cout, D, H, W)

    ref_q = _res_ref(x, params, quantize=True)    # matches kernel's bf16 matmul inputs
    ref_f = _res_ref(x, params, quantize=False)   # full-f32 PyTorch semantics
    err_q = float(jnp.max(jnp.abs(out - ref_q)))
    err_f = float(jnp.max(jnp.abs(out - ref_f)))
    assert jnp.allclose(out, ref_q, atol=3e-3, rtol=3e-3), err_q
    assert jnp.allclose(out, ref_f, atol=6e-2, rtol=6e-2), err_f

    # case 2: in_channels == out_channels  ->  identity residual
    x2 = jax.random.normal(kx2, (B, Cout, D, H, W), jnp.float32)
    params2 = {"conv1": init_fssn_params(k1, Cout, Cout, 3), "res": None}
    out2 = jax.block_until_ready(fwd(x2, params2))
    ref2 = _res_ref(x2, params2, quantize=True)
    err2 = float(jnp.max(jnp.abs(out2 - ref2)))
    assert out2.shape == (B, Cout, D, H, W)
    assert jnp.allclose(out2, ref2, atol=3e-3, rtol=3e-3), err2

    print("KERNEL_OK")
</pallas_src>

<mosaic_0001>
module attributes {stable_mosaic.version = 11 : i64} {
  func.func @_stats_kernel(%arg0: i32, %arg1: i32, %arg2: memref<1x4x512xbf16, #tpu.memory_space<vmem>>, %arg3: memref<1x4x512xbf16, #tpu.memory_space<vmem>>, %arg4: memref<1x512xf32, #tpu.memory_space<vmem>>, %arg5: memref<27x8x4xbf16, #tpu.memory_space<vmem>>, %arg6: memref<8x1xf32, #tpu.memory_space<vmem>>, %arg7: memref<8x4xbf16, #tpu.memory_space<vmem>>, %arg8: memref<8x1xf32, #tpu.memory_space<vmem>>, %arg9: memref<1x8x4xf32, #tpu.memory_space<vmem>>) attributes {dimension_semantics = [#tpu.dimension_semantics<parallel>, #tpu.dimension_semantics<arbitrary>], iteration_bounds = array<i64: 2, 2>, scalar_prefetch = 0 : i64, scratch_operands = 0 : i64, tpu.core_type = #tpu.core_type<tc>, window_params = [{transform_indices = @transform_0, window_bounds = array<i64: 1, 4, 512>}, {transform_indices = @transform_1, window_bounds = array<i64: 1, 4, 512>}, {transform_indices = @transform_2, window_bounds = array<i64: 1, 512>}, {pipeline_mode = #tpu.pipeline_mode<synchronous>, transform_indices = @transform_3, window_bounds = array<i64: 27, 8, 4>}, {pipeline_mode = #tpu.pipeline_mode<synchronous>, transform_indices = @transform_4, window_bounds = array<i64: 8, 1>}, {pipeline_mode = #tpu.pipeline_mode<synchronous>, transform_indices = @transform_5, window_bounds = array<i64: 8, 4>}, {pipeline_mode = #tpu.pipeline_mode<synchronous>, transform_indices = @transform_6, window_bounds = array<i64: 8, 1>}, {transform_indices = @transform_7, window_bounds = array<i64: 1, 8, 4>}]} {
    %c0 = arith.constant 0 : index
    %c0_0 = arith.constant 0 : index
    %c0_1 = arith.constant 0 : index
    %0 = vector.load %arg2[%c0, %c0_0, %c0_1] : memref<1x4x512xbf16, #tpu.memory_space<vmem>>, vector<1x4x512xbf16>
    %1 = vector.shape_cast %0 : vector<1x4x512xbf16> to vector<4x512xbf16>
    %c0_2 = arith.constant 0 : index
    %c0_3 = arith.constant 0 : index
    %c0_4 = arith.constant 0 : index
    %2 = vector.load %arg3[%c0_2, %c0_3, %c0_4] : memref<1x4x512xbf16, #tpu.memory_space<vmem>>, vector<1x4x512xbf16>
    %3 = vector.shape_cast %2 : vector<1x4x512xbf16> to vector<4x512xbf16>
    %4 = tpu.concatenate %1, %3 in 1 : vector<4x512xbf16>, vector<4x512xbf16> -> vector<4x1024xbf16>
    %c0_5 = arith.constant 0 : index
    %c0_6 = arith.constant 0 : index
    %5 = vector.load %arg4[%c0_5, %c0_6] : memref<1x512xf32, #tpu.memory_space<vmem>>, vector<1x512xf32>
    %6 = vector.extract_strided_slice %4 {offsets = [0, 0], sizes = [4, 512], strides = [1, 1]} : vector<4x1024xbf16> to vector<4x512xbf16>
    %c0_7 = arith.constant 0 : index
    %c0_8 = arith.constant 0 : index
    %c0_9 = arith.constant 0 : index
    %7 = vector.load %arg5[%c0_7, %c0_8, %c0_9] : memref<27x8x4xbf16, #tpu.memory_space<vmem>>, vector<1x8x4xbf16>
    %8 = vector.shape_cast %7 : vector<1x8x4xbf16> to vector<8x4xbf16>
    %cst = arith.constant dense<0.000000e+00> : vector<8x512xf32>
    %9 = tpu.matmul %8, %6, %cst {dimension_numbers = #tpu.dot_dimension_numbers<[1], [0], [0], [1], [0, 0, 1, 1], [], []>} : vector<8x4xbf16>, vector<4x512xbf16>, vector<8x512xf32> -> vector<8x512xf32>
    %10 = vector.extract_strided_slice %4 {offsets = [0, 1], sizes = [4, 512], strides = [1, 1]} : vector<4x1024xbf16> to vector<4x512xbf16>
    %c1 = arith.constant 1 : index
    %c0_10 = arith.constant 0 : index
    %c0_11 = arith.constant 0 : index
    %11 = vector.load %arg5[%c1, %c0_10, %c0_11] : memref<27x8x4xbf16, #tpu.memory_space<vmem>>, vector<1x8x4xbf16>
    %12 = vector.shape_cast %11 : vector<1x8x4xbf16> to vector<8x4xbf16>
    %cst_12 = arith.constant dense<0.000000e+00> : vector<8x512xf32>
    %13 = tpu.matmul %12, %10, %cst_12 {dimension_numbers = #tpu.dot_dimension_numbers<[1], [0], [0], [1], [0, 0, 1, 1], [], []>} : vector<8x4xbf16>, vector<4x512xbf16>, vector<8x512xf32> -> vector<8x512xf32>
    %14 = arith.addf %9, %13 : vector<8x512xf32>
    %15 = vector.extract_strided_slice %4 {offsets = [0, 2], sizes = [4, 512], strides = [1, 1]} : vector<4x1024xbf16> to vector<4x512xbf16>
    %c2 = arith.constant 2 : index
    %c0_13 = arith.constant 0 : index
    %c0_14 = arith.constant 0 : index
    %16 = vector.load %arg5[%c2, %c0_13, %c0_14] : memref<27x8x4xbf16, #tpu.memory_space<vmem>>, vector<1x8x4xbf16>
    %17 = vector.shape_cast %16 : vector<1x8x4xbf16> to vector<8x4xbf16>
    %cst_15 = arith.constant dense<0.000000e+00> : vector<8x512xf32>
    %18 = tpu.matmul %17, %15, %cst_15 {dimension_numbers = #tpu.dot_dimension_numbers<[1], [0], [0], [1], [0, 0, 1, 1], [], []>} : vector<8x4xbf16>, vector<4x512xbf16>, vector<8x512xf32> -> vector<8x512xf32>
    %19 = arith.addf %14, %18 : vector<8x512xf32>
    %20 = vector.extract_strided_slice %4 {offsets = [0, 10], sizes = [4, 512], strides = [1, 1]} : vector<4x1024xbf16> to vector<4x512xbf16>
    %c3 = arith.constant 3 : index
    %c0_16 = arith.constant 0 : index
    %c0_17 = arith.constant 0 : index
    %21 = vector.load %arg5[%c3, %c0_16, %c0_17] : memref<27x8x4xbf16, #tpu.memory_space<vmem>>, vector<1x8x4xbf16>
    %22 = vector.shape_cast %21 : vector<1x8x4xbf16> to vector<8x4xbf16>
    %cst_18 = arith.constant dense<0.000000e+00> : vector<8x512xf32>
    %23 = tpu.matmul %22, %20, %cst_18 {dimension_numbers = #tpu.dot_dimension_numbers<[1], [0], [0], [1], [0, 0, 1, 1], [], []>} : vector<8x4xbf16>, vector<4x512xbf16>, vector<8x512xf32> -> vector<8x512xf32>
    %24 = arith.addf %19, %23 : vector<8x512xf32>
    %25 = vector.extract_strided_slice %4 {offsets = [0, 11], sizes = [4, 512], strides = [1, 1]} : vector<4x1024xbf16> to vector<4x512xbf16>
    %c4 = arith.constant 4 : index
    %c0_19 = arith.constant 0 : index
    %c0_20 = arith.constant 0 : index
    %26 = vector.load %arg5[%c4, %c0_19, %c0_20] : memref<27x8x4xbf16, #tpu.memory_space<vmem>>, vector<1x8x4xbf16>
    %27 = vector.shape_cast %26 : vector<1x8x4xbf16> to vector<8x4xbf16>
    %cst_21 = arith.constant dense<0.000000e+00> : vector<8x512xf32>
    %28 = tpu.matmul %27, %25, %cst_21 {dimension_numbers = #tpu.dot_dimension_numbers<[1], [0], [0], [1], [0, 0, 1, 1], [], []>} : vector<8x4xbf16>, vector<4x512xbf16>, vector<8x512xf32> -> vector<8x512xf32>
    %29 = arith.addf %24, %28 : vector<8x512xf32>
    %30 = vector.extract_strided_slice %4 {offsets = [0, 12], sizes = [4, 512], strides = [1, 1]} : vector<4x1024xbf16> to vector<4x512xbf16>
    %c5 = arith.constant 5 : index
    %c0_22 = arith.constant 0 : index
    %c0_23 = arith.constant 0 : index
    %31 = vector.load %arg5[%c5, %c0_22, %c0_23] : memref<27x8x4xbf16, #tpu.memory_space<vmem>>, vector<1x8x4xbf16>
    %32 = vector.shape_cast %31 : vector<1x8x4xbf16> to vector<8x4xbf16>
    %cst_24 = arith.constant dense<0.000000e+00> : vector<8x512xf32>
    %33 = tpu.matmul %32, %30, %cst_24 {dimension_numbers = #tpu.dot_dimension_numbers<[1], [0], [0], [1], [0, 0, 1, 1], [], []>} : vector<8x4xbf16>, vector<4x512xbf16>, vector<8x512xf32> -> vector<8x512xf32>
    %34 = arith.addf %29, %33 : vector<8x512xf32>
    %35 = vector.extract_strided_slice %4 {offsets = [0, 20], sizes = [4, 512], strides = [1, 1]} : vector<4x1024xbf16> to vector<4x512xbf16>
    %c6 = arith.constant 6 : index
    %c0_25 = arith.constant 0 : index
    %c0_26 = arith.constant 0 : index
    %36 = vector.load %arg5[%c6, %c0_25, %c0_26] : memref<27x8x4xbf16, #tpu.memory_space<vmem>>, vector<1x8x4xbf16>
    %37 = vector.shape_cast %36 : vector<1x8x4xbf16> to vector<8x4xbf16>
    %cst_27 = arith.constant dense<0.000000e+00> : vector<8x512xf32>
    %38 = tpu.matmul %37, %35, %cst_27 {dimension_numbers = #tpu.dot_dimension_numbers<[1], [0], [0], [1], [0, 0, 1, 1], [], []>} : vector<8x4xbf16>, vector<4x512xbf16>, vector<8x512xf32> -> vector<8x512xf32>
    %39 = arith.addf %34, %38 : vector<8x512xf32>
    %40 = vector.extract_strided_slice %4 {offsets = [0, 21], sizes = [4, 512], strides = [1, 1]} : vector<4x1024xbf16> to vector<4x512xbf16>
    %c7 = arith.constant 7 : index
    %c0_28 = arith.constant 0 : index
    %c0_29 = arith.constant 0 : index
    %41 = vector.load %arg5[%c7, %c0_28, %c0_29] : memref<27x8x4xbf16, #tpu.memory_space<vmem>>, vector<1x8x4xbf16>
    %42 = vector.shape_cast %41 : vector<1x8x4xbf16> to vector<8x4xbf16>
    %cst_30 = arith.constant dense<0.000000e+00> : vector<8x512xf32>
    %43 = tpu.matmul %42, %40, %cst_30 {dimension_numbers = #tpu.dot_dimension_numbers<[1], [0], [0], [1], [0, 0, 1, 1], [], []>} : vector<8x4xbf16>, vector<4x512xbf16>, vector<8x512xf32> -> vector<8x512xf32>
    %44 = arith.addf %39, %43 : vector<8x512xf32>
    %45 = vector.extract_strided_slice %4 {offsets = [0, 22], sizes = [4, 512], strides = [1, 1]} : vector<4x1024xbf16> to vector<4x512xbf16>
    %c8 = arith.constant 8 : index
    %c0_31 = arith.constant 0 : index
    %c0_32 = arith.constant 0 : index
    %46 = vector.load %arg5[%c8, %c0_31, %c0_32] : memref<27x8x4xbf16, #tpu.memory_space<vmem>>, vector<1x8x4xbf16>
    %47 = vector.shape_cast %46 : vector<1x8x4xbf16> to vector<8x4xbf16>
    %cst_33 = arith.constant dense<0.000000e+00> : vector<8x512xf32>
    %48 = tpu.matmul %47, %45, %cst_33 {dimension_numbers = #tpu.dot_dimension_numbers<[1], [0], [0], [1], [0, 0, 1, 1], [], []>} : vector<8x4xbf16>, vector<4x512xbf16>, vector<8x512xf32> -> vector<8x512xf32>
    %49 = arith.addf %44, %48 : vector<8x512xf32>
    %50 = vector.extract_strided_slice %4 {offsets = [0, 100], sizes = [4, 512], strides = [1, 1]} : vector<4x1024xbf16> to vector<4x512xbf16>
    %c9 = arith.constant 9 : index
    %c0_34 = arith.constant 0 : index
    %c0_35 = arith.constant 0 : index
    %51 = vector.load %arg5[%c9, %c0_34, %c0_35] : memref<27x8x4xbf16, #tpu.memory_space<vmem>>, vector<1x8x4xbf16>
    %52 = vector.shape_cast %51 : vector<1x8x4xbf16> to vector<8x4xbf16>
    %cst_36 = arith.constant dense<0.000000e+00> : vector<8x512xf32>
    %53 = tpu.matmul %52, %50, %cst_36 {dimension_numbers = #tpu.dot_dimension_numbers<[1], [0], [0], [1], [0, 0, 1, 1], [], []>} : vector<8x4xbf16>, vector<4x512xbf16>, vector<8x512xf32> -> vector<8x512xf32>
    %54 = arith.addf %49, %53 : vector<8x512xf32>
    %55 = vector.extract_strided_slice %4 {offsets = [0, 101], sizes = [4, 512], strides = [1, 1]} : vector<4x1024xbf16> to vector<4x512xbf16>
    %c10 = arith.constant 10 : index
    %c0_37 = arith.constant 0 : index
    %c0_38 = arith.constant 0 : index
    %56 = vector.load %arg5[%c10, %c0_37, %c0_38] : memref<27x8x4xbf16, #tpu.memory_space<vmem>>, vector<1x8x4xbf16>
    %57 = vector.shape_cast %56 : vector<1x8x4xbf16> to vector<8x4xbf16>
    %cst_39 = arith.constant dense<0.000000e+00> : vector<8x512xf32>
    %58 = tpu.matmul %57, %55, %cst_39 {dimension_numbers = #tpu.dot_dimension_numbers<[1], [0], [0], [1], [0, 0, 1, 1], [], []>} : vector<8x4xbf16>, vector<4x512xbf16>, vector<8x512xf32> -> vector<8x512xf32>
    %59 = arith.addf %54, %58 : vector<8x512xf32>
    %60 = vector.extract_strided_slice %4 {offsets = [0, 102], sizes = [4, 512], strides = [1, 1]} : vector<4x1024xbf16> to vector<4x512xbf16>
    %c11 = arith.constant 11 : index
    %c0_40 = arith.constant 0 : index
    %c0_41 = arith.constant 0 : index
    %61 = vector.load %arg5[%c11, %c0_40, %c0_41] : memref<27x8x4xbf16, #tpu.memory_space<vmem>>, vector<1x8x4xbf16>
    %62 = vector.shape_cast %61 : vector<1x8x4xbf16> to vector<8x4xbf16>
    %cst_42 = arith.constant dense<0.000000e+00> : vector<8x512xf32>
    %63 = tpu.matmul %62, %60, %cst_42 {dimension_numbers = #tpu.dot_dimension_numbers<[1], [0], [0], [1], [0, 0, 1, 1], [], []>} : vector<8x4xbf16>, vector<4x512xbf16>, vector<8x512xf32> -> vector<8x512xf32>
    %64 = arith.addf %59, %63 : vector<8x512xf32>
    %65 = vector.extract_strided_slice %4 {offsets = [0, 110], sizes = [4, 512], strides = [1, 1]} : vector<4x1024xbf16> to vector<4x512xbf16>
    %c12 = arith.constant 12 : index
    %c0_43 = arith.constant 0 : index
    %c0_44 = arith.constant 0 : index
    %66 = vector.load %arg5[%c12, %c0_43, %c0_44] : memref<27x8x4xbf16, #tpu.memory_space<vmem>>, vector<1x8x4xbf16>
    %67 = vector.shape_cast %66 : vector<1x8x4xbf16> to vector<8x4xbf16>
    %cst_45 = arith.constant dense<0.000000e+00> : vector<8x512xf32>
    %68 = tpu.matmul %67, %65, %cst_45 {dimension_numbers = #tpu.dot_dimension_numbers<[1], [0], [0], [1], [0, 0, 1, 1], [], []>} : vector<8x4xbf16>, vector<4x512xbf16>, vector<8x512xf32> -> vector<8x512xf32>
    %69 = arith.addf %64, %68 : vector<8x512xf32>
    %70 = vector.extract_strided_slice %4 {offsets = [0, 111], sizes = [4, 512], strides = [1, 1]} : vector<4x1024xbf16> to vector<4x512xbf16>
    %c13 = arith.constant 13 : index
    %c0_46 = arith.constant 0 : index
    %c0_47 = arith.constant 0 : index
    %71 = vector.load %arg5[%c13, %c0_46, %c0_47] : memref<27x8x4xbf16, #tpu.memory_space<vmem>>, vector<1x8x4xbf16>
    %72 = vector.shape_cast %71 : vector<1x8x4xbf16> to vector<8x4xbf16>
    %cst_48 = arith.constant dense<0.000000e+00> : vector<8x512xf32>
    %73 = tpu.matmul %72, %70, %cst_48 {dimension_numbers = #tpu.dot_dimension_numbers<[1], [0], [0], [1], [0, 0, 1, 1], [], []>} : vector<8x4xbf16>, vector<4x512xbf16>, vector<8x512xf32> -> vector<8x512xf32>
    %74 = arith.addf %69, %73 : vector<8x512xf32>
    %75 = vector.extract_strided_slice %4 {offsets = [0, 112], sizes = [4, 512], strides = [1, 1]} : vector<4x1024xbf16> to vector<4x512xbf16>
    %c14 = arith.constant 14 : index
    %c0_49 = arith.constant 0 : index
    %c0_50 = arith.constant 0 : index
    %76 = vector.load %arg5[%c14, %c0_49, %c0_50] : memref<27x8x4xbf16, #tpu.memory_space<vmem>>, vector<1x8x4xbf16>
    %77 = vector.shape_cast %76 : vector<1x8x4xbf16> to vector<8x4xbf16>
    %cst_51 = arith.constant dense<0.000000e+00> : vector<8x512xf32>
    %78 = tpu.matmul %77, %75, %cst_51 {dimension_numbers = #tpu.dot_dimension_numbers<[1], [0], [0], [1], [0, 0, 1, 1], [], []>} : vector<8x4xbf16>, vector<4x512xbf16>, vector<8x512xf32> -> vector<8x512xf32>
    %79 = arith.addf %74, %78 : vector<8x512xf32>
    %80 = vector.extract_strided_slice %4 {offsets = [0, 120], sizes = [4, 512], strides = [1, 1]} : vector<4x1024xbf16> to vector<4x512xbf16>
    %c15 = arith.constant 15 : index
    %c0_52 = arith.constant 0 : index
    %c0_53 = arith.constant 0 : index
    %81 = vector.load %arg5[%c15, %c0_52, %c0_53] : memref<27x8x4xbf16, #tpu.memory_space<vmem>>, vector<1x8x4xbf16>
    %82 = vector.shape_cast %81 : vector<1x8x4xbf16> to vector<8x4xbf16>
    %cst_54 = arith.constant dense<0.000000e+00> : vector<8x512xf32>
    %83 = tpu.matmul %82, %80, %cst_54 {dimension_numbers = #tpu.dot_dimension_numbers<[1], [0], [0], [1], [0, 0, 1, 1], [], []>} : vector<8x4xbf16>, vector<4x512xbf16>, vector<8x512xf32> -> vector<8x512xf32>
    %84 = arith.addf %79, %83 : vector<8x512xf32>
    %85 = vector.extract_strided_slice %4 {offsets = [0, 121], sizes = [4, 512], strides = [1, 1]} : vector<4x1024xbf16> to vector<4x512xbf16>
    %c16 = arith.constant 16 : index
    %c0_55 = arith.constant 0 : index
    %c0_56 = arith.constant 0 : index
    %86 = vector.load %arg5[%c16, %c0_55, %c0_56] : memref<27x8x4xbf16, #tpu.memory_space<vmem>>, vector<1x8x4xbf16>
    %87 = vector.shape_cast %86 : vector<1x8x4xbf16> to vector<8x4xbf16>
    %cst_57 = arith.constant dense<0.000000e+00> : vector<8x512xf32>
    %88 = tpu.matmul %87, %85, %cst_57 {dimension_numbers = #tpu.dot_dimension_numbers<[1], [0], [0], [1], [0, 0, 1, 1], [], []>} : vector<8x4xbf16>, vector<4x512xbf16>, vector<8x512xf32> -> vector<8x512xf32>
    %89 = arith.addf %84, %88 : vector<8x512xf32>
    %90 = vector.extract_strided_slice %4 {offsets = [0, 122], sizes = [4, 512], strides = [1, 1]} : vector<4x1024xbf16> to vector<4x512xbf16>
    %c17 = arith.constant 17 : index
    %c0_58 = arith.constant 0 : index
    %c0_59 = arith.constant 0 : index
    %91 = vector.load %arg5[%c17, %c0_58, %c0_59] : memref<27x8x4xbf16, #tpu.memory_space<vmem>>, vector<1x8x4xbf16>
    %92 = vector.shape_cast %91 : vector<1x8x4xbf16> to vector<8x4xbf16>
    %cst_60 = arith.constant dense<0.000000e+00> : vector<8x512xf32>
    %93 = tpu.matmul %92, %90, %cst_60 {dimension_numbers = #tpu.dot_dimension_numbers<[1], [0], [0], [1], [0, 0, 1, 1], [], []>} : vector<8x4xbf16>, vector<4x512xbf16>, vector<8x512xf32> -> vector<8x512xf32>
    %94 = arith.addf %89, %93 : vector<8x512xf32>
    %95 = vector.extract_strided_slice %4 {offsets = [0, 200], sizes = [4, 512], strides = [1, 1]} : vector<4x1024xbf16> to vector<4x512xbf16>
    %c18 = arith.constant 18 : index
    %c0_61 = arith.constant 0 : index
    %c0_62 = arith.constant 0 : index
    %96 = vector.load %arg5[%c18, %c0_61, %c0_62] : memref<27x8x4xbf16, #tpu.memory_space<vmem>>, vector<1x8x4xbf16>
    %97 = vector.shape_cast %96 : vector<1x8x4xbf16> to vector<8x4xbf16>
    %cst_63 = arith.constant dense<0.000000e+00> : vector<8x512xf32>
    %98 = tpu.matmul %97, %95, %cst_63 {dimension_numbers = #tpu.dot_dimension_numbers<[1], [0], [0], [1], [0, 0, 1, 1], [], []>} : vector<8x4xbf16>, vector<4x512xbf16>, vector<8x512xf32> -> vector<8x512xf32>
    %99 = arith.addf %94, %98 : vector<8x512xf32>
    %100 = vector.extract_strided_slice %4 {offsets = [0, 201], sizes = [4, 512], strides = [1, 1]} : vector<4x1024xbf16> to vector<4x512xbf16>
    %c19 = arith.constant 19 : index
    %c0_64 = arith.constant 0 : index
    %c0_65 = arith.constant 0 : index
    %101 = vector.load %arg5[%c19, %c0_64, %c0_65] : memref<27x8x4xbf16, #tpu.memory_space<vmem>>, vector<1x8x4xbf16>
    %102 = vector.shape_cast %101 : vector<1x8x4xbf16> to vector<8x4xbf16>
    %cst_66 = arith.constant dense<0.000000e+00> : vector<8x512xf32>
    %103 = tpu.matmul %102, %100, %cst_66 {dimension_numbers = #tpu.dot_dimension_numbers<[1], [0], [0], [1], [0, 0, 1, 1], [], []>} : vector<8x4xbf16>, vector<4x512xbf16>, vector<8x512xf32> -> vector<8x512xf32>
    %104 = arith.addf %99, %103 : vector<8x512xf32>
    %105 = vector.extract_strided_slice %4 {offsets = [0, 202], sizes = [4, 512], strides = [1, 1]} : vector<4x1024xbf16> to vector<4x512xbf16>
    %c20 = arith.constant 20 : index
    %c0_67 = arith.constant 0 : index
    %c0_68 = arith.constant 0 : index
    %106 = vector.load %arg5[%c20, %c0_67, %c0_68] : memref<27x8x4xbf16, #tpu.memory_space<vmem>>, vector<1x8x4xbf16>
    %107 = vector.shape_cast %106 : vector<1x8x4xbf16> to vector<8x4xbf16>
    %cst_69 = arith.constant dense<0.000000e+00> : vector<8x512xf32>
    %108 = tpu.matmul %107, %105, %cst_69 {dimension_numbers = #tpu.dot_dimension_numbers<[1], [0], [0], [1], [0, 0, 1, 1], [], []>} : vector<8x4xbf16>, vector<4x512xbf16>, vector<8x512xf32> -> vector<8x512xf32>
    %109 = arith.addf %104, %108 : vector<8x512xf32>
    %110 = vector.extract_strided_slice %4 {offsets = [0, 210], sizes = [4, 512], strides = [1, 1]} : vector<4x1024xbf16> to vector<4x512xbf16>
    %c21 = arith.constant 21 : index
    %c0_70 = arith.constant 0 : index
    %c0_71 = arith.constant 0 : index
    %111 = vector.load %arg5[%c21, %c0_70, %c0_71] : memref<27x8x4xbf16, #tpu.memory_space<vmem>>, vector<1x8x4xbf16>
    %112 = vector.shape_cast %111 : vector<1x8x4xbf16> to vector<8x4xbf16>
    %cst_72 = arith.constant dense<0.000000e+00> : vector<8x512xf32>
    %113 = tpu.matmul %112, %110, %cst_72 {dimension_numbers = #tpu.dot_dimension_numbers<[1], [0], [0], [1], [0, 0, 1, 1], [], []>} : vector<8x4xbf16>, vector<4x512xbf16>, vector<8x512xf32> -> vector<8x512xf32>
    %114 = arith.addf %109, %113 : vector<8x512xf32>
    %115 = vector.extract_strided_slice %4 {offsets = [0, 211], sizes = [4, 512], strides = [1, 1]} : vector<4x1024xbf16> to vector<4x512xbf16>
    %c22 = arith.constant 22 : index
    %c0_73 = arith.constant 0 : index
    %c0_74 = arith.constant 0 : index
    %116 = vector.load %arg5[%c22, %c0_73, %c0_74] : memref<27x8x4xbf16, #tpu.memory_space<vmem>>, vector<1x8x4xbf16>
    %117 = vector.shape_cast %116 : vector<1x8x4xbf16> to vector<8x4xbf16>
    %cst_75 = arith.constant dense<0.000000e+00> : vector<8x512xf32>
    %118 = tpu.matmul %117, %115, %cst_75 {dimension_numbers = #tpu.dot_dimension_numbers<[1], [0], [0], [1], [0, 0, 1, 1], [], []>} : vector<8x4xbf16>, vector<4x512xbf16>, vector<8x512xf32> -> vector<8x512xf32>
    %119 = arith.addf %114, %118 : vector<8x512xf32>
    %120 = vector.extract_strided_slice %4 {offsets = [0, 212], sizes = [4, 512], strides = [1, 1]} : vector<4x1024xbf16> to vector<4x512xbf16>
    %c23 = arith.constant 23 : index
    %c0_76 = arith.constant 0 : index
    %c0_77 = arith.constant 0 : index
    %121 = vector.load %arg5[%c23, %c0_76, %c0_77] : memref<27x8x4xbf16, #tpu.memory_space<vmem>>, vector<1x8x4xbf16>
    %122 = vector.shape_cast %121 : vector<1x8x4xbf16> to vector<8x4xbf16>
    %cst_78 = arith.constant dense<0.000000e+00> : vector<8x512xf32>
    %123 = tpu.matmul %122, %120, %cst_78 {dimension_numbers = #tpu.dot_dimension_numbers<[1], [0], [0], [1], [0, 0, 1, 1], [], []>} : vector<8x4xbf16>, vector<4x512xbf16>, vector<8x512xf32> -> vector<8x512xf32>
    %124 = arith.addf %119, %123 : vector<8x512xf32>
    %125 = vector.extract_strided_slice %4 {offsets = [0, 220], sizes = [4, 512], strides = [1, 1]} : vector<4x1024xbf16> to vector<4x512xbf16>
    %c24 = arith.constant 24 : index
    %c0_79 = arith.constant 0 : index
    %c0_80 = arith.constant 0 : index
    %126 = vector.load %arg5[%c24, %c0_79, %c0_80] : memref<27x8x4xbf16, #tpu.memory_space<vmem>>, vector<1x8x4xbf16>
    %127 = vector.shape_cast %126 : vector<1x8x4xbf16> to vector<8x4xbf16>
    %cst_81 = arith.constant dense<0.000000e+00> : vector<8x512xf32>
    %128 = tpu.matmul %127, %125, %cst_81 {dimension_numbers = #tpu.dot_dimension_numbers<[1], [0], [0], [1], [0, 0, 1, 1], [], []>} : vector<8x4xbf16>, vector<4x512xbf16>, vector<8x512xf32> -> vector<8x512xf32>
    %129 = arith.addf %124, %128 : vector<8x512xf32>
    %130 = vector.extract_strided_slice %4 {offsets = [0, 221], sizes = [4, 512], strides = [1, 1]} : vector<4x1024xbf16> to vector<4x512xbf16>
    %c25 = arith.constant 25 : index
    %c0_82 = arith.constant 0 : index
    %c0_83 = arith.constant 0 : index
    %131 = vector.load %arg5[%c25, %c0_82, %c0_83] : memref<27x8x4xbf16, #tpu.memory_space<vmem>>, vector<1x8x4xbf16>
    %132 = vector.shape_cast %131 : vector<1x8x4xbf16> to vector<8x4xbf16>
    %cst_84 = arith.constant dense<0.000000e+00> : vector<8x512xf32>
    %133 = tpu.matmul %132, %130, %cst_84 {dimension_numbers = #tpu.dot_dimension_numbers<[1], [0], [0], [1], [0, 0, 1, 1], [], []>} : vector<8x4xbf16>, vector<4x512xbf16>, vector<8x512xf32> -> vector<8x512xf32>
    %134 = arith.addf %129, %133 : vector<8x512xf32>
    %135 = vector.extract_strided_slice %4 {offsets = [0, 222], sizes = [4, 512], strides = [1, 1]} : vector<4x1024xbf16> to vector<4x512xbf16>
    %c26 = arith.constant 26 : index
    %c0_85 = arith.constant 0 : index
    %c0_86 = arith.constant 0 : index
    %136 = vector.load %arg5[%c26, %c0_85, %c0_86] : memref<27x8x4xbf16, #tpu.memory_space<vmem>>, vector<1x8x4xbf16>
    %137 = vector.shape_cast %136 : vector<1x8x4xbf16> to vector<8x4xbf16>
    %cst_87 = arith.constant dense<0.000000e+00> : vector<8x512xf32>
    %138 = tpu.matmul %137, %135, %cst_87 {dimension_numbers = #tpu.dot_dimension_numbers<[1], [0], [0], [1], [0, 0, 1, 1], [], []>} : vector<8x4xbf16>, vector<4x512xbf16>, vector<8x512xf32> -> vector<8x512xf32>
    %139 = arith.addf %134, %138 : vector<8x512xf32>
    %c0_88 = arith.constant 0 : index
    %c0_89 = arith.constant 0 : index
    %140 = vector.load %arg6[%c0_88, %c0_89] : memref<8x1xf32, #tpu.memory_space<vmem>>, vector<8x1xf32>
    %141 = vector.broadcast %140 : vector<8x1xf32> to vector<8x512xf32>
    %142 = arith.addf %139, %141 : vector<8x512xf32>
    %cst_90 = arith.constant 0.000000e+00 : f32
    %143 = vector.broadcast %cst_90 : f32 to vector<8x512xf32>
    %144 = arith.maximumf %142, %143 : vector<8x512xf32>
    %145 = vector.broadcast %5 : vector<1x512xf32> to vector<8x512xf32>
    %146 = arith.mulf %144, %145 : vector<8x512xf32>
    %cst_91 = arith.constant dense<0.000000e+00> : vector<8xf32>
    %147 = vector.multi_reduction <add>, %146, %cst_91 [1] : vector<8x512xf32> to vector<8xf32>
    %148 = vector.shape_cast %147 : vector<8xf32> to vector<8x1xf32>
    %149 = arith.mulf %144, %144 : vector<8x512xf32>
    %150 = vector.broadcast %5 : vector<1x512xf32> to vector<8x512xf32>
    %151 = arith.mulf %149, %150 : vector<8x512xf32>
    %cst_92 = arith.constant dense<0.000000e+00> : vector<8xf32>
    %152 = vector.multi_reduction <add>, %151, %cst_92 [1] : vector<8x512xf32> to vector<8xf32>
    %153 = vector.shape_cast %152 : vector<8xf32> to vector<8x1xf32>
    %154 = vector.extract_strided_slice %4 {offsets = [0, 111], sizes = [4, 512], strides = [1, 1]} : vector<4x1024xbf16> to vector<4x512xbf16>
    %c0_93 = arith.constant 0 : index
    %c0_94 = arith.constant 0 : index
    %155 = vector.load %arg7[%c0_93, %c0_94] : memref<8x4xbf16, #tpu.memory_space<vmem>>, vector<8x4xbf16>
    %cst_95 = arith.constant dense<0.000000e+00> : vector<8x512xf32>
    %156 = tpu.matmul %155, %154, %cst_95 {dimension_numbers = #tpu.dot_dimension_numbers<[1], [0], [0], [1], [0, 0, 1, 1], [], []>} : vector<8x4xbf16>, vector<4x512xbf16>, vector<8x512xf32> -> vector<8x512xf32>
    %c0_96 = arith.constant 0 : index
    %c0_97 = arith.constant 0 : index
    %157 = vector.load %arg8[%c0_96, %c0_97] : memref<8x1xf32, #tpu.memory_space<vmem>>, vector<8x1xf32>
    %158 = vector.broadcast %157 : vector<8x1xf32> to vector<8x512xf32>
    %159 = arith.addf %156, %158 : vector<8x512xf32>
    %cst_98 = arith.constant 0.000000e+00 : f32
    %160 = vector.broadcast %cst_98 : f32 to vector<8x512xf32>
    %161 = arith.maximumf %159, %160 : vector<8x512xf32>
    %162 = vector.broadcast %5 : vector<1x512xf32> to vector<8x512xf32>
    %163 = arith.mulf %161, %162 : vector<8x512xf32>
    %cst_99 = arith.constant dense<0.000000e+00> : vector<8xf32>
    %164 = vector.multi_reduction <add>, %163, %cst_99 [1] : vector<8x512xf32> to vector<8xf32>
    %165 = vector.shape_cast %164 : vector<8xf32> to vector<8x1xf32>
    %166 = arith.mulf %161, %161 : vector<8x512xf32>
    %167 = vector.broadcast %5 : vector<1x512xf32> to vector<8x512xf32>
    %168 = arith.mulf %166, %167 : vector<8x512xf32>
    %cst_100 = arith.constant dense<0.000000e+00> : vector<8xf32>
    %169 = vector.multi_reduction <add>, %168, %cst_100 [1] : vector<8x512xf32> to vector<8xf32>
    %170 = vector.shape_cast %169 : vector<8xf32> to vector<8x1xf32>
    %171 = tpu.concatenate %148, %153, %165, %170 in 1 : vector<8x1xf32>, vector<8x1xf32>, vector<8x1xf32>, vector<8x1xf32> -> vector<8x4xf32>
    %c0_i32 = arith.constant 0 : i32
    %172 = arith.cmpi eq, %arg1, %c0_i32 : i32
    %173 = arith.extui %172 : i1 to i32
    %c0_i32_101 = arith.constant 0 : i32
    %174 = arith.cmpi ne, %173, %c0_i32_101 : i32
    scf.if %174 {
      %cst_108 = arith.constant 0.000000e+00 : f32
      %181 = vector.broadcast %cst_108 : f32 to vector<8x4xf32>
      %c0_109 = arith.constant 0 : index
      %c0_110 = arith.constant 0 : index
      %c0_111 = arith.constant 0 : index
      %182 = vector.load %arg9[%c0_109, %c0_110, %c0_111] : memref<1x8x4xf32, #tpu.memory_space<vmem>>, vector<1x8x4xf32>
      %183 = vector.shape_cast %182 : vector<1x8x4xf32> to vector<8x4xf32>
      %184 = vector.shape_cast %181 : vector<8x4xf32> to vector<1x8x4xf32>
      tpu.vector_store %arg9[%c0_109, %c0_110, %c0_111], %184 {strides = array<i32>} : memref<1x8x4xf32, #tpu.memory_space<vmem>>, vector<1x8x4xf32>,
    } else {
    }
    %c0_102 = arith.constant 0 : index
    %c0_103 = arith.constant 0 : index
    %c0_104 = arith.constant 0 : index
    %175 = vector.load %arg9[%c0_102, %c0_103, %c0_104] : memref<1x8x4xf32, #tpu.memory_space<vmem>>, vector<1x8x4xf32>
    %176 = vector.shape_cast %175 : vector<1x8x4xf32> to vector<8x4xf32>
    %177 = arith.addf %176, %171 : vector<8x4xf32>
    %c0_105 = arith.constant 0 : index
    %c0_106 = arith.constant 0 : index
    %c0_107 = arith.constant 0 : index
    %178 = vector.load %arg9[%c0_105, %c0_106, %c0_107] : memref<1x8x4xf32, #tpu.memory_space<vmem>>, vector<1x8x4xf32>
    %179 = vector.shape_cast %178 : vector<1x8x4xf32> to vector<8x4xf32>
    %180 = vector.shape_cast %177 : vector<8x4xf32> to vector<1x8x4xf32>
    tpu.vector_store %arg9[%c0_105, %c0_106, %c0_107], %180 {strides = array<i32>} : memref<1x8x4xf32, #tpu.memory_space<vmem>>, vector<1x8x4xf32>,
    return
  }
  func.func @transform_0(%arg0: i32, %arg1: i32) -> (i32, i32, i32) {
    %c0_i32 = arith.constant 0 : i32
    %0 = arith.addi %arg1, %c0_i32 : i32
    %c1_i32 = arith.constant 1 : i32
    %1 = arith.minsi %0, %c1_i32 : i32
    %c0_i32_0 = arith.constant 0 : i32
    %c0_i32_1 = arith.constant 0 : i32
    return %arg0, %c0_i32_0, %1 : i32, i32, i32
  }
  func.func @transform_1(%arg0: i32, %arg1: i32) -> (i32, i32, i32) {
    %c1_i32 = arith.constant 1 : i32
    %0 = arith.addi %arg1, %c1_i32 : i32
    %c1_i32_0 = arith.constant 1 : i32
    %1 = arith.minsi %0, %c1_i32_0 : i32
    %c0_i32 = arith.constant 0 : i32
    %c0_i32_1 = arith.constant 0 : i32
    return %arg0, %c0_i32, %1 : i32, i32, i32
  }
  func.func @transform_2(%arg0: i32, %arg1: i32) -> (i32, i32) {
    %c0_i32 = arith.constant 0 : i32
    %c0_i32_0 = arith.constant 0 : i32
    return %c0_i32, %arg1 : i32, i32
  }
  func.func @transform_3(%arg0: i32, %arg1: i32) -> (i32, i32, i32) {
    %c0_i32 = arith.constant 0 : i32
    %c0_i32_0 = arith.constant 0 : i32
    %c0_i32_1 = arith.constant 0 : i32
    %c0_i32_2 = arith.constant 0 : i32
    return %c0_i32, %c0_i32_0, %c0_i32_1 : i32, i32, i32
  }
  func.func @transform_4(%arg0: i32, %arg1: i32) -> (i32, i32) {
    %c0_i32 = arith.constant 0 : i32
    %c0_i32_0 = arith.constant 0 : i32
    %c0_i32_1 = arith.constant 0 : i32
    return %c0_i32, %c0_i32_0 : i32, i32
  }
  func.func @transform_5(%arg0: i32, %arg1: i32) -> (i32, i32) {
    %c0_i32 = arith.constant 0 : i32
    %c0_i32_0 = arith.constant 0 : i32
    %c0_i32_1 = arith.constant 0 : i32
    return %c0_i32, %c0_i32_0 : i32, i32
  }
  func.func @transform_6(%arg0: i32, %arg1: i32) -> (i32, i32) {
    %c0_i32 = arith.constant 0 : i32
    %c0_i32_0 = arith.constant 0 : i32
    %c0_i32_1 = arith.constant 0 : i32
    return %c0_i32, %c0_i32_0 : i32, i32
  }
  func.func @transform_7(%arg0: i32, %arg1: i32) -> (i32, i32, i32) {
    %c0_i32 = arith.constant 0 : i32
    %c0_i32_0 = arith.constant 0 : i32
    %c0_i32_1 = arith.constant 0 : i32
    return %arg0, %c0_i32, %c0_i32_0 : i32, i32, i32
  }
}

module attributes {stable_mosaic.version = 11 : i64} {
  func.func @_apply_kernel(%arg0: i32, %arg1: i32, %arg2: memref<1x4x512xbf16, #tpu.memory_space<vmem>>, %arg3: memref<1x4x512xbf16, #tpu.memory_space<vmem>>, %arg4: memref<27x8x4xbf16, #tpu.memory_space<vmem>>, %arg5: memref<8x1xf32, #tpu.memory_space<vmem>>, %arg6: memref<8x4xbf16, #tpu.memory_space<vmem>>, %arg7: memref<8x1xf32, #tpu.memory_space<vmem>>, %arg8: memref<1x8x4xf32, #tpu.memory_space<vmem>>, %arg9: memref<1x8x512xf32, #tpu.memory_space<vmem>>) attributes {dimension_semantics = [#tpu.dimension_semantics<parallel>, #tpu.dimension_semantics<parallel>], iteration_bounds = array<i64: 2, 2>, scalar_prefetch = 0 : i64, scratch_operands = 0 : i64, tpu.core_type = #tpu.core_type<tc>, window_params = [{transform_indices = @transform_0, window_bounds = array<i64: 1, 4, 512>}, {transform_indices = @transform_1, window_bounds = array<i64: 1, 4, 512>}, {pipeline_mode = #tpu.pipeline_mode<synchronous>, transform_indices = @transform_2, window_bounds = array<i64: 27, 8, 4>}, {pipeline_mode = #tpu.pipeline_mode<synchronous>, transform_indices = @transform_3, window_bounds = array<i64: 8, 1>}, {pipeline_mode = #tpu.pipeline_mode<synchronous>, transform_indices = @transform_4, window_bounds = array<i64: 8, 4>}, {pipeline_mode = #tpu.pipeline_mode<synchronous>, transform_indices = @transform_5, window_bounds = array<i64: 8, 1>}, {transform_indices = @transform_6, window_bounds = array<i64: 1, 8, 4>}, {transform_indices = @transform_7, window_bounds = array<i64: 1, 8, 512>}]} {
    %c0 = arith.constant 0 : index
    %c0_0 = arith.constant 0 : index
    %c0_1 = arith.constant 0 : index
    %0 = vector.load %arg2[%c0, %c0_0, %c0_1] : memref<1x4x512xbf16, #tpu.memory_space<vmem>>, vector<1x4x512xbf16>
    %1 = vector.shape_cast %0 : vector<1x4x512xbf16> to vector<4x512xbf16>
    %c0_2 = arith.constant 0 : index
    %c0_3 = arith.constant 0 : index
    %c0_4 = arith.constant 0 : index
    %2 = vector.load %arg3[%c0_2, %c0_3, %c0_4] : memref<1x4x512xbf16, #tpu.memory_space<vmem>>, vector<1x4x512xbf16>
    %3 = vector.shape_cast %2 : vector<1x4x512xbf16> to vector<4x512xbf16>
    %4 = tpu.concatenate %1, %3 in 1 : vector<4x512xbf16>, vector<4x512xbf16> -> vector<4x1024xbf16>
    %5 = vector.extract_strided_slice %4 {offsets = [0, 0], sizes = [4, 512], strides = [1, 1]} : vector<4x1024xbf16> to vector<4x512xbf16>
    %c0_5 = arith.constant 0 : index
    %c0_6 = arith.constant 0 : index
    %c0_7 = arith.constant 0 : index
    %6 = vector.load %arg4[%c0_5, %c0_6, %c0_7] : memref<27x8x4xbf16, #tpu.memory_space<vmem>>, vector<1x8x4xbf16>
    %7 = vector.shape_cast %6 : vector<1x8x4xbf16> to vector<8x4xbf16>
    %cst = arith.constant dense<0.000000e+00> : vector<8x512xf32>
    %8 = tpu.matmul %7, %5, %cst {dimension_numbers = #tpu.dot_dimension_numbers<[1], [0], [0], [1], [0, 0, 1, 1], [], []>} : vector<8x4xbf16>, vector<4x512xbf16>, vector<8x512xf32> -> vector<8x512xf32>
    %9 = vector.extract_strided_slice %4 {offsets = [0, 1], sizes = [4, 512], strides = [1, 1]} : vector<4x1024xbf16> to vector<4x512xbf16>
    %c1 = arith.constant 1 : index
    %c0_8 = arith.constant 0 : index
    %c0_9 = arith.constant 0 : index
    %10 = vector.load %arg4[%c1, %c0_8, %c0_9] : memref<27x8x4xbf16, #tpu.memory_space<vmem>>, vector<1x8x4xbf16>
    %11 = vector.shape_cast %10 : vector<1x8x4xbf16> to vector<8x4xbf16>
    %cst_10 = arith.constant dense<0.000000e+00> : vector<8x512xf32>
    %12 = tpu.matmul %11, %9, %cst_10 {dimension_numbers = #tpu.dot_dimension_numbers<[1], [0], [0], [1], [0, 0, 1, 1], [], []>} : vector<8x4xbf16>, vector<4x512xbf16>, vector<8x512xf32> -> vector<8x512xf32>
    %13 = arith.addf %8, %12 : vector<8x512xf32>
    %14 = vector.extract_strided_slice %4 {offsets = [0, 2], sizes = [4, 512], strides = [1, 1]} : vector<4x1024xbf16> to vector<4x512xbf16>
    %c2 = arith.constant 2 : index
    %c0_11 = arith.constant 0 : index
    %c0_12 = arith.constant 0 : index
    %15 = vector.load %arg4[%c2, %c0_11, %c0_12] : memref<27x8x4xbf16, #tpu.memory_space<vmem>>, vector<1x8x4xbf16>
    %16 = vector.shape_cast %15 : vector<1x8x4xbf16> to vector<8x4xbf16>
    %cst_13 = arith.constant dense<0.000000e+00> : vector<8x512xf32>
    %17 = tpu.matmul %16, %14, %cst_13 {dimension_numbers = #tpu.dot_dimension_numbers<[1], [0], [0], [1], [0, 0, 1, 1], [], []>} : vector<8x4xbf16>, vector<4x512xbf16>, vector<8x512xf32> -> vector<8x512xf32>
    %18 = arith.addf %13, %17 : vector<8x512xf32>
    %19 = vector.extract_strided_slice %4 {offsets = [0, 10], sizes = [4, 512], strides = [1, 1]} : vector<4x1024xbf16> to vector<4x512xbf16>
    %c3 = arith.constant 3 : index
    %c0_14 = arith.constant 0 : index
    %c0_15 = arith.constant 0 : index
    %20 = vector.load %arg4[%c3, %c0_14, %c0_15] : memref<27x8x4xbf16, #tpu.memory_space<vmem>>, vector<1x8x4xbf16>
    %21 = vector.shape_cast %20 : vector<1x8x4xbf16> to vector<8x4xbf16>
    %cst_16 = arith.constant dense<0.000000e+00> : vector<8x512xf32>
    %22 = tpu.matmul %21, %19, %cst_16 {dimension_numbers = #tpu.dot_dimension_numbers<[1], [0], [0], [1], [0, 0, 1, 1], [], []>} : vector<8x4xbf16>, vector<4x512xbf16>, vector<8x512xf32> -> vector<8x512xf32>
    %23 = arith.addf %18, %22 : vector<8x512xf32>
    %24 = vector.extract_strided_slice %4 {offsets = [0, 11], sizes = [4, 512], strides = [1, 1]} : vector<4x1024xbf16> to vector<4x512xbf16>
    %c4 = arith.constant 4 : index
    %c0_17 = arith.constant 0 : index
    %c0_18 = arith.constant 0 : index
    %25 = vector.load %arg4[%c4, %c0_17, %c0_18] : memref<27x8x4xbf16, #tpu.memory_space<vmem>>, vector<1x8x4xbf16>
    %26 = vector.shape_cast %25 : vector<1x8x4xbf16> to vector<8x4xbf16>
    %cst_19 = arith.constant dense<0.000000e+00> : vector<8x512xf32>
    %27 = tpu.matmul %26, %24, %cst_19 {dimension_numbers = #tpu.dot_dimension_numbers<[1], [0], [0], [1], [0, 0, 1, 1], [], []>} : vector<8x4xbf16>, vector<4x512xbf16>, vector<8x512xf32> -> vector<8x512xf32>
    %28 = arith.addf %23, %27 : vector<8x512xf32>
    %29 = vector.extract_strided_slice %4 {offsets = [0, 12], sizes = [4, 512], strides = [1, 1]} : vector<4x1024xbf16> to vector<4x512xbf16>
    %c5 = arith.constant 5 : index
    %c0_20 = arith.constant 0 : index
    %c0_21 = arith.constant 0 : index
    %30 = vector.load %arg4[%c5, %c0_20, %c0_21] : memref<27x8x4xbf16, #tpu.memory_space<vmem>>, vector<1x8x4xbf16>
    %31 = vector.shape_cast %30 : vector<1x8x4xbf16> to vector<8x4xbf16>
    %cst_22 = arith.constant dense<0.000000e+00> : vector<8x512xf32>
    %32 = tpu.matmul %31, %29, %cst_22 {dimension_numbers = #tpu.dot_dimension_numbers<[1], [0], [0], [1], [0, 0, 1, 1], [], []>} : vector<8x4xbf16>, vector<4x512xbf16>, vector<8x512xf32> -> vector<8x512xf32>
    %33 = arith.addf %28, %32 : vector<8x512xf32>
    %34 = vector.extract_strided_slice %4 {offsets = [0, 20], sizes = [4, 512], strides = [1, 1]} : vector<4x1024xbf16> to vector<4x512xbf16>
    %c6 = arith.constant 6 : index
    %c0_23 = arith.constant 0 : index
    %c0_24 = arith.constant 0 : index
    %35 = vector.load %arg4[%c6, %c0_23, %c0_24] : memref<27x8x4xbf16, #tpu.memory_space<vmem>>, vector<1x8x4xbf16>
    %36 = vector.shape_cast %35 : vector<1x8x4xbf16> to vector<8x4xbf16>
    %cst_25 = arith.constant dense<0.000000e+00> : vector<8x512xf32>
    %37 = tpu.matmul %36, %34, %cst_25 {dimension_numbers = #tpu.dot_dimension_numbers<[1], [0], [0], [1], [0, 0, 1, 1], [], []>} : vector<8x4xbf16>, vector<4x512xbf16>, vector<8x512xf32> -> vector<8x512xf32>
    %38 = arith.addf %33, %37 : vector<8x512xf32>
    %39 = vector.extract_strided_slice %4 {offsets = [0, 21], sizes = [4, 512], strides = [1, 1]} : vector<4x1024xbf16> to vector<4x512xbf16>
    %c7 = arith.constant 7 : index
    %c0_26 = arith.constant 0 : index
    %c0_27 = arith.constant 0 : index
    %40 = vector.load %arg4[%c7, %c0_26, %c0_27] : memref<27x8x4xbf16, #tpu.memory_space<vmem>>, vector<1x8x4xbf16>
    %41 = vector.shape_cast %40 : vector<1x8x4xbf16> to vector<8x4xbf16>
    %cst_28 = arith.constant dense<0.000000e+00> : vector<8x512xf32>
    %42 = tpu.matmul %41, %39, %cst_28 {dimension_numbers = #tpu.dot_dimension_numbers<[1], [0], [0], [1], [0, 0, 1, 1], [], []>} : vector<8x4xbf16>, vector<4x512xbf16>, vector<8x512xf32> -> vector<8x512xf32>
    %43 = arith.addf %38, %42 : vector<8x512xf32>
    %44 = vector.extract_strided_slice %4 {offsets = [0, 22], sizes = [4, 512], strides = [1, 1]} : vector<4x1024xbf16> to vector<4x512xbf16>
    %c8 = arith.constant 8 : index
    %c0_29 = arith.constant 0 : index
    %c0_30 = arith.constant 0 : index
    %45 = vector.load %arg4[%c8, %c0_29, %c0_30] : memref<27x8x4xbf16, #tpu.memory_space<vmem>>, vector<1x8x4xbf16>
    %46 = vector.shape_cast %45 : vector<1x8x4xbf16> to vector<8x4xbf16>
    %cst_31 = arith.constant dense<0.000000e+00> : vector<8x512xf32>
    %47 = tpu.matmul %46, %44, %cst_31 {dimension_numbers = #tpu.dot_dimension_numbers<[1], [0], [0], [1], [0, 0, 1, 1], [], []>} : vector<8x4xbf16>, vector<4x512xbf16>, vector<8x512xf32> -> vector<8x512xf32>
    %48 = arith.addf %43, %47 : vector<8x512xf32>
    %49 = vector.extract_strided_slice %4 {offsets = [0, 100], sizes = [4, 512], strides = [1, 1]} : vector<4x1024xbf16> to vector<4x512xbf16>
    %c9 = arith.constant 9 : index
    %c0_32 = arith.constant 0 : index
    %c0_33 = arith.constant 0 : index
    %50 = vector.load %arg4[%c9, %c0_32, %c0_33] : memref<27x8x4xbf16, #tpu.memory_space<vmem>>, vector<1x8x4xbf16>
    %51 = vector.shape_cast %50 : vector<1x8x4xbf16> to vector<8x4xbf16>
    %cst_34 = arith.constant dense<0.000000e+00> : vector<8x512xf32>
    %52 = tpu.matmul %51, %49, %cst_34 {dimension_numbers = #tpu.dot_dimension_numbers<[1], [0], [0], [1], [0, 0, 1, 1], [], []>} : vector<8x4xbf16>, vector<4x512xbf16>, vector<8x512xf32> -> vector<8x512xf32>
    %53 = arith.addf %48, %52 : vector<8x512xf32>
    %54 = vector.extract_strided_slice %4 {offsets = [0, 101], sizes = [4, 512], strides = [1, 1]} : vector<4x1024xbf16> to vector<4x512xbf16>
    %c10 = arith.constant 10 : index
    %c0_35 = arith.constant 0 : index
    %c0_36 = arith.constant 0 : index
    %55 = vector.load %arg4[%c10, %c0_35, %c0_36] : memref<27x8x4xbf16, #tpu.memory_space<vmem>>, vector<1x8x4xbf16>
    %56 = vector.shape_cast %55 : vector<1x8x4xbf16> to vector<8x4xbf16>
    %cst_37 = arith.constant dense<0.000000e+00> : vector<8x512xf32>
    %57 = tpu.matmul %56, %54, %cst_37 {dimension_numbers = #tpu.dot_dimension_numbers<[1], [0], [0], [1], [0, 0, 1, 1], [], []>} : vector<8x4xbf16>, vector<4x512xbf16>, vector<8x512xf32> -> vector<8x512xf32>
    %58 = arith.addf %53, %57 : vector<8x512xf32>
    %59 = vector.extract_strided_slice %4 {offsets = [0, 102], sizes = [4, 512], strides = [1, 1]} : vector<4x1024xbf16> to vector<4x512xbf16>
    %c11 = arith.constant 11 : index
    %c0_38 = arith.constant 0 : index
    %c0_39 = arith.constant 0 : index
    %60 = vector.load %arg4[%c11, %c0_38, %c0_39] : memref<27x8x4xbf16, #tpu.memory_space<vmem>>, vector<1x8x4xbf16>
    %61 = vector.shape_cast %60 : vector<1x8x4xbf16> to vector<8x4xbf16>
    %cst_40 = arith.constant dense<0.000000e+00> : vector<8x512xf32>
    %62 = tpu.matmul %61, %59, %cst_40 {dimension_numbers = #tpu.dot_dimension_numbers<[1], [0], [0], [1], [0, 0, 1, 1], [], []>} : vector<8x4xbf16>, vector<4x512xbf16>, vector<8x512xf32> -> vector<8x512xf32>
    %63 = arith.addf %58, %62 : vector<8x512xf32>
    %64 = vector.extract_strided_slice %4 {offsets = [0, 110], sizes = [4, 512], strides = [1, 1]} : vector<4x1024xbf16> to vector<4x512xbf16>
    %c12 = arith.constant 12 : index
    %c0_41 = arith.constant 0 : index
    %c0_42 = arith.constant 0 : index
    %65 = vector.load %arg4[%c12, %c0_41, %c0_42] : memref<27x8x4xbf16, #tpu.memory_space<vmem>>, vector<1x8x4xbf16>
    %66 = vector.shape_cast %65 : vector<1x8x4xbf16> to vector<8x4xbf16>
    %cst_43 = arith.constant dense<0.000000e+00> : vector<8x512xf32>
    %67 = tpu.matmul %66, %64, %cst_43 {dimension_numbers = #tpu.dot_dimension_numbers<[1], [0], [0], [1], [0, 0, 1, 1], [], []>} : vector<8x4xbf16>, vector<4x512xbf16>, vector<8x512xf32> -> vector<8x512xf32>
    %68 = arith.addf %63, %67 : vector<8x512xf32>
    %69 = vector.extract_strided_slice %4 {offsets = [0, 111], sizes = [4, 512], strides = [1, 1]} : vector<4x1024xbf16> to vector<4x512xbf16>
    %c13 = arith.constant 13 : index
    %c0_44 = arith.constant 0 : index
    %c0_45 = arith.constant 0 : index
    %70 = vector.load %arg4[%c13, %c0_44, %c0_45] : memref<27x8x4xbf16, #tpu.memory_space<vmem>>, vector<1x8x4xbf16>
    %71 = vector.shape_cast %70 : vector<1x8x4xbf16> to vector<8x4xbf16>
    %cst_46 = arith.constant dense<0.000000e+00> : vector<8x512xf32>
    %72 = tpu.matmul %71, %69, %cst_46 {dimension_numbers = #tpu.dot_dimension_numbers<[1], [0], [0], [1], [0, 0, 1, 1], [], []>} : vector<8x4xbf16>, vector<4x512xbf16>, vector<8x512xf32> -> vector<8x512xf32>
    %73 = arith.addf %68, %72 : vector<8x512xf32>
    %74 = vector.extract_strided_slice %4 {offsets = [0, 112], sizes = [4, 512], strides = [1, 1]} : vector<4x1024xbf16> to vector<4x512xbf16>
    %c14 = arith.constant 14 : index
    %c0_47 = arith.constant 0 : index
    %c0_48 = arith.constant 0 : index
    %75 = vector.load %arg4[%c14, %c0_47, %c0_48] : memref<27x8x4xbf16, #tpu.memory_space<vmem>>, vector<1x8x4xbf16>
    %76 = vector.shape_cast %75 : vector<1x8x4xbf16> to vector<8x4xbf16>
    %cst_49 = arith.constant dense<0.000000e+00> : vector<8x512xf32>
    %77 = tpu.matmul %76, %74, %cst_49 {dimension_numbers = #tpu.dot_dimension_numbers<[1], [0], [0], [1], [0, 0, 1, 1], [], []>} : vector<8x4xbf16>, vector<4x512xbf16>, vector<8x512xf32> -> vector<8x512xf32>
    %78 = arith.addf %73, %77 : vector<8x512xf32>
    %79 = vector.extract_strided_slice %4 {offsets = [0, 120], sizes = [4, 512], strides = [1, 1]} : vector<4x1024xbf16> to vector<4x512xbf16>
    %c15 = arith.constant 15 : index
    %c0_50 = arith.constant 0 : index
    %c0_51 = arith.constant 0 : index
    %80 = vector.load %arg4[%c15, %c0_50, %c0_51] : memref<27x8x4xbf16, #tpu.memory_space<vmem>>, vector<1x8x4xbf16>
    %81 = vector.shape_cast %80 : vector<1x8x4xbf16> to vector<8x4xbf16>
    %cst_52 = arith.constant dense<0.000000e+00> : vector<8x512xf32>
    %82 = tpu.matmul %81, %79, %cst_52 {dimension_numbers = #tpu.dot_dimension_numbers<[1], [0], [0], [1], [0, 0, 1, 1], [], []>} : vector<8x4xbf16>, vector<4x512xbf16>, vector<8x512xf32> -> vector<8x512xf32>
    %83 = arith.addf %78, %82 : vector<8x512xf32>
    %84 = vector.extract_strided_slice %4 {offsets = [0, 121], sizes = [4, 512], strides = [1, 1]} : vector<4x1024xbf16> to vector<4x512xbf16>
    %c16 = arith.constant 16 : index
    %c0_53 = arith.constant 0 : index
    %c0_54 = arith.constant 0 : index
    %85 = vector.load %arg4[%c16, %c0_53, %c0_54] : memref<27x8x4xbf16, #tpu.memory_space<vmem>>, vector<1x8x4xbf16>
    %86 = vector.shape_cast %85 : vector<1x8x4xbf16> to vector<8x4xbf16>
    %cst_55 = arith.constant dense<0.000000e+00> : vector<8x512xf32>
    %87 = tpu.matmul %86, %84, %cst_55 {dimension_numbers = #tpu.dot_dimension_numbers<[1], [0], [0], [1], [0, 0, 1, 1], [], []>} : vector<8x4xbf16>, vector<4x512xbf16>, vector<8x512xf32> -> vector<8x512xf32>
    %88 = arith.addf %83, %87 : vector<8x512xf32>
    %89 = vector.extract_strided_slice %4 {offsets = [0, 122], sizes = [4, 512], strides = [1, 1]} : vector<4x1024xbf16> to vector<4x512xbf16>
    %c17 = arith.constant 17 : index
    %c0_56 = arith.constant 0 : index
    %c0_57 = arith.constant 0 : index
    %90 = vector.load %arg4[%c17, %c0_56, %c0_57] : memref<27x8x4xbf16, #tpu.memory_space<vmem>>, vector<1x8x4xbf16>
    %91 = vector.shape_cast %90 : vector<1x8x4xbf16> to vector<8x4xbf16>
    %cst_58 = arith.constant dense<0.000000e+00> : vector<8x512xf32>
    %92 = tpu.matmul %91, %89, %cst_58 {dimension_numbers = #tpu.dot_dimension_numbers<[1], [0], [0], [1], [0, 0, 1, 1], [], []>} : vector<8x4xbf16>, vector<4x512xbf16>, vector<8x512xf32> -> vector<8x512xf32>
    %93 = arith.addf %88, %92 : vector<8x512xf32>
    %94 = vector.extract_strided_slice %4 {offsets = [0, 200], sizes = [4, 512], strides = [1, 1]} : vector<4x1024xbf16> to vector<4x512xbf16>
    %c18 = arith.constant 18 : index
    %c0_59 = arith.constant 0 : index
    %c0_60 = arith.constant 0 : index
    %95 = vector.load %arg4[%c18, %c0_59, %c0_60] : memref<27x8x4xbf16, #tpu.memory_space<vmem>>, vector<1x8x4xbf16>
    %96 = vector.shape_cast %95 : vector<1x8x4xbf16> to vector<8x4xbf16>
    %cst_61 = arith.constant dense<0.000000e+00> : vector<8x512xf32>
    %97 = tpu.matmul %96, %94, %cst_61 {dimension_numbers = #tpu.dot_dimension_numbers<[1], [0], [0], [1], [0, 0, 1, 1], [], []>} : vector<8x4xbf16>, vector<4x512xbf16>, vector<8x512xf32> -> vector<8x512xf32>
    %98 = arith.addf %93, %97 : vector<8x512xf32>
    %99 = vector.extract_strided_slice %4 {offsets = [0, 201], sizes = [4, 512], strides = [1, 1]} : vector<4x1024xbf16> to vector<4x512xbf16>
    %c19 = arith.constant 19 : index
    %c0_62 = arith.constant 0 : index
    %c0_63 = arith.constant 0 : index
    %100 = vector.load %arg4[%c19, %c0_62, %c0_63] : memref<27x8x4xbf16, #tpu.memory_space<vmem>>, vector<1x8x4xbf16>
    %101 = vector.shape_cast %100 : vector<1x8x4xbf16> to vector<8x4xbf16>
    %cst_64 = arith.constant dense<0.000000e+00> : vector<8x512xf32>
    %102 = tpu.matmul %101, %99, %cst_64 {dimension_numbers = #tpu.dot_dimension_numbers<[1], [0], [0], [1], [0, 0, 1, 1], [], []>} : vector<8x4xbf16>, vector<4x512xbf16>, vector<8x512xf32> -> vector<8x512xf32>
    %103 = arith.addf %98, %102 : vector<8x512xf32>
    %104 = vector.extract_strided_slice %4 {offsets = [0, 202], sizes = [4, 512], strides = [1, 1]} : vector<4x1024xbf16> to vector<4x512xbf16>
    %c20 = arith.constant 20 : index
    %c0_65 = arith.constant 0 : index
    %c0_66 = arith.constant 0 : index
    %105 = vector.load %arg4[%c20, %c0_65, %c0_66] : memref<27x8x4xbf16, #tpu.memory_space<vmem>>, vector<1x8x4xbf16>
    %106 = vector.shape_cast %105 : vector<1x8x4xbf16> to vector<8x4xbf16>
    %cst_67 = arith.constant dense<0.000000e+00> : vector<8x512xf32>
    %107 = tpu.matmul %106, %104, %cst_67 {dimension_numbers = #tpu.dot_dimension_numbers<[1], [0], [0], [1], [0, 0, 1, 1], [], []>} : vector<8x4xbf16>, vector<4x512xbf16>, vector<8x512xf32> -> vector<8x512xf32>
    %108 = arith.addf %103, %107 : vector<8x512xf32>
    %109 = vector.extract_strided_slice %4 {offsets = [0, 210], sizes = [4, 512], strides = [1, 1]} : vector<4x1024xbf16> to vector<4x512xbf16>
    %c21 = arith.constant 21 : index
    %c0_68 = arith.constant 0 : index
    %c0_69 = arith.constant 0 : index
    %110 = vector.load %arg4[%c21, %c0_68, %c0_69] : memref<27x8x4xbf16, #tpu.memory_space<vmem>>, vector<1x8x4xbf16>
    %111 = vector.shape_cast %110 : vector<1x8x4xbf16> to vector<8x4xbf16>
    %cst_70 = arith.constant dense<0.000000e+00> : vector<8x512xf32>
    %112 = tpu.matmul %111, %109, %cst_70 {dimension_numbers = #tpu.dot_dimension_numbers<[1], [0], [0], [1], [0, 0, 1, 1], [], []>} : vector<8x4xbf16>, vector<4x512xbf16>, vector<8x512xf32> -> vector<8x512xf32>
    %113 = arith.addf %108, %112 : vector<8x512xf32>
    %114 = vector.extract_strided_slice %4 {offsets = [0, 211], sizes = [4, 512], strides = [1, 1]} : vector<4x1024xbf16> to vector<4x512xbf16>
    %c22 = arith.constant 22 : index
    %c0_71 = arith.constant 0 : index
    %c0_72 = arith.constant 0 : index
    %115 = vector.load %arg4[%c22, %c0_71, %c0_72] : memref<27x8x4xbf16, #tpu.memory_space<vmem>>, vector<1x8x4xbf16>
    %116 = vector.shape_cast %115 : vector<1x8x4xbf16> to vector<8x4xbf16>
    %cst_73 = arith.constant dense<0.000000e+00> : vector<8x512xf32>
    %117 = tpu.matmul %116, %114, %cst_73 {dimension_numbers = #tpu.dot_dimension_numbers<[1], [0], [0], [1], [0, 0, 1, 1], [], []>} : vector<8x4xbf16>, vector<4x512xbf16>, vector<8x512xf32> -> vector<8x512xf32>
    %118 = arith.addf %113, %117 : vector<8x512xf32>
    %119 = vector.extract_strided_slice %4 {offsets = [0, 212], sizes = [4, 512], strides = [1, 1]} : vector<4x1024xbf16> to vector<4x512xbf16>
    %c23 = arith.constant 23 : index
    %c0_74 = arith.constant 0 : index
    %c0_75 = arith.constant 0 : index
    %120 = vector.load %arg4[%c23, %c0_74, %c0_75] : memref<27x8x4xbf16, #tpu.memory_space<vmem>>, vector<1x8x4xbf16>
    %121 = vector.shape_cast %120 : vector<1x8x4xbf16> to vector<8x4xbf16>
    %cst_76 = arith.constant dense<0.000000e+00> : vector<8x512xf32>
    %122 = tpu.matmul %121, %119, %cst_76 {dimension_numbers = #tpu.dot_dimension_numbers<[1], [0], [0], [1], [0, 0, 1, 1], [], []>} : vector<8x4xbf16>, vector<4x512xbf16>, vector<8x512xf32> -> vector<8x512xf32>
    %123 = arith.addf %118, %122 : vector<8x512xf32>
    %124 = vector.extract_strided_slice %4 {offsets = [0, 220], sizes = [4, 512], strides = [1, 1]} : vector<4x1024xbf16> to vector<4x512xbf16>
    %c24 = arith.constant 24 : index
    %c0_77 = arith.constant 0 : index
    %c0_78 = arith.constant 0 : index
    %125 = vector.load %arg4[%c24, %c0_77, %c0_78] : memref<27x8x4xbf16, #tpu.memory_space<vmem>>, vector<1x8x4xbf16>
    %126 = vector.shape_cast %125 : vector<1x8x4xbf16> to vector<8x4xbf16>
    %cst_79 = arith.constant dense<0.000000e+00> : vector<8x512xf32>
    %127 = tpu.matmul %126, %124, %cst_79 {dimension_numbers = #tpu.dot_dimension_numbers<[1], [0], [0], [1], [0, 0, 1, 1], [], []>} : vector<8x4xbf16>, vector<4x512xbf16>, vector<8x512xf32> -> vector<8x512xf32>
    %128 = arith.addf %123, %127 : vector<8x512xf32>
    %129 = vector.extract_strided_slice %4 {offsets = [0, 221], sizes = [4, 512], strides = [1, 1]} : vector<4x1024xbf16> to vector<4x512xbf16>
    %c25 = arith.constant 25 : index
    %c0_80 = arith.constant 0 : index
    %c0_81 = arith.constant 0 : index
    %130 = vector.load %arg4[%c25, %c0_80, %c0_81] : memref<27x8x4xbf16, #tpu.memory_space<vmem>>, vector<1x8x4xbf16>
    %131 = vector.shape_cast %130 : vector<1x8x4xbf16> to vector<8x4xbf16>
    %cst_82 = arith.constant dense<0.000000e+00> : vector<8x512xf32>
    %132 = tpu.matmul %131, %129, %cst_82 {dimension_numbers = #tpu.dot_dimension_numbers<[1], [0], [0], [1], [0, 0, 1, 1], [], []>} : vector<8x4xbf16>, vector<4x512xbf16>, vector<8x512xf32> -> vector<8x512xf32>
    %133 = arith.addf %128, %132 : vector<8x512xf32>
    %134 = vector.extract_strided_slice %4 {offsets = [0, 222], sizes = [4, 512], strides = [1, 1]} : vector<4x1024xbf16> to vector<4x512xbf16>
    %c26 = arith.constant 26 : index
    %c0_83 = arith.constant 0 : index
    %c0_84 = arith.constant 0 : index
    %135 = vector.load %arg4[%c26, %c0_83, %c0_84] : memref<27x8x4xbf16, #tpu.memory_space<vmem>>, vector<1x8x4xbf16>
    %136 = vector.shape_cast %135 : vector<1x8x4xbf16> to vector<8x4xbf16>
    %cst_85 = arith.constant dense<0.000000e+00> : vector<8x512xf32>
    %137 = tpu.matmul %136, %134, %cst_85 {dimension_numbers = #tpu.dot_dimension_numbers<[1], [0], [0], [1], [0, 0, 1, 1], [], []>} : vector<8x4xbf16>, vector<4x512xbf16>, vector<8x512xf32> -> vector<8x512xf32>
    %138 = arith.addf %133, %137 : vector<8x512xf32>
    %c0_86 = arith.constant 0 : index
    %c0_87 = arith.constant 0 : index
    %139 = vector.load %arg5[%c0_86, %c0_87] : memref<8x1xf32, #tpu.memory_space<vmem>>, vector<8x1xf32>
    %140 = vector.broadcast %139 : vector<8x1xf32> to vector<8x512xf32>
    %141 = arith.addf %138, %140 : vector<8x512xf32>
    %cst_88 = arith.constant 0.000000e+00 : f32
    %142 = vector.broadcast %cst_88 : f32 to vector<8x512xf32>
    %143 = arith.maximumf %141, %142 : vector<8x512xf32>
    %c0_89 = arith.constant 0 : index
    %c0_90 = arith.constant 0 : index
    %c0_91 = arith.constant 0 : index
    %144 = vector.load %arg8[%c0_89, %c0_90, %c0_91] : memref<1x8x4xf32, #tpu.memory_space<vmem>>, vector<1x8x4xf32>
    %145 = vector.shape_cast %144 : vector<1x8x4xf32> to vector<8x4xf32>
    %146 = vector.extract_strided_slice %145 {offsets = [0, 0], sizes = [8, 1], strides = [1, 1]} : vector<8x4xf32> to vector<8x1xf32>
    %147 = vector.broadcast %146 : vector<8x1xf32> to vector<8x512xf32>
    %148 = arith.mulf %147, %143 : vector<8x512xf32>
    %149 = vector.extract_strided_slice %145 {offsets = [0, 1], sizes = [8, 1], strides = [1, 1]} : vector<8x4xf32> to vector<8x1xf32>
    %150 = vector.broadcast %149 : vector<8x1xf32> to vector<8x512xf32>
    %151 = arith.addf %148, %150 : vector<8x512xf32>
    %152 = vector.extract_strided_slice %4 {offsets = [0, 111], sizes = [4, 512], strides = [1, 1]} : vector<4x1024xbf16> to vector<4x512xbf16>
    %c0_92 = arith.constant 0 : index
    %c0_93 = arith.constant 0 : index
    %153 = vector.load %arg6[%c0_92, %c0_93] : memref<8x4xbf16, #tpu.memory_space<vmem>>, vector<8x4xbf16>
    %cst_94 = arith.constant dense<0.000000e+00> : vector<8x512xf32>
    %154 = tpu.matmul %153, %152, %cst_94 {dimension_numbers = #tpu.dot_dimension_numbers<[1], [0], [0], [1], [0, 0, 1, 1], [], []>} : vector<8x4xbf16>, vector<4x512xbf16>, vector<8x512xf32> -> vector<8x512xf32>
    %c0_95 = arith.constant 0 : index
    %c0_96 = arith.constant 0 : index
    %155 = vector.load %arg7[%c0_95, %c0_96] : memref<8x1xf32, #tpu.memory_space<vmem>>, vector<8x1xf32>
    %156 = vector.broadcast %155 : vector<8x1xf32> to vector<8x512xf32>
    %157 = arith.addf %154, %156 : vector<8x512xf32>
    %cst_97 = arith.constant 0.000000e+00 : f32
    %158 = vector.broadcast %cst_97 : f32 to vector<8x512xf32>
    %159 = arith.maximumf %157, %158 : vector<8x512xf32>
    %160 = vector.extract_strided_slice %145 {offsets = [0, 2], sizes = [8, 1], strides = [1, 1]} : vector<8x4xf32> to vector<8x1xf32>
    %161 = vector.broadcast %160 : vector<8x1xf32> to vector<8x512xf32>
    %162 = arith.mulf %161, %159 : vector<8x512xf32>
    %163 = arith.addf %151, %162 : vector<8x512xf32>
    %164 = vector.extract_strided_slice %145 {offsets = [0, 3], sizes = [8, 1], strides = [1, 1]} : vector<8x4xf32> to vector<8x1xf32>
    %165 = vector.broadcast %164 : vector<8x1xf32> to vector<8x512xf32>
    %166 = arith.addf %163, %165 : vector<8x512xf32>
    %c0_98 = arith.constant 0 : index
    %c0_99 = arith.constant 0 : index
    %c0_100 = arith.constant 0 : index
    %167 = vector.load %arg9[%c0_98, %c0_99, %c0_100] : memref<1x8x512xf32, #tpu.memory_space<vmem>>, vector<1x8x512xf32>
    %168 = vector.shape_cast %167 : vector<1x8x512xf32> to vector<8x512xf32>
    %169 = vector.shape_cast %166 : vector<8x512xf32> to vector<1x8x512xf32>
    tpu.vector_store %arg9[%c0_98, %c0_99, %c0_100], %169 {strides = array<i32>} : memref<1x8x512xf32, #tpu.memory_space<vmem>>, vector<1x8x512xf32>,
    return
  }
  func.func @transform_0(%arg0: i32, %arg1: i32) -> (i32, i32, i32) {
    %c0_i32 = arith.constant 0 : i32
    %0 = arith.addi %arg1, %c0_i32 : i32
    %c1_i32 = arith.constant 1 : i32
    %1 = arith.minsi %0, %c1_i32 : i32
    %c0_i32_0 = arith.constant 0 : i32
    %c0_i32_1 = arith.constant 0 : i32
    return %arg0, %c0_i32_0, %1 : i32, i32, i32
  }
  func.func @transform_1(%arg0: i32, %arg1: i32) -> (i32, i32, i32) {
    %c1_i32 = arith.constant 1 : i32
    %0 = arith.addi %arg1, %c1_i32 : i32
    %c1_i32_0 = arith.constant 1 : i32
    %1 = arith.minsi %0, %c1_i32_0 : i32
    %c0_i32 = arith.constant 0 : i32
    %c0_i32_1 = arith.constant 0 : i32
    return %arg0, %c0_i32, %1 : i32, i32, i32
  }
  func.func @transform_2(%arg0: i32, %arg1: i32) -> (i32, i32, i32) {
    %c0_i32 = arith.constant 0 : i32
    %c0_i32_0 = arith.constant 0 : i32
    %c0_i32_1 = arith.constant 0 : i32
    %c0_i32_2 = arith.constant 0 : i32
    return %c0_i32, %c0_i32_0, %c0_i32_1 : i32, i32, i32
  }
  func.func @transform_3(%arg0: i32, %arg1: i32) -> (i32, i32) {
    %c0_i32 = arith.constant 0 : i32
    %c0_i32_0 = arith.constant 0 : i32
    %c0_i32_1 = arith.constant 0 : i32
    return %c0_i32, %c0_i32_0 : i32, i32
  }
  func.func @transform_4(%arg0: i32, %arg1: i32) -> (i32, i32) {
    %c0_i32 = arith.constant 0 : i32
    %c0_i32_0 = arith.constant 0 : i32
    %c0_i32_1 = arith.constant 0 : i32
    return %c0_i32, %c0_i32_0 : i32, i32
  }
  func.func @transform_5(%arg0: i32, %arg1: i32) -> (i32, i32) {
    %c0_i32 = arith.constant 0 : i32
    %c0_i32_0 = arith.constant 0 : i32
    %c0_i32_1 = arith.constant 0 : i32
    return %c0_i32, %c0_i32_0 : i32, i32
  }
  func.func @transform_6(%arg0: i32, %arg1: i32) -> (i32, i32, i32) {
    %c0_i32 = arith.constant 0 : i32
    %c0_i32_0 = arith.constant 0 : i32
    %c0_i32_1 = arith.constant 0 : i32
    return %arg0, %c0_i32, %c0_i32_0 : i32, i32, i32
  }
  func.func @transform_7(%arg0: i32, %arg1: i32) -> (i32, i32, i32) {
    %c0_i32 = arith.constant 0 : i32
    %c0_i32_0 = arith.constant 0 : i32
    return %arg0, %c0_i32, %arg1 : i32, i32, i32
  }
}

</mosaic_0001>

<llo_original>
// kernel: res_se_norm_conv3d.2
$region0: #{res_se_norm_conv3d.2}
  #allocation0 [shape = 'u32[]', space=smem, size = 0x4, offset = 0x4, fixed_abs, tag = 'smem constant byte address 0x4 - core index']
  #allocation1 [shape = 'u32[72,128]{1,0:T(1,128)}', space=vmem, size = 0x9000, scoped, tag = 'internal scratch']
  %s0 = inlined_call_operand.vmem [shape: bf16[2,4,1024], index: 0, kind: input, shape index: {}, may-alias: {0,1}]
  %s1 = inlined_call_operand.vmem [shape: bf16[2,4,1024], index: 1, kind: input, shape index: {}, may-alias: {0,1}]
  %s2 = inlined_call_operand.vmem [shape: f32[1,1024], index: 2, kind: input, shape index: {}]
  %s3 = inlined_call_operand.vmem [shape: bf16[27,8,4], index: 3, kind: input, shape index: {}]
  %s4 = inlined_call_operand.vmem [shape: f32[8,1], index: 4, kind: input, shape index: {}]
  %s5 = inlined_call_operand.vmem [shape: bf16[8,4], index: 5, kind: input, shape index: {}]
  %s6 = inlined_call_operand.vmem [shape: f32[8,1], index: 6, kind: input, shape index: {}]
  %s7 = inlined_call_operand.vmem [shape: f32[2,8,4], index: 7, kind: output, shape index: {}]
  %s8 = sld [smem:[#allocation0]]
  $region65: #{res_se_norm_conv3d.2} parent=0
    _
  %s10 = ssub.s32 1, %s8
  %s11 = scalar_select 0, %s10, %s8
  loop: start=0, step=1, limit=6
  $region2: #{res_se_norm_conv3d.2} parent=0 // loop_pre_header
    _
  $region3: #{res_se_norm_conv3d.2} parent=0 // loop_header
    %s13 = sphi 0, %s17
    %p14 = scmp.ge.s32.totalorder %s13, 6
    %s20 = sphi 0, %s32
    %s21 = sphi 0, %s28
    %s22 = sphi 0, %s20
    %s23 = sphi 0, %s21
    %s24 = sphi 0, %s22
    %s25 = sphi 0, %s23
    %s41 = sphi 0, %s43
    %s44 = sphi 0, %s41
    %s45 = sphi 0, %s44
    %s61 = sphi 0, %s45
    %s75 = sphi 0, %s77
    %s78 = sphi 0, %s75
    %s79 = sphi 0, %s78
    %s95 = sphi 0, %s79
    %s101 = sphi 0, %s103
    %s104 = sphi 0, %s101
    %s105 = sphi 0, %s104
    %s121 = sphi 0, %s105
    %s125 = sphi 0, %s125
    %s127 = sphi 0, %s125
    %s128 = sphi 0, %s127
    %s142 = sphi 0, %s128
    %s146 = sphi 0, %s146
    %s148 = sphi 0, %s146
    %s149 = sphi 0, %s148
    %s163 = sphi 0, %s149
    %s167 = sphi 0, %s167
    %s169 = sphi 0, %s167
    %s170 = sphi 0, %s169
    %s184 = sphi 0, %s170
    %s188 = sphi 0, %s188
    %s190 = sphi 0, %s188
    %s191 = sphi 0, %s190
    %s205 = sphi 0, %s191
    %s211 = sphi 0, %s213
    %s214 = sphi 0, %s211
    %s215 = sphi 0, %s214
    %s231 = sphi 0, %s215
  $region4: #{res_se_norm_conv3d.2} parent=0 // loop_header_branch
    %16 = sbr.rel (%p14) target = $region8
  $region5: #{res_se_norm_conv3d.2} parent=0 // loop_body
    %s18 = ssub.s32 %s13, 1
    %s19 = ssub.s32 %s13, 2
    %s26 = sadd.s32 1, %s21
    %p27 = scmp.ge.s32.totalorder %s26, 2
    %s28 = scalar_select %p27, 0, %s26
    %s29 = sadd.s32 1, %s20
    %s30 = scalar_select %p27, %s29, %s20
    %p31 = scmp.ge.s32.totalorder %s30, 2
    %s32 = scalar_select %p31, 0, %s30
    %p33 = scmp.lt.s32.totalorder %s21, 1
    %s34 = scalar_select %p33, %s21, 1
    %p35 = scmp.lt.s32.totalorder %s28, 1
    %s36 = scalar_select %p35, %s28, 1
    %s37 = ssub.s32 %s20, %s32
    %s38 = ssub.s32 %s34, %s36
    %s39 = sor.u32 %s37, %s38
    %p40 = scmp.eq.s32.totalorder %s39, 0
    %s42 = sadd.s32 %s41, 1
    %s43 = scalar_select %p40, %s41, %s42
    %p46 = pneg %p40
    %p47 = scmp.eq.s32.totalorder %s13, 3
    %p48 = por %p46, %p47
    %p49 = scmp.ne.s32.totalorder %s41, %s44
    %p50 = scmp.eq.s32.totalorder %s13, 0
    %p51 = por %p49, %p50
    %p52 = scmp.ne.s32.totalorder %s41, %s44
    %p53 = scmp.eq.s32.totalorder %s18, 3
    %p54 = por %p52, %p53
    %p55 = scmp.ne.s32.totalorder %s44, %s45
    %p56 = scmp.eq.s32.totalorder %s18, 0
    %p57 = por %p55, %p56
    %p58 = scmp.ne.s32.totalorder %s44, %s45
    %p59 = scmp.eq.s32.totalorder %s19, 3
    %p60 = por %p58, %p59
    %p62 = scmp.ne.s32.totalorder %s45, %s61
    %p63 = scmp.eq.s32.totalorder %s19, 0
    %p64 = por %p62, %p63
    %s65 = sadd.s32 %s21, 1
    %p66 = scmp.lt.s32.totalorder %s65, 1
    %s67 = scalar_select %p66, %s65, 1
    %s68 = sadd.s32 %s28, 1
    %p69 = scmp.lt.s32.totalorder %s68, 1
    %s70 = scalar_select %p69, %s68, 1
    %s71 = ssub.s32 %s20, %s32
    %s72 = ssub.s32 %s67, %s70
    %s73 = sor.u32 %s71, %s72
    %p74 = scmp.eq.s32.totalorder %s73, 0
    %s76 = sadd.s32 %s75, 1
    %s77 = scalar_select %p74, %s75, %s76
    %p80 = pneg %p74
    %p81 = scmp.eq.s32.totalorder %s13, 3
    %p82 = por %p80, %p81
    %p83 = scmp.ne.s32.totalorder %s75, %s78
    %p84 = scmp.eq.s32.totalorder %s13, 0
    %p85 = por %p83, %p84
    %p86 = scmp.ne.s32.totalorder %s75, %s78
    %p87 = scmp.eq.s32.totalorder %s18, 3
    %p88 = por %p86, %p87
    %p89 = scmp.ne.s32.totalorder %s78, %s79
    %p90 = scmp.eq.s32.totalorder %s18, 0
    %p91 = por %p89, %p90
    %p92 = scmp.ne.s32.totalorder %s78, %s79
    %p93 = scmp.eq.s32.totalorder %s19, 3
    %p94 = por %p92, %p93
    %p96 = scmp.ne.s32.totalorder %s79, %s95
    %p97 = scmp.eq.s32.totalorder %s19, 0
    %p98 = por %p96, %p97
    %s99 = ssub.s32 %s21, %s28
    %p100 = scmp.eq.s32.totalorder %s99, 0
    %s102 = sadd.s32 %s101, 1
    %s103 = scalar_select %p100, %s101, %s102
    %p106 = pneg %p100
    %p107 = scmp.eq.s32.totalorder %s13, 3
    %p108 = por %p106, %p107
    %p109 = scmp.ne.s32.totalorder %s101, %s104
    %p110 = scmp.eq.s32.totalorder %s13, 0
    %p111 = por %p109, %p110
    %p112 = scmp.ne.s32.totalorder %s101, %s104
    %p113 = scmp.eq.s32.totalorder %s18, 3
    %p114 = por %p112, %p113
    %p115 = scmp.ne.s32.totalorder %s104, %s105
    %p116 = scmp.eq.s32.totalorder %s18, 0
    %p117 = por %p115, %p116
    %p118 = scmp.ne.s32.totalorder %s104, %s105
    %p119 = scmp.eq.s32.totalorder %s19, 3
    %p120 = por %p118, %p119
    %p122 = scmp.ne.s32.totalorder %s105, %s121
    %p123 = scmp.eq.s32.totalorder %s19, 0
    %p124 = por %p122, %p123
    %s126 = sadd.s32 %s125, 1
    %p129 = scmp.eq.s32.totalorder %s13, 3
    %p130 = scmp.ne.s32.totalorder %s125, %s127
    %p131 = scmp.eq.s32.totalorder %s13, 0
    %p132 = por %p130, %p131
    %p133 = scmp.ne.s32.totalorder %s125, %s127
    %p134 = scmp.eq.s32.totalorder %s18, 3
    %p135 = por %p133, %p134
    %p136 = scmp.ne.s32.totalorder %s127, %s128
    %p137 = scmp.eq.s32.totalorder %s18, 0
    %p138 = por %p136, %p137
    %p139 = scmp.ne.s32.totalorder %s127, %s128
    %p140 = scmp.eq.s32.totalorder %s19, 3
    %p141 = por %p139, %p140
    %p143 = scmp.ne.s32.totalorder %s128, %s142
    %p144 = scmp.eq.s32.totalorder %s19, 0
    %p145 = por %p143, %p144
    %s147 = sadd.s32 %s146, 1
    %p150 = scmp.eq.s32.totalorder %s13, 3
    %p151 = scmp.ne.s32.totalorder %s146, %s148
    %p152 = scmp.eq.s32.totalorder %s13, 0
    %p153 = por %p151, %p152
    %p154 = scmp.ne.s32.totalorder %s146, %s148
    %p155 = scmp.eq.s32.totalorder %s18, 3
    %p156 = por %p154, %p155
    %p157 = scmp.ne.s32.totalorder %s148, %s149
    %p158 = scmp.eq.s32.totalorder %s18, 0
    %p159 = por %p157, %p158
    %p160 = scmp.ne.s32.totalorder %s148, %s149
    %p161 = scmp.eq.s32.totalorder %s19, 3
    %p162 = por %p160, %p161
    %p164 = scmp.ne.s32.totalorder %s149, %s163
    %p165 = scmp.eq.s32.totalorder %s19, 0
    %p166 = por %p164, %p165
    %s168 = sadd.s32 %s167, 1
    %p171 = scmp.eq.s32.totalorder %s13, 3
    %p172 = scmp.ne.s32.totalorder %s167, %s169
    %p173 = scmp.eq.s32.totalorder %s13, 0
    %p174 = por %p172, %p173
    %p175 = scmp.ne.s32.totalorder %s167, %s169
    %p176 = scmp.eq.s32.totalorder %s18, 3
    %p177 = por %p175, %p176
    %p178 = scmp.ne.s32.totalorder %s169, %s170
    %p179 = scmp.eq.s32.totalorder %s18, 0
    %p180 = por %p178, %p179
    %p181 = scmp.ne.s32.totalorder %s169, %s170
    %p182 = scmp.eq.s32.totalorder %s19, 3
    %p183 = por %p181, %p182
    %p185 = scmp.ne.s32.totalorder %s170, %s184
    %p186 = scmp.eq.s32.totalorder %s19, 0
    %p187 = por %p185, %p186
    %s189 = sadd.s32 %s188, 1
    %p192 = scmp.eq.s32.totalorder %s13, 3
    %p193 = scmp.ne.s32.totalorder %s188, %s190
    %p194 = scmp.eq.s32.totalorder %s13, 0
    %p195 = por %p193, %p194
    %p196 = scmp.ne.s32.totalorder %s188, %s190
    %p197 = scmp.eq.s32.totalorder %s18, 3
    %p198 = por %p196, %p197
    %p199 = scmp.ne.s32.totalorder %s190, %s191
    %p200 = scmp.eq.s32.totalorder %s18, 0
    %p201 = por %p199, %p200
    %p202 = scmp.ne.s32.totalorder %s190, %s191
    %p203 = scmp.eq.s32.totalorder %s19, 3
    %p204 = por %p202, %p203
    %p206 = scmp.ne.s32.totalorder %s191, %s205
    %p207 = scmp.eq.s32.totalorder %s19, 0
    %p208 = por %p206, %p207
    %s209 = ssub.s32 %s20, %s32
    %p210 = scmp.eq.s32.totalorder %s209, 0
    %s212 = sadd.s32 %s211, 1
    %s213 = scalar_select %p210, %s211, %s212
    %p216 = pneg %p210
    %p217 = scmp.eq.s32.totalorder %s13, 3
    %p218 = por %p216, %p217
    %p219 = scmp.ne.s32.totalorder %s211, %s214
    %p220 = scmp.eq.s32.totalorder %s13, 0
    %p221 = por %p219, %p220
    %p222 = scmp.ne.s32.totalorder %s211, %s214
    %p223 = scmp.eq.s32.totalorder %s18, 3
    %p224 = por %p222, %p223
    %p225 = scmp.ne.s32.totalorder %s214, %s215
    %p226 = scmp.eq.s32.totalorder %s18, 0
    %p227 = por %p225, %p226
    %p228 = scmp.ne.s32.totalorder %s214, %s215
    %p229 = scmp.eq.s32.totalorder %s19, 3
    %p230 = por %p228, %p229
    %p232 = scmp.ne.s32.totalorder %s215, %s231
    %p233 = scmp.eq.s32.totalorder %s19, 0
    %p234 = por %p232, %p233
    %p235 = scmp.le.s32.totalorder 1, %s13
    %p236 = scmp.lt.s32.totalorder %s13, 5
    %p237 = pnand %p235, %p236
    %p238 = pneg %p237
    // Predicated region
    $region9: #{res_se_norm_conv3d.2} parent=5 // pred_check
      _
    $region10: #{res_se_norm_conv3d.2} parent=5 // pred_check_branch
      %240 = sbr.rel (%p237) target = $region12
    $region11: #{res_se_norm_conv3d.2} parent=5 // pred_region
      %s241 = ssub.s32 %s13, 1
      // Predicated region
      $region13: #{res_se_norm_conv3d.2} parent=11 // pred_check
        %p242 = pneg %p138
      $region14: #{res_se_norm_conv3d.2} parent=11 // pred_check_branch
        %244 = sbr.rel (%p242) target = $region16
      $region15: #{res_se_norm_conv3d.2} parent=11 // pred_region
        _
      $region16: #{res_se_norm_conv3d.2} parent=11 // pred_fallthru
        _
      // Predicated region
      $region17: #{res_se_norm_conv3d.2} parent=11 // pred_check
        %p245 = pneg %p159
      $region18: #{res_se_norm_conv3d.2} parent=11 // pred_check_branch
        %247 = sbr.rel (%p245) target = $region20
      $region19: #{res_se_norm_conv3d.2} parent=11 // pred_region
        _
      $region20: #{res_se_norm_conv3d.2} parent=11 // pred_fallthru
        _
      // Predicated region
      $region21: #{res_se_norm_conv3d.2} parent=11 // pred_check
        %p248 = pneg %p180
      $region22: #{res_se_norm_conv3d.2} parent=11 // pred_check_branch
        %250 = sbr.rel (%p248) target = $region24
      $region23: #{res_se_norm_conv3d.2} parent=11 // pred_region
        _
      $region24: #{res_se_norm_conv3d.2} parent=11 // pred_fallthru
        _
      // Predicated region
      $region25: #{res_se_norm_conv3d.2} parent=11 // pred_check
        %p251 = pneg %p201
      $region26: #{res_se_norm_conv3d.2} parent=11 // pred_check_branch
        %253 = sbr.rel (%p251) target = $region28
      $region27: #{res_se_norm_conv3d.2} parent=11 // pred_region
        _
      $region28: #{res_se_norm_conv3d.2} parent=11 // pred_fallthru
        _
    $region12: #{res_se_norm_conv3d.2} parent=5 // pred_fallthru
      _
    %p254 = scmp.lt.s32.totalorder %s13, 4
    // Predicated region
    $region29: #{res_se_norm_conv3d.2} parent=5 // pred_check
      %p255 = pneg %p254
    $region30: #{res_se_norm_conv3d.2} parent=5 // pred_check_branch
      %257 = sbr.rel (%p255) target = $region32
    $region31: #{res_se_norm_conv3d.2} parent=5 // pred_region
      // Predicated region
      $region33: #{res_se_norm_conv3d.2} parent=31 // pred_check
        %p258 = pneg %p51
      $region34: #{res_se_norm_conv3d.2} parent=31 // pred_check_branch
        %260 = sbr.rel (%p258) target = $region36
      $region35: #{res_se_norm_conv3d.2} parent=31 // pred_region
        %p261 = scmp.lt.s32.totalorder %s21, 1
        %s262 = scalar_select %p261, %s21, 1
        %s263 = smul.u32 4, %s262
        %p264 = scmp.lt.s32.totalorder %s20, 1
        %s265 = scalar_select %p264, %s20, 1
        %p266 = scmp.lt.s32.totalorder %s263, 7
        %s267 = scalar_select %p266, %s263, 7
        %s268 = smul.addr %s265, 8
        %s269 = sadd.s32 %s267, %s268
        %s270 = smul.addr %s269, 2
        %s271 = scalar_lea.vmem %s0, %s270
        %p272 = scmp.lt.s32.totalorder %s21, 1
        %s273 = scalar_select %p272, %s21, 1
        %s274 = smul.u32 4, %s273
      $region36: #{res_se_norm_conv3d.2} parent=31 // pred_fallthru
        _
      // Predicated region
      $region37: #{res_se_norm_conv3d.2} parent=31 // pred_check
        %p275 = pneg %p85
      $region38: #{res_se_norm_conv3d.2} parent=31 // pred_check_branch
        %277 = sbr.rel (%p275) target = $region40
      $region39: #{res_se_norm_conv3d.2} parent=31 // pred_region
        %s278 = sadd.s32 %s21, 1
        %p279 = scmp.lt.s32.totalorder %s278, 1
        %s280 = scalar_select %p279, %s278, 1
        %s281 = smul.u32 4, %s280
        %p282 = scmp.lt.s32.totalorder %s20, 1
        %s283 = scalar_select %p282, %s20, 1
        %p284 = scmp.lt.s32.totalorder %s281, 7
        %s285 = scalar_select %p284, %s281, 7
        %s286 = smul.addr %s283, 8
        %s287 = sadd.s32 %s285, %s286
        %s288 = smul.addr %s287, 2
        %s289 = scalar_lea.vmem %s1, %s288
        %s290 = sadd.s32 %s21, 1
        %p291 = scmp.lt.s32.totalorder %s290, 1
        %s292 = scalar_select %p291, %s290, 1
        %s293 = smul.u32 4, %s292
      $region40: #{res_se_norm_conv3d.2} parent=31 // pred_fallthru
        _
      // Predicated region
      $region41: #{res_se_norm_conv3d.2} parent=31 // pred_check
        %p294 = pneg %p111
      $region42: #{res_se_norm_conv3d.2} parent=31 // pred_check_branch
        %296 = sbr.rel (%p294) target = $region44
      $region43: #{res_se_norm_conv3d.2} parent=31 // pred_region
        %s297 = smul.u32 4, %s21
        %p298 = scmp.lt.s32.totalorder %s297, 7
        %s299 = scalar_select %p298, %s297, 7
        %s300 = scalar_lea.vmem %s2, %s299
        %s301 = smul.u32 4, %s21
      $region44: #{res_se_norm_conv3d.2} parent=31 // pred_fallthru
        _
    $region32: #{res_se_norm_conv3d.2} parent=5 // pred_fallthru
      _
    %p302 = scmp.le.s32.totalorder 1, %s13
    %p303 = scmp.lt.s32.totalorder %s13, 5
    %p304 = pnand %p302, %p303
    %p305 = pneg %p304
    // Predicated region
    $region45: #{res_se_norm_conv3d.2} parent=5 // pred_check
      _
    $region46: #{res_se_norm_conv3d.2} parent=5 // pred_check_branch
      %307 = sbr.rel (%p304) target = $region48
    $region47: #{res_se_norm_conv3d.2} parent=5 // pred_region
      %s308 = ssub.s32 %s13, 1
      %p309 = scmp.lt.s32.totalorder %s23, 1
      %s310 = scalar_select %p309, %s23, 1
      %s311 = smul.u32 4, %s310
      %p312 = scmp.lt.s32.totalorder %s22, 1
      %s313 = scalar_select %p312, %s22, 1
      %p314 = scmp.lt.s32.totalorder %s311, 7
      %s315 = scalar_select %p314, %s311, 7
      %s316 = smul.addr %s313, 8
      %s317 = sadd.s32 %s315, %s316
      %s318 = smul.addr %s317, 2
      %s319 = scalar_lea.vmem %s0, %s318
      %p320 = pneg %p57
      %p321 = pneg %p54
      %s322 = sadd.s32 %s23, 1
      %p323 = scmp.lt.s32.totalorder %s322, 1
      %s324 = scalar_select %p323, %s322, 1
      %s325 = smul.u32 4, %s324
      %p326 = scmp.lt.s32.totalorder %s22, 1
      %s327 = scalar_select %p326, %s22, 1
      %p328 = scmp.lt.s32.totalorder %s325, 7
      %s329 = scalar_select %p328, %s325, 7
      %s330 = smul.addr %s327, 8
      %s331 = sadd.s32 %s329, %s330
      %s332 = smul.addr %s331, 2
      %s333 = scalar_lea.vmem %s1, %s332
      %p334 = pneg %p91
      %p335 = pneg %p88
      %s336 = smul.u32 4, %s23
      %p337 = scmp.lt.s32.totalorder %s336, 7
      %s338 = scalar_select %p337, %s336, 7
      %s339 = scalar_lea.vmem %s2, %s338
      %p340 = pneg %p117
      %p341 = pneg %p114
      %p342 = pneg %p138
      %p343 = pneg %p135
      %p344 = pneg %p159
      %p345 = pneg %p156
      %p346 = pneg %p180
      %p347 = pneg %p177
      %p348 = pneg %p201
      %p349 = pneg %p198
      %p350 = pneg %p227
      %p351 = pneg %p224
      %p352 = scmp.lt.s32.totalorder %s22, 1
      %s353 = scalar_select %p352, %s22, 1
      %s354 = smul.addr %s353, 8
      %s355 = scalar_lea.vmem %s7, %s354
      %p356 = scmp.lt.s32.totalorder %s23, 1
      %s357 = scalar_select %p356, %s23, 1
      %s358 = smul.u32 4, %s357
      %p359 = scmp.lt.s32.totalorder %s22, 1
      %s360 = scalar_select %p359, %s22, 1
      %p361 = scmp.lt.s32.totalorder %s358, 7
      %s362 = scalar_select %p361, %s358, 7
      %s363 = smul.addr %s360, 8
      %s364 = sadd.s32 %s362, %s363
      %s365 = smul.addr %s364, 2
      %s366 = scalar_lea.vmem %s0, %s365
      %p367 = scmp.lt.s32.totalorder %s23, 1
      %s368 = scalar_select %p367, %s23, 1
      %s369 = smul.u32 4, %s368
      %s370 = sadd.s32 %s23, 1
      %p371 = scmp.lt.s32.totalorder %s370, 1
      %s372 = scalar_select %p371, %s370, 1
      %s373 = smul.u32 4, %s372
      %p374 = scmp.lt.s32.totalorder %s22, 1
      %s375 = scalar_select %p374, %s22, 1
      %p376 = scmp.lt.s32.totalorder %s373, 7
      %s377 = scalar_select %p376, %s373, 7
      %s378 = smul.addr %s375, 8
      %s379 = sadd.s32 %s377, %s378
      %s380 = smul.addr %s379, 2
      %s381 = scalar_lea.vmem %s1, %s380
      %s382 = sadd.s32 %s23, 1
      %p383 = scmp.lt.s32.totalorder %s382, 1
      %s384 = scalar_select %p383, %s382, 1
      %s385 = smul.u32 4, %s384
      %s386 = smul.u32 4, %s23
      %p387 = scmp.lt.s32.totalorder %s386, 7
      %s388 = scalar_select %p387, %s386, 7
      %s389 = scalar_lea.vmem %s2, %s388
      %s390 = smul.u32 4, %s23
      %p391 = scmp.lt.s32.totalorder %s22, 1
      %s392 = scalar_select %p391, %s22, 1
      %s393 = smul.addr %s392, 8
      %s394 = scalar_lea.vmem %s7, %s393
      %v396 = vld [vmem:[%s366] sm:$0xff]
      %v397 = vld [vmem:[%s381] sm:$0xff]
      %399 = vst [vmem:[#allocation1] ss:$4 sm:$0xff] %v396
      %v400 = vld.sshfl [vmem:[#allocation1] sm:$0xff pattern:$0x73625140]
      %v402 = vld.sshfl [vmem:[#allocation1 + $0x8] sm:$0xff pattern:$0x73625140]
      %v404 = vld.sshfl [vmem:[#allocation1 + $0x10] sm:$0xff pattern:$0x73625140]
      %v406 = vld.sshfl [vmem:[#allocation1 + $0x18] sm:$0xff pattern:$0x73625140]
      %409 = vst [vmem:[#allocation1] ss:$4 sm:$0xff] %v397
      %v410 = vld.sshfl [vmem:[#allocation1] sm:$0xff pattern:$0x73625140]
      %v412 = vld.sshfl [vmem:[#allocation1 + $0x8] sm:$0xff pattern:$0x73625140]
      %v414 = vld [vmem:[%s389] sm:$0xf]
      %v415 = vld [vmem:[%s3] sm:$0xf]
      %s416 = scalar_lea.vmem %s3, 4
      %v417 = vld [vmem:[%s416] sm:$0xf]
      %418 = vrot.lane.b32.xlu0 %v400, 127
      %v419 = vpop.permute.xlu0 %418
      %420 = vrot.lane.b32.xlu0 %v402, 127
      %v421 = vpop.permute.xlu0 %420
      %422 = vrot.lane.b32.xlu0 %v404, 127
      %v423 = vpop.permute.xlu0 %422
      %424 = vrot.lane.b32.xlu0 %v406, 127
      %v425 = vpop.permute.xlu0 %424
      %426 = vrot.lane.b32.xlu0 %v410, 127
      %v427 = vpop.permute.xlu0 %426
      %vm428 = vcmask 1039360
      %v429 = vsel %vm428, %v419, %v421
      %v430 = vsel %vm428, %v421, %v423
      %v431 = vsel %vm428, %v423, %v425
      %v432 = vsel %vm428, %v425, %v427
      %vm433 = vcmask 31744
      %v435 = vsel %vm433, %v417, 0
      %vm437 = vcmask 1041408
      %v439 = vsel %vm437, %v429, 0
      %v442 = vsel %vm437, %v430, 0
      %v445 = vsel %vm437, %v431, 0
      %v448 = vsel %vm437, %v432, 0
      %450 = vmatpush.bf16.msra.mxu0 0
      %451 = vmatpush.bf16.msra.mxu0 0
      %452 = vmatpush.bf16.msra.mxu0 0
      %453 = vmatpush.bf16.msra.mxu0 0
      %454 = vmatpush.bf16.msra.mxu0 0
      %455 = vmatpush.bf16.msra.mxu0 0
      %456 = vmatpush.bf16.msra.mxu0 0
      %457 = vmatpush.bf16.msra.mxu0 %v439
      %458 = vmatmul.bf16.gmra.mxu0 %v435
      %v459 = vpop.f32.mrf.mxu0
      %v460 = vadd.f32 0.0, %v459
      %v461 = vpop.f32.mrf.mxu0
      %462 = vdwg.mxu0
      %463 = vmatpush.bf16.msra.mxu0 0
      %464 = vmatpush.bf16.msra.mxu0 0
      %465 = vmatpush.bf16.msra.mxu0 0
      %466 = vmatpush.bf16.msra.mxu0 0
      %467 = vmatpush.bf16.msra.mxu0 0
      %468 = vmatpush.bf16.msra.mxu0 0
      %469 = vmatpush.bf16.msra.mxu0 0
      %470 = vmatpush.bf16.msra.mxu0 %v442
      %471 = vmatmul.bf16.gmra.mxu0 %v435
      %v472 = vpop.f32.mrf.mxu0
      %v473 = vadd.f32 0.0, %v472
      %v474 = vpop.f32.mrf.mxu0
      %475 = vdwg.mxu0
      %476 = vmatpush.bf16.msra.mxu0 0
      %477 = vmatpush.bf16.msra.mxu0 0
      %478 = vmatpush.bf16.msra.mxu0 0
      %479 = vmatpush.bf16.msra.mxu0 0
      %480 = vmatpush.bf16.msra.mxu0 0
      %481 = vmatpush.bf16.msra.mxu0 0
      %482 = vmatpush.bf16.msra.mxu0 0
      %483 = vmatpush.bf16.msra.mxu0 %v445
      %484 = vmatmul.bf16.gmra.mxu0 %v435
      %v485 = vpop.f32.mrf.mxu0
      %v486 = vadd.f32 0.0, %v485
      %v487 = vpop.f32.mrf.mxu0
      %488 = vdwg.mxu0
      %489 = vmatpush.bf16.msra.mxu0 0
      %490 = vmatpush.bf16.msra.mxu0 0
      %491 = vmatpush.bf16.msra.mxu0 0
      %492 = vmatpush.bf16.msra.mxu0 0
      %493 = vmatpush.bf16.msra.mxu0 0
      %494 = vmatpush.bf16.msra.mxu0 0
      %495 = vmatpush.bf16.msra.mxu0 0
      %496 = vmatpush.bf16.msra.mxu0 %v448
      %497 = vmatmul.bf16.gmra.mxu0 %v435
      %v498 = vpop.f32.mrf.mxu0
      %v499 = vadd.f32 0.0, %v498
      %v500 = vpop.f32.mrf.mxu0
      %501 = vdwg.mxu0
      %v503 = vsel %vm433, %v415, 0
      %v505 = vsel %vm437, %v400, 0
      %v507 = vsel %vm437, %v402, 0
      %v509 = vsel %vm437, %v404, 0
      %v511 = vsel %vm437, %v406, 0
      %513 = vmatpush.bf16.msra.mxu0 0
      %514 = vmatpush.bf16.msra.mxu0 0
      %515 = vmatpush.bf16.msra.mxu0 0
      %516 = vmatpush.bf16.msra.mxu0 0
      %517 = vmatpush.bf16.msra.mxu0 0
      %518 = vmatpush.bf16.msra.mxu0 0
      %519 = vmatpush.bf16.msra.mxu0 0
      %520 = vmatpush.bf16.msra.mxu0 %v505
      %521 = vmatmul.bf16.gmra.mxu0 %v503
      %v522 = vpop.f32.mrf.mxu0
      %v523 = vadd.f32 %v460, %v522
      %v524 = vpop.f32.mrf.mxu0
      %525 = vdwg.mxu0
      %526 = vmatpush.bf16.msra.mxu0 0
      %527 = vmatpush.bf16.msra.mxu0 0
      %528 = vmatpush.bf16.msra.mxu0 0
      %529 = vmatpush.bf16.msra.mxu0 0
      %530 = vmatpush.bf16.msra.mxu0 0
      %531 = vmatpush.bf16.msra.mxu0 0
      %532 = vmatpush.bf16.msra.mxu0 0
      %533 = vmatpush.bf16.msra.mxu0 %v507
      %534 = vmatmul.bf16.gmra.mxu0 %v503
      %v535 = vpop.f32.mrf.mxu0
      %v536 = vadd.f32 %v473, %v535
      %v537 = vpop.f32.mrf.mxu0
      %538 = vdwg.mxu0
      %539 = vmatpush.bf16.msra.mxu0 0
      %540 = vmatpush.bf16.msra.mxu0 0
      %541 = vmatpush.bf16.msra.mxu0 0
      %542 = vmatpush.bf16.msra.mxu0 0
      %543 = vmatpush.bf16.msra.mxu0 0
      %544 = vmatpush.bf16.msra.mxu0 0
      %545 = vmatpush.bf16.msra.mxu0 0
      %546 = vmatpush.bf16.msra.mxu0 %v509
      %547 = vmatmul.bf16.gmra.mxu0 %v503
      %v548 = vpop.f32.mrf.mxu0
      %v549 = vadd.f32 %v486, %v548
      %v550 = vpop.f32.mrf.mxu0
      %551 = vdwg.mxu0
      %552 = vmatpush.bf16.msra.mxu0 0
      %553 = vmatpush.bf16.msra.mxu0 0
      %554 = vmatpush.bf16.msra.mxu0 0
      %555 = vmatpush.bf16.msra.mxu0 0
      %556 = vmatpush.bf16.msra.mxu0 0
      %557 = vmatpush.bf16.msra.mxu0 0
      %558 = vmatpush.bf16.msra.mxu0 0
      %559 = vmatpush.bf16.msra.mxu0 %v511
      %560 = vmatmul.bf16.gmra.mxu0 %v503
      %v561 = vpop.f32.mrf.mxu0
      %v562 = vadd.f32 %v499, %v561
      %v563 = vpop.f32.mrf.mxu0
      %564 = vdwg.mxu0
      %s565 = scalar_lea.vmem %s3, 8
      %v566 = vld [vmem:[%s565] sm:$0xf]
      %567 = vrot.lane.b32.xlu0 %v400, 126
      %v568 = vpop.permute.xlu0 %567
      %569 = vrot.lane.b32.xlu0 %v402, 126
      %v570 = vpop.permute.xlu0 %569
      %571 = vrot.lane.b32.xlu0 %v404, 126
      %v572 = vpop.permute.xlu0 %571
      %573 = vrot.lane.b32.xlu0 %v406, 126
      %v574 = vpop.permute.xlu0 %573
      %575 = vrot.lane.b32.xlu0 %v410, 126
      %v576 = vpop.permute.xlu0 %575
      %vm577 = vcmask 1031168
      %v578 = vsel %vm577, %v568, %v570
      %v579 = vsel %vm577, %v570, %v572
      %v580 = vsel %vm577, %v572, %v574
      %v581 = vsel %vm577, %v574, %v576
      %v583 = vsel %vm433, %v566, 0
      %v586 = vsel %vm437, %v578, 0
      %v589 = vsel %vm437, %v579, 0
      %v592 = vsel %vm437, %v580, 0
      %v595 = vsel %vm437, %v581, 0
      %597 = vmatpush.bf16.msra.mxu0 0
      %598 = vmatpush.bf16.msra.mxu0 0
      %599 = vmatpush.bf16.msra.mxu0 0
      %600 = vmatpush.bf16.msra.mxu0 0
      %601 = vmatpush.bf16.msra.mxu0 0
      %602 = vmatpush.bf16.msra.mxu0 0
      %603 = vmatpush.bf16.msra.mxu0 0
      %604 = vmatpush.bf16.msra.mxu0 %v586
      %605 = vmatmul.bf16.gmra.mxu0 %v583
      %v606 = vpop.f32.mrf.mxu0
      %v607 = vadd.f32 0.0, %v606
      %v608 = vpop.f32.mrf.mxu0
      %609 = vdwg.mxu0
      %610 = vmatpush.bf16.msra.mxu0 0
      %611 = vmatpush.bf16.msra.mxu0 0
      %612 = vmatpush.bf16.msra.mxu0 0
      %613 = vmatpush.bf16.msra.mxu0 0
      %614 = vmatpush.bf16.msra.mxu0 0
      %615 = vmatpush.bf16.msra.mxu0 0
      %616 = vmatpush.bf16.msra.mxu0 0
      %617 = vmatpush.bf16.msra.mxu0 %v589
      %618 = vmatmul.bf16.gmra.mxu0 %v583
      %v619 = vpop.f32.mrf.mxu0
      %v620 = vadd.f32 0.0, %v619
      %v621 = vpop.f32.mrf.mxu0
      %622 = vdwg.mxu0
      %623 = vmatpush.bf16.msra.mxu0 0
      %624 = vmatpush.bf16.msra.mxu0 0
      %625 = vmatpush.bf16.msra.mxu0 0
      %626 = vmatpush.bf16.msra.mxu0 0
      %627 = vmatpush.bf16.msra.mxu0 0
      %628 = vmatpush.bf16.msra.mxu0 0
      %629 = vmatpush.bf16.msra.mxu0 0
      %630 = vmatpush.bf16.msra.mxu0 %v592
      %631 = vmatmul.bf16.gmra.mxu0 %v583
      %v632 = vpop.f32.mrf.mxu0
      %v633 = vadd.f32 0.0, %v632
      %v634 = vpop.f32.mrf.mxu0
      %635 = vdwg.mxu0
      %636 = vmatpush.bf16.msra.mxu0 0
      %637 = vmatpush.bf16.msra.mxu0 0
      %638 = vmatpush.bf16.msra.mxu0 0
      %639 = vmatpush.bf16.msra.mxu0 0
      %640 = vmatpush.bf16.msra.mxu0 0
      %641 = vmatpush.bf16.msra.mxu0 0
      %642 = vmatpush.bf16.msra.mxu0 0
      %643 = vmatpush.bf16.msra.mxu0 %v595
      %644 = vmatmul.bf16.gmra.mxu0 %v583
      %v645 = vpop.f32.mrf.mxu0
      %v646 = vadd.f32 0.0, %v645
      %v647 = vpop.f32.mrf.mxu0
      %648 = vdwg.mxu0
      %v649 = vadd.f32 %v523, %v607
      %v650 = vadd.f32 %v536, %v620
      %v651 = vadd.f32 %v549, %v633
      %v652 = vadd.f32 %v562, %v646
      %s653 = scalar_lea.vmem %s3, 12
      %v654 = vld [vmem:[%s653] sm:$0xf]
      %655 = vrot.lane.b32.xlu0 %v400, 118
      %v656 = vpop.permute.xlu0 %655
      %657 = vrot.lane.b32.xlu0 %v402, 118
      %v658 = vpop.permute.xlu0 %657
      %659 = vrot.lane.b32.xlu0 %v404, 118
      %v660 = vpop.permute.xlu0 %659
      %661 = vrot.lane.b32.xlu0 %v406, 118
      %v662 = vpop.permute.xlu0 %661
      %663 = vrot.lane.b32.xlu0 %v410, 118
      %v664 = vpop.permute.xlu0 %663
      %vm665 = vcmask 965632
      %v666 = vsel %vm665, %v656, %v658
      %v667 = vsel %vm665, %v658, %v660
      %v668 = vsel %vm665, %v660, %v662
      %v669 = vsel %vm665, %v662, %v664
      %v671 = vsel %vm433, %v654, 0
      %v674 = vsel %vm437, %v666, 0
      %v677 = vsel %vm437, %v667, 0
      %v680 = vsel %vm437, %v668, 0
      %v683 = vsel %vm437, %v669, 0
      %685 = vmatpush.bf16.msra.mxu0 0
      %686 = vmatpush.bf16.msra.mxu0 0
      %687 = vmatpush.bf16.msra.mxu0 0
      %688 = vmatpush.bf16.msra.mxu0 0
      %689 = vmatpush.bf16.msra.mxu0 0
      %690 = vmatpush.bf16.msra.mxu0 0
      %691 = vmatpush.bf16.msra.mxu0 0
      %692 = vmatpush.bf16.msra.mxu0 %v674
      %693 = vmatmul.bf16.gmra.mxu0 %v671
      %v694 = vpop.f32.mrf.mxu0
      %v695 = vadd.f32 0.0, %v694
      %v696 = vpop.f32.mrf.mxu0
      %697 = vdwg.mxu0
      %698 = vmatpush.bf16.msra.mxu0 0
      %699 = vmatpush.bf16.msra.mxu0 0
      %700 = vmatpush.bf16.msra.mxu0 0
      %701 = vmatpush.bf16.msra.mxu0 0
      %702 = vmatpush.bf16.msra.mxu0 0
      %703 = vmatpush.bf16.msra.mxu0 0
      %704 = vmatpush.bf16.msra.mxu0 0
      %705 = vmatpush.bf16.msra.mxu0 %v677
      %706 = vmatmul.bf16.gmra.mxu0 %v671
      %v707 = vpop.f32.mrf.mxu0
      %v708 = vadd.f32 0.0, %v707
      %v709 = vpop.f32.mrf.mxu0
      %710 = vdwg.mxu0
      %711 = vmatpush.bf16.msra.mxu0 0
      %712 = vmatpush.bf16.msra.mxu0 0
      %713 = vmatpush.bf16.msra.mxu0 0
      %714 = vmatpush.bf16.msra.mxu0 0
      %715 = vmatpush.bf16.msra.mxu0 0
      %716 = vmatpush.bf16.msra.mxu0 0
      %717 = vmatpush.bf16.msra.mxu0 0
      %718 = vmatpush.bf16.msra.mxu0 %v680
      %719 = vmatmul.bf16.gmra.mxu0 %v671
      %v720 = vpop.f32.mrf.mxu0
      %v721 = vadd.f32 0.0, %v720
      %v722 = vpop.f32.mrf.mxu0
      %723 = vdwg.mxu0
      %724 = vmatpush.bf16.msra.mxu0 0
      %725 = vmatpush.bf16.msra.mxu0 0
      %726 = vmatpush.bf16.msra.mxu0 0
      %727 = vmatpush.bf16.msra.mxu0 0
      %728 = vmatpush.bf16.msra.mxu0 0
      %729 = vmatpush.bf16.msra.mxu0 0
      %730 = vmatpush.bf16.msra.mxu0 0
      %731 = vmatpush.bf16.msra.mxu0 %v683
      %732 = vmatmul.bf16.gmra.mxu0 %v671
      %v733 = vpop.f32.mrf.mxu0
      %v734 = vadd.f32 0.0, %v733
      %v735 = vpop.f32.mrf.mxu0
      %736 = vdwg.mxu0
      %v737 = vadd.f32 %v649, %v695
      %v738 = vadd.f32 %v650, %v708
      %v739 = vadd.f32 %v651, %v721
      %v740 = vadd.f32 %v652, %v734
      %s741 = scalar_lea.vmem %s3, 16
      %v742 = vld [vmem:[%s741] sm:$0xf]
      %743 = vrot.lane.b32.xlu0 %v400, 117
      %v744 = vpop.permute.xlu0 %743
      %745 = vrot.lane.b32.xlu0 %v402, 117
      %v746 = vpop.permute.xlu0 %745
      %747 = vrot.lane.b32.xlu0 %v404, 117
      %v748 = vpop.permute.xlu0 %747
      %749 = vrot.lane.b32.xlu0 %v406, 117
      %v750 = vpop.permute.xlu0 %749
      %751 = vrot.lane.b32.xlu0 %v410, 117
      %v752 = vpop.permute.xlu0 %751
      %vm753 = vcmask 957440
      %v754 = vsel %vm753, %v744, %v746
      %v755 = vsel %vm753, %v746, %v748
      %v756 = vsel %vm753, %v748, %v750
      %v757 = vsel %vm753, %v750, %v752
      %v759 = vsel %vm433, %v742, 0
      %v762 = vsel %vm437, %v754, 0
      %v765 = vsel %vm437, %v755, 0
      %v768 = vsel %vm437, %v756, 0
      %v771 = vsel %vm437, %v757, 0
      %773 = vmatpush.bf16.msra.mxu0 0
      %774 = vmatpush.bf16.msra.mxu0 0
      %775 = vmatpush.bf16.msra.mxu0 0
      %776 = vmatpush.bf16.msra.mxu0 0
      %777 = vmatpush.bf16.msra.mxu0 0
      %778 = vmatpush.bf16.msra.mxu0 0
      %779 = vmatpush.bf16.msra.mxu0 0
      %780 = vmatpush.bf16.msra.mxu0 %v762
      %781 = vmatmul.bf16.gmra.mxu0 %v759
      %v782 = vpop.f32.mrf.mxu0
      %v783 = vadd.f32 0.0, %v782
      %v784 = vpop.f32.mrf.mxu0
      %785 = vdwg.mxu0
      %786 = vmatpush.bf16.msra.mxu0 0
      %787 = vmatpush.bf16.msra.mxu0 0
      %788 = vmatpush.bf16.msra.mxu0 0
      %789 = vmatpush.bf16.msra.mxu0 0
      %790 = vmatpush.bf16.msra.mxu0 0
      %791 = vmatpush.bf16.msra.mxu0 0
      %792 = vmatpush.bf16.msra.mxu0 0
      %793 = vmatpush.bf16.msra.mxu0 %v765
      %794 = vmatmul.bf16.gmra.mxu0 %v759
      %v795 = vpop.f32.mrf.mxu0
      %v796 = vadd.f32 0.0, %v795
      %v797 = vpop.f32.mrf.mxu0
      %798 = vdwg.mxu0
      %799 = vmatpush.bf16.msra.mxu0 0
      %800 = vmatpush.bf16.msra.mxu0 0
      %801 = vmatpush.bf16.msra.mxu0 0
      %802 = vmatpush.bf16.msra.mxu0 0
      %803 = vmatpush.bf16.msra.mxu0 0
      %804 = vmatpush.bf16.msra.mxu0 0
      %805 = vmatpush.bf16.msra.mxu0 0
      %806 = vmatpush.bf16.msra.mxu0 %v768
      %807 = vmatmul.bf16.gmra.mxu0 %v759
      %v808 = vpop.f32.mrf.mxu0
      %v809 = vadd.f32 0.0, %v808
      %v810 = vpop.f32.mrf.mxu0
      %811 = vdwg.mxu0
      %812 = vmatpush.bf16.msra.mxu0 0
      %813 = vmatpush.bf16.msra.mxu0 0
      %814 = vmatpush.bf16.msra.mxu0 0
      %815 = vmatpush.bf16.msra.mxu0 0
      %816 = vmatpush.bf16.msra.mxu0 0
      %817 = vmatpush.bf16.msra.mxu0 0
      %818 = vmatpush.bf16.msra.mxu0 0
      %819 = vmatpush.bf16.msra.mxu0 %v771
      %820 = vmatmul.bf16.gmra.mxu0 %v759
      %v821 = vpop.f32.mrf.mxu0
      %v822 = vadd.f32 0.0, %v821
      %v823 = vpop.f32.mrf.mxu0
      %824 = vdwg.mxu0
      %v825 = vadd.f32 %v737, %v783
      %v826 = vadd.f32 %v738, %v796
      %v827 = vadd.f32 %v739, %v809
      %v828 = vadd.f32 %v740, %v822
      %s829 = scalar_lea.vmem %s3, 20
      %v830 = vld [vmem:[%s829] sm:$0xf]
      %831 = vrot.lane.b32.xlu0 %v400, 116
      %v832 = vpop.permute.xlu0 %831
      %833 = vrot.lane.b32.xlu0 %v402, 116
      %v834 = vpop.permute.xlu0 %833
      %835 = vrot.lane.b32.xlu0 %v404, 116
      %v836 = vpop.permute.xlu0 %835
      %837 = vrot.lane.b32.xlu0 %v406, 116
      %v838 = vpop.permute.xlu0 %837
      %839 = vrot.lane.b32.xlu0 %v410, 116
      %v840 = vpop.permute.xlu0 %839
      %vm841 = vcmask 949248
      %v842 = vsel %vm841, %v832, %v834
      %v843 = vsel %vm841, %v834, %v836
      %v844 = vsel %vm841, %v836, %v838
      %v845 = vsel %vm841, %v838, %v840
      %v847 = vsel %vm433, %v830, 0
      %v850 = vsel %vm437, %v842, 0
      %v853 = vsel %vm437, %v843, 0
      %v856 = vsel %vm437, %v844, 0
      %v859 = vsel %vm437, %v845, 0
      %861 = vmatpush.bf16.msra.mxu0 0
      %862 = vmatpush.bf16.msra.mxu0 0
      %863 = vmatpush.bf16.msra.mxu0 0
      %864 = vmatpush.bf16.msra.mxu0 0
      %865 = vmatpush.bf16.msra.mxu0 0
      %866 = vmatpush.bf16.msra.mxu0 0
      %867 = vmatpush.bf16.msra.mxu0 0
      %868 = vmatpush.bf16.msra.mxu0 %v850
      %869 = vmatmul.bf16.gmra.mxu0 %v847
      %v870 = vpop.f32.mrf.mxu0
      %v871 = vadd.f32 0.0, %v870
      %v872 = vpop.f32.mrf.mxu0
      %873 = vdwg.mxu0
      %874 = vmatpush.bf16.msra.mxu0 0
      %875 = vmatpush.bf16.msra.mxu0 0
      %876 = vmatpush.bf16.msra.mxu0 0
      %877 = vmatpush.bf16.msra.mxu0 0
      %878 = vmatpush.bf16.msra.mxu0 0
      %879 = vmatpush.bf16.msra.mxu0 0
      %880 = vmatpush.bf16.msra.mxu0 0
      %881 = vmatpush.bf16.msra.mxu0 %v853
      %882 = vmatmul.bf16.gmra.mxu0 %v847
      %v883 = vpop.f32.mrf.mxu0
      %v884 = vadd.f32 0.0, %v883
      %v885 = vpop.f32.mrf.mxu0
      %886 = vdwg.mxu0
      %887 = vmatpush.bf16.msra.mxu0 0
      %888 = vmatpush.bf16.msra.mxu0 0
      %889 = vmatpush.bf16.msra.mxu0 0
      %890 = vmatpush.bf16.msra.mxu0 0
      %891 = vmatpush.bf16.msra.mxu0 0
      %892 = vmatpush.bf16.msra.mxu0 0
      %893 = vmatpush.bf16.msra.mxu0 0
      %894 = vmatpush.bf16.msra.mxu0 %v856
      %895 = vmatmul.bf16.gmra.mxu0 %v847
      %v896 = vpop.f32.mrf.mxu0
      %v897 = vadd.f32 0.0, %v896
      %v898 = vpop.f32.mrf.mxu0
      %899 = vdwg.mxu0
      %900 = vmatpush.bf16.msra.mxu0 0
      %901 = vmatpush.bf16.msra.mxu0 0
      %902 = vmatpush.bf16.msra.mxu0 0
      %903 = vmatpush.bf16.msra.mxu0 0
      %904 = vmatpush.bf16.msra.mxu0 0
      %905 = vmatpush.bf16.msra.mxu0 0
      %906 = vmatpush.bf16.msra.mxu0 0
      %907 = vmatpush.bf16.msra.mxu0 %v859
      %908 = vmatmul.bf16.gmra.mxu0 %v847
      %v909 = vpop.f32.mrf.mxu0
      %v910 = vadd.f32 0.0, %v909
      %v911 = vpop.f32.mrf.mxu0
      %912 = vdwg.mxu0
      %v913 = vadd.f32 %v825, %v871
      %v914 = vadd.f32 %v826, %v884
      %v915 = vadd.f32 %v827, %v897
      %v916 = vadd.f32 %v828, %v910
      %s917 = scalar_lea.vmem %s3, 24
      %v918 = vld [vmem:[%s917] sm:$0xf]
      %919 = vrot.lane.b32.xlu0 %v400, 108
      %v920 = vpop.permute.xlu0 %919
      %921 = vrot.lane.b32.xlu0 %v402, 108
      %v922 = vpop.permute.xlu0 %921
      %923 = vrot.lane.b32.xlu0 %v404, 108
      %v924 = vpop.permute.xlu0 %923
      %925 = vrot.lane.b32.xlu0 %v406, 108
      %v926 = vpop.permute.xlu0 %925
      %927 = vrot.lane.b32.xlu0 %v410, 108
      %v928 = vpop.permute.xlu0 %927
      %vm929 = vcmask 883712
      %v930 = vsel %vm929, %v920, %v922
      %v931 = vsel %vm929, %v922, %v924
      %v932 = vsel %vm929, %v924, %v926
      %v933 = vsel %vm929, %v926, %v928
      %v935 = vsel %vm433, %v918, 0
      %v938 = vsel %vm437, %v930, 0
      %v941 = vsel %vm437, %v931, 0
      %v944 = vsel %vm437, %v932, 0
      %v947 = vsel %vm437, %v933, 0
      %949 = vmatpush.bf16.msra.mxu0 0
      %950 = vmatpush.bf16.msra.mxu0 0
      %951 = vmatpush.bf16.msra.mxu0 0
      %952 = vmatpush.bf16.msra.mxu0 0
      %953 = vmatpush.bf16.msra.mxu0 0
      %954 = vmatpush.bf16.msra.mxu0 0
      %955 = vmatpush.bf16.msra.mxu0 0
      %956 = vmatpush.bf16.msra.mxu0 %v938
      %957 = vmatmul.bf16.gmra.mxu0 %v935
      %v958 = vpop.f32.mrf.mxu0
      %v959 = vadd.f32 0.0, %v958
      %v960 = vpop.f32.mrf.mxu0
      %961 = vdwg.mxu0
      %962 = vmatpush.bf16.msra.mxu0 0
      %963 = vmatpush.bf16.msra.mxu0 0
      %964 = vmatpush.bf16.msra.mxu0 0
      %965 = vmatpush.bf16.msra.mxu0 0
      %966 = vmatpush.bf16.msra.mxu0 0
      %967 = vmatpush.bf16.msra.mxu0 0
      %968 = vmatpush.bf16.msra.mxu0 0
      %969 = vmatpush.bf16.msra.mxu0 %v941
      %970 = vmatmul.bf16.gmra.mxu0 %v935
      %v971 = vpop.f32.mrf.mxu0
      %v972 = vadd.f32 0.0, %v971
      %v973 = vpop.f32.mrf.mxu0
      %974 = vdwg.mxu0
      %975 = vmatpush.bf16.msra.mxu0 0
      %976 = vmatpush.bf16.msra.mxu0 0
      %977 = vmatpush.bf16.msra.mxu0 0
      %978 = vmatpush.bf16.msra.mxu0 0
      %979 = vmatpush.bf16.msra.mxu0 0
      %980 = vmatpush.bf16.msra.mxu0 0
      %981 = vmatpush.bf16.msra.mxu0 0
      %982 = vmatpush.bf16.msra.mxu0 %v944
      %983 = vmatmul.bf16.gmra.mxu0 %v935
      %v984 = vpop.f32.mrf.mxu0
      %v985 = vadd.f32 0.0, %v984
      %v986 = vpop.f32.mrf.mxu0
      %987 = vdwg.mxu0
      %988 = vmatpush.bf16.msra.mxu0 0
      %989 = vmatpush.bf16.msra.mxu0 0
      %990 = vmatpush.bf16.msra.mxu0 0
      %991 = vmatpush.bf16.msra.mxu0 0
      %992 = vmatpush.bf16.msra.mxu0 0
      %993 = vmatpush.bf16.msra.mxu0 0
      %994 = vmatpush.bf16.msra.mxu0 0
      %995 = vmatpush.bf16.msra.mxu0 %v947
      %996 = vmatmul.bf16.gmra.mxu0 %v935
      %v997 = vpop.f32.mrf.mxu0
      %v998 = vadd.f32 0.0, %v997
      %v999 = vpop.f32.mrf.mxu0
      %1000 = vdwg.mxu0
      %v1001 = vadd.f32 %v913, %v959
      %v1002 = vadd.f32 %v914, %v972
      %v1003 = vadd.f32 %v915, %v985
      %v1004 = vadd.f32 %v916, %v998
      %s1005 = scalar_lea.vmem %s3, 28
      %v1006 = vld [vmem:[%s1005] sm:$0xf]
      %1007 = vrot.lane.b32.xlu0 %v400, 107
      %v1008 = vpop.permute.xlu0 %1007
      %1009 = vrot.lane.b32.xlu0 %v402, 107
      %v1010 = vpop.permute.xlu0 %1009
      %1011 = vrot.lane.b32.xlu0 %v404, 107
      %v1012 = vpop.permute.xlu0 %1011
      %1013 = vrot.lane.b32.xlu0 %v406, 107
      %v1014 = vpop.permute.xlu0 %1013
      %1015 = vrot.lane.b32.xlu0 %v410, 107
      %v1016 = vpop.permute.xlu0 %1015
      %vm1017 = vcmask 875520
      %v1018 = vsel %vm1017, %v1008, %v1010
      %v1019 = vsel %vm1017, %v1010, %v1012
      %v1020 = vsel %vm1017, %v1012, %v1014
      %v1021 = vsel %vm1017, %v1014, %v1016
      %v1023 = vsel %vm433, %v1006, 0
      %v1026 = vsel %vm437, %v1018, 0
      %v1029 = vsel %vm437, %v1019, 0
      %v1032 = vsel %vm437, %v1020, 0
      %v1035 = vsel %vm437, %v1021, 0
      %1037 = vmatpush.bf16.msra.mxu0 0
      %1038 = vmatpush.bf16.msra.mxu0 0
      %1039 = vmatpush.bf16.msra.mxu0 0
      %1040 = vmatpush.bf16.msra.mxu0 0
      %1041 = vmatpush.bf16.msra.mxu0 0
      %1042 = vmatpush.bf16.msra.mxu0 0
      %1043 = vmatpush.bf16.msra.mxu0 0
      %1044 = vmatpush.bf16.msra.mxu0 %v1026
      %1045 = vmatmul.bf16.gmra.mxu0 %v1023
      %v1046 = vpop.f32.mrf.mxu0
      %v1047 = vadd.f32 0.0, %v1046
      %v1048 = vpop.f32.mrf.mxu0
      %1049 = vdwg.mxu0
      %1050 = vmatpush.bf16.msra.mxu0 0
      %1051 = vmatpush.bf16.msra.mxu0 0
      %1052 = vmatpush.bf16.msra.mxu0 0
      %1053 = vmatpush.bf16.msra.mxu0 0
      %1054 = vmatpush.bf16.msra.mxu0 0
      %1055 = vmatpush.bf16.msra.mxu0 0
      %1056 = vmatpush.bf16.msra.mxu0 0
      %1057 = vmatpush.bf16.msra.mxu0 %v1029
      %1058 = vmatmul.bf16.gmra.mxu0 %v1023
      %v1059 = vpop.f32.mrf.mxu0
      %v1060 = vadd.f32 0.0, %v1059
      %v1061 = vpop.f32.mrf.mxu0
      %1062 = vdwg.mxu0
      %1063 = vmatpush.bf16.msra.mxu0 0
      %1064 = vmatpush.bf16.msra.mxu0 0
      %1065 = vmatpush.bf16.msra.mxu0 0
      %1066 = vmatpush.bf16.msra.mxu0 0
      %1067 = vmatpush.bf16.msra.mxu0 0
      %1068 = vmatpush.bf16.msra.mxu0 0
      %1069 = vmatpush.bf16.msra.mxu0 0
      %1070 = vmatpush.bf16.msra.mxu0 %v1032
      %1071 = vmatmul.bf16.gmra.mxu0 %v1023
      %v1072 = vpop.f32.mrf.mxu0
      %v1073 = vadd.f32 0.0, %v1072
      %v1074 = vpop.f32.mrf.mxu0
      %1075 = vdwg.mxu0
      %1076 = vmatpush.bf16.msra.mxu0 0
      %1077 = vmatpush.bf16.msra.mxu0 0
      %1078 = vmatpush.bf16.msra.mxu0 0
      %1079 = vmatpush.bf16.msra.mxu0 0
      %1080 = vmatpush.bf16.msra.mxu0 0
      %1081 = vmatpush.bf16.msra.mxu0 0
      %1082 = vmatpush.bf16.msra.mxu0 0
      %1083 = vmatpush.bf16.msra.mxu0 %v1035
      %1084 = vmatmul.bf16.gmra.mxu0 %v1023
      %v1085 = vpop.f32.mrf.mxu0
      %v1086 = vadd.f32 0.0, %v1085
      %v1087 = vpop.f32.mrf.mxu0
      %1088 = vdwg.mxu0
      %v1089 = vadd.f32 %v1001, %v1047
      %v1090 = vadd.f32 %v1002, %v1060
      %v1091 = vadd.f32 %v1003, %v1073
      %v1092 = vadd.f32 %v1004, %v1086
      %s1093 = scalar_lea.vmem %s3, 32
      %v1094 = vld [vmem:[%s1093] sm:$0xf]
      %1095 = vrot.lane.b32.xlu0 %v400, 106
      %v1096 = vpop.permute.xlu0 %1095
      %1097 = vrot.lane.b32.xlu0 %v402, 106
      %v1098 = vpop.permute.xlu0 %1097
      %1099 = vrot.lane.b32.xlu0 %v404, 106
      %v1100 = vpop.permute.xlu0 %1099
      %1101 = vrot.lane.b32.xlu0 %v406, 106
      %v1102 = vpop.permute.xlu0 %1101
      %1103 = vrot.lane.b32.xlu0 %v410, 106
      %v1104 = vpop.permute.xlu0 %1103
      %vm1105 = vcmask 867328
      %v1106 = vsel %vm1105, %v1096, %v1098
      %v1107 = vsel %vm1105, %v1098, %v1100
      %v1108 = vsel %vm1105, %v1100, %v1102
      %v1109 = vsel %vm1105, %v1102, %v1104
      %v1111 = vsel %vm433, %v1094, 0
      %v1114 = vsel %vm437, %v1106, 0
      %v1117 = vsel %vm437, %v1107, 0
      %v1120 = vsel %vm437, %v1108, 0
      %v1123 = vsel %vm437, %v1109, 0
      %1125 = vmatpush.bf16.msra.mxu0 0
      %1126 = vmatpush.bf16.msra.mxu0 0
      %1127 = vmatpush.bf16.msra.mxu0 0
      %1128 = vmatpush.bf16.msra.mxu0 0
      %1129 = vmatpush.bf16.msra.mxu0 0
      %1130 = vmatpush.bf16.msra.mxu0 0
      %1131 = vmatpush.bf16.msra.mxu0 0
      %1132 = vmatpush.bf16.msra.mxu0 %v1114
      %1133 = vmatmul.bf16.gmra.mxu0 %v1111
      %v1134 = vpop.f32.mrf.mxu0
      %v1135 = vadd.f32 0.0, %v1134
      %v1136 = vpop.f32.mrf.mxu0
      %1137 = vdwg.mxu0
      %1138 = vmatpush.bf16.msra.mxu0 0
      %1139 = vmatpush.bf16.msra.mxu0 0
      %1140 = vmatpush.bf16.msra.mxu0 0
      %1141 = vmatpush.bf16.msra.mxu0 0
      %1142 = vmatpush.bf16.msra.mxu0 0
      %1143 = vmatpush.bf16.msra.mxu0 0
      %1144 = vmatpush.bf16.msra.mxu0 0
      %1145 = vmatpush.bf16.msra.mxu0 %v1117
      %1146 = vmatmul.bf16.gmra.mxu0 %v1111
      %v1147 = vpop.f32.mrf.mxu0
      %v1148 = vadd.f32 0.0, %v1147
      %v1149 = vpop.f32.mrf.mxu0
      %1150 = vdwg.mxu0
      %1151 = vmatpush.bf16.msra.mxu0 0
      %1152 = vmatpush.bf16.msra.mxu0 0
      %1153 = vmatpush.bf16.msra.mxu0 0
      %1154 = vmatpush.bf16.msra.mxu0 0
      %1155 = vmatpush.bf16.msra.mxu0 0
      %1156 = vmatpush.bf16.msra.mxu0 0
      %1157 = vmatpush.bf16.msra.mxu0 0
      %1158 = vmatpush.bf16.msra.mxu0 %v1120
      %1159 = vmatmul.bf16.gmra.mxu0 %v1111
      %v1160 = vpop.f32.mrf.mxu0
      %v1161 = vadd.f32 0.0, %v1160
      %v1162 = vpop.f32.mrf.mxu0
      %1163 = vdwg.mxu0
      %1164 = vmatpush.bf16.msra.mxu0 0
      %1165 = vmatpush.bf16.msra.mxu0 0
      %1166 = vmatpush.bf16.msra.mxu0 0
      %1167 = vmatpush.bf16.msra.mxu0 0
      %1168 = vmatpush.bf16.msra.mxu0 0
      %1169 = vmatpush.bf16.msra.mxu0 0
      %1170 = vmatpush.bf16.msra.mxu0 0
      %1171 = vmatpush.bf16.msra.mxu0 %v1123
      %1172 = vmatmul.bf16.gmra.mxu0 %v1111
      %v1173 = vpop.f32.mrf.mxu0
      %v1174 = vadd.f32 0.0, %v1173
      %v1175 = vpop.f32.mrf.mxu0
      %1176 = vdwg.mxu0
      %v1177 = vadd.f32 %v1089, %v1135
      %v1178 = vadd.f32 %v1090, %v1148
      %v1179 = vadd.f32 %v1091, %v1161
      %v1180 = vadd.f32 %v1092, %v1174
      %s1181 = scalar_lea.vmem %s3, 36
      %v1182 = vld [vmem:[%s1181] sm:$0xf]
      %1183 = vrot.lane.b32.xlu0 %v400, 28
      %v1184 = vpop.permute.xlu0 %1183
      %1185 = vrot.lane.b32.xlu0 %v402, 28
      %v1186 = vpop.permute.xlu0 %1185
      %1187 = vrot.lane.b32.xlu0 %v404, 28
      %v1188 = vpop.permute.xlu0 %1187
      %1189 = vrot.lane.b32.xlu0 %v406, 28
      %v1190 = vpop.permute.xlu0 %1189
      %1191 = vrot.lane.b32.xlu0 %v410, 28
      %v1192 = vpop.permute.xlu0 %1191
      %vm1193 = vcmask 228352
      %v1194 = vsel %vm1193, %v1184, %v1186
      %v1195 = vsel %vm1193, %v1186, %v1188
      %v1196 = vsel %vm1193, %v1188, %v1190
      %v1197 = vsel %vm1193, %v1190, %v1192
      %v1199 = vsel %vm433, %v1182, 0
      %v1202 = vsel %vm437, %v1194, 0
      %v1205 = vsel %vm437, %v1195, 0
      %v1208 = vsel %vm437, %v1196, 0
      %v1211 = vsel %vm437, %v1197, 0
      %1213 = vmatpush.bf16.msra.mxu0 0
      %1214 = vmatpush.bf16.msra.mxu0 0
      %1215 = vmatpush.bf16.msra.mxu0 0
      %1216 = vmatpush.bf16.msra.mxu0 0
      %1217 = vmatpush.bf16.msra.mxu0 0
      %1218 = vmatpush.bf16.msra.mxu0 0
      %1219 = vmatpush.bf16.msra.mxu0 0
      %1220 = vmatpush.bf16.msra.mxu0 %v1202
      %1221 = vmatmul.bf16.gmra.mxu0 %v1199
      %v1222 = vpop.f32.mrf.mxu0
      %v1223 = vadd.f32 0.0, %v1222
      %v1224 = vpop.f32.mrf.mxu0
      %1225 = vdwg.mxu0
      %1226 = vmatpush.bf16.msra.mxu0 0
      %1227 = vmatpush.bf16.msra.mxu0 0
      %1228 = vmatpush.bf16.msra.mxu0 0
      %1229 = vmatpush.bf16.msra.mxu0 0
      %1230 = vmatpush.bf16.msra.mxu0 0
      %1231 = vmatpush.bf16.msra.mxu0 0
      %1232 = vmatpush.bf16.msra.mxu0 0
      %1233 = vmatpush.bf16.msra.mxu0 %v1205
      %1234 = vmatmul.bf16.gmra.mxu0 %v1199
      %v1235 = vpop.f32.mrf.mxu0
      %v1236 = vadd.f32 0.0, %v1235
      %v1237 = vpop.f32.mrf.mxu0
      %1238 = vdwg.mxu0
      %1239 = vmatpush.bf16.msra.mxu0 0
      %1240 = vmatpush.bf16.msra.mxu0 0
      %1241 = vmatpush.bf16.msra.mxu0 0
      %1242 = vmatpush.bf16.msra.mxu0 0
      %1243 = vmatpush.bf16.msra.mxu0 0
      %1244 = vmatpush.bf16.msra.mxu0 0
      %1245 = vmatpush.bf16.msra.mxu0 0
      %1246 = vmatpush.bf16.msra.mxu0 %v1208
      %1247 = vmatmul.bf16.gmra.mxu0 %v1199
      %v1248 = vpop.f32.mrf.mxu0
      %v1249 = vadd.f32 0.0, %v1248
      %v1250 = vpop.f32.mrf.mxu0
      %1251 = vdwg.mxu0
      %1252 = vmatpush.bf16.msra.mxu0 0
      %1253 = vmatpush.bf16.msra.mxu0 0
      %1254 = vmatpush.bf16.msra.mxu0 0
      %1255 = vmatpush.bf16.msra.mxu0 0
      %1256 = vmatpush.bf16.msra.mxu0 0
      %1257 = vmatpush.bf16.msra.mxu0 0
      %1258 = vmatpush.bf16.msra.mxu0 0
      %1259 = vmatpush.bf16.msra.mxu0 %v1211
      %1260 = vmatmul.bf16.gmra.mxu0 %v1199
      %v1261 = vpop.f32.mrf.mxu0
      %v1262 = vadd.f32 0.0, %v1261
      %v1263 = vpop.f32.mrf.mxu0
      %1264 = vdwg.mxu0
      %v1265 = vadd.f32 %v1177, %v1223
      %v1266 = vadd.f32 %v1178, %v1236
      %v1267 = vadd.f32 %v1179, %v1249
      %v1268 = vadd.f32 %v1180, %v1262
      %s1269 = scalar_lea.vmem %s3, 40
      %v1270 = vld [vmem:[%s1269] sm:$0xf]
      %1271 = vrot.lane.b32.xlu0 %v400, 27
      %v1272 = vpop.permute.xlu0 %1271
      %1273 = vrot.lane.b32.xlu0 %v402, 27
      %v1274 = vpop.permute.xlu0 %1273
      %1275 = vrot.lane.b32.xlu0 %v404, 27
      %v1276 = vpop.permute.xlu0 %1275
      %1277 = vrot.lane.b32.xlu0 %v406, 27
      %v1278 = vpop.permute.xlu0 %1277
      %1279 = vrot.lane.b32.xlu0 %v410, 27
      %v1280 = vpop.permute.xlu0 %1279
      %vm1281 = vcmask 220160
      %v1282 = vsel %vm1281, %v1272, %v1274
      %v1283 = vsel %vm1281, %v1274, %v1276
      %v1284 = vsel %vm1281, %v1276, %v1278
      %v1285 = vsel %vm1281, %v1278, %v1280
      %v1287 = vsel %vm433, %v1270, 0
      %v1290 = vsel %vm437, %v1282, 0
      %v1293 = vsel %vm437, %v1283, 0
      %v1296 = vsel %vm437, %v1284, 0
      %v1299 = vsel %vm437, %v1285, 0
      %1301 = vmatpush.bf16.msra.mxu0 0
      %1302 = vmatpush.bf16.msra.mxu0 0
      %1303 = vmatpush.bf16.msra.mxu0 0
      %1304 = vmatpush.bf16.msra.mxu0 0
      %1305 = vmatpush.bf16.msra.mxu0 0
      %1306 = vmatpush.bf16.msra.mxu0 0
      %1307 = vmatpush.bf16.msra.mxu0 0
      %1308 = vmatpush.bf16.msra.mxu0 %v1290
      %1309 = vmatmul.bf16.gmra.mxu0 %v1287
      %v1310 = vpop.f32.mrf.mxu0
      %v1311 = vadd.f32 0.0, %v1310
      %v1312 = vpop.f32.mrf.mxu0
      %1313 = vdwg.mxu0
      %1314 = vmatpush.bf16.msra.mxu0 0
      %1315 = vmatpush.bf16.msra.mxu0 0
      %1316 = vmatpush.bf16.msra.mxu0 0
      %1317 = vmatpush.bf16.msra.mxu0 0
      %1318 = vmatpush.bf16.msra.mxu0 0
      %1319 = vmatpush.bf16.msra.mxu0 0
      %1320 = vmatpush.bf16.msra.mxu0 0
      %1321 = vmatpush.bf16.msra.mxu0 %v1293
      %1322 = vmatmul.bf16.gmra.mxu0 %v1287
      %v1323 = vpop.f32.mrf.mxu0
      %v1324 = vadd.f32 0.0, %v1323
      %v1325 = vpop.f32.mrf.mxu0
      %1326 = vdwg.mxu0
      %1327 = vmatpush.bf16.msra.mxu0 0
      %1328 = vmatpush.bf16.msra.mxu0 0
      %1329 = vmatpush.bf16.msra.mxu0 0
      %1330 = vmatpush.bf16.msra.mxu0 0
      %1331 = vmatpush.bf16.msra.mxu0 0
      %1332 = vmatpush.bf16.msra.mxu0 0
      %1333 = vmatpush.bf16.msra.mxu0 0
      %1334 = vmatpush.bf16.msra.mxu0 %v1296
      %1335 = vmatmul.bf16.gmra.mxu0 %v1287
      %v1336 = vpop.f32.mrf.mxu0
      %v1337 = vadd.f32 0.0, %v1336
      %v1338 = vpop.f32.mrf.mxu0
      %1339 = vdwg.mxu0
      %1340 = vmatpush.bf16.msra.mxu0 0
      %1341 = vmatpush.bf16.msra.mxu0 0
      %1342 = vmatpush.bf16.msra.mxu0 0
      %1343 = vmatpush.bf16.msra.mxu0 0
      %1344 = vmatpush.bf16.msra.mxu0 0
      %1345 = vmatpush.bf16.msra.mxu0 0
      %1346 = vmatpush.bf16.msra.mxu0 0
      %1347 = vmatpush.bf16.msra.mxu0 %v1299
      %1348 = vmatmul.bf16.gmra.mxu0 %v1287
      %v1349 = vpop.f32.mrf.mxu0
      %v1350 = vadd.f32 0.0, %v1349
      %v1351 = vpop.f32.mrf.mxu0
      %1352 = vdwg.mxu0
      %v1353 = vadd.f32 %v1265, %v1311
      %v1354 = vadd.f32 %v1266, %v1324
      %v1355 = vadd.f32 %v1267, %v1337
      %v1356 = vadd.f32 %v1268, %v1350
      %s1357 = scalar_lea.vmem %s3, 44
      %v1358 = vld [vmem:[%s1357] sm:$0xf]
      %1359 = vrot.lane.b32.xlu0 %v400, 26
      %v1360 = vpop.permute.xlu0 %1359
      %1361 = vrot.lane.b32.xlu0 %v402, 26
      %v1362 = vpop.permute.xlu0 %1361
      %1363 = vrot.lane.b32.xlu0 %v404, 26
      %v1364 = vpop.permute.xlu0 %1363
      %1365 = vrot.lane.b32.xlu0 %v406, 26
      %v1366 = vpop.permute.xlu0 %1365
      %1367 = vrot.lane.b32.xlu0 %v410, 26
      %v1368 = vpop.permute.xlu0 %1367
      %vm1369 = vcmask 211968
      %v1370 = vsel %vm1369, %v1360, %v1362
      %v1371 = vsel %vm1369, %v1362, %v1364
      %v1372 = vsel %vm1369, %v1364, %v1366
      %v1373 = vsel %vm1369, %v1366, %v1368
      %v1375 = vsel %vm433, %v1358, 0
      %v1378 = vsel %vm437, %v1370, 0
      %v1381 = vsel %vm437, %v1371, 0
      %v1384 = vsel %vm437, %v1372, 0
      %v1387 = vsel %vm437, %v1373, 0
      %1389 = vmatpush.bf16.msra.mxu0 0
      %1390 = vmatpush.bf16.msra.mxu0 0
      %1391 = vmatpush.bf16.msra.mxu0 0
      %1392 = vmatpush.bf16.msra.mxu0 0
      %1393 = vmatpush.bf16.msra.mxu0 0
      %1394 = vmatpush.bf16.msra.mxu0 0
      %1395 = vmatpush.bf16.msra.mxu0 0
      %1396 = vmatpush.bf16.msra.mxu0 %v1378
      %1397 = vmatmul.bf16.gmra.mxu0 %v1375
      %v1398 = vpop.f32.mrf.mxu0
      %v1399 = vadd.f32 0.0, %v1398
      %v1400 = vpop.f32.mrf.mxu0
      %1401 = vdwg.mxu0
      %1402 = vmatpush.bf16.msra.mxu0 0
      %1403 = vmatpush.bf16.msra.mxu0 0
      %1404 = vmatpush.bf16.msra.mxu0 0
      %1405 = vmatpush.bf16.msra.mxu0 0
      %1406 = vmatpush.bf16.msra.mxu0 0
      %1407 = vmatpush.bf16.msra.mxu0 0
      %1408 = vmatpush.bf16.msra.mxu0 0
      %1409 = vmatpush.bf16.msra.mxu0 %v1381
      %1410 = vmatmul.bf16.gmra.mxu0 %v1375
      %v1411 = vpop.f32.mrf.mxu0
      %v1412 = vadd.f32 0.0, %v1411
      %v1413 = vpop.f32.mrf.mxu0
      %1414 = vdwg.mxu0
      %1415 = vmatpush.bf16.msra.mxu0 0
      %1416 = vmatpush.bf16.msra.mxu0 0
      %1417 = vmatpush.bf16.msra.mxu0 0
      %1418 = vmatpush.bf16.msra.mxu0 0
      %1419 = vmatpush.bf16.msra.mxu0 0
      %1420 = vmatpush.bf16.msra.mxu0 0
      %1421 = vmatpush.bf16.msra.mxu0 0
      %1422 = vmatpush.bf16.msra.mxu0 %v1384
      %1423 = vmatmul.bf16.gmra.mxu0 %v1375
      %v1424 = vpop.f32.mrf.mxu0
      %v1425 = vadd.f32 0.0, %v1424
      %v1426 = vpop.f32.mrf.mxu0
      %1427 = vdwg.mxu0
      %1428 = vmatpush.bf16.msra.mxu0 0
      %1429 = vmatpush.bf16.msra.mxu0 0
      %1430 = vmatpush.bf16.msra.mxu0 0
      %1431 = vmatpush.bf16.msra.mxu0 0
      %1432 = vmatpush.bf16.msra.mxu0 0
      %1433 = vmatpush.bf16.msra.mxu0 0
      %1434 = vmatpush.bf16.msra.mxu0 0
      %1435 = vmatpush.bf16.msra.mxu0 %v1387
      %1436 = vmatmul.bf16.gmra.mxu0 %v1375
      %v1437 = vpop.f32.mrf.mxu0
      %v1438 = vadd.f32 0.0, %v1437
      %v1439 = vpop.f32.mrf.mxu0
      %1440 = vdwg.mxu0
      %v1441 = vadd.f32 %v1353, %v1399
      %v1442 = vadd.f32 %v1354, %v1412
      %v1443 = vadd.f32 %v1355, %v1425
      %v1444 = vadd.f32 %v1356, %v1438
      %s1445 = scalar_lea.vmem %s3, 48
      %v1446 = vld [vmem:[%s1445] sm:$0xf]
      %1447 = vrot.lane.b32.xlu0 %v400, 18
      %v1448 = vpop.permute.xlu0 %1447
      %1449 = vrot.lane.b32.xlu0 %v402, 18
      %v1450 = vpop.permute.xlu0 %1449
      %1451 = vrot.lane.b32.xlu0 %v404, 18
      %v1452 = vpop.permute.xlu0 %1451
      %1453 = vrot.lane.b32.xlu0 %v406, 18
      %v1454 = vpop.permute.xlu0 %1453
      %1455 = vrot.lane.b32.xlu0 %v410, 18
      %v1456 = vpop.permute.xlu0 %1455
      %vm1457 = vcmask 146432
      %v1458 = vsel %vm1457, %v1448, %v1450
      %v1459 = vsel %vm1457, %v1450, %v1452
      %v1460 = vsel %vm1457, %v1452, %v1454
      %v1461 = vsel %vm1457, %v1454, %v1456
      %v1463 = vsel %vm433, %v1446, 0
      %v1466 = vsel %vm437, %v1458, 0
      %v1469 = vsel %vm437, %v1459, 0
      %v1472 = vsel %vm437, %v1460, 0
      %v1475 = vsel %vm437, %v1461, 0
      %1477 = vmatpush.bf16.msra.mxu0 0
      %1478 = vmatpush.bf16.msra.mxu0 0
      %1479 = vmatpush.bf16.msra.mxu0 0
      %1480 = vmatpush.bf16.msra.mxu0 0
      %1481 = vmatpush.bf16.msra.mxu0 0
      %1482 = vmatpush.bf16.msra.mxu0 0
      %1483 = vmatpush.bf16.msra.mxu0 0
      %1484 = vmatpush.bf16.msra.mxu0 %v1466
      %1485 = vmatmul.bf16.gmra.mxu0 %v1463
      %v1486 = vpop.f32.mrf.mxu0
      %v1487 = vadd.f32 0.0, %v1486
      %v1488 = vpop.f32.mrf.mxu0
      %1489 = vdwg.mxu0
      %1490 = vmatpush.bf16.msra.mxu0 0
      %1491 = vmatpush.bf16.msra.mxu0 0
      %1492 = vmatpush.bf16.msra.mxu0 0
      %1493 = vmatpush.bf16.msra.mxu0 0
      %1494 = vmatpush.bf16.msra.mxu0 0
      %1495 = vmatpush.bf16.msra.mxu0 0
      %1496 = vmatpush.bf16.msra.mxu0 0
      %1497 = vmatpush.bf16.msra.mxu0 %v1469
      %1498 = vmatmul.bf16.gmra.mxu0 %v1463
      %v1499 = vpop.f32.mrf.mxu0
      %v1500 = vadd.f32 0.0, %v1499
      %v1501 = vpop.f32.mrf.mxu0
      %1502 = vdwg.mxu0
      %1503 = vmatpush.bf16.msra.mxu0 0
      %1504 = vmatpush.bf16.msra.mxu0 0
      %1505 = vmatpush.bf16.msra.mxu0 0
      %1506 = vmatpush.bf16.msra.mxu0 0
      %1507 = vmatpush.bf16.msra.mxu0 0
      %1508 = vmatpush.bf16.msra.mxu0 0
      %1509 = vmatpush.bf16.msra.mxu0 0
      %1510 = vmatpush.bf16.msra.mxu0 %v1472
      %1511 = vmatmul.bf16.gmra.mxu0 %v1463
      %v1512 = vpop.f32.mrf.mxu0
      %v1513 = vadd.f32 0.0, %v1512
      %v1514 = vpop.f32.mrf.mxu0
      %1515 = vdwg.mxu0
      %1516 = vmatpush.bf16.msra.mxu0 0
      %1517 = vmatpush.bf16.msra.mxu0 0
      %1518 = vmatpush.bf16.msra.mxu0 0
      %1519 = vmatpush.bf16.msra.mxu0 0
      %1520 = vmatpush.bf16.msra.mxu0 0
      %1521 = vmatpush.bf16.msra.mxu0 0
      %1522 = vmatpush.bf16.msra.mxu0 0
      %1523 = vmatpush.bf16.msra.mxu0 %v1475
      %1524 = vmatmul.bf16.gmra.mxu0 %v1463
      %v1525 = vpop.f32.mrf.mxu0
      %v1526 = vadd.f32 0.0, %v1525
      %v1527 = vpop.f32.mrf.mxu0
      %1528 = vdwg.mxu0
      %v1529 = vadd.f32 %v1441, %v1487
      %v1530 = vadd.f32 %v1442, %v1500
      %v1531 = vadd.f32 %v1443, %v1513
      %v1532 = vadd.f32 %v1444, %v1526
      %s1533 = scalar_lea.vmem %s3, 52
      %v1534 = vld [vmem:[%s1533] sm:$0xf]
      %1535 = vrot.lane.b32.xlu0 %v400, 17
      %v1536 = vpop.permute.xlu0 %1535
      %1537 = vrot.lane.b32.xlu0 %v402, 17
      %v1538 = vpop.permute.xlu0 %1537
      %1539 = vrot.lane.b32.xlu0 %v404, 17
      %v1540 = vpop.permute.xlu0 %1539
      %1541 = vrot.lane.b32.xlu0 %v406, 17
      %v1542 = vpop.permute.xlu0 %1541
      %1543 = vrot.lane.b32.xlu0 %v410, 17
      %v1544 = vpop.permute.xlu0 %1543
      %vm1545 = vcmask 138240
      %v1546 = vsel %vm1545, %v1536, %v1538
      %v1547 = vsel %vm1545, %v1538, %v1540
      %v1548 = vsel %vm1545, %v1540, %v1542
      %v1549 = vsel %vm1545, %v1542, %v1544
      %v1551 = vsel %vm433, %v1534, 0
      %v1554 = vsel %vm437, %v1546, 0
      %v1557 = vsel %vm437, %v1547, 0
      %v1560 = vsel %vm437, %v1548, 0
      %v1563 = vsel %vm437, %v1549, 0
      %1565 = vmatpush.bf16.msra.mxu0 0
      %1566 = vmatpush.bf16.msra.mxu0 0
      %1567 = vmatpush.bf16.msra.mxu0 0
      %1568 = vmatpush.bf16.msra.mxu0 0
      %1569 = vmatpush.bf16.msra.mxu0 0
      %1570 = vmatpush.bf16.msra.mxu0 0
      %1571 = vmatpush.bf16.msra.mxu0 0
      %1572 = vmatpush.bf16.msra.mxu0 %v1554
      %1573 = vmatmul.bf16.gmra.mxu0 %v1551
      %v1574 = vpop.f32.mrf.mxu0
      %v1575 = vadd.f32 0.0, %v1574
      %v1576 = vpop.f32.mrf.mxu0
      %1577 = vdwg.mxu0
      %1578 = vmatpush.bf16.msra.mxu0 0
      %1579 = vmatpush.bf16.msra.mxu0 0
      %1580 = vmatpush.bf16.msra.mxu0 0
      %1581 = vmatpush.bf16.msra.mxu0 0
      %1582 = vmatpush.bf16.msra.mxu0 0
      %1583 = vmatpush.bf16.msra.mxu0 0
      %1584 = vmatpush.bf16.msra.mxu0 0
      %1585 = vmatpush.bf16.msra.mxu0 %v1557
      %1586 = vmatmul.bf16.gmra.mxu0 %v1551
      %v1587 = vpop.f32.mrf.mxu0
      %v1588 = vadd.f32 0.0, %v1587
      %v1589 = vpop.f32.mrf.mxu0
      %1590 = vdwg.mxu0
      %1591 = vmatpush.bf16.msra.mxu0 0
      %1592 = vmatpush.bf16.msra.mxu0 0
      %1593 = vmatpush.bf16.msra.mxu0 0
      %1594 = vmatpush.bf16.msra.mxu0 0
      %1595 = vmatpush.bf16.msra.mxu0 0
      %1596 = vmatpush.bf16.msra.mxu0 0
      %1597 = vmatpush.bf16.msra.mxu0 0
      %1598 = vmatpush.bf16.msra.mxu0 %v1560
      %1599 = vmatmul.bf16.gmra.mxu0 %v1551
      %v1600 = vpop.f32.mrf.mxu0
      %v1601 = vadd.f32 0.0, %v1600
      %v1602 = vpop.f32.mrf.mxu0
      %1603 = vdwg.mxu0
      %1604 = vmatpush.bf16.msra.mxu0 0
      %1605 = vmatpush.bf16.msra.mxu0 0
      %1606 = vmatpush.bf16.msra.mxu0 0
      %1607 = vmatpush.bf16.msra.mxu0 0
      %1608 = vmatpush.bf16.msra.mxu0 0
      %1609 = vmatpush.bf16.msra.mxu0 0
      %1610 = vmatpush.bf16.msra.mxu0 0
      %1611 = vmatpush.bf16.msra.mxu0 %v1563
      %1612 = vmatmul.bf16.gmra.mxu0 %v1551
      %v1613 = vpop.f32.mrf.mxu0
      %v1614 = vadd.f32 0.0, %v1613
      %v1615 = vpop.f32.mrf.mxu0
      %1616 = vdwg.mxu0
      %v1617 = vadd.f32 %v1529, %v1575
      %v1618 = vadd.f32 %v1530, %v1588
      %v1619 = vadd.f32 %v1531, %v1601
      %v1620 = vadd.f32 %v1532, %v1614
      %s1621 = scalar_lea.vmem %s3, 56
      %v1622 = vld [vmem:[%s1621] sm:$0xf]
      %1623 = vrot.lane.b32.xlu0 %v400, 16
      %v1624 = vpop.permute.xlu0 %1623
      %1625 = vrot.lane.b32.xlu0 %v402, 16
      %v1626 = vpop.permute.xlu0 %1625
      %1627 = vrot.lane.b32.xlu0 %v404, 16
      %v1628 = vpop.permute.xlu0 %1627
      %1629 = vrot.lane.b32.xlu0 %v406, 16
      %v1630 = vpop.permute.xlu0 %1629
      %1631 = vrot.lane.b32.xlu0 %v410, 16
      %v1632 = vpop.permute.xlu0 %1631
      %vm1633 = vcmask 130048
      %v1634 = vsel %vm1633, %v1624, %v1626
      %v1635 = vsel %vm1633, %v1626, %v1628
      %v1636 = vsel %vm1633, %v1628, %v1630
      %v1637 = vsel %vm1633, %v1630, %v1632
      %v1639 = vsel %vm433, %v1622, 0
      %v1642 = vsel %vm437, %v1634, 0
      %v1645 = vsel %vm437, %v1635, 0
      %v1648 = vsel %vm437, %v1636, 0
      %v1651 = vsel %vm437, %v1637, 0
      %1653 = vmatpush.bf16.msra.mxu0 0
      %1654 = vmatpush.bf16.msra.mxu0 0
      %1655 = vmatpush.bf16.msra.mxu0 0
      %1656 = vmatpush.bf16.msra.mxu0 0
      %1657 = vmatpush.bf16.msra.mxu0 0
      %1658 = vmatpush.bf16.msra.mxu0 0
      %1659 = vmatpush.bf16.msra.mxu0 0
      %1660 = vmatpush.bf16.msra.mxu0 %v1642
      %1661 = vmatmul.bf16.gmra.mxu0 %v1639
      %v1662 = vpop.f32.mrf.mxu0
      %v1663 = vadd.f32 0.0, %v1662
      %v1664 = vpop.f32.mrf.mxu0
      %1665 = vdwg.mxu0
      %1666 = vmatpush.bf16.msra.mxu0 0
      %1667 = vmatpush.bf16.msra.mxu0 0
      %1668 = vmatpush.bf16.msra.mxu0 0
      %1669 = vmatpush.bf16.msra.mxu0 0
      %1670 = vmatpush.bf16.msra.mxu0 0
      %1671 = vmatpush.bf16.msra.mxu0 0
      %1672 = vmatpush.bf16.msra.mxu0 0
      %1673 = vmatpush.bf16.msra.mxu0 %v1645
      %1674 = vmatmul.bf16.gmra.mxu0 %v1639
      %v1675 = vpop.f32.mrf.mxu0
      %v1676 = vadd.f32 0.0, %v1675
      %v1677 = vpop.f32.mrf.mxu0
      %1678 = vdwg.mxu0
      %1679 = vmatpush.bf16.msra.mxu0 0
      %1680 = vmatpush.bf16.msra.mxu0 0
      %1681 = vmatpush.bf16.msra.mxu0 0
      %1682 = vmatpush.bf16.msra.mxu0 0
      %1683 = vmatpush.bf16.msra.mxu0 0
      %1684 = vmatpush.bf16.msra.mxu0 0
      %1685 = vmatpush.bf16.msra.mxu0 0
      %1686 = vmatpush.bf16.msra.mxu0 %v1648
      %1687 = vmatmul.bf16.gmra.mxu0 %v1639
      %v1688 = vpop.f32.mrf.mxu0
      %v1689 = vadd.f32 0.0, %v1688
      %v1690 = vpop.f32.mrf.mxu0
      %1691 = vdwg.mxu0
      %1692 = vmatpush.bf16.msra.mxu0 0
      %1693 = vmatpush.bf16.msra.mxu0 0
      %1694 = vmatpush.bf16.msra.mxu0 0
      %1695 = vmatpush.bf16.msra.mxu0 0
      %1696 = vmatpush.bf16.msra.mxu0 0
      %1697 = vmatpush.bf16.msra.mxu0 0
      %1698 = vmatpush.bf16.msra.mxu0 0
      %1699 = vmatpush.bf16.msra.mxu0 %v1651
      %1700 = vmatmul.bf16.gmra.mxu0 %v1639
      %v1701 = vpop.f32.mrf.mxu0
      %v1702 = vadd.f32 0.0, %v1701
      %v1703 = vpop.f32.mrf.mxu0
      %1704 = vdwg.mxu0
      %v1705 = vadd.f32 %v1617, %v1663
      %v1706 = vadd.f32 %v1618, %v1676
      %v1707 = vadd.f32 %v1619, %v1689
      %v1708 = vadd.f32 %v1620, %v1702
      %s1709 = scalar_lea.vmem %s3, 60
      %v1710 = vld [vmem:[%s1709] sm:$0xf]
      %1711 = vrot.lane.b32.xlu0 %v400, 8
      %v1712 = vpop.permute.xlu0 %1711
      %1713 = vrot.lane.b32.xlu0 %v402, 8
      %v1714 = vpop.permute.xlu0 %1713
      %1715 = vrot.lane.b32.xlu0 %v404, 8
      %v1716 = vpop.permute.xlu0 %1715
      %1717 = vrot.lane.b32.xlu0 %v406, 8
      %v1718 = vpop.permute.xlu0 %1717
      %1719 = vrot.lane.b32.xlu0 %v410, 8
      %v1720 = vpop.permute.xlu0 %1719
      %vm1721 = vcmask 64512
      %v1722 = vsel %vm1721, %v1712, %v1714
      %v1723 = vsel %vm1721, %v1714, %v1716
      %v1724 = vsel %vm1721, %v1716, %v1718
      %v1725 = vsel %vm1721, %v1718, %v1720
      %v1727 = vsel %vm433, %v1710, 0
      %v1730 = vsel %vm437, %v1722, 0
      %v1733 = vsel %vm437, %v1723, 0
      %v1736 = vsel %vm437, %v1724, 0
      %v1739 = vsel %vm437, %v1725, 0
      %1741 = vmatpush.bf16.msra.mxu0 0
      %1742 = vmatpush.bf16.msra.mxu0 0
      %1743 = vmatpush.bf16.msra.mxu0 0
      %1744 = vmatpush.bf16.msra.mxu0 0
      %1745 = vmatpush.bf16.msra.mxu0 0
      %1746 = vmatpush.bf16.msra.mxu0 0
      %1747 = vmatpush.bf16.msra.mxu0 0
      %1748 = vmatpush.bf16.msra.mxu0 %v1730
      %1749 = vmatmul.bf16.gmra.mxu0 %v1727
      %v1750 = vpop.f32.mrf.mxu0
      %v1751 = vadd.f32 0.0, %v1750
      %v1752 = vpop.f32.mrf.mxu0
      %1753 = vdwg.mxu0
      %1754 = vmatpush.bf16.msra.mxu0 0
      %1755 = vmatpush.bf16.msra.mxu0 0
      %1756 = vmatpush.bf16.msra.mxu0 0
      %1757 = vmatpush.bf16.msra.mxu0 0
      %1758 = vmatpush.bf16.msra.mxu0 0
      %1759 = vmatpush.bf16.msra.mxu0 0
      %1760 = vmatpush.bf16.msra.mxu0 0
      %1761 = vmatpush.bf16.msra.mxu0 %v1733
      %1762 = vmatmul.bf16.gmra.mxu0 %v1727
      %v1763 = vpop.f32.mrf.mxu0
      %v1764 = vadd.f32 0.0, %v1763
      %v1765 = vpop.f32.mrf.mxu0
      %1766 = vdwg.mxu0
      %1767 = vmatpush.bf16.msra.mxu0 0
      %1768 = vmatpush.bf16.msra.mxu0 0
      %1769 = vmatpush.bf16.msra.mxu0 0
      %1770 = vmatpush.bf16.msra.mxu0 0
      %1771 = vmatpush.bf16.msra.mxu0 0
      %1772 = vmatpush.bf16.msra.mxu0 0
      %1773 = vmatpush.bf16.msra.mxu0 0
      %1774 = vmatpush.bf16.msra.mxu0 %v1736
      %1775 = vmatmul.bf16.gmra.mxu0 %v1727
      %v1776 = vpop.f32.mrf.mxu0
      %v1777 = vadd.f32 0.0, %v1776
      %v1778 = vpop.f32.mrf.mxu0
      %1779 = vdwg.mxu0
      %1780 = vmatpush.bf16.msra.mxu0 0
      %1781 = vmatpush.bf16.msra.mxu0 0
      %1782 = vmatpush.bf16.msra.mxu0 0
      %1783 = vmatpush.bf16.msra.mxu0 0
      %1784 = vmatpush.bf16.msra.mxu0 0
      %1785 = vmatpush.bf16.msra.mxu0 0
      %1786 = vmatpush.bf16.msra.mxu0 0
      %1787 = vmatpush.bf16.msra.mxu0 %v1739
      %1788 = vmatmul.bf16.gmra.mxu0 %v1727
      %v1789 = vpop.f32.mrf.mxu0
      %v1790 = vadd.f32 0.0, %v1789
      %v1791 = vpop.f32.mrf.mxu0
      %1792 = vdwg.mxu0
      %v1793 = vadd.f32 %v1705, %v1751
      %v1794 = vadd.f32 %v1706, %v1764
      %v1795 = vadd.f32 %v1707, %v1777
      %v1796 = vadd.f32 %v1708, %v1790
      %s1797 = scalar_lea.vmem %s3, 64
      %v1798 = vld [vmem:[%s1797] sm:$0xf]
      %1799 = vrot.lane.b32.xlu0 %v400, 7
      %v1800 = vpop.permute.xlu0 %1799
      %1801 = vrot.lane.b32.xlu0 %v402, 7
      %v1802 = vpop.permute.xlu0 %1801
      %1803 = vrot.lane.b32.xlu0 %v404, 7
      %v1804 = vpop.permute.xlu0 %1803
      %1805 = vrot.lane.b32.xlu0 %v406, 7
      %v1806 = vpop.permute.xlu0 %1805
      %1807 = vrot.lane.b32.xlu0 %v410, 7
      %v1808 = vpop.permute.xlu0 %1807
      %vm1809 = vcmask 56320
      %v1810 = vsel %vm1809, %v1800, %v1802
      %v1811 = vsel %vm1809, %v1802, %v1804
      %v1812 = vsel %vm1809, %v1804, %v1806
      %v1813 = vsel %vm1809, %v1806, %v1808
      %v1815 = vsel %vm433, %v1798, 0
      %v1818 = vsel %vm437, %v1810, 0
      %v1821 = vsel %vm437, %v1811, 0
      %v1824 = vsel %vm437, %v1812, 0
      %v1827 = vsel %vm437, %v1813, 0
      %1829 = vmatpush.bf16.msra.mxu0 0
      %1830 = vmatpush.bf16.msra.mxu0 0
      %1831 = vmatpush.bf16.msra.mxu0 0
      %1832 = vmatpush.bf16.msra.mxu0 0
      %1833 = vmatpush.bf16.msra.mxu0 0
      %1834 = vmatpush.bf16.msra.mxu0 0
      %1835 = vmatpush.bf16.msra.mxu0 0
      %1836 = vmatpush.bf16.msra.mxu0 %v1818
      %1837 = vmatmul.bf16.gmra.mxu0 %v1815
      %v1838 = vpop.f32.mrf.mxu0
      %v1839 = vadd.f32 0.0, %v1838
      %v1840 = vpop.f32.mrf.mxu0
      %1841 = vdwg.mxu0
      %1842 = vmatpush.bf16.msra.mxu0 0
      %1843 = vmatpush.bf16.msra.mxu0 0
      %1844 = vmatpush.bf16.msra.mxu0 0
      %1845 = vmatpush.bf16.msra.mxu0 0
      %1846 = vmatpush.bf16.msra.mxu0 0
      %1847 = vmatpush.bf16.msra.mxu0 0
      %1848 = vmatpush.bf16.msra.mxu0 0
      %1849 = vmatpush.bf16.msra.mxu0 %v1821
      %1850 = vmatmul.bf16.gmra.mxu0 %v1815
      %v1851 = vpop.f32.mrf.mxu0
      %v1852 = vadd.f32 0.0, %v1851
      %v1853 = vpop.f32.mrf.mxu0
      %1854 = vdwg.mxu0
      %1855 = vmatpush.bf16.msra.mxu0 0
      %1856 = vmatpush.bf16.msra.mxu0 0
      %1857 = vmatpush.bf16.msra.mxu0 0
      %1858 = vmatpush.bf16.msra.mxu0 0
      %1859 = vmatpush.bf16.msra.mxu0 0
      %1860 = vmatpush.bf16.msra.mxu0 0
      %1861 = vmatpush.bf16.msra.mxu0 0
      %1862 = vmatpush.bf16.msra.mxu0 %v1824
      %1863 = vmatmul.bf16.gmra.mxu0 %v1815
      %v1864 = vpop.f32.mrf.mxu0
      %v1865 = vadd.f32 0.0, %v1864
      %v1866 = vpop.f32.mrf.mxu0
      %1867 = vdwg.mxu0
      %1868 = vmatpush.bf16.msra.mxu0 0
      %1869 = vmatpush.bf16.msra.mxu0 0
      %1870 = vmatpush.bf16.msra.mxu0 0
      %1871 = vmatpush.bf16.msra.mxu0 0
      %1872 = vmatpush.bf16.msra.mxu0 0
      %1873 = vmatpush.bf16.msra.mxu0 0
      %1874 = vmatpush.bf16.msra.mxu0 0
      %1875 = vmatpush.bf16.msra.mxu0 %v1827
      %1876 = vmatmul.bf16.gmra.mxu0 %v1815
      %v1877 = vpop.f32.mrf.mxu0
      %v1878 = vadd.f32 0.0, %v1877
      %v1879 = vpop.f32.mrf.mxu0
      %1880 = vdwg.mxu0
      %v1881 = vadd.f32 %v1793, %v1839
      %v1882 = vadd.f32 %v1794, %v1852
      %v1883 = vadd.f32 %v1795, %v1865
      %v1884 = vadd.f32 %v1796, %v1878
      %s1885 = scalar_lea.vmem %s3, 68
      %v1886 = vld [vmem:[%s1885] sm:$0xf]
      %1887 = vrot.lane.b32.xlu0 %v400, 6
      %v1888 = vpop.permute.xlu0 %1887
      %1889 = vrot.lane.b32.xlu0 %v402, 6
      %v1890 = vpop.permute.xlu0 %1889
      %1891 = vrot.lane.b32.xlu0 %v404, 6
      %v1892 = vpop.permute.xlu0 %1891
      %1893 = vrot.lane.b32.xlu0 %v406, 6
      %v1894 = vpop.permute.xlu0 %1893
      %1895 = vrot.lane.b32.xlu0 %v410, 6
      %v1896 = vpop.permute.xlu0 %1895
      %vm1897 = vcmask 48128
      %v1898 = vsel %vm1897, %v1888, %v1890
      %v1899 = vsel %vm1897, %v1890, %v1892
      %v1900 = vsel %vm1897, %v1892, %v1894
      %v1901 = vsel %vm1897, %v1894, %v1896
      %v1903 = vsel %vm433, %v1886, 0
      %v1906 = vsel %vm437, %v1898, 0
      %v1909 = vsel %vm437, %v1899, 0
      %v1912 = vsel %vm437, %v1900, 0
      %v1915 = vsel %vm437, %v1901, 0
      %1917 = vmatpush.bf16.msra.mxu0 0
      %1918 = vmatpush.bf16.msra.mxu0 0
      %1919 = vmatpush.bf16.msra.mxu0 0
      %1920 = vmatpush.bf16.msra.mxu0 0
      %1921 = vmatpush.bf16.msra.mxu0 0
      %1922 = vmatpush.bf16.msra.mxu0 0
      %1923 = vmatpush.bf16.msra.mxu0 0
      %1924 = vmatpush.bf16.msra.mxu0 %v1906
      %1925 = vmatmul.bf16.gmra.mxu0 %v1903
      %v1926 = vpop.f32.mrf.mxu0
      %v1927 = vadd.f32 0.0, %v1926
      %v1928 = vpop.f32.mrf.mxu0
      %1929 = vdwg.mxu0
      %1930 = vmatpush.bf16.msra.mxu0 0
      %1931 = vmatpush.bf16.msra.mxu0 0
      %1932 = vmatpush.bf16.msra.mxu0 0
      %1933 = vmatpush.bf16.msra.mxu0 0
      %1934 = vmatpush.bf16.msra.mxu0 0
      %1935 = vmatpush.bf16.msra.mxu0 0
      %1936 = vmatpush.bf16.msra.mxu0 0
      %1937 = vmatpush.bf16.msra.mxu0 %v1909
      %1938 = vmatmul.bf16.gmra.mxu0 %v1903
      %v1939 = vpop.f32.mrf.mxu0
      %v1940 = vadd.f32 0.0, %v1939
      %v1941 = vpop.f32.mrf.mxu0
      %1942 = vdwg.mxu0
      %1943 = vmatpush.bf16.msra.mxu0 0
      %1944 = vmatpush.bf16.msra.mxu0 0
      %1945 = vmatpush.bf16.msra.mxu0 0
      %1946 = vmatpush.bf16.msra.mxu0 0
      %1947 = vmatpush.bf16.msra.mxu0 0
      %1948 = vmatpush.bf16.msra.mxu0 0
      %1949 = vmatpush.bf16.msra.mxu0 0
      %1950 = vmatpush.bf16.msra.mxu0 %v1912
      %1951 = vmatmul.bf16.gmra.mxu0 %v1903
      %v1952 = vpop.f32.mrf.mxu0
      %v1953 = vadd.f32 0.0, %v1952
      %v1954 = vpop.f32.mrf.mxu0
      %1955 = vdwg.mxu0
      %1956 = vmatpush.bf16.msra.mxu0 0
      %1957 = vmatpush.bf16.msra.mxu0 0
      %1958 = vmatpush.bf16.msra.mxu0 0
      %1959 = vmatpush.bf16.msra.mxu0 0
      %1960 = vmatpush.bf16.msra.mxu0 0
      %1961 = vmatpush.bf16.msra.mxu0 0
      %1962 = vmatpush.bf16.msra.mxu0 0
      %1963 = vmatpush.bf16.msra.mxu0 %v1915
      %1964 = vmatmul.bf16.gmra.mxu0 %v1903
      %v1965 = vpop.f32.mrf.mxu0
      %v1966 = vadd.f32 0.0, %v1965
      %v1967 = vpop.f32.mrf.mxu0
      %1968 = vdwg.mxu0
      %v1969 = vadd.f32 %v1881, %v1927
      %v1970 = vadd.f32 %v1882, %v1940
      %v1971 = vadd.f32 %v1883, %v1953
      %v1972 = vadd.f32 %v1884, %v1966
      %s1973 = scalar_lea.vmem %s3, 72
      %v1974 = vld [vmem:[%s1973] sm:$0xf]
      %1975 = vrot.lane.b32.xlu0 %v402, 56
      %v1976 = vpop.permute.xlu0 %1975
      %1977 = vrot.lane.b32.xlu0 %v404, 56
      %v1978 = vpop.permute.xlu0 %1977
      %1979 = vrot.lane.b32.xlu0 %v406, 56
      %v1980 = vpop.permute.xlu0 %1979
      %1981 = vrot.lane.b32.xlu0 %v410, 56
      %v1982 = vpop.permute.xlu0 %1981
      %1983 = vrot.lane.b32.xlu0 %v412, 56
      %v1984 = vpop.permute.xlu0 %1983
      %vm1985 = vcmask 457728
      %v1986 = vsel %vm1985, %v1976, %v1978
      %v1987 = vsel %vm1985, %v1978, %v1980
      %v1988 = vsel %vm1985, %v1980, %v1982
      %v1989 = vsel %vm1985, %v1982, %v1984
      %v1991 = vsel %vm433, %v1974, 0
      %v1994 = vsel %vm437, %v1986, 0
      %v1997 = vsel %vm437, %v1987, 0
      %v2000 = vsel %vm437, %v1988, 0
      %v2003 = vsel %vm437, %v1989, 0
      %2005 = vmatpush.bf16.msra.mxu0 0
      %2006 = vmatpush.bf16.msra.mxu0 0
      %2007 = vmatpush.bf16.msra.mxu0 0
      %2008 = vmatpush.bf16.msra.mxu0 0
      %2009 = vmatpush.bf16.msra.mxu0 0
      %2010 = vmatpush.bf16.msra.mxu0 0
      %2011 = vmatpush.bf16.msra.mxu0 0
      %2012 = vmatpush.bf16.msra.mxu0 %v1994
      %2013 = vmatmul.bf16.gmra.mxu0 %v1991
      %v2014 = vpop.f32.mrf.mxu0
      %v2015 = vadd.f32 0.0, %v2014
      %v2016 = vpop.f32.mrf.mxu0
      %2017 = vdwg.mxu0
      %2018 = vmatpush.bf16.msra.mxu0 0
      %2019 = vmatpush.bf16.msra.mxu0 0
      %2020 = vmatpush.bf16.msra.mxu0 0
      %2021 = vmatpush.bf16.msra.mxu0 0
      %2022 = vmatpush.bf16.msra.mxu0 0
      %2023 = vmatpush.bf16.msra.mxu0 0
      %2024 = vmatpush.bf16.msra.mxu0 0
      %2025 = vmatpush.bf16.msra.mxu0 %v1997
      %2026 = vmatmul.bf16.gmra.mxu0 %v1991
      %v2027 = vpop.f32.mrf.mxu0
      %v2028 = vadd.f32 0.0, %v2027
      %v2029 = vpop.f32.mrf.mxu0
      %2030 = vdwg.mxu0
      %2031 = vmatpush.bf16.msra.mxu0 0
      %2032 = vmatpush.bf16.msra.mxu0 0
      %2033 = vmatpush.bf16.msra.mxu0 0
      %2034 = vmatpush.bf16.msra.mxu0 0
      %2035 = vmatpush.bf16.msra.mxu0 0
      %2036 = vmatpush.bf16.msra.mxu0 0
      %2037 = vmatpush.bf16.msra.mxu0 0
      %2038 = vmatpush.bf16.msra.mxu0 %v2000
      %2039 = vmatmul.bf16.gmra.mxu0 %v1991
      %v2040 = vpop.f32.mrf.mxu0
      %v2041 = vadd.f32 0.0, %v2040
      %v2042 = vpop.f32.mrf.mxu0
      %2043 = vdwg.mxu0
      %2044 = vmatpush.bf16.msra.mxu0 0
      %2045 = vmatpush.bf16.msra.mxu0 0
      %2046 = vmatpush.bf16.msra.mxu0 0
      %2047 = vmatpush.bf16.msra.mxu0 0
      %2048 = vmatpush.bf16.msra.mxu0 0
      %2049 = vmatpush.bf16.msra.mxu0 0
      %2050 = vmatpush.bf16.msra.mxu0 0
      %2051 = vmatpush.bf16.msra.mxu0 %v2003
      %2052 = vmatmul.bf16.gmra.mxu0 %v1991
      %v2053 = vpop.f32.mrf.mxu0
      %v2054 = vadd.f32 0.0, %v2053
      %v2055 = vpop.f32.mrf.mxu0
      %2056 = vdwg.mxu0
      %v2057 = vadd.f32 %v1969, %v2015
      %v2058 = vadd.f32 %v1970, %v2028
      %v2059 = vadd.f32 %v1971, %v2041
      %v2060 = vadd.f32 %v1972, %v2054
      %s2061 = scalar_lea.vmem %s3, 76
      %v2062 = vld [vmem:[%s2061] sm:$0xf]
      %2063 = vrot.lane.b32.xlu0 %v402, 55
      %v2064 = vpop.permute.xlu0 %2063
      %2065 = vrot.lane.b32.xlu0 %v404, 55
      %v2066 = vpop.permute.xlu0 %2065
      %2067 = vrot.lane.b32.xlu0 %v406, 55
      %v2068 = vpop.permute.xlu0 %2067
      %2069 = vrot.lane.b32.xlu0 %v410, 55
      %v2070 = vpop.permute.xlu0 %2069
      %2071 = vrot.lane.b32.xlu0 %v412, 55
      %v2072 = vpop.permute.xlu0 %2071
      %vm2073 = vcmask 449536
      %v2074 = vsel %vm2073, %v2064, %v2066
      %v2075 = vsel %vm2073, %v2066, %v2068
      %v2076 = vsel %vm2073, %v2068, %v2070
      %v2077 = vsel %vm2073, %v2070, %v2072
      %v2079 = vsel %vm433, %v2062, 0
      %v2082 = vsel %vm437, %v2074, 0
      %v2085 = vsel %vm437, %v2075, 0
      %v2088 = vsel %vm437, %v2076, 0
      %v2091 = vsel %vm437, %v2077, 0
      %2093 = vmatpush.bf16.msra.mxu0 0
      %2094 = vmatpush.bf16.msra.mxu0 0
      %2095 = vmatpush.bf16.msra.mxu0 0
      %2096 = vmatpush.bf16.msra.mxu0 0
      %2097 = vmatpush.bf16.msra.mxu0 0
      %2098 = vmatpush.bf16.msra.mxu0 0
      %2099 = vmatpush.bf16.msra.mxu0 0
      %2100 = vmatpush.bf16.msra.mxu0 %v2082
      %2101 = vmatmul.bf16.gmra.mxu0 %v2079
      %v2102 = vpop.f32.mrf.mxu0
      %v2103 = vadd.f32 0.0, %v2102
      %v2104 = vpop.f32.mrf.mxu0
      %2105 = vdwg.mxu0
      %2106 = vmatpush.bf16.msra.mxu0 0
      %2107 = vmatpush.bf16.msra.mxu0 0
      %2108 = vmatpush.bf16.msra.mxu0 0
      %2109 = vmatpush.bf16.msra.mxu0 0
      %2110 = vmatpush.bf16.msra.mxu0 0
      %2111 = vmatpush.bf16.msra.mxu0 0
      %2112 = vmatpush.bf16.msra.mxu0 0
      %2113 = vmatpush.bf16.msra.mxu0 %v2085
      %2114 = vmatmul.bf16.gmra.mxu0 %v2079
      %v2115 = vpop.f32.mrf.mxu0
      %v2116 = vadd.f32 0.0, %v2115
      %v2117 = vpop.f32.mrf.mxu0
      %2118 = vdwg.mxu0
      %2119 = vmatpush.bf16.msra.mxu0 0
      %2120 = vmatpush.bf16.msra.mxu0 0
      %2121 = vmatpush.bf16.msra.mxu0 0
      %2122 = vmatpush.bf16.msra.mxu0 0
      %2123 = vmatpush.bf16.msra.mxu0 0
      %2124 = vmatpush.bf16.msra.mxu0 0
      %2125 = vmatpush.bf16.msra.mxu0 0
      %2126 = vmatpush.bf16.msra.mxu0 %v2088
      %2127 = vmatmul.bf16.gmra.mxu0 %v2079
      %v2128 = vpop.f32.mrf.mxu0
      %v2129 = vadd.f32 0.0, %v2128
      %v2130 = vpop.f32.mrf.mxu0
      %2131 = vdwg.mxu0
      %2132 = vmatpush.bf16.msra.mxu0 0
      %2133 = vmatpush.bf16.msra.mxu0 0
      %2134 = vmatpush.bf16.msra.mxu0 0
      %2135 = vmatpush.bf16.msra.mxu0 0
      %2136 = vmatpush.bf16.msra.mxu0 0
      %2137 = vmatpush.bf16.msra.mxu0 0
      %2138 = vmatpush.bf16.msra.mxu0 0
      %2139 = vmatpush.bf16.msra.mxu0 %v2091
      %2140 = vmatmul.bf16.gmra.mxu0 %v2079
      %v2141 = vpop.f32.mrf.mxu0
      %v2142 = vadd.f32 0.0, %v2141
      %v2143 = vpop.f32.mrf.mxu0
      %2144 = vdwg.mxu0
      %v2145 = vadd.f32 %v2057, %v2103
      %v2146 = vadd.f32 %v2058, %v2116
      %v2147 = vadd.f32 %v2059, %v2129
      %v2148 = vadd.f32 %v2060, %v2142
      %s2149 = scalar_lea.vmem %s3, 80
      %v2150 = vld [vmem:[%s2149] sm:$0xf]
      %2151 = vrot.lane.b32.xlu0 %v402, 54
      %v2152 = vpop.permute.xlu0 %2151
      %2153 = vrot.lane.b32.xlu0 %v404, 54
      %v2154 = vpop.permute.xlu0 %2153
      %2155 = vrot.lane.b32.xlu0 %v406, 54
      %v2156 = vpop.permute.xlu0 %2155
      %2157 = vrot.lane.b32.xlu0 %v410, 54
      %v2158 = vpop.permute.xlu0 %2157
      %2159 = vrot.lane.b32.xlu0 %v412, 54
      %v2160 = vpop.permute.xlu0 %2159
      %vm2161 = vcmask 441344
      %v2162 = vsel %vm2161, %v2152, %v2154
      %v2163 = vsel %vm2161, %v2154, %v2156
      %v2164 = vsel %vm2161, %v2156, %v2158
      %v2165 = vsel %vm2161, %v2158, %v2160
      %v2167 = vsel %vm433, %v2150, 0
      %v2170 = vsel %vm437, %v2162, 0
      %v2173 = vsel %vm437, %v2163, 0
      %v2176 = vsel %vm437, %v2164, 0
      %v2179 = vsel %vm437, %v2165, 0
      %2181 = vmatpush.bf16.msra.mxu0 0
      %2182 = vmatpush.bf16.msra.mxu0 0
      %2183 = vmatpush.bf16.msra.mxu0 0
      %2184 = vmatpush.bf16.msra.mxu0 0
      %2185 = vmatpush.bf16.msra.mxu0 0
      %2186 = vmatpush.bf16.msra.mxu0 0
      %2187 = vmatpush.bf16.msra.mxu0 0
      %2188 = vmatpush.bf16.msra.mxu0 %v2170
      %2189 = vmatmul.bf16.gmra.mxu0 %v2167
      %v2190 = vpop.f32.mrf.mxu0
      %v2191 = vadd.f32 0.0, %v2190
      %v2192 = vpop.f32.mrf.mxu0
      %2193 = vdwg.mxu0
      %2194 = vmatpush.bf16.msra.mxu0 0
      %2195 = vmatpush.bf16.msra.mxu0 0
      %2196 = vmatpush.bf16.msra.mxu0 0
      %2197 = vmatpush.bf16.msra.mxu0 0
      %2198 = vmatpush.bf16.msra.mxu0 0
      %2199 = vmatpush.bf16.msra.mxu0 0
      %2200 = vmatpush.bf16.msra.mxu0 0
      %2201 = vmatpush.bf16.msra.mxu0 %v2173
      %2202 = vmatmul.bf16.gmra.mxu0 %v2167
      %v2203 = vpop.f32.mrf.mxu0
      %v2204 = vadd.f32 0.0, %v2203
      %v2205 = vpop.f32.mrf.mxu0
      %2206 = vdwg.mxu0
      %2207 = vmatpush.bf16.msra.mxu0 0
      %2208 = vmatpush.bf16.msra.mxu0 0
      %2209 = vmatpush.bf16.msra.mxu0 0
      %2210 = vmatpush.bf16.msra.mxu0 0
      %2211 = vmatpush.bf16.msra.mxu0 0
      %2212 = vmatpush.bf16.msra.mxu0 0
      %2213 = vmatpush.bf16.msra.mxu0 0
      %2214 = vmatpush.bf16.msra.mxu0 %v2176
      %2215 = vmatmul.bf16.gmra.mxu0 %v2167
      %v2216 = vpop.f32.mrf.mxu0
      %v2217 = vadd.f32 0.0, %v2216
      %v2218 = vpop.f32.mrf.mxu0
      %2219 = vdwg.mxu0
      %2220 = vmatpush.bf16.msra.mxu0 0
      %2221 = vmatpush.bf16.msra.mxu0 0
      %2222 = vmatpush.bf16.msra.mxu0 0
      %2223 = vmatpush.bf16.msra.mxu0 0
      %2224 = vmatpush.bf16.msra.mxu0 0
      %2225 = vmatpush.bf16.msra.mxu0 0
      %2226 = vmatpush.bf16.msra.mxu0 0
      %2227 = vmatpush.bf16.msra.mxu0 %v2179
      %2228 = vmatmul.bf16.gmra.mxu0 %v2167
      %v2229 = vpop.f32.mrf.mxu0
      %v2230 = vadd.f32 0.0, %v2229
      %v2231 = vpop.f32.mrf.mxu0
      %2232 = vdwg.mxu0
      %v2233 = vadd.f32 %v2145, %v2191
      %v2234 = vadd.f32 %v2146, %v2204
      %v2235 = vadd.f32 %v2147, %v2217
      %v2236 = vadd.f32 %v2148, %v2230
      %s2237 = scalar_lea.vmem %s3, 84
      %v2238 = vld [vmem:[%s2237] sm:$0xf]
      %2239 = vrot.lane.b32.xlu0 %v402, 46
      %v2240 = vpop.permute.xlu0 %2239
      %2241 = vrot.lane.b32.xlu0 %v404, 46
      %v2242 = vpop.permute.xlu0 %2241
      %2243 = vrot.lane.b32.xlu0 %v406, 46
      %v2244 = vpop.permute.xlu0 %2243
      %2245 = vrot.lane.b32.xlu0 %v410, 46
      %v2246 = vpop.permute.xlu0 %2245
      %2247 = vrot.lane.b32.xlu0 %v412, 46
      %v2248 = vpop.permute.xlu0 %2247
      %vm2249 = vcmask 375808
      %v2250 = vsel %vm2249, %v2240, %v2242
      %v2251 = vsel %vm2249, %v2242, %v2244
      %v2252 = vsel %vm2249, %v2244, %v2246
      %v2253 = vsel %vm2249, %v2246, %v2248
      %v2255 = vsel %vm433, %v2238, 0
      %v2258 = vsel %vm437, %v2250, 0
      %v2261 = vsel %vm437, %v2251, 0
      %v2264 = vsel %vm437, %v2252, 0
      %v2267 = vsel %vm437, %v2253, 0
      %2269 = vmatpush.bf16.msra.mxu0 0
      %2270 = vmatpush.bf16.msra.mxu0 0
      %2271 = vmatpush.bf16.msra.mxu0 0
      %2272 = vmatpush.bf16.msra.mxu0 0
      %2273 = vmatpush.bf16.msra.mxu0 0
      %2274 = vmatpush.bf16.msra.mxu0 0
      %2275 = vmatpush.bf16.msra.mxu0 0
      %2276 = vmatpush.bf16.msra.mxu0 %v2258
      %2277 = vmatmul.bf16.gmra.mxu0 %v2255
      %v2278 = vpop.f32.mrf.mxu0
      %v2279 = vadd.f32 0.0, %v2278
      %v2280 = vpop.f32.mrf.mxu0
      %2281 = vdwg.mxu0
      %2282 = vmatpush.bf16.msra.mxu0 0
      %2283 = vmatpush.bf16.msra.mxu0 0
      %2284 = vmatpush.bf16.msra.mxu0 0
      %2285 = vmatpush.bf16.msra.mxu0 0
      %2286 = vmatpush.bf16.msra.mxu0 0
      %2287 = vmatpush.bf16.msra.mxu0 0
      %2288 = vmatpush.bf16.msra.mxu0 0
      %2289 = vmatpush.bf16.msra.mxu0 %v2261
      %2290 = vmatmul.bf16.gmra.mxu0 %v2255
      %v2291 = vpop.f32.mrf.mxu0
      %v2292 = vadd.f32 0.0, %v2291
      %v2293 = vpop.f32.mrf.mxu0
      %2294 = vdwg.mxu0
      %2295 = vmatpush.bf16.msra.mxu0 0
      %2296 = vmatpush.bf16.msra.mxu0 0
      %2297 = vmatpush.bf16.msra.mxu0 0
      %2298 = vmatpush.bf16.msra.mxu0 0
      %2299 = vmatpush.bf16.msra.mxu0 0
      %2300 = vmatpush.bf16.msra.mxu0 0
      %2301 = vmatpush.bf16.msra.mxu0 0
      %2302 = vmatpush.bf16.msra.mxu0 %v2264
      %2303 = vmatmul.bf16.gmra.mxu0 %v2255
      %v2304 = vpop.f32.mrf.mxu0
      %v2305 = vadd.f32 0.0, %v2304
      %v2306 = vpop.f32.mrf.mxu0
      %2307 = vdwg.mxu0
      %2308 = vmatpush.bf16.msra.mxu0 0
      %2309 = vmatpush.bf16.msra.mxu0 0
      %2310 = vmatpush.bf16.msra.mxu0 0
      %2311 = vmatpush.bf16.msra.mxu0 0
      %2312 = vmatpush.bf16.msra.mxu0 0
      %2313 = vmatpush.bf16.msra.mxu0 0
      %2314 = vmatpush.bf16.msra.mxu0 0
      %2315 = vmatpush.bf16.msra.mxu0 %v2267
      %2316 = vmatmul.bf16.gmra.mxu0 %v2255
      %v2317 = vpop.f32.mrf.mxu0
      %v2318 = vadd.f32 0.0, %v2317
      %v2319 = vpop.f32.mrf.mxu0
      %2320 = vdwg.mxu0
      %v2321 = vadd.f32 %v2233, %v2279
      %v2322 = vadd.f32 %v2234, %v2292
      %v2323 = vadd.f32 %v2235, %v2305
      %v2324 = vadd.f32 %v2236, %v2318
      %s2325 = scalar_lea.vmem %s3, 88
      %v2326 = vld [vmem:[%s2325] sm:$0xf]
      %2327 = vrot.lane.b32.xlu0 %v402, 45
      %v2328 = vpop.permute.xlu0 %2327
      %2329 = vrot.lane.b32.xlu0 %v404, 45
      %v2330 = vpop.permute.xlu0 %2329
      %2331 = vrot.lane.b32.xlu0 %v406, 45
      %v2332 = vpop.permute.xlu0 %2331
      %2333 = vrot.lane.b32.xlu0 %v410, 45
      %v2334 = vpop.permute.xlu0 %2333
      %2335 = vrot.lane.b32.xlu0 %v412, 45
      %v2336 = vpop.permute.xlu0 %2335
      %vm2337 = vcmask 367616
      %v2338 = vsel %vm2337, %v2328, %v2330
      %v2339 = vsel %vm2337, %v2330, %v2332
      %v2340 = vsel %vm2337, %v2332, %v2334
      %v2341 = vsel %vm2337, %v2334, %v2336
      %v2343 = vsel %vm433, %v2326, 0
      %v2346 = vsel %vm437, %v2338, 0
      %v2349 = vsel %vm437, %v2339, 0
      %v2352 = vsel %vm437, %v2340, 0
      %v2355 = vsel %vm437, %v2341, 0
      %2357 = vmatpush.bf16.msra.mxu0 0
      %2358 = vmatpush.bf16.msra.mxu0 0
      %2359 = vmatpush.bf16.msra.mxu0 0
      %2360 = vmatpush.bf16.msra.mxu0 0
      %2361 = vmatpush.bf16.msra.mxu0 0
      %2362 = vmatpush.bf16.msra.mxu0 0
      %2363 = vmatpush.bf16.msra.mxu0 0
      %2364 = vmatpush.bf16.msra.mxu0 %v2346
      %2365 = vmatmul.bf16.gmra.mxu0 %v2343
      %v2366 = vpop.f32.mrf.mxu0
      %v2367 = vadd.f32 0.0, %v2366
      %v2368 = vpop.f32.mrf.mxu0
      %2369 = vdwg.mxu0
      %2370 = vmatpush.bf16.msra.mxu0 0
      %2371 = vmatpush.bf16.msra.mxu0 0
      %2372 = vmatpush.bf16.msra.mxu0 0
      %2373 = vmatpush.bf16.msra.mxu0 0
      %2374 = vmatpush.bf16.msra.mxu0 0
      %2375 = vmatpush.bf16.msra.mxu0 0
      %2376 = vmatpush.bf16.msra.mxu0 0
      %2377 = vmatpush.bf16.msra.mxu0 %v2349
      %2378 = vmatmul.bf16.gmra.mxu0 %v2343
      %v2379 = vpop.f32.mrf.mxu0
      %v2380 = vadd.f32 0.0, %v2379
      %v2381 = vpop.f32.mrf.mxu0
      %2382 = vdwg.mxu0
      %2383 = vmatpush.bf16.msra.mxu0 0
      %2384 = vmatpush.bf16.msra.mxu0 0
      %2385 = vmatpush.bf16.msra.mxu0 0
      %2386 = vmatpush.bf16.msra.mxu0 0
      %2387 = vmatpush.bf16.msra.mxu0 0
      %2388 = vmatpush.bf16.msra.mxu0 0
      %2389 = vmatpush.bf16.msra.mxu0 0
      %2390 = vmatpush.bf16.msra.mxu0 %v2352
      %2391 = vmatmul.bf16.gmra.mxu0 %v2343
      %v2392 = vpop.f32.mrf.mxu0
      %v2393 = vadd.f32 0.0, %v2392
      %v2394 = vpop.f32.mrf.mxu0
      %2395 = vdwg.mxu0
      %2396 = vmatpush.bf16.msra.mxu0 0
      %2397 = vmatpush.bf16.msra.mxu0 0
      %2398 = vmatpush.bf16.msra.mxu0 0
      %2399 = vmatpush.bf16.msra.mxu0 0
      %2400 = vmatpush.bf16.msra.mxu0 0
      %2401 = vmatpush.bf16.msra.mxu0 0
      %2402 = vmatpush.bf16.msra.mxu0 0
      %2403 = vmatpush.bf16.msra.mxu0 %v2355
      %2404 = vmatmul.bf16.gmra.mxu0 %v2343
      %v2405 = vpop.f32.mrf.mxu0
      %v2406 = vadd.f32 0.0, %v2405
      %v2407 = vpop.f32.mrf.mxu0
      %2408 = vdwg.mxu0
      %v2409 = vadd.f32 %v2321, %v2367
      %v2410 = vadd.f32 %v2322, %v2380
      %v2411 = vadd.f32 %v2323, %v2393
      %v2412 = vadd.f32 %v2324, %v2406
      %s2413 = scalar_lea.vmem %s3, 92
      %v2414 = vld [vmem:[%s2413] sm:$0xf]
      %2415 = vrot.lane.b32.xlu0 %v402, 44
      %v2416 = vpop.permute.xlu0 %2415
      %2417 = vrot.lane.b32.xlu0 %v404, 44
      %v2418 = vpop.permute.xlu0 %2417
      %2419 = vrot.lane.b32.xlu0 %v406, 44
      %v2420 = vpop.permute.xlu0 %2419
      %2421 = vrot.lane.b32.xlu0 %v410, 44
      %v2422 = vpop.permute.xlu0 %2421
      %2423 = vrot.lane.b32.xlu0 %v412, 44
      %v2424 = vpop.permute.xlu0 %2423
      %vm2425 = vcmask 359424
      %v2426 = vsel %vm2425, %v2416, %v2418
      %v2427 = vsel %vm2425, %v2418, %v2420
      %v2428 = vsel %vm2425, %v2420, %v2422
      %v2429 = vsel %vm2425, %v2422, %v2424
      %v2431 = vsel %vm433, %v2414, 0
      %v2434 = vsel %vm437, %v2426, 0
      %v2437 = vsel %vm437, %v2427, 0
      %v2440 = vsel %vm437, %v2428, 0
      %v2443 = vsel %vm437, %v2429, 0
      %2445 = vmatpush.bf16.msra.mxu0 0
      %2446 = vmatpush.bf16.msra.mxu0 0
      %2447 = vmatpush.bf16.msra.mxu0 0
      %2448 = vmatpush.bf16.msra.mxu0 0
      %2449 = vmatpush.bf16.msra.mxu0 0
      %2450 = vmatpush.bf16.msra.mxu0 0
      %2451 = vmatpush.bf16.msra.mxu0 0
      %2452 = vmatpush.bf16.msra.mxu0 %v2434
      %2453 = vmatmul.bf16.gmra.mxu0 %v2431
      %v2454 = vpop.f32.mrf.mxu0
      %v2455 = vadd.f32 0.0, %v2454
      %v2456 = vpop.f32.mrf.mxu0
      %2457 = vdwg.mxu0
      %2458 = vmatpush.bf16.msra.mxu0 0
      %2459 = vmatpush.bf16.msra.mxu0 0
      %2460 = vmatpush.bf16.msra.mxu0 0
      %2461 = vmatpush.bf16.msra.mxu0 0
      %2462 = vmatpush.bf16.msra.mxu0 0
      %2463 = vmatpush.bf16.msra.mxu0 0
      %2464 = vmatpush.bf16.msra.mxu0 0
      %2465 = vmatpush.bf16.msra.mxu0 %v2437
      %2466 = vmatmul.bf16.gmra.mxu0 %v2431
      %v2467 = vpop.f32.mrf.mxu0
      %v2468 = vadd.f32 0.0, %v2467
      %v2469 = vpop.f32.mrf.mxu0
      %2470 = vdwg.mxu0
      %2471 = vmatpush.bf16.msra.mxu0 0
      %2472 = vmatpush.bf16.msra.mxu0 0
      %2473 = vmatpush.bf16.msra.mxu0 0
      %2474 = vmatpush.bf16.msra.mxu0 0
      %2475 = vmatpush.bf16.msra.mxu0 0
      %2476 = vmatpush.bf16.msra.mxu0 0
      %2477 = vmatpush.bf16.msra.mxu0 0
      %2478 = vmatpush.bf16.msra.mxu0 %v2440
      %2479 = vmatmul.bf16.gmra.mxu0 %v2431
      %v2480 = vpop.f32.mrf.mxu0
      %v2481 = vadd.f32 0.0, %v2480
      %v2482 = vpop.f32.mrf.mxu0
      %2483 = vdwg.mxu0
      %2484 = vmatpush.bf16.msra.mxu0 0
      %2485 = vmatpush.bf16.msra.mxu0 0
      %2486 = vmatpush.bf16.msra.mxu0 0
      %2487 = vmatpush.bf16.msra.mxu0 0
      %2488 = vmatpush.bf16.msra.mxu0 0
      %2489 = vmatpush.bf16.msra.mxu0 0
      %2490 = vmatpush.bf16.msra.mxu0 0
      %2491 = vmatpush.bf16.msra.mxu0 %v2443
      %2492 = vmatmul.bf16.gmra.mxu0 %v2431
      %v2493 = vpop.f32.mrf.mxu0
      %v2494 = vadd.f32 0.0, %v2493
      %v2495 = vpop.f32.mrf.mxu0
      %2496 = vdwg.mxu0
      %v2497 = vadd.f32 %v2409, %v2455
      %v2498 = vadd.f32 %v2410, %v2468
      %v2499 = vadd.f32 %v2411, %v2481
      %v2500 = vadd.f32 %v2412, %v2494
      %s2501 = scalar_lea.vmem %s3, 96
      %v2502 = vld [vmem:[%s2501] sm:$0xf]
      %2503 = vrot.lane.b32.xlu0 %v402, 36
      %v2504 = vpop.permute.xlu0 %2503
      %2505 = vrot.lane.b32.xlu0 %v404, 36
      %v2506 = vpop.permute.xlu0 %2505
      %2507 = vrot.lane.b32.xlu0 %v406, 36
      %v2508 = vpop.permute.xlu0 %2507
      %2509 = vrot.lane.b32.xlu0 %v410, 36
      %v2510 = vpop.permute.xlu0 %2509
      %2511 = vrot.lane.b32.xlu0 %v412, 36
      %v2512 = vpop.permute.xlu0 %2511
      %vm2513 = vcmask 293888
      %v2514 = vsel %vm2513, %v2504, %v2506
      %v2515 = vsel %vm2513, %v2506, %v2508
      %v2516 = vsel %vm2513, %v2508, %v2510
      %v2517 = vsel %vm2513, %v2510, %v2512
      %v2519 = vsel %vm433, %v2502, 0
      %v2522 = vsel %vm437, %v2514, 0
      %v2525 = vsel %vm437, %v2515, 0
      %v2528 = vsel %vm437, %v2516, 0
      %v2531 = vsel %vm437, %v2517, 0
      %2533 = vmatpush.bf16.msra.mxu0 0
      %2534 = vmatpush.bf16.msra.mxu0 0
      %2535 = vmatpush.bf16.msra.mxu0 0
      %2536 = vmatpush.bf16.msra.mxu0 0
      %2537 = vmatpush.bf16.msra.mxu0 0
      %2538 = vmatpush.bf16.msra.mxu0 0
      %2539 = vmatpush.bf16.msra.mxu0 0
      %2540 = vmatpush.bf16.msra.mxu0 %v2522
      %2541 = vmatmul.bf16.gmra.mxu0 %v2519
      %v2542 = vpop.f32.mrf.mxu0
      %v2543 = vadd.f32 0.0, %v2542
      %v2544 = vpop.f32.mrf.mxu0
      %2545 = vdwg.mxu0
      %2546 = vmatpush.bf16.msra.mxu0 0
      %2547 = vmatpush.bf16.msra.mxu0 0
      %2548 = vmatpush.bf16.msra.mxu0 0
      %2549 = vmatpush.bf16.msra.mxu0 0
      %2550 = vmatpush.bf16.msra.mxu0 0
      %2551 = vmatpush.bf16.msra.mxu0 0
      %2552 = vmatpush.bf16.msra.mxu0 0
      %2553 = vmatpush.bf16.msra.mxu0 %v2525
      %2554 = vmatmul.bf16.gmra.mxu0 %v2519
      %v2555 = vpop.f32.mrf.mxu0
      %v2556 = vadd.f32 0.0, %v2555
      %v2557 = vpop.f32.mrf.mxu0
      %2558 = vdwg.mxu0
      %2559 = vmatpush.bf16.msra.mxu0 0
      %2560 = vmatpush.bf16.msra.mxu0 0
      %2561 = vmatpush.bf16.msra.mxu0 0
      %2562 = vmatpush.bf16.msra.mxu0 0
      %2563 = vmatpush.bf16.msra.mxu0 0
      %2564 = vmatpush.bf16.msra.mxu0 0
      %2565 = vmatpush.bf16.msra.mxu0 0
      %2566 = vmatpush.bf16.msra.mxu0 %v2528
      %2567 = vmatmul.bf16.gmra.mxu0 %v2519
      %v2568 = vpop.f32.mrf.mxu0
      %v2569 = vadd.f32 0.0, %v2568
      %v2570 = vpop.f32.mrf.mxu0
      %2571 = vdwg.mxu0
      %2572 = vmatpush.bf16.msra.mxu0 0
      %2573 = vmatpush.bf16.msra.mxu0 0
      %2574 = vmatpush.bf16.msra.mxu0 0
      %2575 = vmatpush.bf16.msra.mxu0 0
      %2576 = vmatpush.bf16.msra.mxu0 0
      %2577 = vmatpush.bf16.msra.mxu0 0
      %2578 = vmatpush.bf16.msra.mxu0 0
      %2579 = vmatpush.bf16.msra.mxu0 %v2531
      %2580 = vmatmul.bf16.gmra.mxu0 %v2519
      %v2581 = vpop.f32.mrf.mxu0
      %v2582 = vadd.f32 0.0, %v2581
      %v2583 = vpop.f32.mrf.mxu0
      %2584 = vdwg.mxu0
      %v2585 = vadd.f32 %v2497, %v2543
      %v2586 = vadd.f32 %v2498, %v2556
      %v2587 = vadd.f32 %v2499, %v2569
      %v2588 = vadd.f32 %v2500, %v2582
      %s2589 = scalar_lea.vmem %s3, 100
      %v2590 = vld [vmem:[%s2589] sm:$0xf]
      %2591 = vrot.lane.b32.xlu0 %v402, 35
      %v2592 = vpop.permute.xlu0 %2591
      %2593 = vrot.lane.b32.xlu0 %v404, 35
      %v2594 = vpop.permute.xlu0 %2593
      %2595 = vrot.lane.b32.xlu0 %v406, 35
      %v2596 = vpop.permute.xlu0 %2595
      %2597 = vrot.lane.b32.xlu0 %v410, 35
      %v2598 = vpop.permute.xlu0 %2597
      %2599 = vrot.lane.b32.xlu0 %v412, 35
      %v2600 = vpop.permute.xlu0 %2599
      %vm2601 = vcmask 285696
      %v2602 = vsel %vm2601, %v2592, %v2594
      %v2603 = vsel %vm2601, %v2594, %v2596
      %v2604 = vsel %vm2601, %v2596, %v2598
      %v2605 = vsel %vm2601, %v2598, %v2600
      %v2607 = vsel %vm433, %v2590, 0
      %v2610 = vsel %vm437, %v2602, 0
      %v2613 = vsel %vm437, %v2603, 0
      %v2616 = vsel %vm437, %v2604, 0
      %v2619 = vsel %vm437, %v2605, 0
      %2621 = vmatpush.bf16.msra.mxu0 0
      %2622 = vmatpush.bf16.msra.mxu0 0
      %2623 = vmatpush.bf16.msra.mxu0 0
      %2624 = vmatpush.bf16.msra.mxu0 0
      %2625 = vmatpush.bf16.msra.mxu0 0
      %2626 = vmatpush.bf16.msra.mxu0 0
      %2627 = vmatpush.bf16.msra.mxu0 0
      %2628 = vmatpush.bf16.msra.mxu0 %v2610
      %2629 = vmatmul.bf16.gmra.mxu0 %v2607
      %v2630 = vpop.f32.mrf.mxu0
      %v2631 = vadd.f32 0.0, %v2630
      %v2632 = vpop.f32.mrf.mxu0
      %2633 = vdwg.mxu0
      %2634 = vmatpush.bf16.msra.mxu0 0
      %2635 = vmatpush.bf16.msra.mxu0 0
      %2636 = vmatpush.bf16.msra.mxu0 0
      %2637 = vmatpush.bf16.msra.mxu0 0
      %2638 = vmatpush.bf16.msra.mxu0 0
      %2639 = vmatpush.bf16.msra.mxu0 0
      %2640 = vmatpush.bf16.msra.mxu0 0
      %2641 = vmatpush.bf16.msra.mxu0 %v2613
      %2642 = vmatmul.bf16.gmra.mxu0 %v2607
      %v2643 = vpop.f32.mrf.mxu0
      %v2644 = vadd.f32 0.0, %v2643
      %v2645 = vpop.f32.mrf.mxu0
      %2646 = vdwg.mxu0
      %2647 = vmatpush.bf16.msra.mxu0 0
      %2648 = vmatpush.bf16.msra.mxu0 0
      %2649 = vmatpush.bf16.msra.mxu0 0
      %2650 = vmatpush.bf16.msra.mxu0 0
      %2651 = vmatpush.bf16.msra.mxu0 0
      %2652 = vmatpush.bf16.msra.mxu0 0
      %2653 = vmatpush.bf16.msra.mxu0 0
      %2654 = vmatpush.bf16.msra.mxu0 %v2616
      %2655 = vmatmul.bf16.gmra.mxu0 %v2607
      %v2656 = vpop.f32.mrf.mxu0
      %v2657 = vadd.f32 0.0, %v2656
      %v2658 = vpop.f32.mrf.mxu0
      %2659 = vdwg.mxu0
      %2660 = vmatpush.bf16.msra.mxu0 0
      %2661 = vmatpush.bf16.msra.mxu0 0
      %2662 = vmatpush.bf16.msra.mxu0 0
      %2663 = vmatpush.bf16.msra.mxu0 0
      %2664 = vmatpush.bf16.msra.mxu0 0
      %2665 = vmatpush.bf16.msra.mxu0 0
      %2666 = vmatpush.bf16.msra.mxu0 0
      %2667 = vmatpush.bf16.msra.mxu0 %v2619
      %2668 = vmatmul.bf16.gmra.mxu0 %v2607
      %v2669 = vpop.f32.mrf.mxu0
      %v2670 = vadd.f32 0.0, %v2669
      %v2671 = vpop.f32.mrf.mxu0
      %2672 = vdwg.mxu0
      %v2673 = vadd.f32 %v2585, %v2631
      %v2674 = vadd.f32 %v2586, %v2644
      %v2675 = vadd.f32 %v2587, %v2657
      %v2676 = vadd.f32 %v2588, %v2670
      %s2677 = scalar_lea.vmem %s3, 104
      %v2678 = vld [vmem:[%s2677] sm:$0xf]
      %2679 = vrot.lane.b32.xlu0 %v402, 34
      %v2680 = vpop.permute.xlu0 %2679
      %2681 = vrot.lane.b32.xlu0 %v404, 34
      %v2682 = vpop.permute.xlu0 %2681
      %2683 = vrot.lane.b32.xlu0 %v406, 34
      %v2684 = vpop.permute.xlu0 %2683
      %2685 = vrot.lane.b32.xlu0 %v410, 34
      %v2686 = vpop.permute.xlu0 %2685
      %2687 = vrot.lane.b32.xlu0 %v412, 34
      %v2688 = vpop.permute.xlu0 %2687
      %vm2689 = vcmask 277504
      %v2690 = vsel %vm2689, %v2680, %v2682
      %v2691 = vsel %vm2689, %v2682, %v2684
      %v2692 = vsel %vm2689, %v2684, %v2686
      %v2693 = vsel %vm2689, %v2686, %v2688
      %v2695 = vsel %vm433, %v2678, 0
      %v2698 = vsel %vm437, %v2690, 0
      %v2701 = vsel %vm437, %v2691, 0
      %v2704 = vsel %vm437, %v2692, 0
      %v2707 = vsel %vm437, %v2693, 0
      %2709 = vmatpush.bf16.msra.mxu0 0
      %2710 = vmatpush.bf16.msra.mxu0 0
      %2711 = vmatpush.bf16.msra.mxu0 0
      %2712 = vmatpush.bf16.msra.mxu0 0
      %2713 = vmatpush.bf16.msra.mxu0 0
      %2714 = vmatpush.bf16.msra.mxu0 0
      %2715 = vmatpush.bf16.msra.mxu0 0
      %2716 = vmatpush.bf16.msra.mxu0 %v2698
      %2717 = vmatmul.bf16.gmra.mxu0 %v2695
      %v2718 = vpop.f32.mrf.mxu0
      %v2719 = vadd.f32 0.0, %v2718
      %v2720 = vpop.f32.mrf.mxu0
      %2721 = vdwg.mxu0
      %2722 = vmatpush.bf16.msra.mxu0 0
      %2723 = vmatpush.bf16.msra.mxu0 0
      %2724 = vmatpush.bf16.msra.mxu0 0
      %2725 = vmatpush.bf16.msra.mxu0 0
      %2726 = vmatpush.bf16.msra.mxu0 0
      %2727 = vmatpush.bf16.msra.mxu0 0
      %2728 = vmatpush.bf16.msra.mxu0 0
      %2729 = vmatpush.bf16.msra.mxu0 %v2701
      %2730 = vmatmul.bf16.gmra.mxu0 %v2695
      %v2731 = vpop.f32.mrf.mxu0
      %v2732 = vadd.f32 0.0, %v2731
      %v2733 = vpop.f32.mrf.mxu0
      %2734 = vdwg.mxu0
      %2735 = vmatpush.bf16.msra.mxu0 0
      %2736 = vmatpush.bf16.msra.mxu0 0
      %2737 = vmatpush.bf16.msra.mxu0 0
      %2738 = vmatpush.bf16.msra.mxu0 0
      %2739 = vmatpush.bf16.msra.mxu0 0
      %2740 = vmatpush.bf16.msra.mxu0 0
      %2741 = vmatpush.bf16.msra.mxu0 0
      %2742 = vmatpush.bf16.msra.mxu0 %v2704
      %2743 = vmatmul.bf16.gmra.mxu0 %v2695
      %v2744 = vpop.f32.mrf.mxu0
      %v2745 = vadd.f32 0.0, %v2744
      %v2746 = vpop.f32.mrf.mxu0
      %2747 = vdwg.mxu0
      %2748 = vmatpush.bf16.msra.mxu0 0
      %2749 = vmatpush.bf16.msra.mxu0 0
      %2750 = vmatpush.bf16.msra.mxu0 0
      %2751 = vmatpush.bf16.msra.mxu0 0
      %2752 = vmatpush.bf16.msra.mxu0 0
      %2753 = vmatpush.bf16.msra.mxu0 0
      %2754 = vmatpush.bf16.msra.mxu0 0
      %2755 = vmatpush.bf16.msra.mxu0 %v2707
      %2756 = vmatmul.bf16.gmra.mxu0 %v2695
      %v2757 = vpop.f32.mrf.mxu0
      %v2758 = vadd.f32 0.0, %v2757
      %v2759 = vpop.f32.mrf.mxu0
      %2760 = vdwg.mxu0
      %v2761 = vadd.f32 %v2673, %v2719
      %v2762 = vadd.f32 %v2674, %v2732
      %v2763 = vadd.f32 %v2675, %v2745
      %v2764 = vadd.f32 %v2676, %v2758
      %v2765 = vld [vmem:[%s4] sm:$0xff]
      %2767 = vset.pattern.permute.xlu0 0
      %2768 = vperm.xlu0 %2767, %v2765
      %v2769 = vpop.permute.xlu0 %2768
      %v2771 = vadd.f32 %v2761, %v2769
      %v2772 = vadd.f32 %v2762, %v2769
      %v2773 = vadd.f32 %v2763, %v2769
      %v2774 = vadd.f32 %v2764, %v2769
      %v2775 = vmax.f32 %v2771, 0.0
      %v2776 = vmax.f32 %v2772, 0.0
      %v2777 = vmax.f32 %v2773, 0.0
      %v2778 = vmax.f32 %v2774, 0.0
      %v2780 = vperm.slane %v414, 0
      %v2781 = vperm.slane %v414, 1
      %v2782 = vperm.slane %v414, 2
      %v2783 = vperm.slane %v414, 3
      %v2788 = vmul.f32 %v2775, %v2780
      %v2789 = vmul.f32 %v2776, %v2781
      %v2790 = vmul.f32 %v2777, %v2782
      %v2791 = vmul.f32 %v2778, %v2783
      %v2792 = vadd.f32 %v2788, %v2789
      %v2793 = vadd.f32 %v2792, %v2790
      %v2794 = vadd.f32 %v2793, %v2791
      %2795 = vadd.xlane.f32.xlu0 %v2794
      %v2796 = vpop.xlane.xlu0 %2795
      %v2797 = vmul.f32 %v2775, %v2775
      %v2798 = vmul.f32 %v2776, %v2776
      %v2799 = vmul.f32 %v2777, %v2777
      %v2800 = vmul.f32 %v2778, %v2778
      %v2801 = vmul.f32 %v2797, %v2780
      %v2802 = vmul.f32 %v2798, %v2781
      %v2803 = vmul.f32 %v2799, %v2782
      %v2804 = vmul.f32 %v2800, %v2783
      %v2805 = vadd.f32 %v2801, %v2802
      %v2806 = vadd.f32 %v2805, %v2803
      %v2807 = vadd.f32 %v2806, %v2804
      %2808 = vadd.xlane.f32.xlu0 %v2807
      %v2809 = vpop.xlane.xlu0 %2808
      %v2810 = vld [vmem:[%s5] sm:$0xf]
      %v2811 = vld [vmem:[%s6] sm:$0xff]
      %2813 = vset.pattern.permute.xlu0 0
      %2814 = vperm.xlu0 %2813, %v2811
      %v2815 = vpop.permute.xlu0 %2814
      %v2818 = vsel %vm433, %v2810, 0
      %2820 = vmatpush.bf16.msra.mxu0 0
      %2821 = vmatpush.bf16.msra.mxu0 0
      %2822 = vmatpush.bf16.msra.mxu0 0
      %2823 = vmatpush.bf16.msra.mxu0 0
      %2824 = vmatpush.bf16.msra.mxu0 0
      %2825 = vmatpush.bf16.msra.mxu0 0
      %2826 = vmatpush.bf16.msra.mxu0 0
      %2827 = vmatpush.bf16.msra.mxu0 %v1554
      %2828 = vmatmul.bf16.gmra.mxu0 %v2818
      %v2829 = vpop.f32.mrf.mxu0
      %v2830 = vadd.f32 %v2815, %v2829
      %v2831 = vpop.f32.mrf.mxu0
      %2832 = vdwg.mxu0
      %2833 = vmatpush.bf16.msra.mxu0 0
      %2834 = vmatpush.bf16.msra.mxu0 0
      %2835 = vmatpush.bf16.msra.mxu0 0
      %2836 = vmatpush.bf16.msra.mxu0 0
      %2837 = vmatpush.bf16.msra.mxu0 0
      %2838 = vmatpush.bf16.msra.mxu0 0
      %2839 = vmatpush.bf16.msra.mxu0 0
      %2840 = vmatpush.bf16.msra.mxu0 %v1557
      %2841 = vmatmul.bf16.gmra.mxu0 %v2818
      %v2842 = vpop.f32.mrf.mxu0
      %v2843 = vadd.f32 %v2815, %v2842
      %v2844 = vpop.f32.mrf.mxu0
      %2845 = vdwg.mxu0
      %2846 = vmatpush.bf16.msra.mxu0 0
      %2847 = vmatpush.bf16.msra.mxu0 0
      %2848 = vmatpush.bf16.msra.mxu0 0
      %2849 = vmatpush.bf16.msra.mxu0 0
      %2850 = vmatpush.bf16.msra.mxu0 0
      %2851 = vmatpush.bf16.msra.mxu0 0
      %2852 = vmatpush.bf16.msra.mxu0 0
      %2853 = vmatpush.bf16.msra.mxu0 %v1560
      %2854 = vmatmul.bf16.gmra.mxu0 %v2818
      %v2855 = vpop.f32.mrf.mxu0
      %v2856 = vadd.f32 %v2815, %v2855
      %v2857 = vpop.f32.mrf.mxu0
      %2858 = vdwg.mxu0
      %2859 = vmatpush.bf16.msra.mxu0 0
      %2860 = vmatpush.bf16.msra.mxu0 0
      %2861 = vmatpush.bf16.msra.mxu0 0
      %2862 = vmatpush.bf16.msra.mxu0 0
      %2863 = vmatpush.bf16.msra.mxu0 0
      %2864 = vmatpush.bf16.msra.mxu0 0
      %2865 = vmatpush.bf16.msra.mxu0 0
      %2866 = vmatpush.bf16.msra.mxu0 %v1563
      %2867 = vmatmul.bf16.gmra.mxu0 %v2818
      %v2868 = vpop.f32.mrf.mxu0
      %v2869 = vadd.f32 %v2815, %v2868
      %v2870 = vpop.f32.mrf.mxu0
      %2871 = vdwg.mxu0
      %v2872 = vmax.f32 %v2830, 0.0
      %v2873 = vmax.f32 %v2843, 0.0
      %v2874 = vmax.f32 %v2856, 0.0
      %v2875 = vmax.f32 %v2869, 0.0
      %v2876 = vmul.f32 %v2872, %v2780
      %v2877 = vmul.f32 %v2873, %v2781
      %v2878 = vmul.f32 %v2874, %v2782
      %v2879 = vmul.f32 %v2875, %v2783
      %v2880 = vadd.f32 %v2876, %v2877
      %v2881 = vadd.f32 %v2880, %v2878
      %v2882 = vadd.f32 %v2881, %v2879
      %2883 = vadd.xlane.f32.xlu0 %v2882
      %v2884 = vpop.xlane.xlu0 %2883
      %v2885 = vmul.f32 %v2872, %v2872
      %v2886 = vmul.f32 %v2873, %v2873
      %v2887 = vmul.f32 %v2874, %v2874
      %v2888 = vmul.f32 %v2875, %v2875
      %v2889 = vmul.f32 %v2885, %v2780
      %v2890 = vmul.f32 %v2886, %v2781
      %v2891 = vmul.f32 %v2887, %v2782
      %v2892 = vmul.f32 %v2888, %v2783
      %v2893 = vadd.f32 %v2889, %v2890
      %v2894 = vadd.f32 %v2893, %v2891
      %v2895 = vadd.f32 %v2894, %v2892
      %2896 = vadd.xlane.f32.xlu0 %v2895
      %v2897 = vpop.xlane.xlu0 %2896
      %vm2898 = vcmask 7168
      %v2899 = vsel %vm2898, %v2796, %v2809
      %vm2900 = vcmask 15360
      %v2901 = vsel %vm2900, %v2899, %v2884
      %vm2902 = vcmask 23552
      %v2903 = vsel %vm2902, %v2901, %v2897
      %p2904 = scmp.eq.s32.totalorder %s23, 0
      // Predicated region
      $region49: #{res_se_norm_conv3d.2} parent=47 // pred_check
        %p2905 = pneg %p2904
      $region50: #{res_se_norm_conv3d.2} parent=47 // pred_check_branch
        %2907 = sbr.rel (%p2905) target = $region52
      $region51: #{res_se_norm_conv3d.2} parent=47 // pred_region
        %2908 = vst.msk [vmem:[%s394] sm:$0xff] %vm433, 0.0
      $region52: #{res_se_norm_conv3d.2} parent=47 // pred_fallthru
        _
      %v2909 = vld [vmem:[%s394] sm:$0xff]
      %v2910 = vadd.f32 %v2909, %v2903
      %2911 = vst.msk [vmem:[%s394] sm:$0xff] %vm433, %v2910
      %p2912 = scmp.lt.s32.totalorder %s22, 1
      %s2913 = scalar_select %p2912, %s22, 1
      %s2914 = smul.addr %s2913, 8
      %s2915 = scalar_lea.vmem %s7, %s2914
      // Predicated region
      $region53: #{res_se_norm_conv3d.2} parent=47 // pred_check
        %p2916 = pneg %p224
      $region54: #{res_se_norm_conv3d.2} parent=47 // pred_check_branch
        %2918 = sbr.rel (%p2916) target = $region56
      $region55: #{res_se_norm_conv3d.2} parent=47 // pred_region
        _
      $region56: #{res_se_norm_conv3d.2} parent=47 // pred_fallthru
        _
    $region48: #{res_se_norm_conv3d.2} parent=5 // pred_fallthru
      _
    %p2919 = scmp.le.s32.totalorder 2, %s13
    // Predicated region
    $region57: #{res_se_norm_conv3d.2} parent=5 // pred_check
      %p2920 = pneg %p2919
    $region58: #{res_se_norm_conv3d.2} parent=5 // pred_check_branch
      %2922 = sbr.rel (%p2920) target = $region60
    $region59: #{res_se_norm_conv3d.2} parent=5 // pred_region
      %s2923 = ssub.s32 %s13, 2
      // Predicated region
      $region61: #{res_se_norm_conv3d.2} parent=59 // pred_check
        %p2924 = pneg %p230
      $region62: #{res_se_norm_conv3d.2} parent=59 // pred_check_branch
        %2926 = sbr.rel (%p2924) target = $region64
      $region63: #{res_se_norm_conv3d.2} parent=59 // pred_region
        %p2927 = scmp.lt.s32.totalorder %s24, 1
        %s2928 = scalar_select %p2927, %s24, 1
        %s2929 = smul.addr %s2928, 8
        %s2930 = scalar_lea.vmem %s7, %s2929
      $region64: #{res_se_norm_conv3d.2} parent=59 // pred_fallthru
        _
    $region60: #{res_se_norm_conv3d.2} parent=5 // pred_fallthru
      _
  $region6: #{res_se_norm_conv3d.2} parent=0 // loop_footer
    %s17 = sadd.s32 1, %s13
  $region7: #{res_se_norm_conv3d.2} parent=0 // loop_footer_branch
    %12 = sbr.rel target = $region3
  $region8: #{res_se_norm_conv3d.2} parent=0 // loop_exit
    _

// kernel: res_se_norm_conv3d.3
$region0: #{res_se_norm_conv3d.3}
  #allocation0 [shape = 'u32[]', space=smem, size = 0x4, offset = 0x4, fixed_abs, tag = 'smem constant byte address 0x4 - core index']
  #allocation1 [shape = 'u32[72,128]{1,0:T(1,128)}', space=vmem, size = 0x9000, scoped, tag = 'internal scratch']
  %s0 = inlined_call_operand.vmem [shape: bf16[2,4,1024], index: 0, kind: input, shape index: {}, may-alias: {0,1}]
  %s1 = inlined_call_operand.vmem [shape: bf16[2,4,1024], index: 1, kind: input, shape index: {}, may-alias: {0,1}]
  %s2 = inlined_call_operand.vmem [shape: bf16[27,8,4], index: 2, kind: input, shape index: {}]
  %s3 = inlined_call_operand.vmem [shape: f32[8,1], index: 3, kind: input, shape index: {}]
  %s4 = inlined_call_operand.vmem [shape: bf16[8,4], index: 4, kind: input, shape index: {}]
  %s5 = inlined_call_operand.vmem [shape: f32[8,1], index: 5, kind: input, shape index: {}]
  %s6 = inlined_call_operand.vmem [shape: f32[2,8,4], index: 6, kind: input, shape index: {}]
  %s7 = inlined_call_operand.vmem [shape: f32[2,8,1024], index: 7, kind: output, shape index: {}]
  %s8 = sld [smem:[#allocation0]]
  $region61: #{res_se_norm_conv3d.3} parent=0
    _
  %s10 = ssub.s32 1, %s8
  %s11 = scalar_select 0, %s10, %s8
  loop: start=0, step=1, limit=6
  $region2: #{res_se_norm_conv3d.3} parent=0 // loop_pre_header
    _
  $region3: #{res_se_norm_conv3d.3} parent=0 // loop_header
    %s13 = sphi 0, %s17
    %p14 = scmp.ge.s32.totalorder %s13, 6
    %s20 = sphi 0, %s32
    %s21 = sphi 0, %s28
    %s22 = sphi 0, %s20
    %s23 = sphi 0, %s21
    %s24 = sphi 0, %s22
    %s25 = sphi 0, %s23
    %s41 = sphi 0, %s43
    %s44 = sphi 0, %s41
    %s45 = sphi 0, %s44
    %s61 = sphi 0, %s45
    %s75 = sphi 0, %s77
    %s78 = sphi 0, %s75
    %s79 = sphi 0, %s78
    %s95 = sphi 0, %s79
    %s99 = sphi 0, %s99
    %s101 = sphi 0, %s99
    %s102 = sphi 0, %s101
    %s116 = sphi 0, %s102
    %s120 = sphi 0, %s120
    %s122 = sphi 0, %s120
    %s123 = sphi 0, %s122
    %s137 = sphi 0, %s123
    %s141 = sphi 0, %s141
    %s143 = sphi 0, %s141
    %s144 = sphi 0, %s143
    %s158 = sphi 0, %s144
    %s162 = sphi 0, %s162
    %s164 = sphi 0, %s162
    %s165 = sphi 0, %s164
    %s179 = sphi 0, %s165
    %s185 = sphi 0, %s187
    %s188 = sphi 0, %s185
    %s189 = sphi 0, %s188
    %s205 = sphi 0, %s189
    %s213 = sphi 0, %s215
    %s216 = sphi 0, %s213
    %s217 = sphi 0, %s216
    %s233 = sphi 0, %s217
  $region4: #{res_se_norm_conv3d.3} parent=0 // loop_header_branch
    %16 = sbr.rel (%p14) target = $region8
  $region5: #{res_se_norm_conv3d.3} parent=0 // loop_body
    %s18 = ssub.s32 %s13, 1
    %s19 = ssub.s32 %s13, 2
    %s26 = sadd.s32 1, %s21
    %p27 = scmp.ge.s32.totalorder %s26, 2
    %s28 = scalar_select %p27, 0, %s26
    %s29 = sadd.s32 1, %s20
    %s30 = scalar_select %p27, %s29, %s20
    %p31 = scmp.ge.s32.totalorder %s30, 2
    %s32 = scalar_select %p31, 0, %s30
    %p33 = scmp.lt.s32.totalorder %s21, 1
    %s34 = scalar_select %p33, %s21, 1
    %p35 = scmp.lt.s32.totalorder %s28, 1
    %s36 = scalar_select %p35, %s28, 1
    %s37 = ssub.s32 %s20, %s32
    %s38 = ssub.s32 %s34, %s36
    %s39 = sor.u32 %s37, %s38
    %p40 = scmp.eq.s32.totalorder %s39, 0
    %s42 = sadd.s32 %s41, 1
    %s43 = scalar_select %p40, %s41, %s42
    %p46 = pneg %p40
    %p47 = scmp.eq.s32.totalorder %s13, 3
    %p48 = por %p46, %p47
    %p49 = scmp.ne.s32.totalorder %s41, %s44
    %p50 = scmp.eq.s32.totalorder %s13, 0
    %p51 = por %p49, %p50
    %p52 = scmp.ne.s32.totalorder %s41, %s44
    %p53 = scmp.eq.s32.totalorder %s18, 3
    %p54 = por %p52, %p53
    %p55 = scmp.ne.s32.totalorder %s44, %s45
    %p56 = scmp.eq.s32.totalorder %s18, 0
    %p57 = por %p55, %p56
    %p58 = scmp.ne.s32.totalorder %s44, %s45
    %p59 = scmp.eq.s32.totalorder %s19, 3
    %p60 = por %p58, %p59
    %p62 = scmp.ne.s32.totalorder %s45, %s61
    %p63 = scmp.eq.s32.totalorder %s19, 0
    %p64 = por %p62, %p63
    %s65 = sadd.s32 %s21, 1
    %p66 = scmp.lt.s32.totalorder %s65, 1
    %s67 = scalar_select %p66, %s65, 1
    %s68 = sadd.s32 %s28, 1
    %p69 = scmp.lt.s32.totalorder %s68, 1
    %s70 = scalar_select %p69, %s68, 1
    %s71 = ssub.s32 %s20, %s32
    %s72 = ssub.s32 %s67, %s70
    %s73 = sor.u32 %s71, %s72
    %p74 = scmp.eq.s32.totalorder %s73, 0
    %s76 = sadd.s32 %s75, 1
    %s77 = scalar_select %p74, %s75, %s76
    %p80 = pneg %p74
    %p81 = scmp.eq.s32.totalorder %s13, 3
    %p82 = por %p80, %p81
    %p83 = scmp.ne.s32.totalorder %s75, %s78
    %p84 = scmp.eq.s32.totalorder %s13, 0
    %p85 = por %p83, %p84
    %p86 = scmp.ne.s32.totalorder %s75, %s78
    %p87 = scmp.eq.s32.totalorder %s18, 3
    %p88 = por %p86, %p87
    %p89 = scmp.ne.s32.totalorder %s78, %s79
    %p90 = scmp.eq.s32.totalorder %s18, 0
    %p91 = por %p89, %p90
    %p92 = scmp.ne.s32.totalorder %s78, %s79
    %p93 = scmp.eq.s32.totalorder %s19, 3
    %p94 = por %p92, %p93
    %p96 = scmp.ne.s32.totalorder %s79, %s95
    %p97 = scmp.eq.s32.totalorder %s19, 0
    %p98 = por %p96, %p97
    %s100 = sadd.s32 %s99, 1
    %p103 = scmp.eq.s32.totalorder %s13, 3
    %p104 = scmp.ne.s32.totalorder %s99, %s101
    %p105 = scmp.eq.s32.totalorder %s13, 0
    %p106 = por %p104, %p105
    %p107 = scmp.ne.s32.totalorder %s99, %s101
    %p108 = scmp.eq.s32.totalorder %s18, 3
    %p109 = por %p107, %p108
    %p110 = scmp.ne.s32.totalorder %s101, %s102
    %p111 = scmp.eq.s32.totalorder %s18, 0
    %p112 = por %p110, %p111
    %p113 = scmp.ne.s32.totalorder %s101, %s102
    %p114 = scmp.eq.s32.totalorder %s19, 3
    %p115 = por %p113, %p114
    %p117 = scmp.ne.s32.totalorder %s102, %s116
    %p118 = scmp.eq.s32.totalorder %s19, 0
    %p119 = por %p117, %p118
    %s121 = sadd.s32 %s120, 1
    %p124 = scmp.eq.s32.totalorder %s13, 3
    %p125 = scmp.ne.s32.totalorder %s120, %s122
    %p126 = scmp.eq.s32.totalorder %s13, 0
    %p127 = por %p125, %p126
    %p128 = scmp.ne.s32.totalorder %s120, %s122
    %p129 = scmp.eq.s32.totalorder %s18, 3
    %p130 = por %p128, %p129
    %p131 = scmp.ne.s32.totalorder %s122, %s123
    %p132 = scmp.eq.s32.totalorder %s18, 0
    %p133 = por %p131, %p132
    %p134 = scmp.ne.s32.totalorder %s122, %s123
    %p135 = scmp.eq.s32.totalorder %s19, 3
    %p136 = por %p134, %p135
    %p138 = scmp.ne.s32.totalorder %s123, %s137
    %p139 = scmp.eq.s32.totalorder %s19, 0
    %p140 = por %p138, %p139
    %s142 = sadd.s32 %s141, 1
    %p145 = scmp.eq.s32.totalorder %s13, 3
    %p146 = scmp.ne.s32.totalorder %s141, %s143
    %p147 = scmp.eq.s32.totalorder %s13, 0
    %p148 = por %p146, %p147
    %p149 = scmp.ne.s32.totalorder %s141, %s143
    %p150 = scmp.eq.s32.totalorder %s18, 3
    %p151 = por %p149, %p150
    %p152 = scmp.ne.s32.totalorder %s143, %s144
    %p153 = scmp.eq.s32.totalorder %s18, 0
    %p154 = por %p152, %p153
    %p155 = scmp.ne.s32.totalorder %s143, %s144
    %p156 = scmp.eq.s32.totalorder %s19, 3
    %p157 = por %p155, %p156
    %p159 = scmp.ne.s32.totalorder %s144, %s158
    %p160 = scmp.eq.s32.totalorder %s19, 0
    %p161 = por %p159, %p160
    %s163 = sadd.s32 %s162, 1
    %p166 = scmp.eq.s32.totalorder %s13, 3
    %p167 = scmp.ne.s32.totalorder %s162, %s164
    %p168 = scmp.eq.s32.totalorder %s13, 0
    %p169 = por %p167, %p168
    %p170 = scmp.ne.s32.totalorder %s162, %s164
    %p171 = scmp.eq.s32.totalorder %s18, 3
    %p172 = por %p170, %p171
    %p173 = scmp.ne.s32.totalorder %s164, %s165
    %p174 = scmp.eq.s32.totalorder %s18, 0
    %p175 = por %p173, %p174
    %p176 = scmp.ne.s32.totalorder %s164, %s165
    %p177 = scmp.eq.s32.totalorder %s19, 3
    %p178 = por %p176, %p177
    %p180 = scmp.ne.s32.totalorder %s165, %s179
    %p181 = scmp.eq.s32.totalorder %s19, 0
    %p182 = por %p180, %p181
    %s183 = ssub.s32 %s20, %s32
    %p184 = scmp.eq.s32.totalorder %s183, 0
    %s186 = sadd.s32 %s185, 1
    %s187 = scalar_select %p184, %s185, %s186
    %p190 = pneg %p184
    %p191 = scmp.eq.s32.totalorder %s13, 3
    %p192 = por %p190, %p191
    %p193 = scmp.ne.s32.totalorder %s185, %s188
    %p194 = scmp.eq.s32.totalorder %s13, 0
    %p195 = por %p193, %p194
    %p196 = scmp.ne.s32.totalorder %s185, %s188
    %p197 = scmp.eq.s32.totalorder %s18, 3
    %p198 = por %p196, %p197
    %p199 = scmp.ne.s32.totalorder %s188, %s189
    %p200 = scmp.eq.s32.totalorder %s18, 0
    %p201 = por %p199, %p200
    %p202 = scmp.ne.s32.totalorder %s188, %s189
    %p203 = scmp.eq.s32.totalorder %s19, 3
    %p204 = por %p202, %p203
    %p206 = scmp.ne.s32.totalorder %s189, %s205
    %p207 = scmp.eq.s32.totalorder %s19, 0
    %p208 = por %p206, %p207
    %s209 = ssub.s32 %s20, %s32
    %s210 = ssub.s32 %s21, %s28
    %s211 = sor.u32 %s209, %s210
    %p212 = scmp.eq.s32.totalorder %s211, 0
    %s214 = sadd.s32 %s213, 1
    %s215 = scalar_select %p212, %s213, %s214
    %p218 = pneg %p212
    %p219 = scmp.eq.s32.totalorder %s13, 3
    %p220 = por %p218, %p219
    %p221 = scmp.ne.s32.totalorder %s213, %s216
    %p222 = scmp.eq.s32.totalorder %s13, 0
    %p223 = por %p221, %p222
    %p224 = scmp.ne.s32.totalorder %s213, %s216
    %p225 = scmp.eq.s32.totalorder %s18, 3
    %p226 = por %p224, %p225
    %p227 = scmp.ne.s32.totalorder %s216, %s217
    %p228 = scmp.eq.s32.totalorder %s18, 0
    %p229 = por %p227, %p228
    %p230 = scmp.ne.s32.totalorder %s216, %s217
    %p231 = scmp.eq.s32.totalorder %s19, 3
    %p232 = por %p230, %p231
    %p234 = scmp.ne.s32.totalorder %s217, %s233
    %p235 = scmp.eq.s32.totalorder %s19, 0
    %p236 = por %p234, %p235
    %p237 = scmp.le.s32.totalorder 1, %s13
    %p238 = scmp.lt.s32.totalorder %s13, 5
    %p239 = pnand %p237, %p238
    %p240 = pneg %p239
    // Predicated region
    $region9: #{res_se_norm_conv3d.3} parent=5 // pred_check
      _
    $region10: #{res_se_norm_conv3d.3} parent=5 // pred_check_branch
      %242 = sbr.rel (%p239) target = $region12
    $region11: #{res_se_norm_conv3d.3} parent=5 // pred_region
      %s243 = ssub.s32 %s13, 1
      // Predicated region
      $region13: #{res_se_norm_conv3d.3} parent=11 // pred_check
        %p244 = pneg %p112
      $region14: #{res_se_norm_conv3d.3} parent=11 // pred_check_branch
        %246 = sbr.rel (%p244) target = $region16
      $region15: #{res_se_norm_conv3d.3} parent=11 // pred_region
        _
      $region16: #{res_se_norm_conv3d.3} parent=11 // pred_fallthru
        _
      // Predicated region
      $region17: #{res_se_norm_conv3d.3} parent=11 // pred_check
        %p247 = pneg %p133
      $region18: #{res_se_norm_conv3d.3} parent=11 // pred_check_branch
        %249 = sbr.rel (%p247) target = $region20
      $region19: #{res_se_norm_conv3d.3} parent=11 // pred_region
        _
      $region20: #{res_se_norm_conv3d.3} parent=11 // pred_fallthru
        _
      // Predicated region
      $region21: #{res_se_norm_conv3d.3} parent=11 // pred_check
        %p250 = pneg %p154
      $region22: #{res_se_norm_conv3d.3} parent=11 // pred_check_branch
        %252 = sbr.rel (%p250) target = $region24
      $region23: #{res_se_norm_conv3d.3} parent=11 // pred_region
        _
      $region24: #{res_se_norm_conv3d.3} parent=11 // pred_fallthru
        _
      // Predicated region
      $region25: #{res_se_norm_conv3d.3} parent=11 // pred_check
        %p253 = pneg %p175
      $region26: #{res_se_norm_conv3d.3} parent=11 // pred_check_branch
        %255 = sbr.rel (%p253) target = $region28
      $region27: #{res_se_norm_conv3d.3} parent=11 // pred_region
        _
      $region28: #{res_se_norm_conv3d.3} parent=11 // pred_fallthru
        _
    $region12: #{res_se_norm_conv3d.3} parent=5 // pred_fallthru
      _
    %p256 = scmp.lt.s32.totalorder %s13, 4
    // Predicated region
    $region29: #{res_se_norm_conv3d.3} parent=5 // pred_check
      %p257 = pneg %p256
    $region30: #{res_se_norm_conv3d.3} parent=5 // pred_check_branch
      %259 = sbr.rel (%p257) target = $region32
    $region31: #{res_se_norm_conv3d.3} parent=5 // pred_region
      // Predicated region
      $region33: #{res_se_norm_conv3d.3} parent=31 // pred_check
        %p260 = pneg %p51
      $region34: #{res_se_norm_conv3d.3} parent=31 // pred_check_branch
        %262 = sbr.rel (%p260) target = $region36
      $region35: #{res_se_norm_conv3d.3} parent=31 // pred_region
        %p263 = scmp.lt.s32.totalorder %s21, 1
        %s264 = scalar_select %p263, %s21, 1
        %s265 = smul.u32 4, %s264
        %p266 = scmp.lt.s32.totalorder %s20, 1
        %s267 = scalar_select %p266, %s20, 1
        %p268 = scmp.lt.s32.totalorder %s265, 7
        %s269 = scalar_select %p268, %s265, 7
        %s270 = smul.addr %s267, 8
        %s271 = sadd.s32 %s269, %s270
        %s272 = smul.addr %s271, 2
        %s273 = scalar_lea.vmem %s0, %s272
        %p274 = scmp.lt.s32.totalorder %s21, 1
        %s275 = scalar_select %p274, %s21, 1
        %s276 = smul.u32 4, %s275
      $region36: #{res_se_norm_conv3d.3} parent=31 // pred_fallthru
        _
      // Predicated region
      $region37: #{res_se_norm_conv3d.3} parent=31 // pred_check
        %p277 = pneg %p85
      $region38: #{res_se_norm_conv3d.3} parent=31 // pred_check_branch
        %279 = sbr.rel (%p277) target = $region40
      $region39: #{res_se_norm_conv3d.3} parent=31 // pred_region
        %s280 = sadd.s32 %s21, 1
        %p281 = scmp.lt.s32.totalorder %s280, 1
        %s282 = scalar_select %p281, %s280, 1
        %s283 = smul.u32 4, %s282
        %p284 = scmp.lt.s32.totalorder %s20, 1
        %s285 = scalar_select %p284, %s20, 1
        %p286 = scmp.lt.s32.totalorder %s283, 7
        %s287 = scalar_select %p286, %s283, 7
        %s288 = smul.addr %s285, 8
        %s289 = sadd.s32 %s287, %s288
        %s290 = smul.addr %s289, 2
        %s291 = scalar_lea.vmem %s1, %s290
        %s292 = sadd.s32 %s21, 1
        %p293 = scmp.lt.s32.totalorder %s292, 1
        %s294 = scalar_select %p293, %s292, 1
        %s295 = smul.u32 4, %s294
      $region40: #{res_se_norm_conv3d.3} parent=31 // pred_fallthru
        _
      // Predicated region
      $region41: #{res_se_norm_conv3d.3} parent=31 // pred_check
        %p296 = pneg %p195
      $region42: #{res_se_norm_conv3d.3} parent=31 // pred_check_branch
        %298 = sbr.rel (%p296) target = $region44
      $region43: #{res_se_norm_conv3d.3} parent=31 // pred_region
        %p299 = scmp.lt.s32.totalorder %s20, 1
        %s300 = scalar_select %p299, %s20, 1
        %s301 = smul.addr %s300, 8
        %s302 = scalar_lea.vmem %s6, %s301
      $region44: #{res_se_norm_conv3d.3} parent=31 // pred_fallthru
        _
    $region32: #{res_se_norm_conv3d.3} parent=5 // pred_fallthru
      _
    %p303 = scmp.le.s32.totalorder 1, %s13
    %p304 = scmp.lt.s32.totalorder %s13, 5
    %p305 = pnand %p303, %p304
    %p306 = pneg %p305
    // Predicated region
    $region45: #{res_se_norm_conv3d.3} parent=5 // pred_check
      _
    $region46: #{res_se_norm_conv3d.3} parent=5 // pred_check_branch
      %308 = sbr.rel (%p305) target = $region48
    $region47: #{res_se_norm_conv3d.3} parent=5 // pred_region
      %s309 = ssub.s32 %s13, 1
      %p310 = scmp.lt.s32.totalorder %s23, 1
      %s311 = scalar_select %p310, %s23, 1
      %s312 = smul.u32 4, %s311
      %p313 = scmp.lt.s32.totalorder %s22, 1
      %s314 = scalar_select %p313, %s22, 1
      %p315 = scmp.lt.s32.totalorder %s312, 7
      %s316 = scalar_select %p315, %s312, 7
      %s317 = smul.addr %s314, 8
      %s318 = sadd.s32 %s316, %s317
      %s319 = smul.addr %s318, 2
      %s320 = scalar_lea.vmem %s0, %s319
      %p321 = pneg %p57
      %p322 = pneg %p54
      %s323 = sadd.s32 %s23, 1
      %p324 = scmp.lt.s32.totalorder %s323, 1
      %s325 = scalar_select %p324, %s323, 1
      %s326 = smul.u32 4, %s325
      %p327 = scmp.lt.s32.totalorder %s22, 1
      %s328 = scalar_select %p327, %s22, 1
      %p329 = scmp.lt.s32.totalorder %s326, 7
      %s330 = scalar_select %p329, %s326, 7
      %s331 = smul.addr %s328, 8
      %s332 = sadd.s32 %s330, %s331
      %s333 = smul.addr %s332, 2
      %s334 = scalar_lea.vmem %s1, %s333
      %p335 = pneg %p91
      %p336 = pneg %p88
      %p337 = pneg %p112
      %p338 = pneg %p109
      %p339 = pneg %p133
      %p340 = pneg %p130
      %p341 = pneg %p154
      %p342 = pneg %p151
      %p343 = pneg %p175
      %p344 = pneg %p172
      %p345 = scmp.lt.s32.totalorder %s22, 1
      %s346 = scalar_select %p345, %s22, 1
      %s347 = smul.addr %s346, 8
      %s348 = scalar_lea.vmem %s6, %s347
      %p349 = pneg %p201
      %p350 = pneg %p198
      %p351 = pneg %p229
      %p352 = pneg %p226
      %s353 = smul.u32 4, %s23
      %p354 = scmp.lt.s32.totalorder %s22, 1
      %s355 = scalar_select %p354, %s22, 1
      %p356 = scmp.lt.s32.totalorder %s353, 7
      %s357 = scalar_select %p356, %s353, 7
      %s358 = smul.addr %s355, 8
      %s359 = sadd.s32 %s357, %s358
      %s360 = smul.addr %s359, 8
      %s361 = scalar_lea.vmem %s7, %s360
      %p362 = scmp.lt.s32.totalorder %s23, 1
      %s363 = scalar_select %p362, %s23, 1
      %s364 = smul.u32 4, %s363
      %p365 = scmp.lt.s32.totalorder %s22, 1
      %s366 = scalar_select %p365, %s22, 1
      %p367 = scmp.lt.s32.totalorder %s364, 7
      %s368 = scalar_select %p367, %s364, 7
      %s369 = smul.addr %s366, 8
      %s370 = sadd.s32 %s368, %s369
      %s371 = smul.addr %s370, 2
      %s372 = scalar_lea.vmem %s0, %s371
      %p373 = scmp.lt.s32.totalorder %s23, 1
      %s374 = scalar_select %p373, %s23, 1
      %s375 = smul.u32 4, %s374
      %s376 = sadd.s32 %s23, 1
      %p377 = scmp.lt.s32.totalorder %s376, 1
      %s378 = scalar_select %p377, %s376, 1
      %s379 = smul.u32 4, %s378
      %p380 = scmp.lt.s32.totalorder %s22, 1
      %s381 = scalar_select %p380, %s22, 1
      %p382 = scmp.lt.s32.totalorder %s379, 7
      %s383 = scalar_select %p382, %s379, 7
      %s384 = smul.addr %s381, 8
      %s385 = sadd.s32 %s383, %s384
      %s386 = smul.addr %s385, 2
      %s387 = scalar_lea.vmem %s1, %s386
      %s388 = sadd.s32 %s23, 1
      %p389 = scmp.lt.s32.totalorder %s388, 1
      %s390 = scalar_select %p389, %s388, 1
      %s391 = smul.u32 4, %s390
      %p392 = scmp.lt.s32.totalorder %s22, 1
      %s393 = scalar_select %p392, %s22, 1
      %s394 = smul.addr %s393, 8
      %s395 = scalar_lea.vmem %s6, %s394
      %s396 = smul.u32 4, %s23
      %p397 = scmp.lt.s32.totalorder %s22, 1
      %s398 = scalar_select %p397, %s22, 1
      %p399 = scmp.lt.s32.totalorder %s396, 7
      %s400 = scalar_select %p399, %s396, 7
      %s401 = smul.addr %s398, 8
      %s402 = sadd.s32 %s400, %s401
      %s403 = smul.addr %s402, 8
      %s404 = scalar_lea.vmem %s7, %s403
      %s405 = smul.u32 4, %s23
      %v407 = vld [vmem:[%s372] sm:$0xff]
      %v408 = vld [vmem:[%s387] sm:$0xff]
      %410 = vst [vmem:[#allocation1] ss:$4 sm:$0xff] %v407
      %v411 = vld.sshfl [vmem:[#allocation1] sm:$0xff pattern:$0x73625140]
      %v413 = vld.sshfl [vmem:[#allocation1 + $0x8] sm:$0xff pattern:$0x73625140]
      %v415 = vld.sshfl [vmem:[#allocation1 + $0x10] sm:$0xff pattern:$0x73625140]
      %v417 = vld.sshfl [vmem:[#allocation1 + $0x18] sm:$0xff pattern:$0x73625140]
      %420 = vst [vmem:[#allocation1] ss:$4 sm:$0xff] %v408
      %v421 = vld.sshfl [vmem:[#allocation1] sm:$0xff pattern:$0x73625140]
      %v423 = vld.sshfl [vmem:[#allocation1 + $0x8] sm:$0xff pattern:$0x73625140]
      %v425 = vld [vmem:[%s2] sm:$0xf]
      %s426 = scalar_lea.vmem %s2, 4
      %v427 = vld [vmem:[%s426] sm:$0xf]
      %428 = vrot.lane.b32.xlu0 %v411, 127
      %v429 = vpop.permute.xlu0 %428
      %430 = vrot.lane.b32.xlu0 %v413, 127
      %v431 = vpop.permute.xlu0 %430
      %432 = vrot.lane.b32.xlu0 %v415, 127
      %v433 = vpop.permute.xlu0 %432
      %434 = vrot.lane.b32.xlu0 %v417, 127
      %v435 = vpop.permute.xlu0 %434
      %436 = vrot.lane.b32.xlu0 %v421, 127
      %v437 = vpop.permute.xlu0 %436
      %vm438 = vcmask 1039360
      %v439 = vsel %vm438, %v429, %v431
      %v440 = vsel %vm438, %v431, %v433
      %v441 = vsel %vm438, %v433, %v435
      %v442 = vsel %vm438, %v435, %v437
      %vm443 = vcmask 31744
      %v445 = vsel %vm443, %v427, 0
      %vm447 = vcmask 1041408
      %v449 = vsel %vm447, %v439, 0
      %v452 = vsel %vm447, %v440, 0
      %v455 = vsel %vm447, %v441, 0
      %v458 = vsel %vm447, %v442, 0
      %460 = vmatpush.bf16.msra.mxu0 0
      %461 = vmatpush.bf16.msra.mxu0 0
      %462 = vmatpush.bf16.msra.mxu0 0
      %463 = vmatpush.bf16.msra.mxu0 0
      %464 = vmatpush.bf16.msra.mxu0 0
      %465 = vmatpush.bf16.msra.mxu0 0
      %466 = vmatpush.bf16.msra.mxu0 0
      %467 = vmatpush.bf16.msra.mxu0 %v449
      %468 = vmatmul.bf16.gmra.mxu0 %v445
      %v469 = vpop.f32.mrf.mxu0
      %v470 = vadd.f32 0.0, %v469
      %v471 = vpop.f32.mrf.mxu0
      %472 = vdwg.mxu0
      %473 = vmatpush.bf16.msra.mxu0 0
      %474 = vmatpush.bf16.msra.mxu0 0
      %475 = vmatpush.bf16.msra.mxu0 0
      %476 = vmatpush.bf16.msra.mxu0 0
      %477 = vmatpush.bf16.msra.mxu0 0
      %478 = vmatpush.bf16.msra.mxu0 0
      %479 = vmatpush.bf16.msra.mxu0 0
      %480 = vmatpush.bf16.msra.mxu0 %v452
      %481 = vmatmul.bf16.gmra.mxu0 %v445
      %v482 = vpop.f32.mrf.mxu0
      %v483 = vadd.f32 0.0, %v482
      %v484 = vpop.f32.mrf.mxu0
      %485 = vdwg.mxu0
      %486 = vmatpush.bf16.msra.mxu0 0
      %487 = vmatpush.bf16.msra.mxu0 0
      %488 = vmatpush.bf16.msra.mxu0 0
      %489 = vmatpush.bf16.msra.mxu0 0
      %490 = vmatpush.bf16.msra.mxu0 0
      %491 = vmatpush.bf16.msra.mxu0 0
      %492 = vmatpush.bf16.msra.mxu0 0
      %493 = vmatpush.bf16.msra.mxu0 %v455
      %494 = vmatmul.bf16.gmra.mxu0 %v445
      %v495 = vpop.f32.mrf.mxu0
      %v496 = vadd.f32 0.0, %v495
      %v497 = vpop.f32.mrf.mxu0
      %498 = vdwg.mxu0
      %499 = vmatpush.bf16.msra.mxu0 0
      %500 = vmatpush.bf16.msra.mxu0 0
      %501 = vmatpush.bf16.msra.mxu0 0
      %502 = vmatpush.bf16.msra.mxu0 0
      %503 = vmatpush.bf16.msra.mxu0 0
      %504 = vmatpush.bf16.msra.mxu0 0
      %505 = vmatpush.bf16.msra.mxu0 0
      %506 = vmatpush.bf16.msra.mxu0 %v458
      %507 = vmatmul.bf16.gmra.mxu0 %v445
      %v508 = vpop.f32.mrf.mxu0
      %v509 = vadd.f32 0.0, %v508
      %v510 = vpop.f32.mrf.mxu0
      %511 = vdwg.mxu0
      %v513 = vsel %vm443, %v425, 0
      %v515 = vsel %vm447, %v411, 0
      %v517 = vsel %vm447, %v413, 0
      %v519 = vsel %vm447, %v415, 0
      %v521 = vsel %vm447, %v417, 0
      %523 = vmatpush.bf16.msra.mxu0 0
      %524 = vmatpush.bf16.msra.mxu0 0
      %525 = vmatpush.bf16.msra.mxu0 0
      %526 = vmatpush.bf16.msra.mxu0 0
      %527 = vmatpush.bf16.msra.mxu0 0
      %528 = vmatpush.bf16.msra.mxu0 0
      %529 = vmatpush.bf16.msra.mxu0 0
      %530 = vmatpush.bf16.msra.mxu0 %v515
      %531 = vmatmul.bf16.gmra.mxu0 %v513
      %v532 = vpop.f32.mrf.mxu0
      %v533 = vadd.f32 %v470, %v532
      %v534 = vpop.f32.mrf.mxu0
      %535 = vdwg.mxu0
      %536 = vmatpush.bf16.msra.mxu0 0
      %537 = vmatpush.bf16.msra.mxu0 0
      %538 = vmatpush.bf16.msra.mxu0 0
      %539 = vmatpush.bf16.msra.mxu0 0
      %540 = vmatpush.bf16.msra.mxu0 0
      %541 = vmatpush.bf16.msra.mxu0 0
      %542 = vmatpush.bf16.msra.mxu0 0
      %543 = vmatpush.bf16.msra.mxu0 %v517
      %544 = vmatmul.bf16.gmra.mxu0 %v513
      %v545 = vpop.f32.mrf.mxu0
      %v546 = vadd.f32 %v483, %v545
      %v547 = vpop.f32.mrf.mxu0
      %548 = vdwg.mxu0
      %549 = vmatpush.bf16.msra.mxu0 0
      %550 = vmatpush.bf16.msra.mxu0 0
      %551 = vmatpush.bf16.msra.mxu0 0
      %552 = vmatpush.bf16.msra.mxu0 0
      %553 = vmatpush.bf16.msra.mxu0 0
      %554 = vmatpush.bf16.msra.mxu0 0
      %555 = vmatpush.bf16.msra.mxu0 0
      %556 = vmatpush.bf16.msra.mxu0 %v519
      %557 = vmatmul.bf16.gmra.mxu0 %v513
      %v558 = vpop.f32.mrf.mxu0
      %v559 = vadd.f32 %v496, %v558
      %v560 = vpop.f32.mrf.mxu0
      %561 = vdwg.mxu0
      %562 = vmatpush.bf16.msra.mxu0 0
      %563 = vmatpush.bf16.msra.mxu0 0
      %564 = vmatpush.bf16.msra.mxu0 0
      %565 = vmatpush.bf16.msra.mxu0 0
      %566 = vmatpush.bf16.msra.mxu0 0
      %567 = vmatpush.bf16.msra.mxu0 0
      %568 = vmatpush.bf16.msra.mxu0 0
      %569 = vmatpush.bf16.msra.mxu0 %v521
      %570 = vmatmul.bf16.gmra.mxu0 %v513
      %v571 = vpop.f32.mrf.mxu0
      %v572 = vadd.f32 %v509, %v571
      %v573 = vpop.f32.mrf.mxu0
      %574 = vdwg.mxu0
      %s575 = scalar_lea.vmem %s2, 8
      %v576 = vld [vmem:[%s575] sm:$0xf]
      %577 = vrot.lane.b32.xlu0 %v411, 126
      %v578 = vpop.permute.xlu0 %577
      %579 = vrot.lane.b32.xlu0 %v413, 126
      %v580 = vpop.permute.xlu0 %579
      %581 = vrot.lane.b32.xlu0 %v415, 126
      %v582 = vpop.permute.xlu0 %581
      %583 = vrot.lane.b32.xlu0 %v417, 126
      %v584 = vpop.permute.xlu0 %583
      %585 = vrot.lane.b32.xlu0 %v421, 126
      %v586 = vpop.permute.xlu0 %585
      %vm587 = vcmask 1031168
      %v588 = vsel %vm587, %v578, %v580
      %v589 = vsel %vm587, %v580, %v582
      %v590 = vsel %vm587, %v582, %v584
      %v591 = vsel %vm587, %v584, %v586
      %v593 = vsel %vm443, %v576, 0
      %v596 = vsel %vm447, %v588, 0
      %v599 = vsel %vm447, %v589, 0
      %v602 = vsel %vm447, %v590, 0
      %v605 = vsel %vm447, %v591, 0
      %607 = vmatpush.bf16.msra.mxu0 0
      %608 = vmatpush.bf16.msra.mxu0 0
      %609 = vmatpush.bf16.msra.mxu0 0
      %610 = vmatpush.bf16.msra.mxu0 0
      %611 = vmatpush.bf16.msra.mxu0 0
      %612 = vmatpush.bf16.msra.mxu0 0
      %613 = vmatpush.bf16.msra.mxu0 0
      %614 = vmatpush.bf16.msra.mxu0 %v596
      %615 = vmatmul.bf16.gmra.mxu0 %v593
      %v616 = vpop.f32.mrf.mxu0
      %v617 = vadd.f32 0.0, %v616
      %v618 = vpop.f32.mrf.mxu0
      %619 = vdwg.mxu0
      %620 = vmatpush.bf16.msra.mxu0 0
      %621 = vmatpush.bf16.msra.mxu0 0
      %622 = vmatpush.bf16.msra.mxu0 0
      %623 = vmatpush.bf16.msra.mxu0 0
      %624 = vmatpush.bf16.msra.mxu0 0
      %625 = vmatpush.bf16.msra.mxu0 0
      %626 = vmatpush.bf16.msra.mxu0 0
      %627 = vmatpush.bf16.msra.mxu0 %v599
      %628 = vmatmul.bf16.gmra.mxu0 %v593
      %v629 = vpop.f32.mrf.mxu0
      %v630 = vadd.f32 0.0, %v629
      %v631 = vpop.f32.mrf.mxu0
      %632 = vdwg.mxu0
      %633 = vmatpush.bf16.msra.mxu0 0
      %634 = vmatpush.bf16.msra.mxu0 0
      %635 = vmatpush.bf16.msra.mxu0 0
      %636 = vmatpush.bf16.msra.mxu0 0
      %637 = vmatpush.bf16.msra.mxu0 0
      %638 = vmatpush.bf16.msra.mxu0 0
      %639 = vmatpush.bf16.msra.mxu0 0
      %640 = vmatpush.bf16.msra.mxu0 %v602
      %641 = vmatmul.bf16.gmra.mxu0 %v593
      %v642 = vpop.f32.mrf.mxu0
      %v643 = vadd.f32 0.0, %v642
      %v644 = vpop.f32.mrf.mxu0
      %645 = vdwg.mxu0
      %646 = vmatpush.bf16.msra.mxu0 0
      %647 = vmatpush.bf16.msra.mxu0 0
      %648 = vmatpush.bf16.msra.mxu0 0
      %649 = vmatpush.bf16.msra.mxu0 0
      %650 = vmatpush.bf16.msra.mxu0 0
      %651 = vmatpush.bf16.msra.mxu0 0
      %652 = vmatpush.bf16.msra.mxu0 0
      %653 = vmatpush.bf16.msra.mxu0 %v605
      %654 = vmatmul.bf16.gmra.mxu0 %v593
      %v655 = vpop.f32.mrf.mxu0
      %v656 = vadd.f32 0.0, %v655
      %v657 = vpop.f32.mrf.mxu0
      %658 = vdwg.mxu0
      %v659 = vadd.f32 %v533, %v617
      %v660 = vadd.f32 %v546, %v630
      %v661 = vadd.f32 %v559, %v643
      %v662 = vadd.f32 %v572, %v656
      %s663 = scalar_lea.vmem %s2, 12
      %v664 = vld [vmem:[%s663] sm:$0xf]
      %665 = vrot.lane.b32.xlu0 %v411, 118
      %v666 = vpop.permute.xlu0 %665
      %667 = vrot.lane.b32.xlu0 %v413, 118
      %v668 = vpop.permute.xlu0 %667
      %669 = vrot.lane.b32.xlu0 %v415, 118
      %v670 = vpop.permute.xlu0 %669
      %671 = vrot.lane.b32.xlu0 %v417, 118
      %v672 = vpop.permute.xlu0 %671
      %673 = vrot.lane.b32.xlu0 %v421, 118
      %v674 = vpop.permute.xlu0 %673
      %vm675 = vcmask 965632
      %v676 = vsel %vm675, %v666, %v668
      %v677 = vsel %vm675, %v668, %v670
      %v678 = vsel %vm675, %v670, %v672
      %v679 = vsel %vm675, %v672, %v674
      %v681 = vsel %vm443, %v664, 0
      %v684 = vsel %vm447, %v676, 0
      %v687 = vsel %vm447, %v677, 0
      %v690 = vsel %vm447, %v678, 0
      %v693 = vsel %vm447, %v679, 0
      %695 = vmatpush.bf16.msra.mxu0 0
      %696 = vmatpush.bf16.msra.mxu0 0
      %697 = vmatpush.bf16.msra.mxu0 0
      %698 = vmatpush.bf16.msra.mxu0 0
      %699 = vmatpush.bf16.msra.mxu0 0
      %700 = vmatpush.bf16.msra.mxu0 0
      %701 = vmatpush.bf16.msra.mxu0 0
      %702 = vmatpush.bf16.msra.mxu0 %v684
      %703 = vmatmul.bf16.gmra.mxu0 %v681
      %v704 = vpop.f32.mrf.mxu0
      %v705 = vadd.f32 0.0, %v704
      %v706 = vpop.f32.mrf.mxu0
      %707 = vdwg.mxu0
      %708 = vmatpush.bf16.msra.mxu0 0
      %709 = vmatpush.bf16.msra.mxu0 0
      %710 = vmatpush.bf16.msra.mxu0 0
      %711 = vmatpush.bf16.msra.mxu0 0
      %712 = vmatpush.bf16.msra.mxu0 0
      %713 = vmatpush.bf16.msra.mxu0 0
      %714 = vmatpush.bf16.msra.mxu0 0
      %715 = vmatpush.bf16.msra.mxu0 %v687
      %716 = vmatmul.bf16.gmra.mxu0 %v681
      %v717 = vpop.f32.mrf.mxu0
      %v718 = vadd.f32 0.0, %v717
      %v719 = vpop.f32.mrf.mxu0
      %720 = vdwg.mxu0
      %721 = vmatpush.bf16.msra.mxu0 0
      %722 = vmatpush.bf16.msra.mxu0 0
      %723 = vmatpush.bf16.msra.mxu0 0
      %724 = vmatpush.bf16.msra.mxu0 0
      %725 = vmatpush.bf16.msra.mxu0 0
      %726 = vmatpush.bf16.msra.mxu0 0
      %727 = vmatpush.bf16.msra.mxu0 0
      %728 = vmatpush.bf16.msra.mxu0 %v690
      %729 = vmatmul.bf16.gmra.mxu0 %v681
      %v730 = vpop.f32.mrf.mxu0
      %v731 = vadd.f32 0.0, %v730
      %v732 = vpop.f32.mrf.mxu0
      %733 = vdwg.mxu0
      %734 = vmatpush.bf16.msra.mxu0 0
      %735 = vmatpush.bf16.msra.mxu0 0
      %736 = vmatpush.bf16.msra.mxu0 0
      %737 = vmatpush.bf16.msra.mxu0 0
      %738 = vmatpush.bf16.msra.mxu0 0
      %739 = vmatpush.bf16.msra.mxu0 0
      %740 = vmatpush.bf16.msra.mxu0 0
      %741 = vmatpush.bf16.msra.mxu0 %v693
      %742 = vmatmul.bf16.gmra.mxu0 %v681
      %v743 = vpop.f32.mrf.mxu0
      %v744 = vadd.f32 0.0, %v743
      %v745 = vpop.f32.mrf.mxu0
      %746 = vdwg.mxu0
      %v747 = vadd.f32 %v659, %v705
      %v748 = vadd.f32 %v660, %v718
      %v749 = vadd.f32 %v661, %v731
      %v750 = vadd.f32 %v662, %v744
      %s751 = scalar_lea.vmem %s2, 16
      %v752 = vld [vmem:[%s751] sm:$0xf]
      %753 = vrot.lane.b32.xlu0 %v411, 117
      %v754 = vpop.permute.xlu0 %753
      %755 = vrot.lane.b32.xlu0 %v413, 117
      %v756 = vpop.permute.xlu0 %755
      %757 = vrot.lane.b32.xlu0 %v415, 117
      %v758 = vpop.permute.xlu0 %757
      %759 = vrot.lane.b32.xlu0 %v417, 117
      %v760 = vpop.permute.xlu0 %759
      %761 = vrot.lane.b32.xlu0 %v421, 117
      %v762 = vpop.permute.xlu0 %761
      %vm763 = vcmask 957440
      %v764 = vsel %vm763, %v754, %v756
      %v765 = vsel %vm763, %v756, %v758
      %v766 = vsel %vm763, %v758, %v760
      %v767 = vsel %vm763, %v760, %v762
      %v769 = vsel %vm443, %v752, 0
      %v772 = vsel %vm447, %v764, 0
      %v775 = vsel %vm447, %v765, 0
      %v778 = vsel %vm447, %v766, 0
      %v781 = vsel %vm447, %v767, 0
      %783 = vmatpush.bf16.msra.mxu0 0
      %784 = vmatpush.bf16.msra.mxu0 0
      %785 = vmatpush.bf16.msra.mxu0 0
      %786 = vmatpush.bf16.msra.mxu0 0
      %787 = vmatpush.bf16.msra.mxu0 0
      %788 = vmatpush.bf16.msra.mxu0 0
      %789 = vmatpush.bf16.msra.mxu0 0
      %790 = vmatpush.bf16.msra.mxu0 %v772
      %791 = vmatmul.bf16.gmra.mxu0 %v769
      %v792 = vpop.f32.mrf.mxu0
      %v793 = vadd.f32 0.0, %v792
      %v794 = vpop.f32.mrf.mxu0
      %795 = vdwg.mxu0
      %796 = vmatpush.bf16.msra.mxu0 0
      %797 = vmatpush.bf16.msra.mxu0 0
      %798 = vmatpush.bf16.msra.mxu0 0
      %799 = vmatpush.bf16.msra.mxu0 0
      %800 = vmatpush.bf16.msra.mxu0 0
      %801 = vmatpush.bf16.msra.mxu0 0
      %802 = vmatpush.bf16.msra.mxu0 0
      %803 = vmatpush.bf16.msra.mxu0 %v775
      %804 = vmatmul.bf16.gmra.mxu0 %v769
      %v805 = vpop.f32.mrf.mxu0
      %v806 = vadd.f32 0.0, %v805
      %v807 = vpop.f32.mrf.mxu0
      %808 = vdwg.mxu0
      %809 = vmatpush.bf16.msra.mxu0 0
      %810 = vmatpush.bf16.msra.mxu0 0
      %811 = vmatpush.bf16.msra.mxu0 0
      %812 = vmatpush.bf16.msra.mxu0 0
      %813 = vmatpush.bf16.msra.mxu0 0
      %814 = vmatpush.bf16.msra.mxu0 0
      %815 = vmatpush.bf16.msra.mxu0 0
      %816 = vmatpush.bf16.msra.mxu0 %v778
      %817 = vmatmul.bf16.gmra.mxu0 %v769
      %v818 = vpop.f32.mrf.mxu0
      %v819 = vadd.f32 0.0, %v818
      %v820 = vpop.f32.mrf.mxu0
      %821 = vdwg.mxu0
      %822 = vmatpush.bf16.msra.mxu0 0
      %823 = vmatpush.bf16.msra.mxu0 0
      %824 = vmatpush.bf16.msra.mxu0 0
      %825 = vmatpush.bf16.msra.mxu0 0
      %826 = vmatpush.bf16.msra.mxu0 0
      %827 = vmatpush.bf16.msra.mxu0 0
      %828 = vmatpush.bf16.msra.mxu0 0
      %829 = vmatpush.bf16.msra.mxu0 %v781
      %830 = vmatmul.bf16.gmra.mxu0 %v769
      %v831 = vpop.f32.mrf.mxu0
      %v832 = vadd.f32 0.0, %v831
      %v833 = vpop.f32.mrf.mxu0
      %834 = vdwg.mxu0
      %v835 = vadd.f32 %v747, %v793
      %v836 = vadd.f32 %v748, %v806
      %v837 = vadd.f32 %v749, %v819
      %v838 = vadd.f32 %v750, %v832
      %s839 = scalar_lea.vmem %s2, 20
      %v840 = vld [vmem:[%s839] sm:$0xf]
      %841 = vrot.lane.b32.xlu0 %v411, 116
      %v842 = vpop.permute.xlu0 %841
      %843 = vrot.lane.b32.xlu0 %v413, 116
      %v844 = vpop.permute.xlu0 %843
      %845 = vrot.lane.b32.xlu0 %v415, 116
      %v846 = vpop.permute.xlu0 %845
      %847 = vrot.lane.b32.xlu0 %v417, 116
      %v848 = vpop.permute.xlu0 %847
      %849 = vrot.lane.b32.xlu0 %v421, 116
      %v850 = vpop.permute.xlu0 %849
      %vm851 = vcmask 949248
      %v852 = vsel %vm851, %v842, %v844
      %v853 = vsel %vm851, %v844, %v846
      %v854 = vsel %vm851, %v846, %v848
      %v855 = vsel %vm851, %v848, %v850
      %v857 = vsel %vm443, %v840, 0
      %v860 = vsel %vm447, %v852, 0
      %v863 = vsel %vm447, %v853, 0
      %v866 = vsel %vm447, %v854, 0
      %v869 = vsel %vm447, %v855, 0
      %871 = vmatpush.bf16.msra.mxu0 0
      %872 = vmatpush.bf16.msra.mxu0 0
      %873 = vmatpush.bf16.msra.mxu0 0
      %874 = vmatpush.bf16.msra.mxu0 0
      %875 = vmatpush.bf16.msra.mxu0 0
      %876 = vmatpush.bf16.msra.mxu0 0
      %877 = vmatpush.bf16.msra.mxu0 0
      %878 = vmatpush.bf16.msra.mxu0 %v860
      %879 = vmatmul.bf16.gmra.mxu0 %v857
      %v880 = vpop.f32.mrf.mxu0
      %v881 = vadd.f32 0.0, %v880
      %v882 = vpop.f32.mrf.mxu0
      %883 = vdwg.mxu0
      %884 = vmatpush.bf16.msra.mxu0 0
      %885 = vmatpush.bf16.msra.mxu0 0
      %886 = vmatpush.bf16.msra.mxu0 0
      %887 = vmatpush.bf16.msra.mxu0 0
      %888 = vmatpush.bf16.msra.mxu0 0
      %889 = vmatpush.bf16.msra.mxu0 0
      %890 = vmatpush.bf16.msra.mxu0 0
      %891 = vmatpush.bf16.msra.mxu0 %v863
      %892 = vmatmul.bf16.gmra.mxu0 %v857
      %v893 = vpop.f32.mrf.mxu0
      %v894 = vadd.f32 0.0, %v893
      %v895 = vpop.f32.mrf.mxu0
      %896 = vdwg.mxu0
      %897 = vmatpush.bf16.msra.mxu0 0
      %898 = vmatpush.bf16.msra.mxu0 0
      %899 = vmatpush.bf16.msra.mxu0 0
      %900 = vmatpush.bf16.msra.mxu0 0
      %901 = vmatpush.bf16.msra.mxu0 0
      %902 = vmatpush.bf16.msra.mxu0 0
      %903 = vmatpush.bf16.msra.mxu0 0
      %904 = vmatpush.bf16.msra.mxu0 %v866
      %905 = vmatmul.bf16.gmra.mxu0 %v857
      %v906 = vpop.f32.mrf.mxu0
      %v907 = vadd.f32 0.0, %v906
      %v908 = vpop.f32.mrf.mxu0
      %909 = vdwg.mxu0
      %910 = vmatpush.bf16.msra.mxu0 0
      %911 = vmatpush.bf16.msra.mxu0 0
      %912 = vmatpush.bf16.msra.mxu0 0
      %913 = vmatpush.bf16.msra.mxu0 0
      %914 = vmatpush.bf16.msra.mxu0 0
      %915 = vmatpush.bf16.msra.mxu0 0
      %916 = vmatpush.bf16.msra.mxu0 0
      %917 = vmatpush.bf16.msra.mxu0 %v869
      %918 = vmatmul.bf16.gmra.mxu0 %v857
      %v919 = vpop.f32.mrf.mxu0
      %v920 = vadd.f32 0.0, %v919
      %v921 = vpop.f32.mrf.mxu0
      %922 = vdwg.mxu0
      %v923 = vadd.f32 %v835, %v881
      %v924 = vadd.f32 %v836, %v894
      %v925 = vadd.f32 %v837, %v907
      %v926 = vadd.f32 %v838, %v920
      %s927 = scalar_lea.vmem %s2, 24
      %v928 = vld [vmem:[%s927] sm:$0xf]
      %929 = vrot.lane.b32.xlu0 %v411, 108
      %v930 = vpop.permute.xlu0 %929
      %931 = vrot.lane.b32.xlu0 %v413, 108
      %v932 = vpop.permute.xlu0 %931
      %933 = vrot.lane.b32.xlu0 %v415, 108
      %v934 = vpop.permute.xlu0 %933
      %935 = vrot.lane.b32.xlu0 %v417, 108
      %v936 = vpop.permute.xlu0 %935
      %937 = vrot.lane.b32.xlu0 %v421, 108
      %v938 = vpop.permute.xlu0 %937
      %vm939 = vcmask 883712
      %v940 = vsel %vm939, %v930, %v932
      %v941 = vsel %vm939, %v932, %v934
      %v942 = vsel %vm939, %v934, %v936
      %v943 = vsel %vm939, %v936, %v938
      %v945 = vsel %vm443, %v928, 0
      %v948 = vsel %vm447, %v940, 0
      %v951 = vsel %vm447, %v941, 0
      %v954 = vsel %vm447, %v942, 0
      %v957 = vsel %vm447, %v943, 0
      %959 = vmatpush.bf16.msra.mxu0 0
      %960 = vmatpush.bf16.msra.mxu0 0
      %961 = vmatpush.bf16.msra.mxu0 0
      %962 = vmatpush.bf16.msra.mxu0 0
      %963 = vmatpush.bf16.msra.mxu0 0
      %964 = vmatpush.bf16.msra.mxu0 0
      %965 = vmatpush.bf16.msra.mxu0 0
      %966 = vmatpush.bf16.msra.mxu0 %v948
      %967 = vmatmul.bf16.gmra.mxu0 %v945
      %v968 = vpop.f32.mrf.mxu0
      %v969 = vadd.f32 0.0, %v968
      %v970 = vpop.f32.mrf.mxu0
      %971 = vdwg.mxu0
      %972 = vmatpush.bf16.msra.mxu0 0
      %973 = vmatpush.bf16.msra.mxu0 0
      %974 = vmatpush.bf16.msra.mxu0 0
      %975 = vmatpush.bf16.msra.mxu0 0
      %976 = vmatpush.bf16.msra.mxu0 0
      %977 = vmatpush.bf16.msra.mxu0 0
      %978 = vmatpush.bf16.msra.mxu0 0
      %979 = vmatpush.bf16.msra.mxu0 %v951
      %980 = vmatmul.bf16.gmra.mxu0 %v945
      %v981 = vpop.f32.mrf.mxu0
      %v982 = vadd.f32 0.0, %v981
      %v983 = vpop.f32.mrf.mxu0
      %984 = vdwg.mxu0
      %985 = vmatpush.bf16.msra.mxu0 0
      %986 = vmatpush.bf16.msra.mxu0 0
      %987 = vmatpush.bf16.msra.mxu0 0
      %988 = vmatpush.bf16.msra.mxu0 0
      %989 = vmatpush.bf16.msra.mxu0 0
      %990 = vmatpush.bf16.msra.mxu0 0
      %991 = vmatpush.bf16.msra.mxu0 0
      %992 = vmatpush.bf16.msra.mxu0 %v954
      %993 = vmatmul.bf16.gmra.mxu0 %v945
      %v994 = vpop.f32.mrf.mxu0
      %v995 = vadd.f32 0.0, %v994
      %v996 = vpop.f32.mrf.mxu0
      %997 = vdwg.mxu0
      %998 = vmatpush.bf16.msra.mxu0 0
      %999 = vmatpush.bf16.msra.mxu0 0
      %1000 = vmatpush.bf16.msra.mxu0 0
      %1001 = vmatpush.bf16.msra.mxu0 0
      %1002 = vmatpush.bf16.msra.mxu0 0
      %1003 = vmatpush.bf16.msra.mxu0 0
      %1004 = vmatpush.bf16.msra.mxu0 0
      %1005 = vmatpush.bf16.msra.mxu0 %v957
      %1006 = vmatmul.bf16.gmra.mxu0 %v945
      %v1007 = vpop.f32.mrf.mxu0
      %v1008 = vadd.f32 0.0, %v1007
      %v1009 = vpop.f32.mrf.mxu0
      %1010 = vdwg.mxu0
      %v1011 = vadd.f32 %v923, %v969
      %v1012 = vadd.f32 %v924, %v982
      %v1013 = vadd.f32 %v925, %v995
      %v1014 = vadd.f32 %v926, %v1008
      %s1015 = scalar_lea.vmem %s2, 28
      %v1016 = vld [vmem:[%s1015] sm:$0xf]
      %1017 = vrot.lane.b32.xlu0 %v411, 107
      %v1018 = vpop.permute.xlu0 %1017
      %1019 = vrot.lane.b32.xlu0 %v413, 107
      %v1020 = vpop.permute.xlu0 %1019
      %1021 = vrot.lane.b32.xlu0 %v415, 107
      %v1022 = vpop.permute.xlu0 %1021
      %1023 = vrot.lane.b32.xlu0 %v417, 107
      %v1024 = vpop.permute.xlu0 %1023
      %1025 = vrot.lane.b32.xlu0 %v421, 107
      %v1026 = vpop.permute.xlu0 %1025
      %vm1027 = vcmask 875520
      %v1028 = vsel %vm1027, %v1018, %v1020
      %v1029 = vsel %vm1027, %v1020, %v1022
      %v1030 = vsel %vm1027, %v1022, %v1024
      %v1031 = vsel %vm1027, %v1024, %v1026
      %v1033 = vsel %vm443, %v1016, 0
      %v1036 = vsel %vm447, %v1028, 0
      %v1039 = vsel %vm447, %v1029, 0
      %v1042 = vsel %vm447, %v1030, 0
      %v1045 = vsel %vm447, %v1031, 0
      %1047 = vmatpush.bf16.msra.mxu0 0
      %1048 = vmatpush.bf16.msra.mxu0 0
      %1049 = vmatpush.bf16.msra.mxu0 0
      %1050 = vmatpush.bf16.msra.mxu0 0
      %1051 = vmatpush.bf16.msra.mxu0 0
      %1052 = vmatpush.bf16.msra.mxu0 0
      %1053 = vmatpush.bf16.msra.mxu0 0
      %1054 = vmatpush.bf16.msra.mxu0 %v1036
      %1055 = vmatmul.bf16.gmra.mxu0 %v1033
      %v1056 = vpop.f32.mrf.mxu0
      %v1057 = vadd.f32 0.0, %v1056
      %v1058 = vpop.f32.mrf.mxu0
      %1059 = vdwg.mxu0
      %1060 = vmatpush.bf16.msra.mxu0 0
      %1061 = vmatpush.bf16.msra.mxu0 0
      %1062 = vmatpush.bf16.msra.mxu0 0
      %1063 = vmatpush.bf16.msra.mxu0 0
      %1064 = vmatpush.bf16.msra.mxu0 0
      %1065 = vmatpush.bf16.msra.mxu0 0
      %1066 = vmatpush.bf16.msra.mxu0 0
      %1067 = vmatpush.bf16.msra.mxu0 %v1039
      %1068 = vmatmul.bf16.gmra.mxu0 %v1033
      %v1069 = vpop.f32.mrf.mxu0
      %v1070 = vadd.f32 0.0, %v1069
      %v1071 = vpop.f32.mrf.mxu0
      %1072 = vdwg.mxu0
      %1073 = vmatpush.bf16.msra.mxu0 0
      %1074 = vmatpush.bf16.msra.mxu0 0
      %1075 = vmatpush.bf16.msra.mxu0 0
      %1076 = vmatpush.bf16.msra.mxu0 0
      %1077 = vmatpush.bf16.msra.mxu0 0
      %1078 = vmatpush.bf16.msra.mxu0 0
      %1079 = vmatpush.bf16.msra.mxu0 0
      %1080 = vmatpush.bf16.msra.mxu0 %v1042
      %1081 = vmatmul.bf16.gmra.mxu0 %v1033
      %v1082 = vpop.f32.mrf.mxu0
      %v1083 = vadd.f32 0.0, %v1082
      %v1084 = vpop.f32.mrf.mxu0
      %1085 = vdwg.mxu0
      %1086 = vmatpush.bf16.msra.mxu0 0
      %1087 = vmatpush.bf16.msra.mxu0 0
      %1088 = vmatpush.bf16.msra.mxu0 0
      %1089 = vmatpush.bf16.msra.mxu0 0
      %1090 = vmatpush.bf16.msra.mxu0 0
      %1091 = vmatpush.bf16.msra.mxu0 0
      %1092 = vmatpush.bf16.msra.mxu0 0
      %1093 = vmatpush.bf16.msra.mxu0 %v1045
      %1094 = vmatmul.bf16.gmra.mxu0 %v1033
      %v1095 = vpop.f32.mrf.mxu0
      %v1096 = vadd.f32 0.0, %v1095
      %v1097 = vpop.f32.mrf.mxu0
      %1098 = vdwg.mxu0
      %v1099 = vadd.f32 %v1011, %v1057
      %v1100 = vadd.f32 %v1012, %v1070
      %v1101 = vadd.f32 %v1013, %v1083
      %v1102 = vadd.f32 %v1014, %v1096
      %s1103 = scalar_lea.vmem %s2, 32
      %v1104 = vld [vmem:[%s1103] sm:$0xf]
      %1105 = vrot.lane.b32.xlu0 %v411, 106
      %v1106 = vpop.permute.xlu0 %1105
      %1107 = vrot.lane.b32.xlu0 %v413, 106
      %v1108 = vpop.permute.xlu0 %1107
      %1109 = vrot.lane.b32.xlu0 %v415, 106
      %v1110 = vpop.permute.xlu0 %1109
      %1111 = vrot.lane.b32.xlu0 %v417, 106
      %v1112 = vpop.permute.xlu0 %1111
      %1113 = vrot.lane.b32.xlu0 %v421, 106
      %v1114 = vpop.permute.xlu0 %1113
      %vm1115 = vcmask 867328
      %v1116 = vsel %vm1115, %v1106, %v1108
      %v1117 = vsel %vm1115, %v1108, %v1110
      %v1118 = vsel %vm1115, %v1110, %v1112
      %v1119 = vsel %vm1115, %v1112, %v1114
      %v1121 = vsel %vm443, %v1104, 0
      %v1124 = vsel %vm447, %v1116, 0
      %v1127 = vsel %vm447, %v1117, 0
      %v1130 = vsel %vm447, %v1118, 0
      %v1133 = vsel %vm447, %v1119, 0
      %1135 = vmatpush.bf16.msra.mxu0 0
      %1136 = vmatpush.bf16.msra.mxu0 0
      %1137 = vmatpush.bf16.msra.mxu0 0
      %1138 = vmatpush.bf16.msra.mxu0 0
      %1139 = vmatpush.bf16.msra.mxu0 0
      %1140 = vmatpush.bf16.msra.mxu0 0
      %1141 = vmatpush.bf16.msra.mxu0 0
      %1142 = vmatpush.bf16.msra.mxu0 %v1124
      %1143 = vmatmul.bf16.gmra.mxu0 %v1121
      %v1144 = vpop.f32.mrf.mxu0
      %v1145 = vadd.f32 0.0, %v1144
      %v1146 = vpop.f32.mrf.mxu0
      %1147 = vdwg.mxu0
      %1148 = vmatpush.bf16.msra.mxu0 0
      %1149 = vmatpush.bf16.msra.mxu0 0
      %1150 = vmatpush.bf16.msra.mxu0 0
      %1151 = vmatpush.bf16.msra.mxu0 0
      %1152 = vmatpush.bf16.msra.mxu0 0
      %1153 = vmatpush.bf16.msra.mxu0 0
      %1154 = vmatpush.bf16.msra.mxu0 0
      %1155 = vmatpush.bf16.msra.mxu0 %v1127
      %1156 = vmatmul.bf16.gmra.mxu0 %v1121
      %v1157 = vpop.f32.mrf.mxu0
      %v1158 = vadd.f32 0.0, %v1157
      %v1159 = vpop.f32.mrf.mxu0
      %1160 = vdwg.mxu0
      %1161 = vmatpush.bf16.msra.mxu0 0
      %1162 = vmatpush.bf16.msra.mxu0 0
      %1163 = vmatpush.bf16.msra.mxu0 0
      %1164 = vmatpush.bf16.msra.mxu0 0
      %1165 = vmatpush.bf16.msra.mxu0 0
      %1166 = vmatpush.bf16.msra.mxu0 0
      %1167 = vmatpush.bf16.msra.mxu0 0
      %1168 = vmatpush.bf16.msra.mxu0 %v1130
      %1169 = vmatmul.bf16.gmra.mxu0 %v1121
      %v1170 = vpop.f32.mrf.mxu0
      %v1171 = vadd.f32 0.0, %v1170
      %v1172 = vpop.f32.mrf.mxu0
      %1173 = vdwg.mxu0
      %1174 = vmatpush.bf16.msra.mxu0 0
      %1175 = vmatpush.bf16.msra.mxu0 0
      %1176 = vmatpush.bf16.msra.mxu0 0
      %1177 = vmatpush.bf16.msra.mxu0 0
      %1178 = vmatpush.bf16.msra.mxu0 0
      %1179 = vmatpush.bf16.msra.mxu0 0
      %1180 = vmatpush.bf16.msra.mxu0 0
      %1181 = vmatpush.bf16.msra.mxu0 %v1133
      %1182 = vmatmul.bf16.gmra.mxu0 %v1121
      %v1183 = vpop.f32.mrf.mxu0
      %v1184 = vadd.f32 0.0, %v1183
      %v1185 = vpop.f32.mrf.mxu0
      %1186 = vdwg.mxu0
      %v1187 = vadd.f32 %v1099, %v1145
      %v1188 = vadd.f32 %v1100, %v1158
      %v1189 = vadd.f32 %v1101, %v1171
      %v1190 = vadd.f32 %v1102, %v1184
      %s1191 = scalar_lea.vmem %s2, 36
      %v1192 = vld [vmem:[%s1191] sm:$0xf]
      %1193 = vrot.lane.b32.xlu0 %v411, 28
      %v1194 = vpop.permute.xlu0 %1193
      %1195 = vrot.lane.b32.xlu0 %v413, 28
      %v1196 = vpop.permute.xlu0 %1195
      %1197 = vrot.lane.b32.xlu0 %v415, 28
      %v1198 = vpop.permute.xlu0 %1197
      %1199 = vrot.lane.b32.xlu0 %v417, 28
      %v1200 = vpop.permute.xlu0 %1199
      %1201 = vrot.lane.b32.xlu0 %v421, 28
      %v1202 = vpop.permute.xlu0 %1201
      %vm1203 = vcmask 228352
      %v1204 = vsel %vm1203, %v1194, %v1196
      %v1205 = vsel %vm1203, %v1196, %v1198
      %v1206 = vsel %vm1203, %v1198, %v1200
      %v1207 = vsel %vm1203, %v1200, %v1202
      %v1209 = vsel %vm443, %v1192, 0
      %v1212 = vsel %vm447, %v1204, 0
      %v1215 = vsel %vm447, %v1205, 0
      %v1218 = vsel %vm447, %v1206, 0
      %v1221 = vsel %vm447, %v1207, 0
      %1223 = vmatpush.bf16.msra.mxu0 0
      %1224 = vmatpush.bf16.msra.mxu0 0
      %1225 = vmatpush.bf16.msra.mxu0 0
      %1226 = vmatpush.bf16.msra.mxu0 0
      %1227 = vmatpush.bf16.msra.mxu0 0
      %1228 = vmatpush.bf16.msra.mxu0 0
      %1229 = vmatpush.bf16.msra.mxu0 0
      %1230 = vmatpush.bf16.msra.mxu0 %v1212
      %1231 = vmatmul.bf16.gmra.mxu0 %v1209
      %v1232 = vpop.f32.mrf.mxu0
      %v1233 = vadd.f32 0.0, %v1232
      %v1234 = vpop.f32.mrf.mxu0
      %1235 = vdwg.mxu0
      %1236 = vmatpush.bf16.msra.mxu0 0
      %1237 = vmatpush.bf16.msra.mxu0 0
      %1238 = vmatpush.bf16.msra.mxu0 0
      %1239 = vmatpush.bf16.msra.mxu0 0
      %1240 = vmatpush.bf16.msra.mxu0 0
      %1241 = vmatpush.bf16.msra.mxu0 0
      %1242 = vmatpush.bf16.msra.mxu0 0
      %1243 = vmatpush.bf16.msra.mxu0 %v1215
      %1244 = vmatmul.bf16.gmra.mxu0 %v1209
      %v1245 = vpop.f32.mrf.mxu0
      %v1246 = vadd.f32 0.0, %v1245
      %v1247 = vpop.f32.mrf.mxu0
      %1248 = vdwg.mxu0
      %1249 = vmatpush.bf16.msra.mxu0 0
      %1250 = vmatpush.bf16.msra.mxu0 0
      %1251 = vmatpush.bf16.msra.mxu0 0
      %1252 = vmatpush.bf16.msra.mxu0 0
      %1253 = vmatpush.bf16.msra.mxu0 0
      %1254 = vmatpush.bf16.msra.mxu0 0
      %1255 = vmatpush.bf16.msra.mxu0 0
      %1256 = vmatpush.bf16.msra.mxu0 %v1218
      %1257 = vmatmul.bf16.gmra.mxu0 %v1209
      %v1258 = vpop.f32.mrf.mxu0
      %v1259 = vadd.f32 0.0, %v1258
      %v1260 = vpop.f32.mrf.mxu0
      %1261 = vdwg.mxu0
      %1262 = vmatpush.bf16.msra.mxu0 0
      %1263 = vmatpush.bf16.msra.mxu0 0
      %1264 = vmatpush.bf16.msra.mxu0 0
      %1265 = vmatpush.bf16.msra.mxu0 0
      %1266 = vmatpush.bf16.msra.mxu0 0
      %1267 = vmatpush.bf16.msra.mxu0 0
      %1268 = vmatpush.bf16.msra.mxu0 0
      %1269 = vmatpush.bf16.msra.mxu0 %v1221
      %1270 = vmatmul.bf16.gmra.mxu0 %v1209
      %v1271 = vpop.f32.mrf.mxu0
      %v1272 = vadd.f32 0.0, %v1271
      %v1273 = vpop.f32.mrf.mxu0
      %1274 = vdwg.mxu0
      %v1275 = vadd.f32 %v1187, %v1233
      %v1276 = vadd.f32 %v1188, %v1246
      %v1277 = vadd.f32 %v1189, %v1259
      %v1278 = vadd.f32 %v1190, %v1272
      %s1279 = scalar_lea.vmem %s2, 40
      %v1280 = vld [vmem:[%s1279] sm:$0xf]
      %1281 = vrot.lane.b32.xlu0 %v411, 27
      %v1282 = vpop.permute.xlu0 %1281
      %1283 = vrot.lane.b32.xlu0 %v413, 27
      %v1284 = vpop.permute.xlu0 %1283
      %1285 = vrot.lane.b32.xlu0 %v415, 27
      %v1286 = vpop.permute.xlu0 %1285
      %1287 = vrot.lane.b32.xlu0 %v417, 27
      %v1288 = vpop.permute.xlu0 %1287
      %1289 = vrot.lane.b32.xlu0 %v421, 27
      %v1290 = vpop.permute.xlu0 %1289
      %vm1291 = vcmask 220160
      %v1292 = vsel %vm1291, %v1282, %v1284
      %v1293 = vsel %vm1291, %v1284, %v1286
      %v1294 = vsel %vm1291, %v1286, %v1288
      %v1295 = vsel %vm1291, %v1288, %v1290
      %v1297 = vsel %vm443, %v1280, 0
      %v1300 = vsel %vm447, %v1292, 0
      %v1303 = vsel %vm447, %v1293, 0
      %v1306 = vsel %vm447, %v1294, 0
      %v1309 = vsel %vm447, %v1295, 0
      %1311 = vmatpush.bf16.msra.mxu0 0
      %1312 = vmatpush.bf16.msra.mxu0 0
      %1313 = vmatpush.bf16.msra.mxu0 0
      %1314 = vmatpush.bf16.msra.mxu0 0
      %1315 = vmatpush.bf16.msra.mxu0 0
      %1316 = vmatpush.bf16.msra.mxu0 0
      %1317 = vmatpush.bf16.msra.mxu0 0
      %1318 = vmatpush.bf16.msra.mxu0 %v1300
      %1319 = vmatmul.bf16.gmra.mxu0 %v1297
      %v1320 = vpop.f32.mrf.mxu0
      %v1321 = vadd.f32 0.0, %v1320
      %v1322 = vpop.f32.mrf.mxu0
      %1323 = vdwg.mxu0
      %1324 = vmatpush.bf16.msra.mxu0 0
      %1325 = vmatpush.bf16.msra.mxu0 0
      %1326 = vmatpush.bf16.msra.mxu0 0
      %1327 = vmatpush.bf16.msra.mxu0 0
      %1328 = vmatpush.bf16.msra.mxu0 0
      %1329 = vmatpush.bf16.msra.mxu0 0
      %1330 = vmatpush.bf16.msra.mxu0 0
      %1331 = vmatpush.bf16.msra.mxu0 %v1303
      %1332 = vmatmul.bf16.gmra.mxu0 %v1297
      %v1333 = vpop.f32.mrf.mxu0
      %v1334 = vadd.f32 0.0, %v1333
      %v1335 = vpop.f32.mrf.mxu0
      %1336 = vdwg.mxu0
      %1337 = vmatpush.bf16.msra.mxu0 0
      %1338 = vmatpush.bf16.msra.mxu0 0
      %1339 = vmatpush.bf16.msra.mxu0 0
      %1340 = vmatpush.bf16.msra.mxu0 0
      %1341 = vmatpush.bf16.msra.mxu0 0
      %1342 = vmatpush.bf16.msra.mxu0 0
      %1343 = vmatpush.bf16.msra.mxu0 0
      %1344 = vmatpush.bf16.msra.mxu0 %v1306
      %1345 = vmatmul.bf16.gmra.mxu0 %v1297
      %v1346 = vpop.f32.mrf.mxu0
      %v1347 = vadd.f32 0.0, %v1346
      %v1348 = vpop.f32.mrf.mxu0
      %1349 = vdwg.mxu0
      %1350 = vmatpush.bf16.msra.mxu0 0
      %1351 = vmatpush.bf16.msra.mxu0 0
      %1352 = vmatpush.bf16.msra.mxu0 0
      %1353 = vmatpush.bf16.msra.mxu0 0
      %1354 = vmatpush.bf16.msra.mxu0 0
      %1355 = vmatpush.bf16.msra.mxu0 0
      %1356 = vmatpush.bf16.msra.mxu0 0
      %1357 = vmatpush.bf16.msra.mxu0 %v1309
      %1358 = vmatmul.bf16.gmra.mxu0 %v1297
      %v1359 = vpop.f32.mrf.mxu0
      %v1360 = vadd.f32 0.0, %v1359
      %v1361 = vpop.f32.mrf.mxu0
      %1362 = vdwg.mxu0
      %v1363 = vadd.f32 %v1275, %v1321
      %v1364 = vadd.f32 %v1276, %v1334
      %v1365 = vadd.f32 %v1277, %v1347
      %v1366 = vadd.f32 %v1278, %v1360
      %s1367 = scalar_lea.vmem %s2, 44
      %v1368 = vld [vmem:[%s1367] sm:$0xf]
      %1369 = vrot.lane.b32.xlu0 %v411, 26
      %v1370 = vpop.permute.xlu0 %1369
      %1371 = vrot.lane.b32.xlu0 %v413, 26
      %v1372 = vpop.permute.xlu0 %1371
      %1373 = vrot.lane.b32.xlu0 %v415, 26
      %v1374 = vpop.permute.xlu0 %1373
      %1375 = vrot.lane.b32.xlu0 %v417, 26
      %v1376 = vpop.permute.xlu0 %1375
      %1377 = vrot.lane.b32.xlu0 %v421, 26
      %v1378 = vpop.permute.xlu0 %1377
      %vm1379 = vcmask 211968
      %v1380 = vsel %vm1379, %v1370, %v1372
      %v1381 = vsel %vm1379, %v1372, %v1374
      %v1382 = vsel %vm1379, %v1374, %v1376
      %v1383 = vsel %vm1379, %v1376, %v1378
      %v1385 = vsel %vm443, %v1368, 0
      %v1388 = vsel %vm447, %v1380, 0
      %v1391 = vsel %vm447, %v1381, 0
      %v1394 = vsel %vm447, %v1382, 0
      %v1397 = vsel %vm447, %v1383, 0
      %1399 = vmatpush.bf16.msra.mxu0 0
      %1400 = vmatpush.bf16.msra.mxu0 0
      %1401 = vmatpush.bf16.msra.mxu0 0
      %1402 = vmatpush.bf16.msra.mxu0 0
      %1403 = vmatpush.bf16.msra.mxu0 0
      %1404 = vmatpush.bf16.msra.mxu0 0
      %1405 = vmatpush.bf16.msra.mxu0 0
      %1406 = vmatpush.bf16.msra.mxu0 %v1388
      %1407 = vmatmul.bf16.gmra.mxu0 %v1385
      %v1408 = vpop.f32.mrf.mxu0
      %v1409 = vadd.f32 0.0, %v1408
      %v1410 = vpop.f32.mrf.mxu0
      %1411 = vdwg.mxu0
      %1412 = vmatpush.bf16.msra.mxu0 0
      %1413 = vmatpush.bf16.msra.mxu0 0
      %1414 = vmatpush.bf16.msra.mxu0 0
      %1415 = vmatpush.bf16.msra.mxu0 0
      %1416 = vmatpush.bf16.msra.mxu0 0
      %1417 = vmatpush.bf16.msra.mxu0 0
      %1418 = vmatpush.bf16.msra.mxu0 0
      %1419 = vmatpush.bf16.msra.mxu0 %v1391
      %1420 = vmatmul.bf16.gmra.mxu0 %v1385
      %v1421 = vpop.f32.mrf.mxu0
      %v1422 = vadd.f32 0.0, %v1421
      %v1423 = vpop.f32.mrf.mxu0
      %1424 = vdwg.mxu0
      %1425 = vmatpush.bf16.msra.mxu0 0
      %1426 = vmatpush.bf16.msra.mxu0 0
      %1427 = vmatpush.bf16.msra.mxu0 0
      %1428 = vmatpush.bf16.msra.mxu0 0
      %1429 = vmatpush.bf16.msra.mxu0 0
      %1430 = vmatpush.bf16.msra.mxu0 0
      %1431 = vmatpush.bf16.msra.mxu0 0
      %1432 = vmatpush.bf16.msra.mxu0 %v1394
      %1433 = vmatmul.bf16.gmra.mxu0 %v1385
      %v1434 = vpop.f32.mrf.mxu0
      %v1435 = vadd.f32 0.0, %v1434
      %v1436 = vpop.f32.mrf.mxu0
      %1437 = vdwg.mxu0
      %1438 = vmatpush.bf16.msra.mxu0 0
      %1439 = vmatpush.bf16.msra.mxu0 0
      %1440 = vmatpush.bf16.msra.mxu0 0
      %1441 = vmatpush.bf16.msra.mxu0 0
      %1442 = vmatpush.bf16.msra.mxu0 0
      %1443 = vmatpush.bf16.msra.mxu0 0
      %1444 = vmatpush.bf16.msra.mxu0 0
      %1445 = vmatpush.bf16.msra.mxu0 %v1397
      %1446 = vmatmul.bf16.gmra.mxu0 %v1385
      %v1447 = vpop.f32.mrf.mxu0
      %v1448 = vadd.f32 0.0, %v1447
      %v1449 = vpop.f32.mrf.mxu0
      %1450 = vdwg.mxu0
      %v1451 = vadd.f32 %v1363, %v1409
      %v1452 = vadd.f32 %v1364, %v1422
      %v1453 = vadd.f32 %v1365, %v1435
      %v1454 = vadd.f32 %v1366, %v1448
      %s1455 = scalar_lea.vmem %s2, 48
      %v1456 = vld [vmem:[%s1455] sm:$0xf]
      %1457 = vrot.lane.b32.xlu0 %v411, 18
      %v1458 = vpop.permute.xlu0 %1457
      %1459 = vrot.lane.b32.xlu0 %v413, 18
      %v1460 = vpop.permute.xlu0 %1459
      %1461 = vrot.lane.b32.xlu0 %v415, 18
      %v1462 = vpop.permute.xlu0 %1461
      %1463 = vrot.lane.b32.xlu0 %v417, 18
      %v1464 = vpop.permute.xlu0 %1463
      %1465 = vrot.lane.b32.xlu0 %v421, 18
      %v1466 = vpop.permute.xlu0 %1465
      %vm1467 = vcmask 146432
      %v1468 = vsel %vm1467, %v1458, %v1460
      %v1469 = vsel %vm1467, %v1460, %v1462
      %v1470 = vsel %vm1467, %v1462, %v1464
      %v1471 = vsel %vm1467, %v1464, %v1466
      %v1473 = vsel %vm443, %v1456, 0
      %v1476 = vsel %vm447, %v1468, 0
      %v1479 = vsel %vm447, %v1469, 0
      %v1482 = vsel %vm447, %v1470, 0
      %v1485 = vsel %vm447, %v1471, 0
      %1487 = vmatpush.bf16.msra.mxu0 0
      %1488 = vmatpush.bf16.msra.mxu0 0
      %1489 = vmatpush.bf16.msra.mxu0 0
      %1490 = vmatpush.bf16.msra.mxu0 0
      %1491 = vmatpush.bf16.msra.mxu0 0
      %1492 = vmatpush.bf16.msra.mxu0 0
      %1493 = vmatpush.bf16.msra.mxu0 0
      %1494 = vmatpush.bf16.msra.mxu0 %v1476
      %1495 = vmatmul.bf16.gmra.mxu0 %v1473
      %v1496 = vpop.f32.mrf.mxu0
      %v1497 = vadd.f32 0.0, %v1496
      %v1498 = vpop.f32.mrf.mxu0
      %1499 = vdwg.mxu0
      %1500 = vmatpush.bf16.msra.mxu0 0
      %1501 = vmatpush.bf16.msra.mxu0 0
      %1502 = vmatpush.bf16.msra.mxu0 0
      %1503 = vmatpush.bf16.msra.mxu0 0
      %1504 = vmatpush.bf16.msra.mxu0 0
      %1505 = vmatpush.bf16.msra.mxu0 0
      %1506 = vmatpush.bf16.msra.mxu0 0
      %1507 = vmatpush.bf16.msra.mxu0 %v1479
      %1508 = vmatmul.bf16.gmra.mxu0 %v1473
      %v1509 = vpop.f32.mrf.mxu0
      %v1510 = vadd.f32 0.0, %v1509
      %v1511 = vpop.f32.mrf.mxu0
      %1512 = vdwg.mxu0
      %1513 = vmatpush.bf16.msra.mxu0 0
      %1514 = vmatpush.bf16.msra.mxu0 0
      %1515 = vmatpush.bf16.msra.mxu0 0
      %1516 = vmatpush.bf16.msra.mxu0 0
      %1517 = vmatpush.bf16.msra.mxu0 0
      %1518 = vmatpush.bf16.msra.mxu0 0
      %1519 = vmatpush.bf16.msra.mxu0 0
      %1520 = vmatpush.bf16.msra.mxu0 %v1482
      %1521 = vmatmul.bf16.gmra.mxu0 %v1473
      %v1522 = vpop.f32.mrf.mxu0
      %v1523 = vadd.f32 0.0, %v1522
      %v1524 = vpop.f32.mrf.mxu0
      %1525 = vdwg.mxu0
      %1526 = vmatpush.bf16.msra.mxu0 0
      %1527 = vmatpush.bf16.msra.mxu0 0
      %1528 = vmatpush.bf16.msra.mxu0 0
      %1529 = vmatpush.bf16.msra.mxu0 0
      %1530 = vmatpush.bf16.msra.mxu0 0
      %1531 = vmatpush.bf16.msra.mxu0 0
      %1532 = vmatpush.bf16.msra.mxu0 0
      %1533 = vmatpush.bf16.msra.mxu0 %v1485
      %1534 = vmatmul.bf16.gmra.mxu0 %v1473
      %v1535 = vpop.f32.mrf.mxu0
      %v1536 = vadd.f32 0.0, %v1535
      %v1537 = vpop.f32.mrf.mxu0
      %1538 = vdwg.mxu0
      %v1539 = vadd.f32 %v1451, %v1497
      %v1540 = vadd.f32 %v1452, %v1510
      %v1541 = vadd.f32 %v1453, %v1523
      %v1542 = vadd.f32 %v1454, %v1536
      %s1543 = scalar_lea.vmem %s2, 52
      %v1544 = vld [vmem:[%s1543] sm:$0xf]
      %1545 = vrot.lane.b32.xlu0 %v411, 17
      %v1546 = vpop.permute.xlu0 %1545
      %1547 = vrot.lane.b32.xlu0 %v413, 17
      %v1548 = vpop.permute.xlu0 %1547
      %1549 = vrot.lane.b32.xlu0 %v415, 17
      %v1550 = vpop.permute.xlu0 %1549
      %1551 = vrot.lane.b32.xlu0 %v417, 17
      %v1552 = vpop.permute.xlu0 %1551
      %1553 = vrot.lane.b32.xlu0 %v421, 17
      %v1554 = vpop.permute.xlu0 %1553
      %vm1555 = vcmask 138240
      %v1556 = vsel %vm1555, %v1546, %v1548
      %v1557 = vsel %vm1555, %v1548, %v1550
      %v1558 = vsel %vm1555, %v1550, %v1552
      %v1559 = vsel %vm1555, %v1552, %v1554
      %v1561 = vsel %vm443, %v1544, 0
      %v1564 = vsel %vm447, %v1556, 0
      %v1567 = vsel %vm447, %v1557, 0
      %v1570 = vsel %vm447, %v1558, 0
      %v1573 = vsel %vm447, %v1559, 0
      %1575 = vmatpush.bf16.msra.mxu0 0
      %1576 = vmatpush.bf16.msra.mxu0 0
      %1577 = vmatpush.bf16.msra.mxu0 0
      %1578 = vmatpush.bf16.msra.mxu0 0
      %1579 = vmatpush.bf16.msra.mxu0 0
      %1580 = vmatpush.bf16.msra.mxu0 0
      %1581 = vmatpush.bf16.msra.mxu0 0
      %1582 = vmatpush.bf16.msra.mxu0 %v1564
      %1583 = vmatmul.bf16.gmra.mxu0 %v1561
      %v1584 = vpop.f32.mrf.mxu0
      %v1585 = vadd.f32 0.0, %v1584
      %v1586 = vpop.f32.mrf.mxu0
      %1587 = vdwg.mxu0
      %1588 = vmatpush.bf16.msra.mxu0 0
      %1589 = vmatpush.bf16.msra.mxu0 0
      %1590 = vmatpush.bf16.msra.mxu0 0
      %1591 = vmatpush.bf16.msra.mxu0 0
      %1592 = vmatpush.bf16.msra.mxu0 0
      %1593 = vmatpush.bf16.msra.mxu0 0
      %1594 = vmatpush.bf16.msra.mxu0 0
      %1595 = vmatpush.bf16.msra.mxu0 %v1567
      %1596 = vmatmul.bf16.gmra.mxu0 %v1561
      %v1597 = vpop.f32.mrf.mxu0
      %v1598 = vadd.f32 0.0, %v1597
      %v1599 = vpop.f32.mrf.mxu0
      %1600 = vdwg.mxu0
      %1601 = vmatpush.bf16.msra.mxu0 0
      %1602 = vmatpush.bf16.msra.mxu0 0
      %1603 = vmatpush.bf16.msra.mxu0 0
      %1604 = vmatpush.bf16.msra.mxu0 0
      %1605 = vmatpush.bf16.msra.mxu0 0
      %1606 = vmatpush.bf16.msra.mxu0 0
      %1607 = vmatpush.bf16.msra.mxu0 0
      %1608 = vmatpush.bf16.msra.mxu0 %v1570
      %1609 = vmatmul.bf16.gmra.mxu0 %v1561
      %v1610 = vpop.f32.mrf.mxu0
      %v1611 = vadd.f32 0.0, %v1610
      %v1612 = vpop.f32.mrf.mxu0
      %1613 = vdwg.mxu0
      %1614 = vmatpush.bf16.msra.mxu0 0
      %1615 = vmatpush.bf16.msra.mxu0 0
      %1616 = vmatpush.bf16.msra.mxu0 0
      %1617 = vmatpush.bf16.msra.mxu0 0
      %1618 = vmatpush.bf16.msra.mxu0 0
      %1619 = vmatpush.bf16.msra.mxu0 0
      %1620 = vmatpush.bf16.msra.mxu0 0
      %1621 = vmatpush.bf16.msra.mxu0 %v1573
      %1622 = vmatmul.bf16.gmra.mxu0 %v1561
      %v1623 = vpop.f32.mrf.mxu0
      %v1624 = vadd.f32 0.0, %v1623
      %v1625 = vpop.f32.mrf.mxu0
      %1626 = vdwg.mxu0
      %v1627 = vadd.f32 %v1539, %v1585
      %v1628 = vadd.f32 %v1540, %v1598
      %v1629 = vadd.f32 %v1541, %v1611
      %v1630 = vadd.f32 %v1542, %v1624
      %s1631 = scalar_lea.vmem %s2, 56
      %v1632 = vld [vmem:[%s1631] sm:$0xf]
      %1633 = vrot.lane.b32.xlu0 %v411, 16
      %v1634 = vpop.permute.xlu0 %1633
      %1635 = vrot.lane.b32.xlu0 %v413, 16
      %v1636 = vpop.permute.xlu0 %1635
      %1637 = vrot.lane.b32.xlu0 %v415, 16
      %v1638 = vpop.permute.xlu0 %1637
      %1639 = vrot.lane.b32.xlu0 %v417, 16
      %v1640 = vpop.permute.xlu0 %1639
      %1641 = vrot.lane.b32.xlu0 %v421, 16
      %v1642 = vpop.permute.xlu0 %1641
      %vm1643 = vcmask 130048
      %v1644 = vsel %vm1643, %v1634, %v1636
      %v1645 = vsel %vm1643, %v1636, %v1638
      %v1646 = vsel %vm1643, %v1638, %v1640
      %v1647 = vsel %vm1643, %v1640, %v1642
      %v1649 = vsel %vm443, %v1632, 0
      %v1652 = vsel %vm447, %v1644, 0
      %v1655 = vsel %vm447, %v1645, 0
      %v1658 = vsel %vm447, %v1646, 0
      %v1661 = vsel %vm447, %v1647, 0
      %1663 = vmatpush.bf16.msra.mxu0 0
      %1664 = vmatpush.bf16.msra.mxu0 0
      %1665 = vmatpush.bf16.msra.mxu0 0
      %1666 = vmatpush.bf16.msra.mxu0 0
      %1667 = vmatpush.bf16.msra.mxu0 0
      %1668 = vmatpush.bf16.msra.mxu0 0
      %1669 = vmatpush.bf16.msra.mxu0 0
      %1670 = vmatpush.bf16.msra.mxu0 %v1652
      %1671 = vmatmul.bf16.gmra.mxu0 %v1649
      %v1672 = vpop.f32.mrf.mxu0
      %v1673 = vadd.f32 0.0, %v1672
      %v1674 = vpop.f32.mrf.mxu0
      %1675 = vdwg.mxu0
      %1676 = vmatpush.bf16.msra.mxu0 0
      %1677 = vmatpush.bf16.msra.mxu0 0
      %1678 = vmatpush.bf16.msra.mxu0 0
      %1679 = vmatpush.bf16.msra.mxu0 0
      %1680 = vmatpush.bf16.msra.mxu0 0
      %1681 = vmatpush.bf16.msra.mxu0 0
      %1682 = vmatpush.bf16.msra.mxu0 0
      %1683 = vmatpush.bf16.msra.mxu0 %v1655
      %1684 = vmatmul.bf16.gmra.mxu0 %v1649
      %v1685 = vpop.f32.mrf.mxu0
      %v1686 = vadd.f32 0.0, %v1685
      %v1687 = vpop.f32.mrf.mxu0
      %1688 = vdwg.mxu0
      %1689 = vmatpush.bf16.msra.mxu0 0
      %1690 = vmatpush.bf16.msra.mxu0 0
      %1691 = vmatpush.bf16.msra.mxu0 0
      %1692 = vmatpush.bf16.msra.mxu0 0
      %1693 = vmatpush.bf16.msra.mxu0 0
      %1694 = vmatpush.bf16.msra.mxu0 0
      %1695 = vmatpush.bf16.msra.mxu0 0
      %1696 = vmatpush.bf16.msra.mxu0 %v1658
      %1697 = vmatmul.bf16.gmra.mxu0 %v1649
      %v1698 = vpop.f32.mrf.mxu0
      %v1699 = vadd.f32 0.0, %v1698
      %v1700 = vpop.f32.mrf.mxu0
      %1701 = vdwg.mxu0
      %1702 = vmatpush.bf16.msra.mxu0 0
      %1703 = vmatpush.bf16.msra.mxu0 0
      %1704 = vmatpush.bf16.msra.mxu0 0
      %1705 = vmatpush.bf16.msra.mxu0 0
      %1706 = vmatpush.bf16.msra.mxu0 0
      %1707 = vmatpush.bf16.msra.mxu0 0
      %1708 = vmatpush.bf16.msra.mxu0 0
      %1709 = vmatpush.bf16.msra.mxu0 %v1661
      %1710 = vmatmul.bf16.gmra.mxu0 %v1649
      %v1711 = vpop.f32.mrf.mxu0
      %v1712 = vadd.f32 0.0, %v1711
      %v1713 = vpop.f32.mrf.mxu0
      %1714 = vdwg.mxu0
      %v1715 = vadd.f32 %v1627, %v1673
      %v1716 = vadd.f32 %v1628, %v1686
      %v1717 = vadd.f32 %v1629, %v1699
      %v1718 = vadd.f32 %v1630, %v1712
      %s1719 = scalar_lea.vmem %s2, 60
      %v1720 = vld [vmem:[%s1719] sm:$0xf]
      %1721 = vrot.lane.b32.xlu0 %v411, 8
      %v1722 = vpop.permute.xlu0 %1721
      %1723 = vrot.lane.b32.xlu0 %v413, 8
      %v1724 = vpop.permute.xlu0 %1723
      %1725 = vrot.lane.b32.xlu0 %v415, 8
      %v1726 = vpop.permute.xlu0 %1725
      %1727 = vrot.lane.b32.xlu0 %v417, 8
      %v1728 = vpop.permute.xlu0 %1727
      %1729 = vrot.lane.b32.xlu0 %v421, 8
      %v1730 = vpop.permute.xlu0 %1729
      %vm1731 = vcmask 64512
      %v1732 = vsel %vm1731, %v1722, %v1724
      %v1733 = vsel %vm1731, %v1724, %v1726
      %v1734 = vsel %vm1731, %v1726, %v1728
      %v1735 = vsel %vm1731, %v1728, %v1730
      %v1737 = vsel %vm443, %v1720, 0
      %v1740 = vsel %vm447, %v1732, 0
      %v1743 = vsel %vm447, %v1733, 0
      %v1746 = vsel %vm447, %v1734, 0
      %v1749 = vsel %vm447, %v1735, 0
      %1751 = vmatpush.bf16.msra.mxu0 0
      %1752 = vmatpush.bf16.msra.mxu0 0
      %1753 = vmatpush.bf16.msra.mxu0 0
      %1754 = vmatpush.bf16.msra.mxu0 0
      %1755 = vmatpush.bf16.msra.mxu0 0
      %1756 = vmatpush.bf16.msra.mxu0 0
      %1757 = vmatpush.bf16.msra.mxu0 0
      %1758 = vmatpush.bf16.msra.mxu0 %v1740
      %1759 = vmatmul.bf16.gmra.mxu0 %v1737
      %v1760 = vpop.f32.mrf.mxu0
      %v1761 = vadd.f32 0.0, %v1760
      %v1762 = vpop.f32.mrf.mxu0
      %1763 = vdwg.mxu0
      %1764 = vmatpush.bf16.msra.mxu0 0
      %1765 = vmatpush.bf16.msra.mxu0 0
      %1766 = vmatpush.bf16.msra.mxu0 0
      %1767 = vmatpush.bf16.msra.mxu0 0
      %1768 = vmatpush.bf16.msra.mxu0 0
      %1769 = vmatpush.bf16.msra.mxu0 0
      %1770 = vmatpush.bf16.msra.mxu0 0
      %1771 = vmatpush.bf16.msra.mxu0 %v1743
      %1772 = vmatmul.bf16.gmra.mxu0 %v1737
      %v1773 = vpop.f32.mrf.mxu0
      %v1774 = vadd.f32 0.0, %v1773
      %v1775 = vpop.f32.mrf.mxu0
      %1776 = vdwg.mxu0
      %1777 = vmatpush.bf16.msra.mxu0 0
      %1778 = vmatpush.bf16.msra.mxu0 0
      %1779 = vmatpush.bf16.msra.mxu0 0
      %1780 = vmatpush.bf16.msra.mxu0 0
      %1781 = vmatpush.bf16.msra.mxu0 0
      %1782 = vmatpush.bf16.msra.mxu0 0
      %1783 = vmatpush.bf16.msra.mxu0 0
      %1784 = vmatpush.bf16.msra.mxu0 %v1746
      %1785 = vmatmul.bf16.gmra.mxu0 %v1737
      %v1786 = vpop.f32.mrf.mxu0
      %v1787 = vadd.f32 0.0, %v1786
      %v1788 = vpop.f32.mrf.mxu0
      %1789 = vdwg.mxu0
      %1790 = vmatpush.bf16.msra.mxu0 0
      %1791 = vmatpush.bf16.msra.mxu0 0
      %1792 = vmatpush.bf16.msra.mxu0 0
      %1793 = vmatpush.bf16.msra.mxu0 0
      %1794 = vmatpush.bf16.msra.mxu0 0
      %1795 = vmatpush.bf16.msra.mxu0 0
      %1796 = vmatpush.bf16.msra.mxu0 0
      %1797 = vmatpush.bf16.msra.mxu0 %v1749
      %1798 = vmatmul.bf16.gmra.mxu0 %v1737
      %v1799 = vpop.f32.mrf.mxu0
      %v1800 = vadd.f32 0.0, %v1799
      %v1801 = vpop.f32.mrf.mxu0
      %1802 = vdwg.mxu0
      %v1803 = vadd.f32 %v1715, %v1761
      %v1804 = vadd.f32 %v1716, %v1774
      %v1805 = vadd.f32 %v1717, %v1787
      %v1806 = vadd.f32 %v1718, %v1800
      %s1807 = scalar_lea.vmem %s2, 64
      %v1808 = vld [vmem:[%s1807] sm:$0xf]
      %1809 = vrot.lane.b32.xlu0 %v411, 7
      %v1810 = vpop.permute.xlu0 %1809
      %1811 = vrot.lane.b32.xlu0 %v413, 7
      %v1812 = vpop.permute.xlu0 %1811
      %1813 = vrot.lane.b32.xlu0 %v415, 7
      %v1814 = vpop.permute.xlu0 %1813
      %1815 = vrot.lane.b32.xlu0 %v417, 7
      %v1816 = vpop.permute.xlu0 %1815
      %1817 = vrot.lane.b32.xlu0 %v421, 7
      %v1818 = vpop.permute.xlu0 %1817
      %vm1819 = vcmask 56320
      %v1820 = vsel %vm1819, %v1810, %v1812
      %v1821 = vsel %vm1819, %v1812, %v1814
      %v1822 = vsel %vm1819, %v1814, %v1816
      %v1823 = vsel %vm1819, %v1816, %v1818
      %v1825 = vsel %vm443, %v1808, 0
      %v1828 = vsel %vm447, %v1820, 0
      %v1831 = vsel %vm447, %v1821, 0
      %v1834 = vsel %vm447, %v1822, 0
      %v1837 = vsel %vm447, %v1823, 0
      %1839 = vmatpush.bf16.msra.mxu0 0
      %1840 = vmatpush.bf16.msra.mxu0 0
      %1841 = vmatpush.bf16.msra.mxu0 0
      %1842 = vmatpush.bf16.msra.mxu0 0
      %1843 = vmatpush.bf16.msra.mxu0 0
      %1844 = vmatpush.bf16.msra.mxu0 0
      %1845 = vmatpush.bf16.msra.mxu0 0
      %1846 = vmatpush.bf16.msra.mxu0 %v1828
      %1847 = vmatmul.bf16.gmra.mxu0 %v1825
      %v1848 = vpop.f32.mrf.mxu0
      %v1849 = vadd.f32 0.0, %v1848
      %v1850 = vpop.f32.mrf.mxu0
      %1851 = vdwg.mxu0
      %1852 = vmatpush.bf16.msra.mxu0 0
      %1853 = vmatpush.bf16.msra.mxu0 0
      %1854 = vmatpush.bf16.msra.mxu0 0
      %1855 = vmatpush.bf16.msra.mxu0 0
      %1856 = vmatpush.bf16.msra.mxu0 0
      %1857 = vmatpush.bf16.msra.mxu0 0
      %1858 = vmatpush.bf16.msra.mxu0 0
      %1859 = vmatpush.bf16.msra.mxu0 %v1831
      %1860 = vmatmul.bf16.gmra.mxu0 %v1825
      %v1861 = vpop.f32.mrf.mxu0
      %v1862 = vadd.f32 0.0, %v1861
      %v1863 = vpop.f32.mrf.mxu0
      %1864 = vdwg.mxu0
      %1865 = vmatpush.bf16.msra.mxu0 0
      %1866 = vmatpush.bf16.msra.mxu0 0
      %1867 = vmatpush.bf16.msra.mxu0 0
      %1868 = vmatpush.bf16.msra.mxu0 0
      %1869 = vmatpush.bf16.msra.mxu0 0
      %1870 = vmatpush.bf16.msra.mxu0 0
      %1871 = vmatpush.bf16.msra.mxu0 0
      %1872 = vmatpush.bf16.msra.mxu0 %v1834
      %1873 = vmatmul.bf16.gmra.mxu0 %v1825
      %v1874 = vpop.f32.mrf.mxu0
      %v1875 = vadd.f32 0.0, %v1874
      %v1876 = vpop.f32.mrf.mxu0
      %1877 = vdwg.mxu0
      %1878 = vmatpush.bf16.msra.mxu0 0
      %1879 = vmatpush.bf16.msra.mxu0 0
      %1880 = vmatpush.bf16.msra.mxu0 0
      %1881 = vmatpush.bf16.msra.mxu0 0
      %1882 = vmatpush.bf16.msra.mxu0 0
      %1883 = vmatpush.bf16.msra.mxu0 0
      %1884 = vmatpush.bf16.msra.mxu0 0
      %1885 = vmatpush.bf16.msra.mxu0 %v1837
      %1886 = vmatmul.bf16.gmra.mxu0 %v1825
      %v1887 = vpop.f32.mrf.mxu0
      %v1888 = vadd.f32 0.0, %v1887
      %v1889 = vpop.f32.mrf.mxu0
      %1890 = vdwg.mxu0
      %v1891 = vadd.f32 %v1803, %v1849
      %v1892 = vadd.f32 %v1804, %v1862
      %v1893 = vadd.f32 %v1805, %v1875
      %v1894 = vadd.f32 %v1806, %v1888
      %s1895 = scalar_lea.vmem %s2, 68
      %v1896 = vld [vmem:[%s1895] sm:$0xf]
      %1897 = vrot.lane.b32.xlu0 %v411, 6
      %v1898 = vpop.permute.xlu0 %1897
      %1899 = vrot.lane.b32.xlu0 %v413, 6
      %v1900 = vpop.permute.xlu0 %1899
      %1901 = vrot.lane.b32.xlu0 %v415, 6
      %v1902 = vpop.permute.xlu0 %1901
      %1903 = vrot.lane.b32.xlu0 %v417, 6
      %v1904 = vpop.permute.xlu0 %1903
      %1905 = vrot.lane.b32.xlu0 %v421, 6
      %v1906 = vpop.permute.xlu0 %1905
      %vm1907 = vcmask 48128
      %v1908 = vsel %vm1907, %v1898, %v1900
      %v1909 = vsel %vm1907, %v1900, %v1902
      %v1910 = vsel %vm1907, %v1902, %v1904
      %v1911 = vsel %vm1907, %v1904, %v1906
      %v1913 = vsel %vm443, %v1896, 0
      %v1916 = vsel %vm447, %v1908, 0
      %v1919 = vsel %vm447, %v1909, 0
      %v1922 = vsel %vm447, %v1910, 0
      %v1925 = vsel %vm447, %v1911, 0
      %1927 = vmatpush.bf16.msra.mxu0 0
      %1928 = vmatpush.bf16.msra.mxu0 0
      %1929 = vmatpush.bf16.msra.mxu0 0
      %1930 = vmatpush.bf16.msra.mxu0 0
      %1931 = vmatpush.bf16.msra.mxu0 0
      %1932 = vmatpush.bf16.msra.mxu0 0
      %1933 = vmatpush.bf16.msra.mxu0 0
      %1934 = vmatpush.bf16.msra.mxu0 %v1916
      %1935 = vmatmul.bf16.gmra.mxu0 %v1913
      %v1936 = vpop.f32.mrf.mxu0
      %v1937 = vadd.f32 0.0, %v1936
      %v1938 = vpop.f32.mrf.mxu0
      %1939 = vdwg.mxu0
      %1940 = vmatpush.bf16.msra.mxu0 0
      %1941 = vmatpush.bf16.msra.mxu0 0
      %1942 = vmatpush.bf16.msra.mxu0 0
      %1943 = vmatpush.bf16.msra.mxu0 0
      %1944 = vmatpush.bf16.msra.mxu0 0
      %1945 = vmatpush.bf16.msra.mxu0 0
      %1946 = vmatpush.bf16.msra.mxu0 0
      %1947 = vmatpush.bf16.msra.mxu0 %v1919
      %1948 = vmatmul.bf16.gmra.mxu0 %v1913
      %v1949 = vpop.f32.mrf.mxu0
      %v1950 = vadd.f32 0.0, %v1949
      %v1951 = vpop.f32.mrf.mxu0
      %1952 = vdwg.mxu0
      %1953 = vmatpush.bf16.msra.mxu0 0
      %1954 = vmatpush.bf16.msra.mxu0 0
      %1955 = vmatpush.bf16.msra.mxu0 0
      %1956 = vmatpush.bf16.msra.mxu0 0
      %1957 = vmatpush.bf16.msra.mxu0 0
      %1958 = vmatpush.bf16.msra.mxu0 0
      %1959 = vmatpush.bf16.msra.mxu0 0
      %1960 = vmatpush.bf16.msra.mxu0 %v1922
      %1961 = vmatmul.bf16.gmra.mxu0 %v1913
      %v1962 = vpop.f32.mrf.mxu0
      %v1963 = vadd.f32 0.0, %v1962
      %v1964 = vpop.f32.mrf.mxu0
      %1965 = vdwg.mxu0
      %1966 = vmatpush.bf16.msra.mxu0 0
      %1967 = vmatpush.bf16.msra.mxu0 0
      %1968 = vmatpush.bf16.msra.mxu0 0
      %1969 = vmatpush.bf16.msra.mxu0 0
      %1970 = vmatpush.bf16.msra.mxu0 0
      %1971 = vmatpush.bf16.msra.mxu0 0
      %1972 = vmatpush.bf16.msra.mxu0 0
      %1973 = vmatpush.bf16.msra.mxu0 %v1925
      %1974 = vmatmul.bf16.gmra.mxu0 %v1913
      %v1975 = vpop.f32.mrf.mxu0
      %v1976 = vadd.f32 0.0, %v1975
      %v1977 = vpop.f32.mrf.mxu0
      %1978 = vdwg.mxu0
      %v1979 = vadd.f32 %v1891, %v1937
      %v1980 = vadd.f32 %v1892, %v1950
      %v1981 = vadd.f32 %v1893, %v1963
      %v1982 = vadd.f32 %v1894, %v1976
      %s1983 = scalar_lea.vmem %s2, 72
      %v1984 = vld [vmem:[%s1983] sm:$0xf]
      %1985 = vrot.lane.b32.xlu0 %v413, 56
      %v1986 = vpop.permute.xlu0 %1985
      %1987 = vrot.lane.b32.xlu0 %v415, 56
      %v1988 = vpop.permute.xlu0 %1987
      %1989 = vrot.lane.b32.xlu0 %v417, 56
      %v1990 = vpop.permute.xlu0 %1989
      %1991 = vrot.lane.b32.xlu0 %v421, 56
      %v1992 = vpop.permute.xlu0 %1991
      %1993 = vrot.lane.b32.xlu0 %v423, 56
      %v1994 = vpop.permute.xlu0 %1993
      %vm1995 = vcmask 457728
      %v1996 = vsel %vm1995, %v1986, %v1988
      %v1997 = vsel %vm1995, %v1988, %v1990
      %v1998 = vsel %vm1995, %v1990, %v1992
      %v1999 = vsel %vm1995, %v1992, %v1994
      %v2001 = vsel %vm443, %v1984, 0
      %v2004 = vsel %vm447, %v1996, 0
      %v2007 = vsel %vm447, %v1997, 0
      %v2010 = vsel %vm447, %v1998, 0
      %v2013 = vsel %vm447, %v1999, 0
      %2015 = vmatpush.bf16.msra.mxu0 0
      %2016 = vmatpush.bf16.msra.mxu0 0
      %2017 = vmatpush.bf16.msra.mxu0 0
      %2018 = vmatpush.bf16.msra.mxu0 0
      %2019 = vmatpush.bf16.msra.mxu0 0
      %2020 = vmatpush.bf16.msra.mxu0 0
      %2021 = vmatpush.bf16.msra.mxu0 0
      %2022 = vmatpush.bf16.msra.mxu0 %v2004
      %2023 = vmatmul.bf16.gmra.mxu0 %v2001
      %v2024 = vpop.f32.mrf.mxu0
      %v2025 = vadd.f32 0.0, %v2024
      %v2026 = vpop.f32.mrf.mxu0
      %2027 = vdwg.mxu0
      %2028 = vmatpush.bf16.msra.mxu0 0
      %2029 = vmatpush.bf16.msra.mxu0 0
      %2030 = vmatpush.bf16.msra.mxu0 0
      %2031 = vmatpush.bf16.msra.mxu0 0
      %2032 = vmatpush.bf16.msra.mxu0 0
      %2033 = vmatpush.bf16.msra.mxu0 0
      %2034 = vmatpush.bf16.msra.mxu0 0
      %2035 = vmatpush.bf16.msra.mxu0 %v2007
      %2036 = vmatmul.bf16.gmra.mxu0 %v2001
      %v2037 = vpop.f32.mrf.mxu0
      %v2038 = vadd.f32 0.0, %v2037
      %v2039 = vpop.f32.mrf.mxu0
      %2040 = vdwg.mxu0
      %2041 = vmatpush.bf16.msra.mxu0 0
      %2042 = vmatpush.bf16.msra.mxu0 0
      %2043 = vmatpush.bf16.msra.mxu0 0
      %2044 = vmatpush.bf16.msra.mxu0 0
      %2045 = vmatpush.bf16.msra.mxu0 0
      %2046 = vmatpush.bf16.msra.mxu0 0
      %2047 = vmatpush.bf16.msra.mxu0 0
      %2048 = vmatpush.bf16.msra.mxu0 %v2010
      %2049 = vmatmul.bf16.gmra.mxu0 %v2001
      %v2050 = vpop.f32.mrf.mxu0
      %v2051 = vadd.f32 0.0, %v2050
      %v2052 = vpop.f32.mrf.mxu0
      %2053 = vdwg.mxu0
      %2054 = vmatpush.bf16.msra.mxu0 0
      %2055 = vmatpush.bf16.msra.mxu0 0
      %2056 = vmatpush.bf16.msra.mxu0 0
      %2057 = vmatpush.bf16.msra.mxu0 0
      %2058 = vmatpush.bf16.msra.mxu0 0
      %2059 = vmatpush.bf16.msra.mxu0 0
      %2060 = vmatpush.bf16.msra.mxu0 0
      %2061 = vmatpush.bf16.msra.mxu0 %v2013
      %2062 = vmatmul.bf16.gmra.mxu0 %v2001
      %v2063 = vpop.f32.mrf.mxu0
      %v2064 = vadd.f32 0.0, %v2063
      %v2065 = vpop.f32.mrf.mxu0
      %2066 = vdwg.mxu0
      %v2067 = vadd.f32 %v1979, %v2025
      %v2068 = vadd.f32 %v1980, %v2038
      %v2069 = vadd.f32 %v1981, %v2051
      %v2070 = vadd.f32 %v1982, %v2064
      %s2071 = scalar_lea.vmem %s2, 76
      %v2072 = vld [vmem:[%s2071] sm:$0xf]
      %2073 = vrot.lane.b32.xlu0 %v413, 55
      %v2074 = vpop.permute.xlu0 %2073
      %2075 = vrot.lane.b32.xlu0 %v415, 55
      %v2076 = vpop.permute.xlu0 %2075
      %2077 = vrot.lane.b32.xlu0 %v417, 55
      %v2078 = vpop.permute.xlu0 %2077
      %2079 = vrot.lane.b32.xlu0 %v421, 55
      %v2080 = vpop.permute.xlu0 %2079
      %2081 = vrot.lane.b32.xlu0 %v423, 55
      %v2082 = vpop.permute.xlu0 %2081
      %vm2083 = vcmask 449536
      %v2084 = vsel %vm2083, %v2074, %v2076
      %v2085 = vsel %vm2083, %v2076, %v2078
      %v2086 = vsel %vm2083, %v2078, %v2080
      %v2087 = vsel %vm2083, %v2080, %v2082
      %v2089 = vsel %vm443, %v2072, 0
      %v2092 = vsel %vm447, %v2084, 0
      %v2095 = vsel %vm447, %v2085, 0
      %v2098 = vsel %vm447, %v2086, 0
      %v2101 = vsel %vm447, %v2087, 0
      %2103 = vmatpush.bf16.msra.mxu0 0
      %2104 = vmatpush.bf16.msra.mxu0 0
      %2105 = vmatpush.bf16.msra.mxu0 0
      %2106 = vmatpush.bf16.msra.mxu0 0
      %2107 = vmatpush.bf16.msra.mxu0 0
      %2108 = vmatpush.bf16.msra.mxu0 0
      %2109 = vmatpush.bf16.msra.mxu0 0
      %2110 = vmatpush.bf16.msra.mxu0 %v2092
      %2111 = vmatmul.bf16.gmra.mxu0 %v2089
      %v2112 = vpop.f32.mrf.mxu0
      %v2113 = vadd.f32 0.0, %v2112
      %v2114 = vpop.f32.mrf.mxu0
      %2115 = vdwg.mxu0
      %2116 = vmatpush.bf16.msra.mxu0 0
      %2117 = vmatpush.bf16.msra.mxu0 0
      %2118 = vmatpush.bf16.msra.mxu0 0
      %2119 = vmatpush.bf16.msra.mxu0 0
      %2120 = vmatpush.bf16.msra.mxu0 0
      %2121 = vmatpush.bf16.msra.mxu0 0
      %2122 = vmatpush.bf16.msra.mxu0 0
      %2123 = vmatpush.bf16.msra.mxu0 %v2095
      %2124 = vmatmul.bf16.gmra.mxu0 %v2089
      %v2125 = vpop.f32.mrf.mxu0
      %v2126 = vadd.f32 0.0, %v2125
      %v2127 = vpop.f32.mrf.mxu0
      %2128 = vdwg.mxu0
      %2129 = vmatpush.bf16.msra.mxu0 0
      %2130 = vmatpush.bf16.msra.mxu0 0
      %2131 = vmatpush.bf16.msra.mxu0 0
      %2132 = vmatpush.bf16.msra.mxu0 0
      %2133 = vmatpush.bf16.msra.mxu0 0
      %2134 = vmatpush.bf16.msra.mxu0 0
      %2135 = vmatpush.bf16.msra.mxu0 0
      %2136 = vmatpush.bf16.msra.mxu0 %v2098
      %2137 = vmatmul.bf16.gmra.mxu0 %v2089
      %v2138 = vpop.f32.mrf.mxu0
      %v2139 = vadd.f32 0.0, %v2138
      %v2140 = vpop.f32.mrf.mxu0
      %2141 = vdwg.mxu0
      %2142 = vmatpush.bf16.msra.mxu0 0
      %2143 = vmatpush.bf16.msra.mxu0 0
      %2144 = vmatpush.bf16.msra.mxu0 0
      %2145 = vmatpush.bf16.msra.mxu0 0
      %2146 = vmatpush.bf16.msra.mxu0 0
      %2147 = vmatpush.bf16.msra.mxu0 0
      %2148 = vmatpush.bf16.msra.mxu0 0
      %2149 = vmatpush.bf16.msra.mxu0 %v2101
      %2150 = vmatmul.bf16.gmra.mxu0 %v2089
      %v2151 = vpop.f32.mrf.mxu0
      %v2152 = vadd.f32 0.0, %v2151
      %v2153 = vpop.f32.mrf.mxu0
      %2154 = vdwg.mxu0
      %v2155 = vadd.f32 %v2067, %v2113
      %v2156 = vadd.f32 %v2068, %v2126
      %v2157 = vadd.f32 %v2069, %v2139
      %v2158 = vadd.f32 %v2070, %v2152
      %s2159 = scalar_lea.vmem %s2, 80
      %v2160 = vld [vmem:[%s2159] sm:$0xf]
      %2161 = vrot.lane.b32.xlu0 %v413, 54
      %v2162 = vpop.permute.xlu0 %2161
      %2163 = vrot.lane.b32.xlu0 %v415, 54
      %v2164 = vpop.permute.xlu0 %2163
      %2165 = vrot.lane.b32.xlu0 %v417, 54
      %v2166 = vpop.permute.xlu0 %2165
      %2167 = vrot.lane.b32.xlu0 %v421, 54
      %v2168 = vpop.permute.xlu0 %2167
      %2169 = vrot.lane.b32.xlu0 %v423, 54
      %v2170 = vpop.permute.xlu0 %2169
      %vm2171 = vcmask 441344
      %v2172 = vsel %vm2171, %v2162, %v2164
      %v2173 = vsel %vm2171, %v2164, %v2166
      %v2174 = vsel %vm2171, %v2166, %v2168
      %v2175 = vsel %vm2171, %v2168, %v2170
      %v2177 = vsel %vm443, %v2160, 0
      %v2180 = vsel %vm447, %v2172, 0
      %v2183 = vsel %vm447, %v2173, 0
      %v2186 = vsel %vm447, %v2174, 0
      %v2189 = vsel %vm447, %v2175, 0
      %2191 = vmatpush.bf16.msra.mxu0 0
      %2192 = vmatpush.bf16.msra.mxu0 0
      %2193 = vmatpush.bf16.msra.mxu0 0
      %2194 = vmatpush.bf16.msra.mxu0 0
      %2195 = vmatpush.bf16.msra.mxu0 0
      %2196 = vmatpush.bf16.msra.mxu0 0
      %2197 = vmatpush.bf16.msra.mxu0 0
      %2198 = vmatpush.bf16.msra.mxu0 %v2180
      %2199 = vmatmul.bf16.gmra.mxu0 %v2177
      %v2200 = vpop.f32.mrf.mxu0
      %v2201 = vadd.f32 0.0, %v2200
      %v2202 = vpop.f32.mrf.mxu0
      %2203 = vdwg.mxu0
      %2204 = vmatpush.bf16.msra.mxu0 0
      %2205 = vmatpush.bf16.msra.mxu0 0
      %2206 = vmatpush.bf16.msra.mxu0 0
      %2207 = vmatpush.bf16.msra.mxu0 0
      %2208 = vmatpush.bf16.msra.mxu0 0
      %2209 = vmatpush.bf16.msra.mxu0 0
      %2210 = vmatpush.bf16.msra.mxu0 0
      %2211 = vmatpush.bf16.msra.mxu0 %v2183
      %2212 = vmatmul.bf16.gmra.mxu0 %v2177
      %v2213 = vpop.f32.mrf.mxu0
      %v2214 = vadd.f32 0.0, %v2213
      %v2215 = vpop.f32.mrf.mxu0
      %2216 = vdwg.mxu0
      %2217 = vmatpush.bf16.msra.mxu0 0
      %2218 = vmatpush.bf16.msra.mxu0 0
      %2219 = vmatpush.bf16.msra.mxu0 0
      %2220 = vmatpush.bf16.msra.mxu0 0
      %2221 = vmatpush.bf16.msra.mxu0 0
      %2222 = vmatpush.bf16.msra.mxu0 0
      %2223 = vmatpush.bf16.msra.mxu0 0
      %2224 = vmatpush.bf16.msra.mxu0 %v2186
      %2225 = vmatmul.bf16.gmra.mxu0 %v2177
      %v2226 = vpop.f32.mrf.mxu0
      %v2227 = vadd.f32 0.0, %v2226
      %v2228 = vpop.f32.mrf.mxu0
      %2229 = vdwg.mxu0
      %2230 = vmatpush.bf16.msra.mxu0 0
      %2231 = vmatpush.bf16.msra.mxu0 0
      %2232 = vmatpush.bf16.msra.mxu0 0
      %2233 = vmatpush.bf16.msra.mxu0 0
      %2234 = vmatpush.bf16.msra.mxu0 0
      %2235 = vmatpush.bf16.msra.mxu0 0
      %2236 = vmatpush.bf16.msra.mxu0 0
      %2237 = vmatpush.bf16.msra.mxu0 %v2189
      %2238 = vmatmul.bf16.gmra.mxu0 %v2177
      %v2239 = vpop.f32.mrf.mxu0
      %v2240 = vadd.f32 0.0, %v2239
      %v2241 = vpop.f32.mrf.mxu0
      %2242 = vdwg.mxu0
      %v2243 = vadd.f32 %v2155, %v2201
      %v2244 = vadd.f32 %v2156, %v2214
      %v2245 = vadd.f32 %v2157, %v2227
      %v2246 = vadd.f32 %v2158, %v2240
      %s2247 = scalar_lea.vmem %s2, 84
      %v2248 = vld [vmem:[%s2247] sm:$0xf]
      %2249 = vrot.lane.b32.xlu0 %v413, 46
      %v2250 = vpop.permute.xlu0 %2249
      %2251 = vrot.lane.b32.xlu0 %v415, 46
      %v2252 = vpop.permute.xlu0 %2251
      %2253 = vrot.lane.b32.xlu0 %v417, 46
      %v2254 = vpop.permute.xlu0 %2253
      %2255 = vrot.lane.b32.xlu0 %v421, 46
      %v2256 = vpop.permute.xlu0 %2255
      %2257 = vrot.lane.b32.xlu0 %v423, 46
      %v2258 = vpop.permute.xlu0 %2257
      %vm2259 = vcmask 375808
      %v2260 = vsel %vm2259, %v2250, %v2252
      %v2261 = vsel %vm2259, %v2252, %v2254
      %v2262 = vsel %vm2259, %v2254, %v2256
      %v2263 = vsel %vm2259, %v2256, %v2258
      %v2265 = vsel %vm443, %v2248, 0
      %v2268 = vsel %vm447, %v2260, 0
      %v2271 = vsel %vm447, %v2261, 0
      %v2274 = vsel %vm447, %v2262, 0
      %v2277 = vsel %vm447, %v2263, 0
      %2279 = vmatpush.bf16.msra.mxu0 0
      %2280 = vmatpush.bf16.msra.mxu0 0
      %2281 = vmatpush.bf16.msra.mxu0 0
      %2282 = vmatpush.bf16.msra.mxu0 0
      %2283 = vmatpush.bf16.msra.mxu0 0
      %2284 = vmatpush.bf16.msra.mxu0 0
      %2285 = vmatpush.bf16.msra.mxu0 0
      %2286 = vmatpush.bf16.msra.mxu0 %v2268
      %2287 = vmatmul.bf16.gmra.mxu0 %v2265
      %v2288 = vpop.f32.mrf.mxu0
      %v2289 = vadd.f32 0.0, %v2288
      %v2290 = vpop.f32.mrf.mxu0
      %2291 = vdwg.mxu0
      %2292 = vmatpush.bf16.msra.mxu0 0
      %2293 = vmatpush.bf16.msra.mxu0 0
      %2294 = vmatpush.bf16.msra.mxu0 0
      %2295 = vmatpush.bf16.msra.mxu0 0
      %2296 = vmatpush.bf16.msra.mxu0 0
      %2297 = vmatpush.bf16.msra.mxu0 0
      %2298 = vmatpush.bf16.msra.mxu0 0
      %2299 = vmatpush.bf16.msra.mxu0 %v2271
      %2300 = vmatmul.bf16.gmra.mxu0 %v2265
      %v2301 = vpop.f32.mrf.mxu0
      %v2302 = vadd.f32 0.0, %v2301
      %v2303 = vpop.f32.mrf.mxu0
      %2304 = vdwg.mxu0
      %2305 = vmatpush.bf16.msra.mxu0 0
      %2306 = vmatpush.bf16.msra.mxu0 0
      %2307 = vmatpush.bf16.msra.mxu0 0
      %2308 = vmatpush.bf16.msra.mxu0 0
      %2309 = vmatpush.bf16.msra.mxu0 0
      %2310 = vmatpush.bf16.msra.mxu0 0
      %2311 = vmatpush.bf16.msra.mxu0 0
      %2312 = vmatpush.bf16.msra.mxu0 %v2274
      %2313 = vmatmul.bf16.gmra.mxu0 %v2265
      %v2314 = vpop.f32.mrf.mxu0
      %v2315 = vadd.f32 0.0, %v2314
      %v2316 = vpop.f32.mrf.mxu0
      %2317 = vdwg.mxu0
      %2318 = vmatpush.bf16.msra.mxu0 0
      %2319 = vmatpush.bf16.msra.mxu0 0
      %2320 = vmatpush.bf16.msra.mxu0 0
      %2321 = vmatpush.bf16.msra.mxu0 0
      %2322 = vmatpush.bf16.msra.mxu0 0
      %2323 = vmatpush.bf16.msra.mxu0 0
      %2324 = vmatpush.bf16.msra.mxu0 0
      %2325 = vmatpush.bf16.msra.mxu0 %v2277
      %2326 = vmatmul.bf16.gmra.mxu0 %v2265
      %v2327 = vpop.f32.mrf.mxu0
      %v2328 = vadd.f32 0.0, %v2327
      %v2329 = vpop.f32.mrf.mxu0
      %2330 = vdwg.mxu0
      %v2331 = vadd.f32 %v2243, %v2289
      %v2332 = vadd.f32 %v2244, %v2302
      %v2333 = vadd.f32 %v2245, %v2315
      %v2334 = vadd.f32 %v2246, %v2328
      %s2335 = scalar_lea.vmem %s2, 88
      %v2336 = vld [vmem:[%s2335] sm:$0xf]
      %2337 = vrot.lane.b32.xlu0 %v413, 45
      %v2338 = vpop.permute.xlu0 %2337
      %2339 = vrot.lane.b32.xlu0 %v415, 45
      %v2340 = vpop.permute.xlu0 %2339
      %2341 = vrot.lane.b32.xlu0 %v417, 45
      %v2342 = vpop.permute.xlu0 %2341
      %2343 = vrot.lane.b32.xlu0 %v421, 45
      %v2344 = vpop.permute.xlu0 %2343
      %2345 = vrot.lane.b32.xlu0 %v423, 45
      %v2346 = vpop.permute.xlu0 %2345
      %vm2347 = vcmask 367616
      %v2348 = vsel %vm2347, %v2338, %v2340
      %v2349 = vsel %vm2347, %v2340, %v2342
      %v2350 = vsel %vm2347, %v2342, %v2344
      %v2351 = vsel %vm2347, %v2344, %v2346
      %v2353 = vsel %vm443, %v2336, 0
      %v2356 = vsel %vm447, %v2348, 0
      %v2359 = vsel %vm447, %v2349, 0
      %v2362 = vsel %vm447, %v2350, 0
      %v2365 = vsel %vm447, %v2351, 0
      %2367 = vmatpush.bf16.msra.mxu0 0
      %2368 = vmatpush.bf16.msra.mxu0 0
      %2369 = vmatpush.bf16.msra.mxu0 0
      %2370 = vmatpush.bf16.msra.mxu0 0
      %2371 = vmatpush.bf16.msra.mxu0 0
      %2372 = vmatpush.bf16.msra.mxu0 0
      %2373 = vmatpush.bf16.msra.mxu0 0
      %2374 = vmatpush.bf16.msra.mxu0 %v2356
      %2375 = vmatmul.bf16.gmra.mxu0 %v2353
      %v2376 = vpop.f32.mrf.mxu0
      %v2377 = vadd.f32 0.0, %v2376
      %v2378 = vpop.f32.mrf.mxu0
      %2379 = vdwg.mxu0
      %2380 = vmatpush.bf16.msra.mxu0 0
      %2381 = vmatpush.bf16.msra.mxu0 0
      %2382 = vmatpush.bf16.msra.mxu0 0
      %2383 = vmatpush.bf16.msra.mxu0 0
      %2384 = vmatpush.bf16.msra.mxu0 0
      %2385 = vmatpush.bf16.msra.mxu0 0
      %2386 = vmatpush.bf16.msra.mxu0 0
      %2387 = vmatpush.bf16.msra.mxu0 %v2359
      %2388 = vmatmul.bf16.gmra.mxu0 %v2353
      %v2389 = vpop.f32.mrf.mxu0
      %v2390 = vadd.f32 0.0, %v2389
      %v2391 = vpop.f32.mrf.mxu0
      %2392 = vdwg.mxu0
      %2393 = vmatpush.bf16.msra.mxu0 0
      %2394 = vmatpush.bf16.msra.mxu0 0
      %2395 = vmatpush.bf16.msra.mxu0 0
      %2396 = vmatpush.bf16.msra.mxu0 0
      %2397 = vmatpush.bf16.msra.mxu0 0
      %2398 = vmatpush.bf16.msra.mxu0 0
      %2399 = vmatpush.bf16.msra.mxu0 0
      %2400 = vmatpush.bf16.msra.mxu0 %v2362
      %2401 = vmatmul.bf16.gmra.mxu0 %v2353
      %v2402 = vpop.f32.mrf.mxu0
      %v2403 = vadd.f32 0.0, %v2402
      %v2404 = vpop.f32.mrf.mxu0
      %2405 = vdwg.mxu0
      %2406 = vmatpush.bf16.msra.mxu0 0
      %2407 = vmatpush.bf16.msra.mxu0 0
      %2408 = vmatpush.bf16.msra.mxu0 0
      %2409 = vmatpush.bf16.msra.mxu0 0
      %2410 = vmatpush.bf16.msra.mxu0 0
      %2411 = vmatpush.bf16.msra.mxu0 0
      %2412 = vmatpush.bf16.msra.mxu0 0
      %2413 = vmatpush.bf16.msra.mxu0 %v2365
      %2414 = vmatmul.bf16.gmra.mxu0 %v2353
      %v2415 = vpop.f32.mrf.mxu0
      %v2416 = vadd.f32 0.0, %v2415
      %v2417 = vpop.f32.mrf.mxu0
      %2418 = vdwg.mxu0
      %v2419 = vadd.f32 %v2331, %v2377
      %v2420 = vadd.f32 %v2332, %v2390
      %v2421 = vadd.f32 %v2333, %v2403
      %v2422 = vadd.f32 %v2334, %v2416
      %s2423 = scalar_lea.vmem %s2, 92
      %v2424 = vld [vmem:[%s2423] sm:$0xf]
      %2425 = vrot.lane.b32.xlu0 %v413, 44
      %v2426 = vpop.permute.xlu0 %2425
      %2427 = vrot.lane.b32.xlu0 %v415, 44
      %v2428 = vpop.permute.xlu0 %2427
      %2429 = vrot.lane.b32.xlu0 %v417, 44
      %v2430 = vpop.permute.xlu0 %2429
      %2431 = vrot.lane.b32.xlu0 %v421, 44
      %v2432 = vpop.permute.xlu0 %2431
      %2433 = vrot.lane.b32.xlu0 %v423, 44
      %v2434 = vpop.permute.xlu0 %2433
      %vm2435 = vcmask 359424
      %v2436 = vsel %vm2435, %v2426, %v2428
      %v2437 = vsel %vm2435, %v2428, %v2430
      %v2438 = vsel %vm2435, %v2430, %v2432
      %v2439 = vsel %vm2435, %v2432, %v2434
      %v2441 = vsel %vm443, %v2424, 0
      %v2444 = vsel %vm447, %v2436, 0
      %v2447 = vsel %vm447, %v2437, 0
      %v2450 = vsel %vm447, %v2438, 0
      %v2453 = vsel %vm447, %v2439, 0
      %2455 = vmatpush.bf16.msra.mxu0 0
      %2456 = vmatpush.bf16.msra.mxu0 0
      %2457 = vmatpush.bf16.msra.mxu0 0
      %2458 = vmatpush.bf16.msra.mxu0 0
      %2459 = vmatpush.bf16.msra.mxu0 0
      %2460 = vmatpush.bf16.msra.mxu0 0
      %2461 = vmatpush.bf16.msra.mxu0 0
      %2462 = vmatpush.bf16.msra.mxu0 %v2444
      %2463 = vmatmul.bf16.gmra.mxu0 %v2441
      %v2464 = vpop.f32.mrf.mxu0
      %v2465 = vadd.f32 0.0, %v2464
      %v2466 = vpop.f32.mrf.mxu0
      %2467 = vdwg.mxu0
      %2468 = vmatpush.bf16.msra.mxu0 0
      %2469 = vmatpush.bf16.msra.mxu0 0
      %2470 = vmatpush.bf16.msra.mxu0 0
      %2471 = vmatpush.bf16.msra.mxu0 0
      %2472 = vmatpush.bf16.msra.mxu0 0
      %2473 = vmatpush.bf16.msra.mxu0 0
      %2474 = vmatpush.bf16.msra.mxu0 0
      %2475 = vmatpush.bf16.msra.mxu0 %v2447
      %2476 = vmatmul.bf16.gmra.mxu0 %v2441
      %v2477 = vpop.f32.mrf.mxu0
      %v2478 = vadd.f32 0.0, %v2477
      %v2479 = vpop.f32.mrf.mxu0
      %2480 = vdwg.mxu0
      %2481 = vmatpush.bf16.msra.mxu0 0
      %2482 = vmatpush.bf16.msra.mxu0 0
      %2483 = vmatpush.bf16.msra.mxu0 0
      %2484 = vmatpush.bf16.msra.mxu0 0
      %2485 = vmatpush.bf16.msra.mxu0 0
      %2486 = vmatpush.bf16.msra.mxu0 0
      %2487 = vmatpush.bf16.msra.mxu0 0
      %2488 = vmatpush.bf16.msra.mxu0 %v2450
      %2489 = vmatmul.bf16.gmra.mxu0 %v2441
      %v2490 = vpop.f32.mrf.mxu0
      %v2491 = vadd.f32 0.0, %v2490
      %v2492 = vpop.f32.mrf.mxu0
      %2493 = vdwg.mxu0
      %2494 = vmatpush.bf16.msra.mxu0 0
      %2495 = vmatpush.bf16.msra.mxu0 0
      %2496 = vmatpush.bf16.msra.mxu0 0
      %2497 = vmatpush.bf16.msra.mxu0 0
      %2498 = vmatpush.bf16.msra.mxu0 0
      %2499 = vmatpush.bf16.msra.mxu0 0
      %2500 = vmatpush.bf16.msra.mxu0 0
      %2501 = vmatpush.bf16.msra.mxu0 %v2453
      %2502 = vmatmul.bf16.gmra.mxu0 %v2441
      %v2503 = vpop.f32.mrf.mxu0
      %v2504 = vadd.f32 0.0, %v2503
      %v2505 = vpop.f32.mrf.mxu0
      %2506 = vdwg.mxu0
      %v2507 = vadd.f32 %v2419, %v2465
      %v2508 = vadd.f32 %v2420, %v2478
      %v2509 = vadd.f32 %v2421, %v2491
      %v2510 = vadd.f32 %v2422, %v2504
      %s2511 = scalar_lea.vmem %s2, 96
      %v2512 = vld [vmem:[%s2511] sm:$0xf]
      %2513 = vrot.lane.b32.xlu0 %v413, 36
      %v2514 = vpop.permute.xlu0 %2513
      %2515 = vrot.lane.b32.xlu0 %v415, 36
      %v2516 = vpop.permute.xlu0 %2515
      %2517 = vrot.lane.b32.xlu0 %v417, 36
      %v2518 = vpop.permute.xlu0 %2517
      %2519 = vrot.lane.b32.xlu0 %v421, 36
      %v2520 = vpop.permute.xlu0 %2519
      %2521 = vrot.lane.b32.xlu0 %v423, 36
      %v2522 = vpop.permute.xlu0 %2521
      %vm2523 = vcmask 293888
      %v2524 = vsel %vm2523, %v2514, %v2516
      %v2525 = vsel %vm2523, %v2516, %v2518
      %v2526 = vsel %vm2523, %v2518, %v2520
      %v2527 = vsel %vm2523, %v2520, %v2522
      %v2529 = vsel %vm443, %v2512, 0
      %v2532 = vsel %vm447, %v2524, 0
      %v2535 = vsel %vm447, %v2525, 0
      %v2538 = vsel %vm447, %v2526, 0
      %v2541 = vsel %vm447, %v2527, 0
      %2543 = vmatpush.bf16.msra.mxu0 0
      %2544 = vmatpush.bf16.msra.mxu0 0
      %2545 = vmatpush.bf16.msra.mxu0 0
      %2546 = vmatpush.bf16.msra.mxu0 0
      %2547 = vmatpush.bf16.msra.mxu0 0
      %2548 = vmatpush.bf16.msra.mxu0 0
      %2549 = vmatpush.bf16.msra.mxu0 0
      %2550 = vmatpush.bf16.msra.mxu0 %v2532
      %2551 = vmatmul.bf16.gmra.mxu0 %v2529
      %v2552 = vpop.f32.mrf.mxu0
      %v2553 = vadd.f32 0.0, %v2552
      %v2554 = vpop.f32.mrf.mxu0
      %2555 = vdwg.mxu0
      %2556 = vmatpush.bf16.msra.mxu0 0
      %2557 = vmatpush.bf16.msra.mxu0 0
      %2558 = vmatpush.bf16.msra.mxu0 0
      %2559 = vmatpush.bf16.msra.mxu0 0
      %2560 = vmatpush.bf16.msra.mxu0 0
      %2561 = vmatpush.bf16.msra.mxu0 0
      %2562 = vmatpush.bf16.msra.mxu0 0
      %2563 = vmatpush.bf16.msra.mxu0 %v2535
      %2564 = vmatmul.bf16.gmra.mxu0 %v2529
      %v2565 = vpop.f32.mrf.mxu0
      %v2566 = vadd.f32 0.0, %v2565
      %v2567 = vpop.f32.mrf.mxu0
      %2568 = vdwg.mxu0
      %2569 = vmatpush.bf16.msra.mxu0 0
      %2570 = vmatpush.bf16.msra.mxu0 0
      %2571 = vmatpush.bf16.msra.mxu0 0
      %2572 = vmatpush.bf16.msra.mxu0 0
      %2573 = vmatpush.bf16.msra.mxu0 0
      %2574 = vmatpush.bf16.msra.mxu0 0
      %2575 = vmatpush.bf16.msra.mxu0 0
      %2576 = vmatpush.bf16.msra.mxu0 %v2538
      %2577 = vmatmul.bf16.gmra.mxu0 %v2529
      %v2578 = vpop.f32.mrf.mxu0
      %v2579 = vadd.f32 0.0, %v2578
      %v2580 = vpop.f32.mrf.mxu0
      %2581 = vdwg.mxu0
      %2582 = vmatpush.bf16.msra.mxu0 0
      %2583 = vmatpush.bf16.msra.mxu0 0
      %2584 = vmatpush.bf16.msra.mxu0 0
      %2585 = vmatpush.bf16.msra.mxu0 0
      %2586 = vmatpush.bf16.msra.mxu0 0
      %2587 = vmatpush.bf16.msra.mxu0 0
      %2588 = vmatpush.bf16.msra.mxu0 0
      %2589 = vmatpush.bf16.msra.mxu0 %v2541
      %2590 = vmatmul.bf16.gmra.mxu0 %v2529
      %v2591 = vpop.f32.mrf.mxu0
      %v2592 = vadd.f32 0.0, %v2591
      %v2593 = vpop.f32.mrf.mxu0
      %2594 = vdwg.mxu0
      %v2595 = vadd.f32 %v2507, %v2553
      %v2596 = vadd.f32 %v2508, %v2566
      %v2597 = vadd.f32 %v2509, %v2579
      %v2598 = vadd.f32 %v2510, %v2592
      %s2599 = scalar_lea.vmem %s2, 100
      %v2600 = vld [vmem:[%s2599] sm:$0xf]
      %2601 = vrot.lane.b32.xlu0 %v413, 35
      %v2602 = vpop.permute.xlu0 %2601
      %2603 = vrot.lane.b32.xlu0 %v415, 35
      %v2604 = vpop.permute.xlu0 %2603
      %2605 = vrot.lane.b32.xlu0 %v417, 35
      %v2606 = vpop.permute.xlu0 %2605
      %2607 = vrot.lane.b32.xlu0 %v421, 35
      %v2608 = vpop.permute.xlu0 %2607
      %2609 = vrot.lane.b32.xlu0 %v423, 35
      %v2610 = vpop.permute.xlu0 %2609
      %vm2611 = vcmask 285696
      %v2612 = vsel %vm2611, %v2602, %v2604
      %v2613 = vsel %vm2611, %v2604, %v2606
      %v2614 = vsel %vm2611, %v2606, %v2608
      %v2615 = vsel %vm2611, %v2608, %v2610
      %v2617 = vsel %vm443, %v2600, 0
      %v2620 = vsel %vm447, %v2612, 0
      %v2623 = vsel %vm447, %v2613, 0
      %v2626 = vsel %vm447, %v2614, 0
      %v2629 = vsel %vm447, %v2615, 0
      %2631 = vmatpush.bf16.msra.mxu0 0
      %2632 = vmatpush.bf16.msra.mxu0 0
      %2633 = vmatpush.bf16.msra.mxu0 0
      %2634 = vmatpush.bf16.msra.mxu0 0
      %2635 = vmatpush.bf16.msra.mxu0 0
      %2636 = vmatpush.bf16.msra.mxu0 0
      %2637 = vmatpush.bf16.msra.mxu0 0
      %2638 = vmatpush.bf16.msra.mxu0 %v2620
      %2639 = vmatmul.bf16.gmra.mxu0 %v2617
      %v2640 = vpop.f32.mrf.mxu0
      %v2641 = vadd.f32 0.0, %v2640
      %v2642 = vpop.f32.mrf.mxu0
      %2643 = vdwg.mxu0
      %2644 = vmatpush.bf16.msra.mxu0 0
      %2645 = vmatpush.bf16.msra.mxu0 0
      %2646 = vmatpush.bf16.msra.mxu0 0
      %2647 = vmatpush.bf16.msra.mxu0 0
      %2648 = vmatpush.bf16.msra.mxu0 0
      %2649 = vmatpush.bf16.msra.mxu0 0
      %2650 = vmatpush.bf16.msra.mxu0 0
      %2651 = vmatpush.bf16.msra.mxu0 %v2623
      %2652 = vmatmul.bf16.gmra.mxu0 %v2617
      %v2653 = vpop.f32.mrf.mxu0
      %v2654 = vadd.f32 0.0, %v2653
      %v2655 = vpop.f32.mrf.mxu0
      %2656 = vdwg.mxu0
      %2657 = vmatpush.bf16.msra.mxu0 0
      %2658 = vmatpush.bf16.msra.mxu0 0
      %2659 = vmatpush.bf16.msra.mxu0 0
      %2660 = vmatpush.bf16.msra.mxu0 0
      %2661 = vmatpush.bf16.msra.mxu0 0
      %2662 = vmatpush.bf16.msra.mxu0 0
      %2663 = vmatpush.bf16.msra.mxu0 0
      %2664 = vmatpush.bf16.msra.mxu0 %v2626
      %2665 = vmatmul.bf16.gmra.mxu0 %v2617
      %v2666 = vpop.f32.mrf.mxu0
      %v2667 = vadd.f32 0.0, %v2666
      %v2668 = vpop.f32.mrf.mxu0
      %2669 = vdwg.mxu0
      %2670 = vmatpush.bf16.msra.mxu0 0
      %2671 = vmatpush.bf16.msra.mxu0 0
      %2672 = vmatpush.bf16.msra.mxu0 0
      %2673 = vmatpush.bf16.msra.mxu0 0
      %2674 = vmatpush.bf16.msra.mxu0 0
      %2675 = vmatpush.bf16.msra.mxu0 0
      %2676 = vmatpush.bf16.msra.mxu0 0
      %2677 = vmatpush.bf16.msra.mxu0 %v2629
      %2678 = vmatmul.bf16.gmra.mxu0 %v2617
      %v2679 = vpop.f32.mrf.mxu0
      %v2680 = vadd.f32 0.0, %v2679
      %v2681 = vpop.f32.mrf.mxu0
      %2682 = vdwg.mxu0
      %v2683 = vadd.f32 %v2595, %v2641
      %v2684 = vadd.f32 %v2596, %v2654
      %v2685 = vadd.f32 %v2597, %v2667
      %v2686 = vadd.f32 %v2598, %v2680
      %s2687 = scalar_lea.vmem %s2, 104
      %v2688 = vld [vmem:[%s2687] sm:$0xf]
      %2689 = vrot.lane.b32.xlu0 %v413, 34
      %v2690 = vpop.permute.xlu0 %2689
      %2691 = vrot.lane.b32.xlu0 %v415, 34
      %v2692 = vpop.permute.xlu0 %2691
      %2693 = vrot.lane.b32.xlu0 %v417, 34
      %v2694 = vpop.permute.xlu0 %2693
      %2695 = vrot.lane.b32.xlu0 %v421, 34
      %v2696 = vpop.permute.xlu0 %2695
      %2697 = vrot.lane.b32.xlu0 %v423, 34
      %v2698 = vpop.permute.xlu0 %2697
      %vm2699 = vcmask 277504
      %v2700 = vsel %vm2699, %v2690, %v2692
      %v2701 = vsel %vm2699, %v2692, %v2694
      %v2702 = vsel %vm2699, %v2694, %v2696
      %v2703 = vsel %vm2699, %v2696, %v2698
      %v2705 = vsel %vm443, %v2688, 0
      %v2708 = vsel %vm447, %v2700, 0
      %v2711 = vsel %vm447, %v2701, 0
      %v2714 = vsel %vm447, %v2702, 0
      %v2717 = vsel %vm447, %v2703, 0
      %2719 = vmatpush.bf16.msra.mxu0 0
      %2720 = vmatpush.bf16.msra.mxu0 0
      %2721 = vmatpush.bf16.msra.mxu0 0
      %2722 = vmatpush.bf16.msra.mxu0 0
      %2723 = vmatpush.bf16.msra.mxu0 0
      %2724 = vmatpush.bf16.msra.mxu0 0
      %2725 = vmatpush.bf16.msra.mxu0 0
      %2726 = vmatpush.bf16.msra.mxu0 %v2708
      %2727 = vmatmul.bf16.gmra.mxu0 %v2705
      %v2728 = vpop.f32.mrf.mxu0
      %v2729 = vadd.f32 0.0, %v2728
      %v2730 = vpop.f32.mrf.mxu0
      %2731 = vdwg.mxu0
      %2732 = vmatpush.bf16.msra.mxu0 0
      %2733 = vmatpush.bf16.msra.mxu0 0
      %2734 = vmatpush.bf16.msra.mxu0 0
      %2735 = vmatpush.bf16.msra.mxu0 0
      %2736 = vmatpush.bf16.msra.mxu0 0
      %2737 = vmatpush.bf16.msra.mxu0 0
      %2738 = vmatpush.bf16.msra.mxu0 0
      %2739 = vmatpush.bf16.msra.mxu0 %v2711
      %2740 = vmatmul.bf16.gmra.mxu0 %v2705
      %v2741 = vpop.f32.mrf.mxu0
      %v2742 = vadd.f32 0.0, %v2741
      %v2743 = vpop.f32.mrf.mxu0
      %2744 = vdwg.mxu0
      %2745 = vmatpush.bf16.msra.mxu0 0
      %2746 = vmatpush.bf16.msra.mxu0 0
      %2747 = vmatpush.bf16.msra.mxu0 0
      %2748 = vmatpush.bf16.msra.mxu0 0
      %2749 = vmatpush.bf16.msra.mxu0 0
      %2750 = vmatpush.bf16.msra.mxu0 0
      %2751 = vmatpush.bf16.msra.mxu0 0
      %2752 = vmatpush.bf16.msra.mxu0 %v2714
      %2753 = vmatmul.bf16.gmra.mxu0 %v2705
      %v2754 = vpop.f32.mrf.mxu0
      %v2755 = vadd.f32 0.0, %v2754
      %v2756 = vpop.f32.mrf.mxu0
      %2757 = vdwg.mxu0
      %2758 = vmatpush.bf16.msra.mxu0 0
      %2759 = vmatpush.bf16.msra.mxu0 0
      %2760 = vmatpush.bf16.msra.mxu0 0
      %2761 = vmatpush.bf16.msra.mxu0 0
      %2762 = vmatpush.bf16.msra.mxu0 0
      %2763 = vmatpush.bf16.msra.mxu0 0
      %2764 = vmatpush.bf16.msra.mxu0 0
      %2765 = vmatpush.bf16.msra.mxu0 %v2717
      %2766 = vmatmul.bf16.gmra.mxu0 %v2705
      %v2767 = vpop.f32.mrf.mxu0
      %v2768 = vadd.f32 0.0, %v2767
      %v2769 = vpop.f32.mrf.mxu0
      %2770 = vdwg.mxu0
      %v2771 = vadd.f32 %v2683, %v2729
      %v2772 = vadd.f32 %v2684, %v2742
      %v2773 = vadd.f32 %v2685, %v2755
      %v2774 = vadd.f32 %v2686, %v2768
      %v2775 = vld [vmem:[%s3] sm:$0xff]
      %2777 = vset.pattern.permute.xlu0 0
      %2778 = vperm.xlu0 %2777, %v2775
      %v2779 = vpop.permute.xlu0 %2778
      %v2781 = vadd.f32 %v2771, %v2779
      %v2782 = vadd.f32 %v2772, %v2779
      %v2783 = vadd.f32 %v2773, %v2779
      %v2784 = vadd.f32 %v2774, %v2779
      %v2785 = vmax.f32 %v2781, 0.0
      %v2786 = vmax.f32 %v2782, 0.0
      %v2787 = vmax.f32 %v2783, 0.0
      %v2788 = vmax.f32 %v2784, 0.0
      %v2789 = vld [vmem:[%s395] sm:$0xff]
      %2791 = vset.pattern.permute.xlu0 0
      %2792 = vperm.xlu0 %2791, %v2789
      %v2793 = vpop.permute.xlu0 %2792
      %v2795 = vmul.f32 %v2793, %v2785
      %v2796 = vmul.f32 %v2793, %v2786
      %v2797 = vmul.f32 %v2793, %v2787
      %v2798 = vmul.f32 %v2793, %v2788
      %2799 = vset.pattern.permute.xlu0 1
      %2800 = vperm.xlu0 %2799, %v2789
      %v2801 = vpop.permute.xlu0 %2800
      %v2803 = vadd.f32 %v2795, %v2801
      %v2804 = vadd.f32 %v2796, %v2801
      %v2805 = vadd.f32 %v2797, %v2801
      %v2806 = vadd.f32 %v2798, %v2801
      %v2807 = vld [vmem:[%s4] sm:$0xf]
      %v2808 = vld [vmem:[%s5] sm:$0xff]
      %2810 = vset.pattern.permute.xlu0 0
      %2811 = vperm.xlu0 %2810, %v2808
      %v2812 = vpop.permute.xlu0 %2811
      %v2815 = vsel %vm443, %v2807, 0
      %2817 = vmatpush.bf16.msra.mxu0 0
      %2818 = vmatpush.bf16.msra.mxu0 0
      %2819 = vmatpush.bf16.msra.mxu0 0
      %2820 = vmatpush.bf16.msra.mxu0 0
      %2821 = vmatpush.bf16.msra.mxu0 0
      %2822 = vmatpush.bf16.msra.mxu0 0
      %2823 = vmatpush.bf16.msra.mxu0 0
      %2824 = vmatpush.bf16.msra.mxu0 %v1564
      %2825 = vmatmul.bf16.gmra.mxu0 %v2815
      %v2826 = vpop.f32.mrf.mxu0
      %v2827 = vadd.f32 %v2812, %v2826
      %v2828 = vpop.f32.mrf.mxu0
      %2829 = vdwg.mxu0
      %2830 = vmatpush.bf16.msra.mxu0 0
      %2831 = vmatpush.bf16.msra.mxu0 0
      %2832 = vmatpush.bf16.msra.mxu0 0
      %2833 = vmatpush.bf16.msra.mxu0 0
      %2834 = vmatpush.bf16.msra.mxu0 0
      %2835 = vmatpush.bf16.msra.mxu0 0
      %2836 = vmatpush.bf16.msra.mxu0 0
      %2837 = vmatpush.bf16.msra.mxu0 %v1567
      %2838 = vmatmul.bf16.gmra.mxu0 %v2815
      %v2839 = vpop.f32.mrf.mxu0
      %v2840 = vadd.f32 %v2812, %v2839
      %v2841 = vpop.f32.mrf.mxu0
      %2842 = vdwg.mxu0
      %2843 = vmatpush.bf16.msra.mxu0 0
      %2844 = vmatpush.bf16.msra.mxu0 0
      %2845 = vmatpush.bf16.msra.mxu0 0
      %2846 = vmatpush.bf16.msra.mxu0 0
      %2847 = vmatpush.bf16.msra.mxu0 0
      %2848 = vmatpush.bf16.msra.mxu0 0
      %2849 = vmatpush.bf16.msra.mxu0 0
      %2850 = vmatpush.bf16.msra.mxu0 %v1570
      %2851 = vmatmul.bf16.gmra.mxu0 %v2815
      %v2852 = vpop.f32.mrf.mxu0
      %v2853 = vadd.f32 %v2812, %v2852
      %v2854 = vpop.f32.mrf.mxu0
      %2855 = vdwg.mxu0
      %2856 = vmatpush.bf16.msra.mxu0 0
      %2857 = vmatpush.bf16.msra.mxu0 0
      %2858 = vmatpush.bf16.msra.mxu0 0
      %2859 = vmatpush.bf16.msra.mxu0 0
      %2860 = vmatpush.bf16.msra.mxu0 0
      %2861 = vmatpush.bf16.msra.mxu0 0
      %2862 = vmatpush.bf16.msra.mxu0 0
      %2863 = vmatpush.bf16.msra.mxu0 %v1573
      %2864 = vmatmul.bf16.gmra.mxu0 %v2815
      %v2865 = vpop.f32.mrf.mxu0
      %v2866 = vadd.f32 %v2812, %v2865
      %v2867 = vpop.f32.mrf.mxu0
      %2868 = vdwg.mxu0
      %v2869 = vmax.f32 %v2827, 0.0
      %v2870 = vmax.f32 %v2840, 0.0
      %v2871 = vmax.f32 %v2853, 0.0
      %v2872 = vmax.f32 %v2866, 0.0
      %2873 = vset.pattern.permute.xlu0 2
      %2874 = vperm.xlu0 %2873, %v2789
      %v2875 = vpop.permute.xlu0 %2874
      %v2877 = vmul.f32 %v2875, %v2869
      %v2878 = vmul.f32 %v2875, %v2870
      %v2879 = vmul.f32 %v2875, %v2871
      %v2880 = vmul.f32 %v2875, %v2872
      %v2881 = vadd.f32 %v2803, %v2877
      %v2882 = vadd.f32 %v2804, %v2878
      %v2883 = vadd.f32 %v2805, %v2879
      %v2884 = vadd.f32 %v2806, %v2880
      %2885 = vset.pattern.permute.xlu0 3
      %2886 = vperm.xlu0 %2885, %v2789
      %v2887 = vpop.permute.xlu0 %2886
      %v2889 = vadd.f32 %v2881, %v2887
      %v2890 = vadd.f32 %v2882, %v2887
      %v2891 = vadd.f32 %v2883, %v2887
      %v2892 = vadd.f32 %v2884, %v2887
      %2893 = vst [vmem:[%s404] sm:$0xff] %v2889
      %2894 = vst [vmem:[%s404 + $0x8] sm:$0xff] %v2890
      %2895 = vst [vmem:[%s404 + $0x10] sm:$0xff] %v2891
      %2896 = vst [vmem:[%s404 + $0x18] sm:$0xff] %v2892
      %s2897 = smul.u32 4, %s23
      %p2898 = scmp.lt.s32.totalorder %s22, 1
      %s2899 = scalar_select %p2898, %s22, 1
      %p2900 = scmp.lt.s32.totalorder %s2897, 7
      %s2901 = scalar_select %p2900, %s2897, 7
      %s2902 = smul.addr %s2899, 8
      %s2903 = sadd.s32 %s2901, %s2902
      %s2904 = smul.addr %s2903, 8
      %s2905 = scalar_lea.vmem %s7, %s2904
      // Predicated region
      $region49: #{res_se_norm_conv3d.3} parent=47 // pred_check
        %p2906 = pneg %p226
      $region50: #{res_se_norm_conv3d.3} parent=47 // pred_check_branch
        %2908 = sbr.rel (%p2906) target = $region52
      $region51: #{res_se_norm_conv3d.3} parent=47 // pred_region
        %s2909 = smul.u32 4, %s23
      $region52: #{res_se_norm_conv3d.3} parent=47 // pred_fallthru
        _
    $region48: #{res_se_norm_conv3d.3} parent=5 // pred_fallthru
      _
    %p2910 = scmp.le.s32.totalorder 2, %s13
    // Predicated region
    $region53: #{res_se_norm_conv3d.3} parent=5 // pred_check
      %p2911 = pneg %p2910
    $region54: #{res_se_norm_conv3d.3} parent=5 // pred_check_branch
      %2913 = sbr.rel (%p2911) target = $region56
    $region55: #{res_se_norm_conv3d.3} parent=5 // pred_region
      %s2914 = ssub.s32 %s13, 2
      // Predicated region
      $region57: #{res_se_norm_conv3d.3} parent=55 // pred_check
        %p2915 = pneg %p232
      $region58: #{res_se_norm_conv3d.3} parent=55 // pred_check_branch
        %2917 = sbr.rel (%p2915) target = $region60
      $region59: #{res_se_norm_conv3d.3} parent=55 // pred_region
        %s2918 = smul.u32 4, %s25
        %p2919 = scmp.lt.s32.totalorder %s24, 1
        %s2920 = scalar_select %p2919, %s24, 1
        %p2921 = scmp.lt.s32.totalorder %s2918, 7
        %s2922 = scalar_select %p2921, %s2918, 7
        %s2923 = smul.addr %s2920, 8
        %s2924 = sadd.s32 %s2922, %s2923
        %s2925 = smul.addr %s2924, 8
        %s2926 = scalar_lea.vmem %s7, %s2925
      $region60: #{res_se_norm_conv3d.3} parent=55 // pred_fallthru
        _
    $region56: #{res_se_norm_conv3d.3} parent=5 // pred_fallthru
      _
  $region6: #{res_se_norm_conv3d.3} parent=0 // loop_footer
    %s17 = sadd.s32 1, %s13
  $region7: #{res_se_norm_conv3d.3} parent=0 // loop_footer_branch
    %12 = sbr.rel target = $region3
  $region8: #{res_se_norm_conv3d.3} parent=0 // loop_exit
    _

</llo_original>
